<compile_context>
chip_gen: v6e
topology: v6e:2x2x1
jax: 0.10.0
libtpu: 0.0.40
codegen_flags: <defaults>
</compile_context>

<pallas_src>
import math

import jax
import jax.numpy as jnp
from jax.experimental import pallas as pl
from jax.experimental.pallas import tpu as pltpu


# ---------------------------------------------------------------------------
# packed per-layer vector-parameter slab row layout  (shape (L, 15, D))
# ---------------------------------------------------------------------------
R_SA_QB, R_SA_KB, R_SA_VB, R_SA_OB = 0, 1, 2, 3      # self-attn q/k/v/out biases
R_CA_QB, R_CA_KB, R_CA_VB, R_CA_OB = 4, 5, 6, 7      # cross-attn q/k/v/out biases
R_FC2_B = 8                                          # fc2 bias
R_SA_LN_G, R_SA_LN_B = 9, 10                         # self_attn_layer_norm
R_CA_LN_G, R_CA_LN_B = 11, 12                        # encoder_attn_layer_norm
R_FFN_LN_G, R_FFN_LN_B = 13, 14                      # final_layer_norm (per layer)
NUM_VEC_ROWS = 15


def make_decoder_kernel(num_layers: int, num_heads: int):
    """Returns a Pallas kernel processing Bb batch elements per grid step."""

    def kernel(x_ref, mem_ref, amask_ref, xpad_ref, mpad_ref,
               sa_qkv_w_ref, sa_out_w_ref,
               ca_q_w_ref, ca_kv_w_ref, ca_out_w_ref,
               fc1_w_ref, fc2_w_ref,
               vec_ref, fc1_b_ref, final_ln_ref,
               out_ref):
        Bb, T, D = x_ref.shape
        S = mem_ref.shape[1]
        hd = D // num_heads
        scale = 1.0 / math.sqrt(hd)
        N = Bb * T
        M = Bb * S

        # compact masks -> additive biases built in-kernel (no (B,T,T) DMA)
        amask = amask_ref[...]                      # (T, T)   additive, f32
        xpad = xpad_ref[...]                        # (Bb,1,T) additive, f32
        mpad = mpad_ref[...]                        # (Bb,1,S) additive, f32
        sa_bias = amask + xpad                      # (Bb, T, T) — hoisted
        ca_bias = mpad                              # (Bb, 1, S) — broadcasts

        xf = x_ref[...].reshape(N, D)               # (N, D) f32, row-flattened
        memf = mem_ref[...].reshape(M, D)           # (M, D) f32
        mem_bf = memf.astype(jnp.bfloat16)          # hoisted bf16 cast

        def layer_norm(h, g, b):
            mu = jnp.mean(h, axis=-1, keepdims=True)
            var = jnp.mean((h - mu) ** 2, axis=-1, keepdims=True)
            return (h - mu) * jax.lax.rsqrt(var + 1e-5) * g + b

        def softmax(s):
            s = s - jnp.max(s, axis=-1, keepdims=True)
            e = jnp.exp(s)
            return e * pl.reciprocal(jnp.sum(e, axis=-1, keepdims=True),
                                     approx=True)

        def mha(q, k, v, bias, w_out):
            # q: (Bb*Tq, D) f32, k/v: (Bb*Tk, D) f32, w_out: (D, D) bf16.
            # Per-head loop, but each MXU call is batched over Bb and the head
            # concat is folded into the output projection (accumulate (N, D)).
            Tq = q.shape[0] // Bb
            Tk = k.shape[0] // Bb
            q3 = q.astype(jnp.bfloat16).reshape(Bb, Tq, D)
            k3 = k.astype(jnp.bfloat16).reshape(Bb, Tk, D)
            v3 = v.astype(jnp.bfloat16).reshape(Bb, Tk, D)
            acc = jnp.zeros((Bb * Tq, D), jnp.float32)
            for h_i in range(num_heads):
                sl = slice(h_i * hd, (h_i + 1) * hd)
                s = jnp.einsum('bqd,bkd->bqk', q3[:, :, sl], k3[:, :, sl],
                               preferred_element_type=jnp.float32)
                p = softmax(s + bias)                       # f32 scores + bias
                ctx = jnp.einsum('bqk,bkd->bqd', p.astype(jnp.bfloat16),
                                 v3[:, :, sl],
                                 preferred_element_type=jnp.float32)
                acc = acc + jnp.dot(
                    ctx.reshape(Bb * Tq, hd).astype(jnp.bfloat16),
                    w_out[sl, :], preferred_element_type=jnp.float32)
            return acc                                      # (N, D) f32

        x = xf
        # static unroll: L is small here.
        # TODO(synk): for L >> 4 use lax.fori_loop / a layer grid axis to keep
        # vreg live ranges and code size bounded.
        for l in range(num_layers):
            vec = vec_ref[l]                                # (NUM_VEC_ROWS, D)

            def row(i, _vec=vec):
                return _vec[i:i + 1, :]                     # (1, D)

            # ---------------- self attention (pre-norm) ----------------
            res = x
            h = layer_norm(x, row(R_SA_LN_G), row(R_SA_LN_B))
            qkv = jnp.dot(h.astype(jnp.bfloat16), sa_qkv_w_ref[l],
                          preferred_element_type=jnp.float32)      # (N, 3D)
            q = (qkv[:, 0:D] + row(R_SA_QB)) * scale
            k = qkv[:, D:2 * D] + row(R_SA_KB)
            v = qkv[:, 2 * D:3 * D] + row(R_SA_VB)
            a = mha(q, k, v, sa_bias, sa_out_w_ref[l])
            x = res + a + row(R_SA_OB)

            # ---------------- encoder (cross) attention ----------------
            res = x
            h = layer_norm(x, row(R_CA_LN_G), row(R_CA_LN_B))
            q = (jnp.dot(h.astype(jnp.bfloat16), ca_q_w_ref[l],
                         preferred_element_type=jnp.float32)
                 + row(R_CA_QB)) * scale
            kv = jnp.dot(mem_bf, ca_kv_w_ref[l],
                         preferred_element_type=jnp.float32)       # (M, 2D)
            k = kv[:, 0:D] + row(R_CA_KB)
            v = kv[:, D:2 * D] + row(R_CA_VB)
            a = mha(q, k, v, ca_bias, ca_out_w_ref[l])
            x = res + a + row(R_CA_OB)

            # ---------------- feed-forward ----------------
            res = x
            h = layer_norm(x, row(R_FFN_LN_G), row(R_FFN_LN_B))
            h = jnp.maximum(
                jnp.dot(h.astype(jnp.bfloat16), fc1_w_ref[l],
                        preferred_element_type=jnp.float32) + fc1_b_ref[l],
                0.0)                                               # relu
            h = jnp.dot(h.astype(jnp.bfloat16), fc2_w_ref[l],
                        preferred_element_type=jnp.float32) + row(R_FC2_B)
            x = res + h

        # final Decoder-level LayerNorm
        fl = final_ln_ref[...]                                     # (2, D)
        y = layer_norm(x, fl[0:1, :], fl[1:2, :])
        out_ref[...] = y.reshape(Bb, T, D)

    return kernel


def decoder_forward(x, mem, params, *, num_head, num_layer,
                    x_mask=None, x_padding_mask=None, mem_padding_mask=None,
                    block_b=None):
    """x: (T, B, D), mem: (S, B, D) (fairseq time-first layout). Returns (T, B, D)."""
    T, B, D = x.shape
    S = mem.shape[0]
    FF = params["fc1_w"].shape[-1]
    L = params["sa_qkv_w"].shape[0]
    assert L == num_layer and D % num_head == 0

    # how many batch elements per grid step (more rows per MXU matmul)
    if block_b is None:
        block_b = B if B <= 8 else max(d for d in range(1, 9) if B % d == 0)
    Bb = block_b
    assert B % Bb == 0

    # ---- compact additive masks (biases are rebuilt inside the kernel) ----
    neg = jnp.float32(-1e9)
    amask = (jnp.zeros((T, T), jnp.float32) if x_mask is None
             else x_mask.astype(jnp.float32))
    xpad = (jnp.zeros((B, 1, T), jnp.float32) if x_padding_mask is None
            else jnp.where(x_padding_mask, neg, 0.0)
                    .astype(jnp.float32).reshape(B, 1, T))
    mpad = (jnp.zeros((B, 1, S), jnp.float32) if mem_padding_mask is None
            else jnp.where(mem_padding_mask, neg, 0.0)
                    .astype(jnp.float32).reshape(B, 1, S))

    xb = jnp.transpose(x, (1, 0, 2))       # (B, T, D)
    memb = jnp.transpose(mem, (1, 0, 2))   # (B, S, D)

    args = (
        xb, memb, amask, xpad, mpad,
        params["sa_qkv_w"], params["sa_out_w"],
        params["ca_q_w"], params["ca_kv_w"], params["ca_out_w"],
        params["fc1_w"], params["fc2_w"],
        params["vec"], params["fc1_b"], params["final_ln"],
    )

    def _resident_spec(a):
        nd = a.ndim
        return pl.BlockSpec(a.shape, lambda g, nd=nd: (0,) * nd)

    in_specs = [
        pl.BlockSpec((Bb, T, D), lambda g: (g, 0, 0)),     # x block
        pl.BlockSpec((Bb, S, D), lambda g: (g, 0, 0)),     # mem block
        _resident_spec(amask),                             # (T,T) attn mask
        pl.BlockSpec((Bb, 1, T), lambda g: (g, 0, 0)),     # self key padding
        pl.BlockSpec((Bb, 1, S), lambda g: (g, 0, 0)),     # mem key padding
    ] + [_resident_spec(a) for a in args[5:]]              # weights: resident

    out_specs = pl.BlockSpec((Bb, T, D), lambda g: (g, 0, 0))

    # ---- advisory cost estimate ----
    flops_pl = (2 * T * D * 3 * D + 4 * T * T * D + 2 * T * D * D          # self
                + 2 * T * D * D + 2 * S * D * 2 * D + 4 * T * S * D
                + 2 * T * D * D                                            # cross
                + 2 * T * D * FF + 2 * T * FF * D)                         # ffn
    cost = pl.CostEstimate(
        flops=int(B * L * flops_pl),
        transcendentals=int(B * L * num_head * (T * T + T * S)),
        bytes_accessed=int(sum(int(a.size) * a.dtype.itemsize for a in args)
                           + B * T * D * 4))

    # ---- VMEM budget from actual buffer sizes (v7x-safe ceiling) ----
    def _nbytes(a):
        return int(a.size) * a.dtype.itemsize
    resident_bytes = _nbytes(amask) + sum(_nbytes(a) for a in args[5:])
    per_step_bytes = Bb * (2 * T * D + S * D + T + S) * 4      # x, out, mem, masks
    intermediates = Bb * T * max(3 * D, FF) * 4 * 8            # slack for temps
    vmem_limit = int(min(max(2 * resident_bytes + 4 * per_step_bytes
                             + intermediates + (8 << 20), 32 << 20), 48 << 20))

    kernel = make_decoder_kernel(num_layer, num_head)
    out = pl.pallas_call(
        kernel,
        out_shape=jax.ShapeDtypeStruct((B, T, D), jnp.float32),
        grid_spec=pltpu.PrefetchScalarGridSpec(
            num_scalar_prefetch=0,
            grid=(B // Bb,),
            in_specs=in_specs,
            out_specs=out_specs,
        ),
        compiler_params=pltpu.CompilerParams(
            dimension_semantics=("parallel",),
            vmem_limit_bytes=vmem_limit,
        ),
        cost_estimate=cost,
    )(*args)

    return jnp.transpose(out, (1, 0, 2))   # back to (T, B, D)


def init_params(key, dim, ff_dim, num_layer):
    """Matmul weights stored (in, out) in bf16: kernel computes x @ W + b.
    (Real torch nn.Linear weights are (out, in) f32 -> transpose + cast on load.)"""
    D, FF, L = dim, ff_dim, num_layer
    ks = jax.random.split(key, 7)

    def w(k, shape):
        return (0.02 * jax.random.normal(k, shape, jnp.float32)).astype(jnp.bfloat16)

    vec = jnp.zeros((L, NUM_VEC_ROWS, D), jnp.float32)
    for g_row in (R_SA_LN_G, R_CA_LN_G, R_FFN_LN_G):
        vec = vec.at[:, g_row, :].set(1.0)                 # LayerNorm gammas = 1

    final_ln = jnp.concatenate(
        [jnp.ones((1, D), jnp.float32), jnp.zeros((1, D), jnp.float32)], axis=0)

    return {
        "sa_qkv_w": w(ks[0], (L, D, 3 * D)),   # fused self-attn q|k|v projection
        "sa_out_w": w(ks[1], (L, D, D)),
        "ca_q_w":   w(ks[2], (L, D, D)),
        "ca_kv_w":  w(ks[3], (L, D, 2 * D)),   # fused cross-attn k|v projection
        "ca_out_w": w(ks[4], (L, D, D)),
        "fc1_w":    w(ks[5], (L, D, FF)),
        "fc2_w":    w(ks[6], (L, FF, D)),
        "vec":      vec,                       # packed biases + LN params (f32)
        "fc1_b":    jnp.zeros((L, 1, FF), jnp.float32),
        "final_ln": final_ln,                  # (2, D): gamma, beta (f32)
    }


if __name__ == "__main__":
    key = jax.random.PRNGKey(0)
    k_x, k_mem, k_p = jax.random.split(key, 3)

    # Decoder(dim=128, ff_dim=256, num_head=4, num_layer=2)
    dim, ff_dim, num_head, num_layer = 128, 256, 4, 2
    T, S, B = 8, 8, 2                          # target seq, memory seq, batch

    x = jax.random.normal(k_x, (T, B, dim), jnp.float32)      # (T, B, C)
    mem = jax.random.normal(k_mem, (S, B, dim), jnp.float32)  # (S, B, C)

    # causal self-attention mask (additive, like fairseq's buffered_future_mask)
    causal = jnp.where(jnp.tril(jnp.ones((T, T), dtype=bool)), 0.0, -1e9)
    causal = causal.astype(jnp.float32)

    params = init_params(k_p, dim, ff_dim, num_layer)

    out = decoder_forward(x, mem, params,
                          num_head=num_head, num_layer=num_layer,
                          x_mask=causal,
                          x_padding_mask=None,
                          mem_padding_mask=None)
    jax.block_until_ready(out)

    assert out.shape == (T, B, dim)
    assert bool(jnp.all(jnp.isfinite(out)))
    print("KERNEL_OK")
</pallas_src>

<mosaic_0001>
module attributes {stable_mosaic.version = 11 : i64} {
  func.func @kernel(%arg0: i32, %arg1: memref<2x8x128xf32, #tpu.memory_space<vmem>>, %arg2: memref<2x8x128xf32, #tpu.memory_space<vmem>>, %arg3: memref<8x8xf32, #tpu.memory_space<vmem>>, %arg4: memref<2x1x8xf32, #tpu.memory_space<vmem>>, %arg5: memref<2x1x8xf32, #tpu.memory_space<vmem>>, %arg6: memref<2x128x384xbf16, #tpu.memory_space<vmem>>, %arg7: memref<2x128x128xbf16, #tpu.memory_space<vmem>>, %arg8: memref<2x128x128xbf16, #tpu.memory_space<vmem>>, %arg9: memref<2x128x256xbf16, #tpu.memory_space<vmem>>, %arg10: memref<2x128x128xbf16, #tpu.memory_space<vmem>>, %arg11: memref<2x128x256xbf16, #tpu.memory_space<vmem>>, %arg12: memref<2x256x128xbf16, #tpu.memory_space<vmem>>, %arg13: memref<2x15x128xf32, #tpu.memory_space<vmem>>, %arg14: memref<2x1x256xf32, #tpu.memory_space<vmem>>, %arg15: memref<2x128xf32, #tpu.memory_space<vmem>>, %arg16: memref<2x8x128xf32, #tpu.memory_space<vmem>>) attributes {dimension_semantics = [#tpu.dimension_semantics<parallel>], iteration_bounds = array<i64: 1>, scalar_prefetch = 0 : i64, scratch_operands = 0 : i64, tpu.core_type = #tpu.core_type<tc>, window_params = [{transform_indices = @transform_0, window_bounds = array<i64: 2, 8, 128>}, {transform_indices = @transform_1, window_bounds = array<i64: 2, 8, 128>}, {pipeline_mode = #tpu.pipeline_mode<synchronous>, transform_indices = @transform_2, window_bounds = array<i64: 8, 8>}, {transform_indices = @transform_3, window_bounds = array<i64: 2, 1, 8>}, {transform_indices = @transform_4, window_bounds = array<i64: 2, 1, 8>}, {pipeline_mode = #tpu.pipeline_mode<synchronous>, transform_indices = @transform_5, window_bounds = array<i64: 2, 128, 384>}, {pipeline_mode = #tpu.pipeline_mode<synchronous>, transform_indices = @transform_6, window_bounds = array<i64: 2, 128, 128>}, {pipeline_mode = #tpu.pipeline_mode<synchronous>, transform_indices = @transform_7, window_bounds = array<i64: 2, 128, 128>}, {pipeline_mode = #tpu.pipeline_mode<synchronous>, transform_indices = @transform_8, window_bounds = array<i64: 2, 128, 256>}, {pipeline_mode = #tpu.pipeline_mode<synchronous>, transform_indices = @transform_9, window_bounds = array<i64: 2, 128, 128>}, {pipeline_mode = #tpu.pipeline_mode<synchronous>, transform_indices = @transform_10, window_bounds = array<i64: 2, 128, 256>}, {pipeline_mode = #tpu.pipeline_mode<synchronous>, transform_indices = @transform_11, window_bounds = array<i64: 2, 256, 128>}, {pipeline_mode = #tpu.pipeline_mode<synchronous>, transform_indices = @transform_12, window_bounds = array<i64: 2, 15, 128>}, {pipeline_mode = #tpu.pipeline_mode<synchronous>, transform_indices = @transform_13, window_bounds = array<i64: 2, 1, 256>}, {pipeline_mode = #tpu.pipeline_mode<synchronous>, transform_indices = @transform_14, window_bounds = array<i64: 2, 128>}, {transform_indices = @transform_15, window_bounds = array<i64: 2, 8, 128>}]} {
    %c0 = arith.constant 0 : index
    %c0_0 = arith.constant 0 : index
    %0 = vector.load %arg3[%c0, %c0_0] : memref<8x8xf32, #tpu.memory_space<vmem>>, vector<8x8xf32>
    %c0_1 = arith.constant 0 : index
    %c0_2 = arith.constant 0 : index
    %c0_3 = arith.constant 0 : index
    %1 = vector.load %arg4[%c0_1, %c0_2, %c0_3] : memref<2x1x8xf32, #tpu.memory_space<vmem>>, vector<2x1x8xf32>
    %c0_4 = arith.constant 0 : index
    %c0_5 = arith.constant 0 : index
    %c0_6 = arith.constant 0 : index
    %2 = vector.load %arg5[%c0_4, %c0_5, %c0_6] : memref<2x1x8xf32, #tpu.memory_space<vmem>>, vector<2x1x8xf32>
    %3 = vector.shape_cast %0 : vector<8x8xf32> to vector<1x8x8xf32>
    %4 = vector.broadcast %3 : vector<1x8x8xf32> to vector<2x8x8xf32>
    %5 = vector.broadcast %1 : vector<2x1x8xf32> to vector<2x8x8xf32>
    %6 = arith.addf %4, %5 : vector<2x8x8xf32>
    %c0_7 = arith.constant 0 : index
    %c0_8 = arith.constant 0 : index
    %c0_9 = arith.constant 0 : index
    %7 = vector.load %arg1[%c0_7, %c0_8, %c0_9] : memref<2x8x128xf32, #tpu.memory_space<vmem>>, vector<2x8x128xf32>
    %8 = vector.shape_cast %7 : vector<2x8x128xf32> to vector<16x128xf32>
    %c0_10 = arith.constant 0 : index
    %c0_11 = arith.constant 0 : index
    %c0_12 = arith.constant 0 : index
    %9 = vector.load %arg2[%c0_10, %c0_11, %c0_12] : memref<2x8x128xf32, #tpu.memory_space<vmem>>, vector<2x8x128xf32>
    %10 = vector.shape_cast %9 : vector<2x8x128xf32> to vector<16x128xf32>
    %11 = arith.truncf %10 : vector<16x128xf32> to vector<16x128xbf16>
    %c0_13 = arith.constant 0 : index
    %c0_14 = arith.constant 0 : index
    %c0_15 = arith.constant 0 : index
    %12 = vector.load %arg13[%c0_13, %c0_14, %c0_15] : memref<2x15x128xf32, #tpu.memory_space<vmem>>, vector<1x15x128xf32>
    %13 = vector.shape_cast %12 : vector<1x15x128xf32> to vector<15x128xf32>
    %14 = vector.extract_strided_slice %13 {offsets = [9, 0], sizes = [1, 128], strides = [1, 1]} : vector<15x128xf32> to vector<1x128xf32>
    %15 = vector.extract_strided_slice %13 {offsets = [10, 0], sizes = [1, 128], strides = [1, 1]} : vector<15x128xf32> to vector<1x128xf32>
    %cst = arith.constant dense<0.000000e+00> : vector<16xf32>
    %16 = vector.multi_reduction <add>, %8, %cst [1] : vector<16x128xf32> to vector<16xf32>
    %17 = vector.shape_cast %16 : vector<16xf32> to vector<16x1xf32>
    %cst_16 = arith.constant 1.280000e+02 : f32
    %18 = vector.broadcast %cst_16 : f32 to vector<16x1xf32>
    %19 = arith.divf %17, %18 : vector<16x1xf32>
    %20 = vector.broadcast %19 : vector<16x1xf32> to vector<16x128xf32>
    %21 = arith.subf %8, %20 : vector<16x128xf32>
    %22 = arith.mulf %21, %21 : vector<16x128xf32>
    %cst_17 = arith.constant dense<0.000000e+00> : vector<16xf32>
    %23 = vector.multi_reduction <add>, %22, %cst_17 [1] : vector<16x128xf32> to vector<16xf32>
    %24 = vector.shape_cast %23 : vector<16xf32> to vector<16x1xf32>
    %cst_18 = arith.constant 1.280000e+02 : f32
    %25 = vector.broadcast %cst_18 : f32 to vector<16x1xf32>
    %26 = arith.divf %24, %25 : vector<16x1xf32>
    %27 = vector.broadcast %19 : vector<16x1xf32> to vector<16x128xf32>
    %28 = arith.subf %8, %27 : vector<16x128xf32>
    %cst_19 = arith.constant 9.99999974E-6 : f32
    %29 = vector.broadcast %cst_19 : f32 to vector<16x1xf32>
    %30 = arith.addf %26, %29 : vector<16x1xf32>
    %31 = math.rsqrt %30 : vector<16x1xf32>
    %32 = vector.broadcast %31 : vector<16x1xf32> to vector<16x128xf32>
    %33 = arith.mulf %28, %32 : vector<16x128xf32>
    %34 = vector.broadcast %14 : vector<1x128xf32> to vector<16x128xf32>
    %35 = arith.mulf %33, %34 : vector<16x128xf32>
    %36 = vector.broadcast %15 : vector<1x128xf32> to vector<16x128xf32>
    %37 = arith.addf %35, %36 : vector<16x128xf32>
    %38 = arith.truncf %37 : vector<16x128xf32> to vector<16x128xbf16>
    %c0_20 = arith.constant 0 : index
    %c0_21 = arith.constant 0 : index
    %c0_22 = arith.constant 0 : index
    %39 = vector.load %arg6[%c0_20, %c0_21, %c0_22] : memref<2x128x384xbf16, #tpu.memory_space<vmem>>, vector<1x128x384xbf16>
    %40 = vector.shape_cast %39 : vector<1x128x384xbf16> to vector<128x384xbf16>
    %cst_23 = arith.constant dense<0.000000e+00> : vector<16x384xf32>
    %41 = tpu.matmul %38, %40, %cst_23 {dimension_numbers = #tpu.dot_dimension_numbers<[1], [0], [0], [1], [0, 0, 1, 1], [], []>} : vector<16x128xbf16>, vector<128x384xbf16>, vector<16x384xf32> -> vector<16x384xf32>
    %42 = vector.extract_strided_slice %41 {offsets = [0, 0], sizes = [16, 128], strides = [1, 1]} : vector<16x384xf32> to vector<16x128xf32>
    %43 = vector.extract_strided_slice %13 {offsets = [0, 0], sizes = [1, 128], strides = [1, 1]} : vector<15x128xf32> to vector<1x128xf32>
    %44 = vector.broadcast %43 : vector<1x128xf32> to vector<16x128xf32>
    %45 = arith.addf %42, %44 : vector<16x128xf32>
    %cst_24 = arith.constant 0.176776692 : f32
    %46 = vector.broadcast %cst_24 : f32 to vector<16x128xf32>
    %47 = arith.mulf %45, %46 : vector<16x128xf32>
    %48 = vector.extract_strided_slice %41 {offsets = [0, 128], sizes = [16, 128], strides = [1, 1]} : vector<16x384xf32> to vector<16x128xf32>
    %49 = vector.extract_strided_slice %13 {offsets = [1, 0], sizes = [1, 128], strides = [1, 1]} : vector<15x128xf32> to vector<1x128xf32>
    %50 = vector.broadcast %49 : vector<1x128xf32> to vector<16x128xf32>
    %51 = arith.addf %48, %50 : vector<16x128xf32>
    %52 = vector.extract_strided_slice %41 {offsets = [0, 256], sizes = [16, 128], strides = [1, 1]} : vector<16x384xf32> to vector<16x128xf32>
    %53 = vector.extract_strided_slice %13 {offsets = [2, 0], sizes = [1, 128], strides = [1, 1]} : vector<15x128xf32> to vector<1x128xf32>
    %54 = vector.broadcast %53 : vector<1x128xf32> to vector<16x128xf32>
    %55 = arith.addf %52, %54 : vector<16x128xf32>
    %c0_25 = arith.constant 0 : index
    %c0_26 = arith.constant 0 : index
    %c0_27 = arith.constant 0 : index
    %56 = vector.load %arg7[%c0_25, %c0_26, %c0_27] : memref<2x128x128xbf16, #tpu.memory_space<vmem>>, vector<1x128x128xbf16>
    %57 = vector.shape_cast %56 : vector<1x128x128xbf16> to vector<128x128xbf16>
    %58 = arith.truncf %47 : vector<16x128xf32> to vector<16x128xbf16>
    %59 = vector.shape_cast %58 : vector<16x128xbf16> to vector<2x8x128xbf16>
    %60 = arith.truncf %51 : vector<16x128xf32> to vector<16x128xbf16>
    %61 = vector.shape_cast %60 : vector<16x128xbf16> to vector<2x8x128xbf16>
    %62 = arith.truncf %55 : vector<16x128xf32> to vector<16x128xbf16>
    %63 = vector.shape_cast %62 : vector<16x128xbf16> to vector<2x8x128xbf16>
    %cst_28 = arith.constant 0.000000e+00 : f32
    %64 = vector.broadcast %cst_28 : f32 to vector<16x128xf32>
    %65 = vector.extract_strided_slice %59 {offsets = [0, 0, 0], sizes = [2, 8, 32], strides = [1, 1, 1]} : vector<2x8x128xbf16> to vector<2x8x32xbf16>
    %66 = vector.extract_strided_slice %61 {offsets = [0, 0, 0], sizes = [2, 8, 32], strides = [1, 1, 1]} : vector<2x8x128xbf16> to vector<2x8x32xbf16>
    "tpu.trace_start"() <{level = 10 : i32, message = "bqd,bkd->bqk"}> : () -> ()
    %cst_29 = arith.constant dense<0.000000e+00> : vector<2x8x8xf32>
    %67 = tpu.matmul %65, %66, %cst_29 {dimension_numbers = #tpu.dot_dimension_numbers<[2], [2], [1], [1], [0, 0, 0, 1, 1, 1], [0], [0]>} : vector<2x8x32xbf16>, vector<2x8x32xbf16>, vector<2x8x8xf32> -> vector<2x8x8xf32>
    "tpu.trace_stop"() : () -> ()
    %68 = arith.addf %67, %6 : vector<2x8x8xf32>
    %cst_30 = arith.constant dense<0xFF800000> : vector<2x8xf32>
    %69 = vector.multi_reduction <maximumf>, %68, %cst_30 [2] : vector<2x8x8xf32> to vector<2x8xf32>
    %70 = vector.shape_cast %69 : vector<2x8xf32> to vector<2x8x1xf32>
    %71 = vector.broadcast %70 : vector<2x8x1xf32> to vector<2x8x8xf32>
    %72 = arith.subf %68, %71 : vector<2x8x8xf32>
    %73 = math.exp %72 : vector<2x8x8xf32>
    %cst_31 = arith.constant dense<0.000000e+00> : vector<2x8xf32>
    %74 = vector.multi_reduction <add>, %73, %cst_31 [2] : vector<2x8x8xf32> to vector<2x8xf32>
    %75 = vector.shape_cast %74 : vector<2x8xf32> to vector<2x8x1xf32>
    %76 = tpu.reciprocal %75 {approx = true} : vector<2x8x1xf32> -> vector<2x8x1xf32>
    %77 = vector.broadcast %76 : vector<2x8x1xf32> to vector<2x8x8xf32>
    %78 = arith.mulf %73, %77 : vector<2x8x8xf32>
    %79 = arith.truncf %78 : vector<2x8x8xf32> to vector<2x8x8xbf16>
    %80 = vector.extract_strided_slice %63 {offsets = [0, 0, 0], sizes = [2, 8, 32], strides = [1, 1, 1]} : vector<2x8x128xbf16> to vector<2x8x32xbf16>
    "tpu.trace_start"() <{level = 10 : i32, message = "bqk,bkd->bqd"}> : () -> ()
    %cst_32 = arith.constant dense<0.000000e+00> : vector<2x8x32xf32>
    %81 = tpu.matmul %79, %80, %cst_32 {dimension_numbers = #tpu.dot_dimension_numbers<[2], [1], [1], [2], [0, 0, 0, 1, 1, 2], [0], [0]>} : vector<2x8x8xbf16>, vector<2x8x32xbf16>, vector<2x8x32xf32> -> vector<2x8x32xf32>
    "tpu.trace_stop"() : () -> ()
    %82 = vector.shape_cast %81 : vector<2x8x32xf32> to vector<16x32xf32>
    %83 = arith.truncf %82 : vector<16x32xf32> to vector<16x32xbf16>
    %84 = vector.extract_strided_slice %57 {offsets = [0, 0], sizes = [32, 128], strides = [1, 1]} : vector<128x128xbf16> to vector<32x128xbf16>
    %cst_33 = arith.constant dense<0.000000e+00> : vector<16x128xf32>
    %85 = tpu.matmul %83, %84, %cst_33 {dimension_numbers = #tpu.dot_dimension_numbers<[1], [0], [0], [1], [0, 0, 1, 1], [], []>} : vector<16x32xbf16>, vector<32x128xbf16>, vector<16x128xf32> -> vector<16x128xf32>
    %86 = arith.addf %64, %85 : vector<16x128xf32>
    %87 = vector.extract_strided_slice %59 {offsets = [0, 0, 32], sizes = [2, 8, 32], strides = [1, 1, 1]} : vector<2x8x128xbf16> to vector<2x8x32xbf16>
    %88 = vector.extract_strided_slice %61 {offsets = [0, 0, 32], sizes = [2, 8, 32], strides = [1, 1, 1]} : vector<2x8x128xbf16> to vector<2x8x32xbf16>
    "tpu.trace_start"() <{level = 10 : i32, message = "bqd,bkd->bqk"}> : () -> ()
    %cst_34 = arith.constant dense<0.000000e+00> : vector<2x8x8xf32>
    %89 = tpu.matmul %87, %88, %cst_34 {dimension_numbers = #tpu.dot_dimension_numbers<[2], [2], [1], [1], [0, 0, 0, 1, 1, 1], [0], [0]>} : vector<2x8x32xbf16>, vector<2x8x32xbf16>, vector<2x8x8xf32> -> vector<2x8x8xf32>
    "tpu.trace_stop"() : () -> ()
    %90 = arith.addf %89, %6 : vector<2x8x8xf32>
    %cst_35 = arith.constant dense<0xFF800000> : vector<2x8xf32>
    %91 = vector.multi_reduction <maximumf>, %90, %cst_35 [2] : vector<2x8x8xf32> to vector<2x8xf32>
    %92 = vector.shape_cast %91 : vector<2x8xf32> to vector<2x8x1xf32>
    %93 = vector.broadcast %92 : vector<2x8x1xf32> to vector<2x8x8xf32>
    %94 = arith.subf %90, %93 : vector<2x8x8xf32>
    %95 = math.exp %94 : vector<2x8x8xf32>
    %cst_36 = arith.constant dense<0.000000e+00> : vector<2x8xf32>
    %96 = vector.multi_reduction <add>, %95, %cst_36 [2] : vector<2x8x8xf32> to vector<2x8xf32>
    %97 = vector.shape_cast %96 : vector<2x8xf32> to vector<2x8x1xf32>
    %98 = tpu.reciprocal %97 {approx = true} : vector<2x8x1xf32> -> vector<2x8x1xf32>
    %99 = vector.broadcast %98 : vector<2x8x1xf32> to vector<2x8x8xf32>
    %100 = arith.mulf %95, %99 : vector<2x8x8xf32>
    %101 = arith.truncf %100 : vector<2x8x8xf32> to vector<2x8x8xbf16>
    %102 = vector.extract_strided_slice %63 {offsets = [0, 0, 32], sizes = [2, 8, 32], strides = [1, 1, 1]} : vector<2x8x128xbf16> to vector<2x8x32xbf16>
    "tpu.trace_start"() <{level = 10 : i32, message = "bqk,bkd->bqd"}> : () -> ()
    %cst_37 = arith.constant dense<0.000000e+00> : vector<2x8x32xf32>
    %103 = tpu.matmul %101, %102, %cst_37 {dimension_numbers = #tpu.dot_dimension_numbers<[2], [1], [1], [2], [0, 0, 0, 1, 1, 2], [0], [0]>} : vector<2x8x8xbf16>, vector<2x8x32xbf16>, vector<2x8x32xf32> -> vector<2x8x32xf32>
    "tpu.trace_stop"() : () -> ()
    %104 = vector.shape_cast %103 : vector<2x8x32xf32> to vector<16x32xf32>
    %105 = arith.truncf %104 : vector<16x32xf32> to vector<16x32xbf16>
    %106 = vector.extract_strided_slice %57 {offsets = [32, 0], sizes = [32, 128], strides = [1, 1]} : vector<128x128xbf16> to vector<32x128xbf16>
    %cst_38 = arith.constant dense<0.000000e+00> : vector<16x128xf32>
    %107 = tpu.matmul %105, %106, %cst_38 {dimension_numbers = #tpu.dot_dimension_numbers<[1], [0], [0], [1], [0, 0, 1, 1], [], []>} : vector<16x32xbf16>, vector<32x128xbf16>, vector<16x128xf32> -> vector<16x128xf32>
    %108 = arith.addf %86, %107 : vector<16x128xf32>
    %109 = vector.extract_strided_slice %59 {offsets = [0, 0, 64], sizes = [2, 8, 32], strides = [1, 1, 1]} : vector<2x8x128xbf16> to vector<2x8x32xbf16>
    %110 = vector.extract_strided_slice %61 {offsets = [0, 0, 64], sizes = [2, 8, 32], strides = [1, 1, 1]} : vector<2x8x128xbf16> to vector<2x8x32xbf16>
    "tpu.trace_start"() <{level = 10 : i32, message = "bqd,bkd->bqk"}> : () -> ()
    %cst_39 = arith.constant dense<0.000000e+00> : vector<2x8x8xf32>
    %111 = tpu.matmul %109, %110, %cst_39 {dimension_numbers = #tpu.dot_dimension_numbers<[2], [2], [1], [1], [0, 0, 0, 1, 1, 1], [0], [0]>} : vector<2x8x32xbf16>, vector<2x8x32xbf16>, vector<2x8x8xf32> -> vector<2x8x8xf32>
    "tpu.trace_stop"() : () -> ()
    %112 = arith.addf %111, %6 : vector<2x8x8xf32>
    %cst_40 = arith.constant dense<0xFF800000> : vector<2x8xf32>
    %113 = vector.multi_reduction <maximumf>, %112, %cst_40 [2] : vector<2x8x8xf32> to vector<2x8xf32>
    %114 = vector.shape_cast %113 : vector<2x8xf32> to vector<2x8x1xf32>
    %115 = vector.broadcast %114 : vector<2x8x1xf32> to vector<2x8x8xf32>
    %116 = arith.subf %112, %115 : vector<2x8x8xf32>
    %117 = math.exp %116 : vector<2x8x8xf32>
    %cst_41 = arith.constant dense<0.000000e+00> : vector<2x8xf32>
    %118 = vector.multi_reduction <add>, %117, %cst_41 [2] : vector<2x8x8xf32> to vector<2x8xf32>
    %119 = vector.shape_cast %118 : vector<2x8xf32> to vector<2x8x1xf32>
    %120 = tpu.reciprocal %119 {approx = true} : vector<2x8x1xf32> -> vector<2x8x1xf32>
    %121 = vector.broadcast %120 : vector<2x8x1xf32> to vector<2x8x8xf32>
    %122 = arith.mulf %117, %121 : vector<2x8x8xf32>
    %123 = arith.truncf %122 : vector<2x8x8xf32> to vector<2x8x8xbf16>
    %124 = vector.extract_strided_slice %63 {offsets = [0, 0, 64], sizes = [2, 8, 32], strides = [1, 1, 1]} : vector<2x8x128xbf16> to vector<2x8x32xbf16>
    "tpu.trace_start"() <{level = 10 : i32, message = "bqk,bkd->bqd"}> : () -> ()
    %cst_42 = arith.constant dense<0.000000e+00> : vector<2x8x32xf32>
    %125 = tpu.matmul %123, %124, %cst_42 {dimension_numbers = #tpu.dot_dimension_numbers<[2], [1], [1], [2], [0, 0, 0, 1, 1, 2], [0], [0]>} : vector<2x8x8xbf16>, vector<2x8x32xbf16>, vector<2x8x32xf32> -> vector<2x8x32xf32>
    "tpu.trace_stop"() : () -> ()
    %126 = vector.shape_cast %125 : vector<2x8x32xf32> to vector<16x32xf32>
    %127 = arith.truncf %126 : vector<16x32xf32> to vector<16x32xbf16>
    %128 = vector.extract_strided_slice %57 {offsets = [64, 0], sizes = [32, 128], strides = [1, 1]} : vector<128x128xbf16> to vector<32x128xbf16>
    %cst_43 = arith.constant dense<0.000000e+00> : vector<16x128xf32>
    %129 = tpu.matmul %127, %128, %cst_43 {dimension_numbers = #tpu.dot_dimension_numbers<[1], [0], [0], [1], [0, 0, 1, 1], [], []>} : vector<16x32xbf16>, vector<32x128xbf16>, vector<16x128xf32> -> vector<16x128xf32>
    %130 = arith.addf %108, %129 : vector<16x128xf32>
    %131 = vector.extract_strided_slice %59 {offsets = [0, 0, 96], sizes = [2, 8, 32], strides = [1, 1, 1]} : vector<2x8x128xbf16> to vector<2x8x32xbf16>
    %132 = vector.extract_strided_slice %61 {offsets = [0, 0, 96], sizes = [2, 8, 32], strides = [1, 1, 1]} : vector<2x8x128xbf16> to vector<2x8x32xbf16>
    "tpu.trace_start"() <{level = 10 : i32, message = "bqd,bkd->bqk"}> : () -> ()
    %cst_44 = arith.constant dense<0.000000e+00> : vector<2x8x8xf32>
    %133 = tpu.matmul %131, %132, %cst_44 {dimension_numbers = #tpu.dot_dimension_numbers<[2], [2], [1], [1], [0, 0, 0, 1, 1, 1], [0], [0]>} : vector<2x8x32xbf16>, vector<2x8x32xbf16>, vector<2x8x8xf32> -> vector<2x8x8xf32>
    "tpu.trace_stop"() : () -> ()
    %134 = arith.addf %133, %6 : vector<2x8x8xf32>
    %cst_45 = arith.constant dense<0xFF800000> : vector<2x8xf32>
    %135 = vector.multi_reduction <maximumf>, %134, %cst_45 [2] : vector<2x8x8xf32> to vector<2x8xf32>
    %136 = vector.shape_cast %135 : vector<2x8xf32> to vector<2x8x1xf32>
    %137 = vector.broadcast %136 : vector<2x8x1xf32> to vector<2x8x8xf32>
    %138 = arith.subf %134, %137 : vector<2x8x8xf32>
    %139 = math.exp %138 : vector<2x8x8xf32>
    %cst_46 = arith.constant dense<0.000000e+00> : vector<2x8xf32>
    %140 = vector.multi_reduction <add>, %139, %cst_46 [2] : vector<2x8x8xf32> to vector<2x8xf32>
    %141 = vector.shape_cast %140 : vector<2x8xf32> to vector<2x8x1xf32>
    %142 = tpu.reciprocal %141 {approx = true} : vector<2x8x1xf32> -> vector<2x8x1xf32>
    %143 = vector.broadcast %142 : vector<2x8x1xf32> to vector<2x8x8xf32>
    %144 = arith.mulf %139, %143 : vector<2x8x8xf32>
    %145 = arith.truncf %144 : vector<2x8x8xf32> to vector<2x8x8xbf16>
    %146 = vector.extract_strided_slice %63 {offsets = [0, 0, 96], sizes = [2, 8, 32], strides = [1, 1, 1]} : vector<2x8x128xbf16> to vector<2x8x32xbf16>
    "tpu.trace_start"() <{level = 10 : i32, message = "bqk,bkd->bqd"}> : () -> ()
    %cst_47 = arith.constant dense<0.000000e+00> : vector<2x8x32xf32>
    %147 = tpu.matmul %145, %146, %cst_47 {dimension_numbers = #tpu.dot_dimension_numbers<[2], [1], [1], [2], [0, 0, 0, 1, 1, 2], [0], [0]>} : vector<2x8x8xbf16>, vector<2x8x32xbf16>, vector<2x8x32xf32> -> vector<2x8x32xf32>
    "tpu.trace_stop"() : () -> ()
    %148 = vector.shape_cast %147 : vector<2x8x32xf32> to vector<16x32xf32>
    %149 = arith.truncf %148 : vector<16x32xf32> to vector<16x32xbf16>
    %150 = vector.extract_strided_slice %57 {offsets = [96, 0], sizes = [32, 128], strides = [1, 1]} : vector<128x128xbf16> to vector<32x128xbf16>
    %cst_48 = arith.constant dense<0.000000e+00> : vector<16x128xf32>
    %151 = tpu.matmul %149, %150, %cst_48 {dimension_numbers = #tpu.dot_dimension_numbers<[1], [0], [0], [1], [0, 0, 1, 1], [], []>} : vector<16x32xbf16>, vector<32x128xbf16>, vector<16x128xf32> -> vector<16x128xf32>
    %152 = arith.addf %130, %151 : vector<16x128xf32>
    %153 = arith.addf %8, %152 : vector<16x128xf32>
    %154 = vector.extract_strided_slice %13 {offsets = [3, 0], sizes = [1, 128], strides = [1, 1]} : vector<15x128xf32> to vector<1x128xf32>
    %155 = vector.broadcast %154 : vector<1x128xf32> to vector<16x128xf32>
    %156 = arith.addf %153, %155 : vector<16x128xf32>
    %157 = vector.extract_strided_slice %13 {offsets = [11, 0], sizes = [1, 128], strides = [1, 1]} : vector<15x128xf32> to vector<1x128xf32>
    %158 = vector.extract_strided_slice %13 {offsets = [12, 0], sizes = [1, 128], strides = [1, 1]} : vector<15x128xf32> to vector<1x128xf32>
    %cst_49 = arith.constant dense<0.000000e+00> : vector<16xf32>
    %159 = vector.multi_reduction <add>, %156, %cst_49 [1] : vector<16x128xf32> to vector<16xf32>
    %160 = vector.shape_cast %159 : vector<16xf32> to vector<16x1xf32>
    %cst_50 = arith.constant 1.280000e+02 : f32
    %161 = vector.broadcast %cst_50 : f32 to vector<16x1xf32>
    %162 = arith.divf %160, %161 : vector<16x1xf32>
    %163 = vector.broadcast %162 : vector<16x1xf32> to vector<16x128xf32>
    %164 = arith.subf %156, %163 : vector<16x128xf32>
    %165 = arith.mulf %164, %164 : vector<16x128xf32>
    %cst_51 = arith.constant dense<0.000000e+00> : vector<16xf32>
    %166 = vector.multi_reduction <add>, %165, %cst_51 [1] : vector<16x128xf32> to vector<16xf32>
    %167 = vector.shape_cast %166 : vector<16xf32> to vector<16x1xf32>
    %cst_52 = arith.constant 1.280000e+02 : f32
    %168 = vector.broadcast %cst_52 : f32 to vector<16x1xf32>
    %169 = arith.divf %167, %168 : vector<16x1xf32>
    %170 = vector.broadcast %162 : vector<16x1xf32> to vector<16x128xf32>
    %171 = arith.subf %156, %170 : vector<16x128xf32>
    %cst_53 = arith.constant 9.99999974E-6 : f32
    %172 = vector.broadcast %cst_53 : f32 to vector<16x1xf32>
    %173 = arith.addf %169, %172 : vector<16x1xf32>
    %174 = math.rsqrt %173 : vector<16x1xf32>
    %175 = vector.broadcast %174 : vector<16x1xf32> to vector<16x128xf32>
    %176 = arith.mulf %171, %175 : vector<16x128xf32>
    %177 = vector.broadcast %157 : vector<1x128xf32> to vector<16x128xf32>
    %178 = arith.mulf %176, %177 : vector<16x128xf32>
    %179 = vector.broadcast %158 : vector<1x128xf32> to vector<16x128xf32>
    %180 = arith.addf %178, %179 : vector<16x128xf32>
    %181 = arith.truncf %180 : vector<16x128xf32> to vector<16x128xbf16>
    %c0_54 = arith.constant 0 : index
    %c0_55 = arith.constant 0 : index
    %c0_56 = arith.constant 0 : index
    %182 = vector.load %arg8[%c0_54, %c0_55, %c0_56] : memref<2x128x128xbf16, #tpu.memory_space<vmem>>, vector<1x128x128xbf16>
    %183 = vector.shape_cast %182 : vector<1x128x128xbf16> to vector<128x128xbf16>
    %cst_57 = arith.constant dense<0.000000e+00> : vector<16x128xf32>
    %184 = tpu.matmul %181, %183, %cst_57 {dimension_numbers = #tpu.dot_dimension_numbers<[1], [0], [0], [1], [0, 0, 1, 1], [], []>} : vector<16x128xbf16>, vector<128x128xbf16>, vector<16x128xf32> -> vector<16x128xf32>
    %185 = vector.extract_strided_slice %13 {offsets = [4, 0], sizes = [1, 128], strides = [1, 1]} : vector<15x128xf32> to vector<1x128xf32>
    %186 = vector.broadcast %185 : vector<1x128xf32> to vector<16x128xf32>
    %187 = arith.addf %184, %186 : vector<16x128xf32>
    %cst_58 = arith.constant 0.176776692 : f32
    %188 = vector.broadcast %cst_58 : f32 to vector<16x128xf32>
    %189 = arith.mulf %187, %188 : vector<16x128xf32>
    %c0_59 = arith.constant 0 : index
    %c0_60 = arith.constant 0 : index
    %c0_61 = arith.constant 0 : index
    %190 = vector.load %arg9[%c0_59, %c0_60, %c0_61] : memref<2x128x256xbf16, #tpu.memory_space<vmem>>, vector<1x128x256xbf16>
    %191 = vector.shape_cast %190 : vector<1x128x256xbf16> to vector<128x256xbf16>
    %cst_62 = arith.constant dense<0.000000e+00> : vector<16x256xf32>
    %192 = tpu.matmul %11, %191, %cst_62 {dimension_numbers = #tpu.dot_dimension_numbers<[1], [0], [0], [1], [0, 0, 1, 1], [], []>} : vector<16x128xbf16>, vector<128x256xbf16>, vector<16x256xf32> -> vector<16x256xf32>
    %193 = vector.extract_strided_slice %192 {offsets = [0, 0], sizes = [16, 128], strides = [1, 1]} : vector<16x256xf32> to vector<16x128xf32>
    %194 = vector.extract_strided_slice %13 {offsets = [5, 0], sizes = [1, 128], strides = [1, 1]} : vector<15x128xf32> to vector<1x128xf32>
    %195 = vector.broadcast %194 : vector<1x128xf32> to vector<16x128xf32>
    %196 = arith.addf %193, %195 : vector<16x128xf32>
    %197 = vector.extract_strided_slice %192 {offsets = [0, 128], sizes = [16, 128], strides = [1, 1]} : vector<16x256xf32> to vector<16x128xf32>
    %198 = vector.extract_strided_slice %13 {offsets = [6, 0], sizes = [1, 128], strides = [1, 1]} : vector<15x128xf32> to vector<1x128xf32>
    %199 = vector.broadcast %198 : vector<1x128xf32> to vector<16x128xf32>
    %200 = arith.addf %197, %199 : vector<16x128xf32>
    %c0_63 = arith.constant 0 : index
    %c0_64 = arith.constant 0 : index
    %c0_65 = arith.constant 0 : index
    %201 = vector.load %arg10[%c0_63, %c0_64, %c0_65] : memref<2x128x128xbf16, #tpu.memory_space<vmem>>, vector<1x128x128xbf16>
    %202 = vector.shape_cast %201 : vector<1x128x128xbf16> to vector<128x128xbf16>
    %203 = arith.truncf %189 : vector<16x128xf32> to vector<16x128xbf16>
    %204 = vector.shape_cast %203 : vector<16x128xbf16> to vector<2x8x128xbf16>
    %205 = arith.truncf %196 : vector<16x128xf32> to vector<16x128xbf16>
    %206 = vector.shape_cast %205 : vector<16x128xbf16> to vector<2x8x128xbf16>
    %207 = arith.truncf %200 : vector<16x128xf32> to vector<16x128xbf16>
    %208 = vector.shape_cast %207 : vector<16x128xbf16> to vector<2x8x128xbf16>
    %cst_66 = arith.constant 0.000000e+00 : f32
    %209 = vector.broadcast %cst_66 : f32 to vector<16x128xf32>
    %210 = vector.extract_strided_slice %204 {offsets = [0, 0, 0], sizes = [2, 8, 32], strides = [1, 1, 1]} : vector<2x8x128xbf16> to vector<2x8x32xbf16>
    %211 = vector.extract_strided_slice %206 {offsets = [0, 0, 0], sizes = [2, 8, 32], strides = [1, 1, 1]} : vector<2x8x128xbf16> to vector<2x8x32xbf16>
    "tpu.trace_start"() <{level = 10 : i32, message = "bqd,bkd->bqk"}> : () -> ()
    %cst_67 = arith.constant dense<0.000000e+00> : vector<2x8x8xf32>
    %212 = tpu.matmul %210, %211, %cst_67 {dimension_numbers = #tpu.dot_dimension_numbers<[2], [2], [1], [1], [0, 0, 0, 1, 1, 1], [0], [0]>} : vector<2x8x32xbf16>, vector<2x8x32xbf16>, vector<2x8x8xf32> -> vector<2x8x8xf32>
    "tpu.trace_stop"() : () -> ()
    %213 = vector.broadcast %2 : vector<2x1x8xf32> to vector<2x8x8xf32>
    %214 = arith.addf %212, %213 : vector<2x8x8xf32>
    %cst_68 = arith.constant dense<0xFF800000> : vector<2x8xf32>
    %215 = vector.multi_reduction <maximumf>, %214, %cst_68 [2] : vector<2x8x8xf32> to vector<2x8xf32>
    %216 = vector.shape_cast %215 : vector<2x8xf32> to vector<2x8x1xf32>
    %217 = vector.broadcast %216 : vector<2x8x1xf32> to vector<2x8x8xf32>
    %218 = arith.subf %214, %217 : vector<2x8x8xf32>
    %219 = math.exp %218 : vector<2x8x8xf32>
    %cst_69 = arith.constant dense<0.000000e+00> : vector<2x8xf32>
    %220 = vector.multi_reduction <add>, %219, %cst_69 [2] : vector<2x8x8xf32> to vector<2x8xf32>
    %221 = vector.shape_cast %220 : vector<2x8xf32> to vector<2x8x1xf32>
    %222 = tpu.reciprocal %221 {approx = true} : vector<2x8x1xf32> -> vector<2x8x1xf32>
    %223 = vector.broadcast %222 : vector<2x8x1xf32> to vector<2x8x8xf32>
    %224 = arith.mulf %219, %223 : vector<2x8x8xf32>
    %225 = arith.truncf %224 : vector<2x8x8xf32> to vector<2x8x8xbf16>
    %226 = vector.extract_strided_slice %208 {offsets = [0, 0, 0], sizes = [2, 8, 32], strides = [1, 1, 1]} : vector<2x8x128xbf16> to vector<2x8x32xbf16>
    "tpu.trace_start"() <{level = 10 : i32, message = "bqk,bkd->bqd"}> : () -> ()
    %cst_70 = arith.constant dense<0.000000e+00> : vector<2x8x32xf32>
    %227 = tpu.matmul %225, %226, %cst_70 {dimension_numbers = #tpu.dot_dimension_numbers<[2], [1], [1], [2], [0, 0, 0, 1, 1, 2], [0], [0]>} : vector<2x8x8xbf16>, vector<2x8x32xbf16>, vector<2x8x32xf32> -> vector<2x8x32xf32>
    "tpu.trace_stop"() : () -> ()
    %228 = vector.shape_cast %227 : vector<2x8x32xf32> to vector<16x32xf32>
    %229 = arith.truncf %228 : vector<16x32xf32> to vector<16x32xbf16>
    %230 = vector.extract_strided_slice %202 {offsets = [0, 0], sizes = [32, 128], strides = [1, 1]} : vector<128x128xbf16> to vector<32x128xbf16>
    %cst_71 = arith.constant dense<0.000000e+00> : vector<16x128xf32>
    %231 = tpu.matmul %229, %230, %cst_71 {dimension_numbers = #tpu.dot_dimension_numbers<[1], [0], [0], [1], [0, 0, 1, 1], [], []>} : vector<16x32xbf16>, vector<32x128xbf16>, vector<16x128xf32> -> vector<16x128xf32>
    %232 = arith.addf %209, %231 : vector<16x128xf32>
    %233 = vector.extract_strided_slice %204 {offsets = [0, 0, 32], sizes = [2, 8, 32], strides = [1, 1, 1]} : vector<2x8x128xbf16> to vector<2x8x32xbf16>
    %234 = vector.extract_strided_slice %206 {offsets = [0, 0, 32], sizes = [2, 8, 32], strides = [1, 1, 1]} : vector<2x8x128xbf16> to vector<2x8x32xbf16>
    "tpu.trace_start"() <{level = 10 : i32, message = "bqd,bkd->bqk"}> : () -> ()
    %cst_72 = arith.constant dense<0.000000e+00> : vector<2x8x8xf32>
    %235 = tpu.matmul %233, %234, %cst_72 {dimension_numbers = #tpu.dot_dimension_numbers<[2], [2], [1], [1], [0, 0, 0, 1, 1, 1], [0], [0]>} : vector<2x8x32xbf16>, vector<2x8x32xbf16>, vector<2x8x8xf32> -> vector<2x8x8xf32>
    "tpu.trace_stop"() : () -> ()
    %236 = vector.broadcast %2 : vector<2x1x8xf32> to vector<2x8x8xf32>
    %237 = arith.addf %235, %236 : vector<2x8x8xf32>
    %cst_73 = arith.constant dense<0xFF800000> : vector<2x8xf32>
    %238 = vector.multi_reduction <maximumf>, %237, %cst_73 [2] : vector<2x8x8xf32> to vector<2x8xf32>
    %239 = vector.shape_cast %238 : vector<2x8xf32> to vector<2x8x1xf32>
    %240 = vector.broadcast %239 : vector<2x8x1xf32> to vector<2x8x8xf32>
    %241 = arith.subf %237, %240 : vector<2x8x8xf32>
    %242 = math.exp %241 : vector<2x8x8xf32>
    %cst_74 = arith.constant dense<0.000000e+00> : vector<2x8xf32>
    %243 = vector.multi_reduction <add>, %242, %cst_74 [2] : vector<2x8x8xf32> to vector<2x8xf32>
    %244 = vector.shape_cast %243 : vector<2x8xf32> to vector<2x8x1xf32>
    %245 = tpu.reciprocal %244 {approx = true} : vector<2x8x1xf32> -> vector<2x8x1xf32>
    %246 = vector.broadcast %245 : vector<2x8x1xf32> to vector<2x8x8xf32>
    %247 = arith.mulf %242, %246 : vector<2x8x8xf32>
    %248 = arith.truncf %247 : vector<2x8x8xf32> to vector<2x8x8xbf16>
    %249 = vector.extract_strided_slice %208 {offsets = [0, 0, 32], sizes = [2, 8, 32], strides = [1, 1, 1]} : vector<2x8x128xbf16> to vector<2x8x32xbf16>
    "tpu.trace_start"() <{level = 10 : i32, message = "bqk,bkd->bqd"}> : () -> ()
    %cst_75 = arith.constant dense<0.000000e+00> : vector<2x8x32xf32>
    %250 = tpu.matmul %248, %249, %cst_75 {dimension_numbers = #tpu.dot_dimension_numbers<[2], [1], [1], [2], [0, 0, 0, 1, 1, 2], [0], [0]>} : vector<2x8x8xbf16>, vector<2x8x32xbf16>, vector<2x8x32xf32> -> vector<2x8x32xf32>
    "tpu.trace_stop"() : () -> ()
    %251 = vector.shape_cast %250 : vector<2x8x32xf32> to vector<16x32xf32>
    %252 = arith.truncf %251 : vector<16x32xf32> to vector<16x32xbf16>
    %253 = vector.extract_strided_slice %202 {offsets = [32, 0], sizes = [32, 128], strides = [1, 1]} : vector<128x128xbf16> to vector<32x128xbf16>
    %cst_76 = arith.constant dense<0.000000e+00> : vector<16x128xf32>
    %254 = tpu.matmul %252, %253, %cst_76 {dimension_numbers = #tpu.dot_dimension_numbers<[1], [0], [0], [1], [0, 0, 1, 1], [], []>} : vector<16x32xbf16>, vector<32x128xbf16>, vector<16x128xf32> -> vector<16x128xf32>
    %255 = arith.addf %232, %254 : vector<16x128xf32>
    %256 = vector.extract_strided_slice %204 {offsets = [0, 0, 64], sizes = [2, 8, 32], strides = [1, 1, 1]} : vector<2x8x128xbf16> to vector<2x8x32xbf16>
    %257 = vector.extract_strided_slice %206 {offsets = [0, 0, 64], sizes = [2, 8, 32], strides = [1, 1, 1]} : vector<2x8x128xbf16> to vector<2x8x32xbf16>
    "tpu.trace_start"() <{level = 10 : i32, message = "bqd,bkd->bqk"}> : () -> ()
    %cst_77 = arith.constant dense<0.000000e+00> : vector<2x8x8xf32>
    %258 = tpu.matmul %256, %257, %cst_77 {dimension_numbers = #tpu.dot_dimension_numbers<[2], [2], [1], [1], [0, 0, 0, 1, 1, 1], [0], [0]>} : vector<2x8x32xbf16>, vector<2x8x32xbf16>, vector<2x8x8xf32> -> vector<2x8x8xf32>
    "tpu.trace_stop"() : () -> ()
    %259 = vector.broadcast %2 : vector<2x1x8xf32> to vector<2x8x8xf32>
    %260 = arith.addf %258, %259 : vector<2x8x8xf32>
    %cst_78 = arith.constant dense<0xFF800000> : vector<2x8xf32>
    %261 = vector.multi_reduction <maximumf>, %260, %cst_78 [2] : vector<2x8x8xf32> to vector<2x8xf32>
    %262 = vector.shape_cast %261 : vector<2x8xf32> to vector<2x8x1xf32>
    %263 = vector.broadcast %262 : vector<2x8x1xf32> to vector<2x8x8xf32>
    %264 = arith.subf %260, %263 : vector<2x8x8xf32>
    %265 = math.exp %264 : vector<2x8x8xf32>
    %cst_79 = arith.constant dense<0.000000e+00> : vector<2x8xf32>
    %266 = vector.multi_reduction <add>, %265, %cst_79 [2] : vector<2x8x8xf32> to vector<2x8xf32>
    %267 = vector.shape_cast %266 : vector<2x8xf32> to vector<2x8x1xf32>
    %268 = tpu.reciprocal %267 {approx = true} : vector<2x8x1xf32> -> vector<2x8x1xf32>
    %269 = vector.broadcast %268 : vector<2x8x1xf32> to vector<2x8x8xf32>
    %270 = arith.mulf %265, %269 : vector<2x8x8xf32>
    %271 = arith.truncf %270 : vector<2x8x8xf32> to vector<2x8x8xbf16>
    %272 = vector.extract_strided_slice %208 {offsets = [0, 0, 64], sizes = [2, 8, 32], strides = [1, 1, 1]} : vector<2x8x128xbf16> to vector<2x8x32xbf16>
    "tpu.trace_start"() <{level = 10 : i32, message = "bqk,bkd->bqd"}> : () -> ()
    %cst_80 = arith.constant dense<0.000000e+00> : vector<2x8x32xf32>
    %273 = tpu.matmul %271, %272, %cst_80 {dimension_numbers = #tpu.dot_dimension_numbers<[2], [1], [1], [2], [0, 0, 0, 1, 1, 2], [0], [0]>} : vector<2x8x8xbf16>, vector<2x8x32xbf16>, vector<2x8x32xf32> -> vector<2x8x32xf32>
    "tpu.trace_stop"() : () -> ()
    %274 = vector.shape_cast %273 : vector<2x8x32xf32> to vector<16x32xf32>
    %275 = arith.truncf %274 : vector<16x32xf32> to vector<16x32xbf16>
    %276 = vector.extract_strided_slice %202 {offsets = [64, 0], sizes = [32, 128], strides = [1, 1]} : vector<128x128xbf16> to vector<32x128xbf16>
    %cst_81 = arith.constant dense<0.000000e+00> : vector<16x128xf32>
    %277 = tpu.matmul %275, %276, %cst_81 {dimension_numbers = #tpu.dot_dimension_numbers<[1], [0], [0], [1], [0, 0, 1, 1], [], []>} : vector<16x32xbf16>, vector<32x128xbf16>, vector<16x128xf32> -> vector<16x128xf32>
    %278 = arith.addf %255, %277 : vector<16x128xf32>
    %279 = vector.extract_strided_slice %204 {offsets = [0, 0, 96], sizes = [2, 8, 32], strides = [1, 1, 1]} : vector<2x8x128xbf16> to vector<2x8x32xbf16>
    %280 = vector.extract_strided_slice %206 {offsets = [0, 0, 96], sizes = [2, 8, 32], strides = [1, 1, 1]} : vector<2x8x128xbf16> to vector<2x8x32xbf16>
    "tpu.trace_start"() <{level = 10 : i32, message = "bqd,bkd->bqk"}> : () -> ()
    %cst_82 = arith.constant dense<0.000000e+00> : vector<2x8x8xf32>
    %281 = tpu.matmul %279, %280, %cst_82 {dimension_numbers = #tpu.dot_dimension_numbers<[2], [2], [1], [1], [0, 0, 0, 1, 1, 1], [0], [0]>} : vector<2x8x32xbf16>, vector<2x8x32xbf16>, vector<2x8x8xf32> -> vector<2x8x8xf32>
    "tpu.trace_stop"() : () -> ()
    %282 = vector.broadcast %2 : vector<2x1x8xf32> to vector<2x8x8xf32>
    %283 = arith.addf %281, %282 : vector<2x8x8xf32>
    %cst_83 = arith.constant dense<0xFF800000> : vector<2x8xf32>
    %284 = vector.multi_reduction <maximumf>, %283, %cst_83 [2] : vector<2x8x8xf32> to vector<2x8xf32>
    %285 = vector.shape_cast %284 : vector<2x8xf32> to vector<2x8x1xf32>
    %286 = vector.broadcast %285 : vector<2x8x1xf32> to vector<2x8x8xf32>
    %287 = arith.subf %283, %286 : vector<2x8x8xf32>
    %288 = math.exp %287 : vector<2x8x8xf32>
    %cst_84 = arith.constant dense<0.000000e+00> : vector<2x8xf32>
    %289 = vector.multi_reduction <add>, %288, %cst_84 [2] : vector<2x8x8xf32> to vector<2x8xf32>
    %290 = vector.shape_cast %289 : vector<2x8xf32> to vector<2x8x1xf32>
    %291 = tpu.reciprocal %290 {approx = true} : vector<2x8x1xf32> -> vector<2x8x1xf32>
    %292 = vector.broadcast %291 : vector<2x8x1xf32> to vector<2x8x8xf32>
    %293 = arith.mulf %288, %292 : vector<2x8x8xf32>
    %294 = arith.truncf %293 : vector<2x8x8xf32> to vector<2x8x8xbf16>
    %295 = vector.extract_strided_slice %208 {offsets = [0, 0, 96], sizes = [2, 8, 32], strides = [1, 1, 1]} : vector<2x8x128xbf16> to vector<2x8x32xbf16>
    "tpu.trace_start"() <{level = 10 : i32, message = "bqk,bkd->bqd"}> : () -> ()
    %cst_85 = arith.constant dense<0.000000e+00> : vector<2x8x32xf32>
    %296 = tpu.matmul %294, %295, %cst_85 {dimension_numbers = #tpu.dot_dimension_numbers<[2], [1], [1], [2], [0, 0, 0, 1, 1, 2], [0], [0]>} : vector<2x8x8xbf16>, vector<2x8x32xbf16>, vector<2x8x32xf32> -> vector<2x8x32xf32>
    "tpu.trace_stop"() : () -> ()
    %297 = vector.shape_cast %296 : vector<2x8x32xf32> to vector<16x32xf32>
    %298 = arith.truncf %297 : vector<16x32xf32> to vector<16x32xbf16>
    %299 = vector.extract_strided_slice %202 {offsets = [96, 0], sizes = [32, 128], strides = [1, 1]} : vector<128x128xbf16> to vector<32x128xbf16>
    %cst_86 = arith.constant dense<0.000000e+00> : vector<16x128xf32>
    %300 = tpu.matmul %298, %299, %cst_86 {dimension_numbers = #tpu.dot_dimension_numbers<[1], [0], [0], [1], [0, 0, 1, 1], [], []>} : vector<16x32xbf16>, vector<32x128xbf16>, vector<16x128xf32> -> vector<16x128xf32>
    %301 = arith.addf %278, %300 : vector<16x128xf32>
    %302 = arith.addf %156, %301 : vector<16x128xf32>
    %303 = vector.extract_strided_slice %13 {offsets = [7, 0], sizes = [1, 128], strides = [1, 1]} : vector<15x128xf32> to vector<1x128xf32>
    %304 = vector.broadcast %303 : vector<1x128xf32> to vector<16x128xf32>
    %305 = arith.addf %302, %304 : vector<16x128xf32>
    %306 = vector.extract_strided_slice %13 {offsets = [13, 0], sizes = [1, 128], strides = [1, 1]} : vector<15x128xf32> to vector<1x128xf32>
    %307 = vector.extract_strided_slice %13 {offsets = [14, 0], sizes = [1, 128], strides = [1, 1]} : vector<15x128xf32> to vector<1x128xf32>
    %cst_87 = arith.constant dense<0.000000e+00> : vector<16xf32>
    %308 = vector.multi_reduction <add>, %305, %cst_87 [1] : vector<16x128xf32> to vector<16xf32>
    %309 = vector.shape_cast %308 : vector<16xf32> to vector<16x1xf32>
    %cst_88 = arith.constant 1.280000e+02 : f32
    %310 = vector.broadcast %cst_88 : f32 to vector<16x1xf32>
    %311 = arith.divf %309, %310 : vector<16x1xf32>
    %312 = vector.broadcast %311 : vector<16x1xf32> to vector<16x128xf32>
    %313 = arith.subf %305, %312 : vector<16x128xf32>
    %314 = arith.mulf %313, %313 : vector<16x128xf32>
    %cst_89 = arith.constant dense<0.000000e+00> : vector<16xf32>
    %315 = vector.multi_reduction <add>, %314, %cst_89 [1] : vector<16x128xf32> to vector<16xf32>
    %316 = vector.shape_cast %315 : vector<16xf32> to vector<16x1xf32>
    %cst_90 = arith.constant 1.280000e+02 : f32
    %317 = vector.broadcast %cst_90 : f32 to vector<16x1xf32>
    %318 = arith.divf %316, %317 : vector<16x1xf32>
    %319 = vector.broadcast %311 : vector<16x1xf32> to vector<16x128xf32>
    %320 = arith.subf %305, %319 : vector<16x128xf32>
    %cst_91 = arith.constant 9.99999974E-6 : f32
    %321 = vector.broadcast %cst_91 : f32 to vector<16x1xf32>
    %322 = arith.addf %318, %321 : vector<16x1xf32>
    %323 = math.rsqrt %322 : vector<16x1xf32>
    %324 = vector.broadcast %323 : vector<16x1xf32> to vector<16x128xf32>
    %325 = arith.mulf %320, %324 : vector<16x128xf32>
    %326 = vector.broadcast %306 : vector<1x128xf32> to vector<16x128xf32>
    %327 = arith.mulf %325, %326 : vector<16x128xf32>
    %328 = vector.broadcast %307 : vector<1x128xf32> to vector<16x128xf32>
    %329 = arith.addf %327, %328 : vector<16x128xf32>
    %330 = arith.truncf %329 : vector<16x128xf32> to vector<16x128xbf16>
    %c0_92 = arith.constant 0 : index
    %c0_93 = arith.constant 0 : index
    %c0_94 = arith.constant 0 : index
    %331 = vector.load %arg11[%c0_92, %c0_93, %c0_94] : memref<2x128x256xbf16, #tpu.memory_space<vmem>>, vector<1x128x256xbf16>
    %332 = vector.shape_cast %331 : vector<1x128x256xbf16> to vector<128x256xbf16>
    %cst_95 = arith.constant dense<0.000000e+00> : vector<16x256xf32>
    %333 = tpu.matmul %330, %332, %cst_95 {dimension_numbers = #tpu.dot_dimension_numbers<[1], [0], [0], [1], [0, 0, 1, 1], [], []>} : vector<16x128xbf16>, vector<128x256xbf16>, vector<16x256xf32> -> vector<16x256xf32>
    %c0_96 = arith.constant 0 : index
    %c0_97 = arith.constant 0 : index
    %c0_98 = arith.constant 0 : index
    %334 = vector.load %arg14[%c0_96, %c0_97, %c0_98] : memref<2x1x256xf32, #tpu.memory_space<vmem>>, vector<1x1x256xf32>
    %335 = vector.shape_cast %334 : vector<1x1x256xf32> to vector<1x256xf32>
    %336 = vector.broadcast %335 : vector<1x256xf32> to vector<16x256xf32>
    %337 = arith.addf %333, %336 : vector<16x256xf32>
    %cst_99 = arith.constant 0.000000e+00 : f32
    %338 = vector.broadcast %cst_99 : f32 to vector<16x256xf32>
    %339 = arith.maximumf %337, %338 : vector<16x256xf32>
    %340 = arith.truncf %339 : vector<16x256xf32> to vector<16x256xbf16>
    %c0_100 = arith.constant 0 : index
    %c0_101 = arith.constant 0 : index
    %c0_102 = arith.constant 0 : index
    %341 = vector.load %arg12[%c0_100, %c0_101, %c0_102] : memref<2x256x128xbf16, #tpu.memory_space<vmem>>, vector<1x256x128xbf16>
    %342 = vector.shape_cast %341 : vector<1x256x128xbf16> to vector<256x128xbf16>
    %cst_103 = arith.constant dense<0.000000e+00> : vector<16x128xf32>
    %343 = tpu.matmul %340, %342, %cst_103 {dimension_numbers = #tpu.dot_dimension_numbers<[1], [0], [0], [1], [0, 0, 1, 1], [], []>} : vector<16x256xbf16>, vector<256x128xbf16>, vector<16x128xf32> -> vector<16x128xf32>
    %344 = vector.extract_strided_slice %13 {offsets = [8, 0], sizes = [1, 128], strides = [1, 1]} : vector<15x128xf32> to vector<1x128xf32>
    %345 = vector.broadcast %344 : vector<1x128xf32> to vector<16x128xf32>
    %346 = arith.addf %343, %345 : vector<16x128xf32>
    %347 = arith.addf %305, %346 : vector<16x128xf32>
    %c1 = arith.constant 1 : index
    %c0_104 = arith.constant 0 : index
    %c0_105 = arith.constant 0 : index
    %348 = vector.load %arg13[%c1, %c0_104, %c0_105] : memref<2x15x128xf32, #tpu.memory_space<vmem>>, vector<1x15x128xf32>
    %349 = vector.shape_cast %348 : vector<1x15x128xf32> to vector<15x128xf32>
    %350 = vector.extract_strided_slice %349 {offsets = [9, 0], sizes = [1, 128], strides = [1, 1]} : vector<15x128xf32> to vector<1x128xf32>
    %351 = vector.extract_strided_slice %349 {offsets = [10, 0], sizes = [1, 128], strides = [1, 1]} : vector<15x128xf32> to vector<1x128xf32>
    %cst_106 = arith.constant dense<0.000000e+00> : vector<16xf32>
    %352 = vector.multi_reduction <add>, %347, %cst_106 [1] : vector<16x128xf32> to vector<16xf32>
    %353 = vector.shape_cast %352 : vector<16xf32> to vector<16x1xf32>
    %cst_107 = arith.constant 1.280000e+02 : f32
    %354 = vector.broadcast %cst_107 : f32 to vector<16x1xf32>
    %355 = arith.divf %353, %354 : vector<16x1xf32>
    %356 = vector.broadcast %355 : vector<16x1xf32> to vector<16x128xf32>
    %357 = arith.subf %347, %356 : vector<16x128xf32>
    %358 = arith.mulf %357, %357 : vector<16x128xf32>
    %cst_108 = arith.constant dense<0.000000e+00> : vector<16xf32>
    %359 = vector.multi_reduction <add>, %358, %cst_108 [1] : vector<16x128xf32> to vector<16xf32>
    %360 = vector.shape_cast %359 : vector<16xf32> to vector<16x1xf32>
    %cst_109 = arith.constant 1.280000e+02 : f32
    %361 = vector.broadcast %cst_109 : f32 to vector<16x1xf32>
    %362 = arith.divf %360, %361 : vector<16x1xf32>
    %363 = vector.broadcast %355 : vector<16x1xf32> to vector<16x128xf32>
    %364 = arith.subf %347, %363 : vector<16x128xf32>
    %cst_110 = arith.constant 9.99999974E-6 : f32
    %365 = vector.broadcast %cst_110 : f32 to vector<16x1xf32>
    %366 = arith.addf %362, %365 : vector<16x1xf32>
    %367 = math.rsqrt %366 : vector<16x1xf32>
    %368 = vector.broadcast %367 : vector<16x1xf32> to vector<16x128xf32>
    %369 = arith.mulf %364, %368 : vector<16x128xf32>
    %370 = vector.broadcast %350 : vector<1x128xf32> to vector<16x128xf32>
    %371 = arith.mulf %369, %370 : vector<16x128xf32>
    %372 = vector.broadcast %351 : vector<1x128xf32> to vector<16x128xf32>
    %373 = arith.addf %371, %372 : vector<16x128xf32>
    %374 = arith.truncf %373 : vector<16x128xf32> to vector<16x128xbf16>
    %c1_111 = arith.constant 1 : index
    %c0_112 = arith.constant 0 : index
    %c0_113 = arith.constant 0 : index
    %375 = vector.load %arg6[%c1_111, %c0_112, %c0_113] : memref<2x128x384xbf16, #tpu.memory_space<vmem>>, vector<1x128x384xbf16>
    %376 = vector.shape_cast %375 : vector<1x128x384xbf16> to vector<128x384xbf16>
    %cst_114 = arith.constant dense<0.000000e+00> : vector<16x384xf32>
    %377 = tpu.matmul %374, %376, %cst_114 {dimension_numbers = #tpu.dot_dimension_numbers<[1], [0], [0], [1], [0, 0, 1, 1], [], []>} : vector<16x128xbf16>, vector<128x384xbf16>, vector<16x384xf32> -> vector<16x384xf32>
    %378 = vector.extract_strided_slice %377 {offsets = [0, 0], sizes = [16, 128], strides = [1, 1]} : vector<16x384xf32> to vector<16x128xf32>
    %379 = vector.extract_strided_slice %349 {offsets = [0, 0], sizes = [1, 128], strides = [1, 1]} : vector<15x128xf32> to vector<1x128xf32>
    %380 = vector.broadcast %379 : vector<1x128xf32> to vector<16x128xf32>
    %381 = arith.addf %378, %380 : vector<16x128xf32>
    %cst_115 = arith.constant 0.176776692 : f32
    %382 = vector.broadcast %cst_115 : f32 to vector<16x128xf32>
    %383 = arith.mulf %381, %382 : vector<16x128xf32>
    %384 = vector.extract_strided_slice %377 {offsets = [0, 128], sizes = [16, 128], strides = [1, 1]} : vector<16x384xf32> to vector<16x128xf32>
    %385 = vector.extract_strided_slice %349 {offsets = [1, 0], sizes = [1, 128], strides = [1, 1]} : vector<15x128xf32> to vector<1x128xf32>
    %386 = vector.broadcast %385 : vector<1x128xf32> to vector<16x128xf32>
    %387 = arith.addf %384, %386 : vector<16x128xf32>
    %388 = vector.extract_strided_slice %377 {offsets = [0, 256], sizes = [16, 128], strides = [1, 1]} : vector<16x384xf32> to vector<16x128xf32>
    %389 = vector.extract_strided_slice %349 {offsets = [2, 0], sizes = [1, 128], strides = [1, 1]} : vector<15x128xf32> to vector<1x128xf32>
    %390 = vector.broadcast %389 : vector<1x128xf32> to vector<16x128xf32>
    %391 = arith.addf %388, %390 : vector<16x128xf32>
    %c1_116 = arith.constant 1 : index
    %c0_117 = arith.constant 0 : index
    %c0_118 = arith.constant 0 : index
    %392 = vector.load %arg7[%c1_116, %c0_117, %c0_118] : memref<2x128x128xbf16, #tpu.memory_space<vmem>>, vector<1x128x128xbf16>
    %393 = vector.shape_cast %392 : vector<1x128x128xbf16> to vector<128x128xbf16>
    %394 = arith.truncf %383 : vector<16x128xf32> to vector<16x128xbf16>
    %395 = vector.shape_cast %394 : vector<16x128xbf16> to vector<2x8x128xbf16>
    %396 = arith.truncf %387 : vector<16x128xf32> to vector<16x128xbf16>
    %397 = vector.shape_cast %396 : vector<16x128xbf16> to vector<2x8x128xbf16>
    %398 = arith.truncf %391 : vector<16x128xf32> to vector<16x128xbf16>
    %399 = vector.shape_cast %398 : vector<16x128xbf16> to vector<2x8x128xbf16>
    %cst_119 = arith.constant 0.000000e+00 : f32
    %400 = vector.broadcast %cst_119 : f32 to vector<16x128xf32>
    %401 = vector.extract_strided_slice %395 {offsets = [0, 0, 0], sizes = [2, 8, 32], strides = [1, 1, 1]} : vector<2x8x128xbf16> to vector<2x8x32xbf16>
    %402 = vector.extract_strided_slice %397 {offsets = [0, 0, 0], sizes = [2, 8, 32], strides = [1, 1, 1]} : vector<2x8x128xbf16> to vector<2x8x32xbf16>
    "tpu.trace_start"() <{level = 10 : i32, message = "bqd,bkd->bqk"}> : () -> ()
    %cst_120 = arith.constant dense<0.000000e+00> : vector<2x8x8xf32>
    %403 = tpu.matmul %401, %402, %cst_120 {dimension_numbers = #tpu.dot_dimension_numbers<[2], [2], [1], [1], [0, 0, 0, 1, 1, 1], [0], [0]>} : vector<2x8x32xbf16>, vector<2x8x32xbf16>, vector<2x8x8xf32> -> vector<2x8x8xf32>
    "tpu.trace_stop"() : () -> ()
    %404 = arith.addf %403, %6 : vector<2x8x8xf32>
    %cst_121 = arith.constant dense<0xFF800000> : vector<2x8xf32>
    %405 = vector.multi_reduction <maximumf>, %404, %cst_121 [2] : vector<2x8x8xf32> to vector<2x8xf32>
    %406 = vector.shape_cast %405 : vector<2x8xf32> to vector<2x8x1xf32>
    %407 = vector.broadcast %406 : vector<2x8x1xf32> to vector<2x8x8xf32>
    %408 = arith.subf %404, %407 : vector<2x8x8xf32>
    %409 = math.exp %408 : vector<2x8x8xf32>
    %cst_122 = arith.constant dense<0.000000e+00> : vector<2x8xf32>
    %410 = vector.multi_reduction <add>, %409, %cst_122 [2] : vector<2x8x8xf32> to vector<2x8xf32>
    %411 = vector.shape_cast %410 : vector<2x8xf32> to vector<2x8x1xf32>
    %412 = tpu.reciprocal %411 {approx = true} : vector<2x8x1xf32> -> vector<2x8x1xf32>
    %413 = vector.broadcast %412 : vector<2x8x1xf32> to vector<2x8x8xf32>
    %414 = arith.mulf %409, %413 : vector<2x8x8xf32>
    %415 = arith.truncf %414 : vector<2x8x8xf32> to vector<2x8x8xbf16>
    %416 = vector.extract_strided_slice %399 {offsets = [0, 0, 0], sizes = [2, 8, 32], strides = [1, 1, 1]} : vector<2x8x128xbf16> to vector<2x8x32xbf16>
    "tpu.trace_start"() <{level = 10 : i32, message = "bqk,bkd->bqd"}> : () -> ()
    %cst_123 = arith.constant dense<0.000000e+00> : vector<2x8x32xf32>
    %417 = tpu.matmul %415, %416, %cst_123 {dimension_numbers = #tpu.dot_dimension_numbers<[2], [1], [1], [2], [0, 0, 0, 1, 1, 2], [0], [0]>} : vector<2x8x8xbf16>, vector<2x8x32xbf16>, vector<2x8x32xf32> -> vector<2x8x32xf32>
    "tpu.trace_stop"() : () -> ()
    %418 = vector.shape_cast %417 : vector<2x8x32xf32> to vector<16x32xf32>
    %419 = arith.truncf %418 : vector<16x32xf32> to vector<16x32xbf16>
    %420 = vector.extract_strided_slice %393 {offsets = [0, 0], sizes = [32, 128], strides = [1, 1]} : vector<128x128xbf16> to vector<32x128xbf16>
    %cst_124 = arith.constant dense<0.000000e+00> : vector<16x128xf32>
    %421 = tpu.matmul %419, %420, %cst_124 {dimension_numbers = #tpu.dot_dimension_numbers<[1], [0], [0], [1], [0, 0, 1, 1], [], []>} : vector<16x32xbf16>, vector<32x128xbf16>, vector<16x128xf32> -> vector<16x128xf32>
    %422 = arith.addf %400, %421 : vector<16x128xf32>
    %423 = vector.extract_strided_slice %395 {offsets = [0, 0, 32], sizes = [2, 8, 32], strides = [1, 1, 1]} : vector<2x8x128xbf16> to vector<2x8x32xbf16>
    %424 = vector.extract_strided_slice %397 {offsets = [0, 0, 32], sizes = [2, 8, 32], strides = [1, 1, 1]} : vector<2x8x128xbf16> to vector<2x8x32xbf16>
    "tpu.trace_start"() <{level = 10 : i32, message = "bqd,bkd->bqk"}> : () -> ()
    %cst_125 = arith.constant dense<0.000000e+00> : vector<2x8x8xf32>
    %425 = tpu.matmul %423, %424, %cst_125 {dimension_numbers = #tpu.dot_dimension_numbers<[2], [2], [1], [1], [0, 0, 0, 1, 1, 1], [0], [0]>} : vector<2x8x32xbf16>, vector<2x8x32xbf16>, vector<2x8x8xf32> -> vector<2x8x8xf32>
    "tpu.trace_stop"() : () -> ()
    %426 = arith.addf %425, %6 : vector<2x8x8xf32>
    %cst_126 = arith.constant dense<0xFF800000> : vector<2x8xf32>
    %427 = vector.multi_reduction <maximumf>, %426, %cst_126 [2] : vector<2x8x8xf32> to vector<2x8xf32>
    %428 = vector.shape_cast %427 : vector<2x8xf32> to vector<2x8x1xf32>
    %429 = vector.broadcast %428 : vector<2x8x1xf32> to vector<2x8x8xf32>
    %430 = arith.subf %426, %429 : vector<2x8x8xf32>
    %431 = math.exp %430 : vector<2x8x8xf32>
    %cst_127 = arith.constant dense<0.000000e+00> : vector<2x8xf32>
    %432 = vector.multi_reduction <add>, %431, %cst_127 [2] : vector<2x8x8xf32> to vector<2x8xf32>
    %433 = vector.shape_cast %432 : vector<2x8xf32> to vector<2x8x1xf32>
    %434 = tpu.reciprocal %433 {approx = true} : vector<2x8x1xf32> -> vector<2x8x1xf32>
    %435 = vector.broadcast %434 : vector<2x8x1xf32> to vector<2x8x8xf32>
    %436 = arith.mulf %431, %435 : vector<2x8x8xf32>
    %437 = arith.truncf %436 : vector<2x8x8xf32> to vector<2x8x8xbf16>
    %438 = vector.extract_strided_slice %399 {offsets = [0, 0, 32], sizes = [2, 8, 32], strides = [1, 1, 1]} : vector<2x8x128xbf16> to vector<2x8x32xbf16>
    "tpu.trace_start"() <{level = 10 : i32, message = "bqk,bkd->bqd"}> : () -> ()
    %cst_128 = arith.constant dense<0.000000e+00> : vector<2x8x32xf32>
    %439 = tpu.matmul %437, %438, %cst_128 {dimension_numbers = #tpu.dot_dimension_numbers<[2], [1], [1], [2], [0, 0, 0, 1, 1, 2], [0], [0]>} : vector<2x8x8xbf16>, vector<2x8x32xbf16>, vector<2x8x32xf32> -> vector<2x8x32xf32>
    "tpu.trace_stop"() : () -> ()
    %440 = vector.shape_cast %439 : vector<2x8x32xf32> to vector<16x32xf32>
    %441 = arith.truncf %440 : vector<16x32xf32> to vector<16x32xbf16>
    %442 = vector.extract_strided_slice %393 {offsets = [32, 0], sizes = [32, 128], strides = [1, 1]} : vector<128x128xbf16> to vector<32x128xbf16>
    %cst_129 = arith.constant dense<0.000000e+00> : vector<16x128xf32>
    %443 = tpu.matmul %441, %442, %cst_129 {dimension_numbers = #tpu.dot_dimension_numbers<[1], [0], [0], [1], [0, 0, 1, 1], [], []>} : vector<16x32xbf16>, vector<32x128xbf16>, vector<16x128xf32> -> vector<16x128xf32>
    %444 = arith.addf %422, %443 : vector<16x128xf32>
    %445 = vector.extract_strided_slice %395 {offsets = [0, 0, 64], sizes = [2, 8, 32], strides = [1, 1, 1]} : vector<2x8x128xbf16> to vector<2x8x32xbf16>
    %446 = vector.extract_strided_slice %397 {offsets = [0, 0, 64], sizes = [2, 8, 32], strides = [1, 1, 1]} : vector<2x8x128xbf16> to vector<2x8x32xbf16>
    "tpu.trace_start"() <{level = 10 : i32, message = "bqd,bkd->bqk"}> : () -> ()
    %cst_130 = arith.constant dense<0.000000e+00> : vector<2x8x8xf32>
    %447 = tpu.matmul %445, %446, %cst_130 {dimension_numbers = #tpu.dot_dimension_numbers<[2], [2], [1], [1], [0, 0, 0, 1, 1, 1], [0], [0]>} : vector<2x8x32xbf16>, vector<2x8x32xbf16>, vector<2x8x8xf32> -> vector<2x8x8xf32>
    "tpu.trace_stop"() : () -> ()
    %448 = arith.addf %447, %6 : vector<2x8x8xf32>
    %cst_131 = arith.constant dense<0xFF800000> : vector<2x8xf32>
    %449 = vector.multi_reduction <maximumf>, %448, %cst_131 [2] : vector<2x8x8xf32> to vector<2x8xf32>
    %450 = vector.shape_cast %449 : vector<2x8xf32> to vector<2x8x1xf32>
    %451 = vector.broadcast %450 : vector<2x8x1xf32> to vector<2x8x8xf32>
    %452 = arith.subf %448, %451 : vector<2x8x8xf32>
    %453 = math.exp %452 : vector<2x8x8xf32>
    %cst_132 = arith.constant dense<0.000000e+00> : vector<2x8xf32>
    %454 = vector.multi_reduction <add>, %453, %cst_132 [2] : vector<2x8x8xf32> to vector<2x8xf32>
    %455 = vector.shape_cast %454 : vector<2x8xf32> to vector<2x8x1xf32>
    %456 = tpu.reciprocal %455 {approx = true} : vector<2x8x1xf32> -> vector<2x8x1xf32>
    %457 = vector.broadcast %456 : vector<2x8x1xf32> to vector<2x8x8xf32>
    %458 = arith.mulf %453, %457 : vector<2x8x8xf32>
    %459 = arith.truncf %458 : vector<2x8x8xf32> to vector<2x8x8xbf16>
    %460 = vector.extract_strided_slice %399 {offsets = [0, 0, 64], sizes = [2, 8, 32], strides = [1, 1, 1]} : vector<2x8x128xbf16> to vector<2x8x32xbf16>
    "tpu.trace_start"() <{level = 10 : i32, message = "bqk,bkd->bqd"}> : () -> ()
    %cst_133 = arith.constant dense<0.000000e+00> : vector<2x8x32xf32>
    %461 = tpu.matmul %459, %460, %cst_133 {dimension_numbers = #tpu.dot_dimension_numbers<[2], [1], [1], [2], [0, 0, 0, 1, 1, 2], [0], [0]>} : vector<2x8x8xbf16>, vector<2x8x32xbf16>, vector<2x8x32xf32> -> vector<2x8x32xf32>
    "tpu.trace_stop"() : () -> ()
    %462 = vector.shape_cast %461 : vector<2x8x32xf32> to vector<16x32xf32>
    %463 = arith.truncf %462 : vector<16x32xf32> to vector<16x32xbf16>
    %464 = vector.extract_strided_slice %393 {offsets = [64, 0], sizes = [32, 128], strides = [1, 1]} : vector<128x128xbf16> to vector<32x128xbf16>
    %cst_134 = arith.constant dense<0.000000e+00> : vector<16x128xf32>
    %465 = tpu.matmul %463, %464, %cst_134 {dimension_numbers = #tpu.dot_dimension_numbers<[1], [0], [0], [1], [0, 0, 1, 1], [], []>} : vector<16x32xbf16>, vector<32x128xbf16>, vector<16x128xf32> -> vector<16x128xf32>
    %466 = arith.addf %444, %465 : vector<16x128xf32>
    %467 = vector.extract_strided_slice %395 {offsets = [0, 0, 96], sizes = [2, 8, 32], strides = [1, 1, 1]} : vector<2x8x128xbf16> to vector<2x8x32xbf16>
    %468 = vector.extract_strided_slice %397 {offsets = [0, 0, 96], sizes = [2, 8, 32], strides = [1, 1, 1]} : vector<2x8x128xbf16> to vector<2x8x32xbf16>
    "tpu.trace_start"() <{level = 10 : i32, message = "bqd,bkd->bqk"}> : () -> ()
    %cst_135 = arith.constant dense<0.000000e+00> : vector<2x8x8xf32>
    %469 = tpu.matmul %467, %468, %cst_135 {dimension_numbers = #tpu.dot_dimension_numbers<[2], [2], [1], [1], [0, 0, 0, 1, 1, 1], [0], [0]>} : vector<2x8x32xbf16>, vector<2x8x32xbf16>, vector<2x8x8xf32> -> vector<2x8x8xf32>
    "tpu.trace_stop"() : () -> ()
    %470 = arith.addf %469, %6 : vector<2x8x8xf32>
    %cst_136 = arith.constant dense<0xFF800000> : vector<2x8xf32>
    %471 = vector.multi_reduction <maximumf>, %470, %cst_136 [2] : vector<2x8x8xf32> to vector<2x8xf32>
    %472 = vector.shape_cast %471 : vector<2x8xf32> to vector<2x8x1xf32>
    %473 = vector.broadcast %472 : vector<2x8x1xf32> to vector<2x8x8xf32>
    %474 = arith.subf %470, %473 : vector<2x8x8xf32>
    %475 = math.exp %474 : vector<2x8x8xf32>
    %cst_137 = arith.constant dense<0.000000e+00> : vector<2x8xf32>
    %476 = vector.multi_reduction <add>, %475, %cst_137 [2] : vector<2x8x8xf32> to vector<2x8xf32>
    %477 = vector.shape_cast %476 : vector<2x8xf32> to vector<2x8x1xf32>
    %478 = tpu.reciprocal %477 {approx = true} : vector<2x8x1xf32> -> vector<2x8x1xf32>
    %479 = vector.broadcast %478 : vector<2x8x1xf32> to vector<2x8x8xf32>
    %480 = arith.mulf %475, %479 : vector<2x8x8xf32>
    %481 = arith.truncf %480 : vector<2x8x8xf32> to vector<2x8x8xbf16>
    %482 = vector.extract_strided_slice %399 {offsets = [0, 0, 96], sizes = [2, 8, 32], strides = [1, 1, 1]} : vector<2x8x128xbf16> to vector<2x8x32xbf16>
    "tpu.trace_start"() <{level = 10 : i32, message = "bqk,bkd->bqd"}> : () -> ()
    %cst_138 = arith.constant dense<0.000000e+00> : vector<2x8x32xf32>
    %483 = tpu.matmul %481, %482, %cst_138 {dimension_numbers = #tpu.dot_dimension_numbers<[2], [1], [1], [2], [0, 0, 0, 1, 1, 2], [0], [0]>} : vector<2x8x8xbf16>, vector<2x8x32xbf16>, vector<2x8x32xf32> -> vector<2x8x32xf32>
    "tpu.trace_stop"() : () -> ()
    %484 = vector.shape_cast %483 : vector<2x8x32xf32> to vector<16x32xf32>
    %485 = arith.truncf %484 : vector<16x32xf32> to vector<16x32xbf16>
    %486 = vector.extract_strided_slice %393 {offsets = [96, 0], sizes = [32, 128], strides = [1, 1]} : vector<128x128xbf16> to vector<32x128xbf16>
    %cst_139 = arith.constant dense<0.000000e+00> : vector<16x128xf32>
    %487 = tpu.matmul %485, %486, %cst_139 {dimension_numbers = #tpu.dot_dimension_numbers<[1], [0], [0], [1], [0, 0, 1, 1], [], []>} : vector<16x32xbf16>, vector<32x128xbf16>, vector<16x128xf32> -> vector<16x128xf32>
    %488 = arith.addf %466, %487 : vector<16x128xf32>
    %489 = arith.addf %347, %488 : vector<16x128xf32>
    %490 = vector.extract_strided_slice %349 {offsets = [3, 0], sizes = [1, 128], strides = [1, 1]} : vector<15x128xf32> to vector<1x128xf32>
    %491 = vector.broadcast %490 : vector<1x128xf32> to vector<16x128xf32>
    %492 = arith.addf %489, %491 : vector<16x128xf32>
    %493 = vector.extract_strided_slice %349 {offsets = [11, 0], sizes = [1, 128], strides = [1, 1]} : vector<15x128xf32> to vector<1x128xf32>
    %494 = vector.extract_strided_slice %349 {offsets = [12, 0], sizes = [1, 128], strides = [1, 1]} : vector<15x128xf32> to vector<1x128xf32>
    %cst_140 = arith.constant dense<0.000000e+00> : vector<16xf32>
    %495 = vector.multi_reduction <add>, %492, %cst_140 [1] : vector<16x128xf32> to vector<16xf32>
    %496 = vector.shape_cast %495 : vector<16xf32> to vector<16x1xf32>
    %cst_141 = arith.constant 1.280000e+02 : f32
    %497 = vector.broadcast %cst_141 : f32 to vector<16x1xf32>
    %498 = arith.divf %496, %497 : vector<16x1xf32>
    %499 = vector.broadcast %498 : vector<16x1xf32> to vector<16x128xf32>
    %500 = arith.subf %492, %499 : vector<16x128xf32>
    %501 = arith.mulf %500, %500 : vector<16x128xf32>
    %cst_142 = arith.constant dense<0.000000e+00> : vector<16xf32>
    %502 = vector.multi_reduction <add>, %501, %cst_142 [1] : vector<16x128xf32> to vector<16xf32>
    %503 = vector.shape_cast %502 : vector<16xf32> to vector<16x1xf32>
    %cst_143 = arith.constant 1.280000e+02 : f32
    %504 = vector.broadcast %cst_143 : f32 to vector<16x1xf32>
    %505 = arith.divf %503, %504 : vector<16x1xf32>
    %506 = vector.broadcast %498 : vector<16x1xf32> to vector<16x128xf32>
    %507 = arith.subf %492, %506 : vector<16x128xf32>
    %cst_144 = arith.constant 9.99999974E-6 : f32
    %508 = vector.broadcast %cst_144 : f32 to vector<16x1xf32>
    %509 = arith.addf %505, %508 : vector<16x1xf32>
    %510 = math.rsqrt %509 : vector<16x1xf32>
    %511 = vector.broadcast %510 : vector<16x1xf32> to vector<16x128xf32>
    %512 = arith.mulf %507, %511 : vector<16x128xf32>
    %513 = vector.broadcast %493 : vector<1x128xf32> to vector<16x128xf32>
    %514 = arith.mulf %512, %513 : vector<16x128xf32>
    %515 = vector.broadcast %494 : vector<1x128xf32> to vector<16x128xf32>
    %516 = arith.addf %514, %515 : vector<16x128xf32>
    %517 = arith.truncf %516 : vector<16x128xf32> to vector<16x128xbf16>
    %c1_145 = arith.constant 1 : index
    %c0_146 = arith.constant 0 : index
    %c0_147 = arith.constant 0 : index
    %518 = vector.load %arg8[%c1_145, %c0_146, %c0_147] : memref<2x128x128xbf16, #tpu.memory_space<vmem>>, vector<1x128x128xbf16>
    %519 = vector.shape_cast %518 : vector<1x128x128xbf16> to vector<128x128xbf16>
    %cst_148 = arith.constant dense<0.000000e+00> : vector<16x128xf32>
    %520 = tpu.matmul %517, %519, %cst_148 {dimension_numbers = #tpu.dot_dimension_numbers<[1], [0], [0], [1], [0, 0, 1, 1], [], []>} : vector<16x128xbf16>, vector<128x128xbf16>, vector<16x128xf32> -> vector<16x128xf32>
    %521 = vector.extract_strided_slice %349 {offsets = [4, 0], sizes = [1, 128], strides = [1, 1]} : vector<15x128xf32> to vector<1x128xf32>
    %522 = vector.broadcast %521 : vector<1x128xf32> to vector<16x128xf32>
    %523 = arith.addf %520, %522 : vector<16x128xf32>
    %cst_149 = arith.constant 0.176776692 : f32
    %524 = vector.broadcast %cst_149 : f32 to vector<16x128xf32>
    %525 = arith.mulf %523, %524 : vector<16x128xf32>
    %c1_150 = arith.constant 1 : index
    %c0_151 = arith.constant 0 : index
    %c0_152 = arith.constant 0 : index
    %526 = vector.load %arg9[%c1_150, %c0_151, %c0_152] : memref<2x128x256xbf16, #tpu.memory_space<vmem>>, vector<1x128x256xbf16>
    %527 = vector.shape_cast %526 : vector<1x128x256xbf16> to vector<128x256xbf16>
    %cst_153 = arith.constant dense<0.000000e+00> : vector<16x256xf32>
    %528 = tpu.matmul %11, %527, %cst_153 {dimension_numbers = #tpu.dot_dimension_numbers<[1], [0], [0], [1], [0, 0, 1, 1], [], []>} : vector<16x128xbf16>, vector<128x256xbf16>, vector<16x256xf32> -> vector<16x256xf32>
    %529 = vector.extract_strided_slice %528 {offsets = [0, 0], sizes = [16, 128], strides = [1, 1]} : vector<16x256xf32> to vector<16x128xf32>
    %530 = vector.extract_strided_slice %349 {offsets = [5, 0], sizes = [1, 128], strides = [1, 1]} : vector<15x128xf32> to vector<1x128xf32>
    %531 = vector.broadcast %530 : vector<1x128xf32> to vector<16x128xf32>
    %532 = arith.addf %529, %531 : vector<16x128xf32>
    %533 = vector.extract_strided_slice %528 {offsets = [0, 128], sizes = [16, 128], strides = [1, 1]} : vector<16x256xf32> to vector<16x128xf32>
    %534 = vector.extract_strided_slice %349 {offsets = [6, 0], sizes = [1, 128], strides = [1, 1]} : vector<15x128xf32> to vector<1x128xf32>
    %535 = vector.broadcast %534 : vector<1x128xf32> to vector<16x128xf32>
    %536 = arith.addf %533, %535 : vector<16x128xf32>
    %c1_154 = arith.constant 1 : index
    %c0_155 = arith.constant 0 : index
    %c0_156 = arith.constant 0 : index
    %537 = vector.load %arg10[%c1_154, %c0_155, %c0_156] : memref<2x128x128xbf16, #tpu.memory_space<vmem>>, vector<1x128x128xbf16>
    %538 = vector.shape_cast %537 : vector<1x128x128xbf16> to vector<128x128xbf16>
    %539 = arith.truncf %525 : vector<16x128xf32> to vector<16x128xbf16>
    %540 = vector.shape_cast %539 : vector<16x128xbf16> to vector<2x8x128xbf16>
    %541 = arith.truncf %532 : vector<16x128xf32> to vector<16x128xbf16>
    %542 = vector.shape_cast %541 : vector<16x128xbf16> to vector<2x8x128xbf16>
    %543 = arith.truncf %536 : vector<16x128xf32> to vector<16x128xbf16>
    %544 = vector.shape_cast %543 : vector<16x128xbf16> to vector<2x8x128xbf16>
    %cst_157 = arith.constant 0.000000e+00 : f32
    %545 = vector.broadcast %cst_157 : f32 to vector<16x128xf32>
    %546 = vector.extract_strided_slice %540 {offsets = [0, 0, 0], sizes = [2, 8, 32], strides = [1, 1, 1]} : vector<2x8x128xbf16> to vector<2x8x32xbf16>
    %547 = vector.extract_strided_slice %542 {offsets = [0, 0, 0], sizes = [2, 8, 32], strides = [1, 1, 1]} : vector<2x8x128xbf16> to vector<2x8x32xbf16>
    "tpu.trace_start"() <{level = 10 : i32, message = "bqd,bkd->bqk"}> : () -> ()
    %cst_158 = arith.constant dense<0.000000e+00> : vector<2x8x8xf32>
    %548 = tpu.matmul %546, %547, %cst_158 {dimension_numbers = #tpu.dot_dimension_numbers<[2], [2], [1], [1], [0, 0, 0, 1, 1, 1], [0], [0]>} : vector<2x8x32xbf16>, vector<2x8x32xbf16>, vector<2x8x8xf32> -> vector<2x8x8xf32>
    "tpu.trace_stop"() : () -> ()
    %549 = vector.broadcast %2 : vector<2x1x8xf32> to vector<2x8x8xf32>
    %550 = arith.addf %548, %549 : vector<2x8x8xf32>
    %cst_159 = arith.constant dense<0xFF800000> : vector<2x8xf32>
    %551 = vector.multi_reduction <maximumf>, %550, %cst_159 [2] : vector<2x8x8xf32> to vector<2x8xf32>
    %552 = vector.shape_cast %551 : vector<2x8xf32> to vector<2x8x1xf32>
    %553 = vector.broadcast %552 : vector<2x8x1xf32> to vector<2x8x8xf32>
    %554 = arith.subf %550, %553 : vector<2x8x8xf32>
    %555 = math.exp %554 : vector<2x8x8xf32>
    %cst_160 = arith.constant dense<0.000000e+00> : vector<2x8xf32>
    %556 = vector.multi_reduction <add>, %555, %cst_160 [2] : vector<2x8x8xf32> to vector<2x8xf32>
    %557 = vector.shape_cast %556 : vector<2x8xf32> to vector<2x8x1xf32>
    %558 = tpu.reciprocal %557 {approx = true} : vector<2x8x1xf32> -> vector<2x8x1xf32>
    %559 = vector.broadcast %558 : vector<2x8x1xf32> to vector<2x8x8xf32>
    %560 = arith.mulf %555, %559 : vector<2x8x8xf32>
    %561 = arith.truncf %560 : vector<2x8x8xf32> to vector<2x8x8xbf16>
    %562 = vector.extract_strided_slice %544 {offsets = [0, 0, 0], sizes = [2, 8, 32], strides = [1, 1, 1]} : vector<2x8x128xbf16> to vector<2x8x32xbf16>
    "tpu.trace_start"() <{level = 10 : i32, message = "bqk,bkd->bqd"}> : () -> ()
    %cst_161 = arith.constant dense<0.000000e+00> : vector<2x8x32xf32>
    %563 = tpu.matmul %561, %562, %cst_161 {dimension_numbers = #tpu.dot_dimension_numbers<[2], [1], [1], [2], [0, 0, 0, 1, 1, 2], [0], [0]>} : vector<2x8x8xbf16>, vector<2x8x32xbf16>, vector<2x8x32xf32> -> vector<2x8x32xf32>
    "tpu.trace_stop"() : () -> ()
    %564 = vector.shape_cast %563 : vector<2x8x32xf32> to vector<16x32xf32>
    %565 = arith.truncf %564 : vector<16x32xf32> to vector<16x32xbf16>
    %566 = vector.extract_strided_slice %538 {offsets = [0, 0], sizes = [32, 128], strides = [1, 1]} : vector<128x128xbf16> to vector<32x128xbf16>
    %cst_162 = arith.constant dense<0.000000e+00> : vector<16x128xf32>
    %567 = tpu.matmul %565, %566, %cst_162 {dimension_numbers = #tpu.dot_dimension_numbers<[1], [0], [0], [1], [0, 0, 1, 1], [], []>} : vector<16x32xbf16>, vector<32x128xbf16>, vector<16x128xf32> -> vector<16x128xf32>
    %568 = arith.addf %545, %567 : vector<16x128xf32>
    %569 = vector.extract_strided_slice %540 {offsets = [0, 0, 32], sizes = [2, 8, 32], strides = [1, 1, 1]} : vector<2x8x128xbf16> to vector<2x8x32xbf16>
    %570 = vector.extract_strided_slice %542 {offsets = [0, 0, 32], sizes = [2, 8, 32], strides = [1, 1, 1]} : vector<2x8x128xbf16> to vector<2x8x32xbf16>
    "tpu.trace_start"() <{level = 10 : i32, message = "bqd,bkd->bqk"}> : () -> ()
    %cst_163 = arith.constant dense<0.000000e+00> : vector<2x8x8xf32>
    %571 = tpu.matmul %569, %570, %cst_163 {dimension_numbers = #tpu.dot_dimension_numbers<[2], [2], [1], [1], [0, 0, 0, 1, 1, 1], [0], [0]>} : vector<2x8x32xbf16>, vector<2x8x32xbf16>, vector<2x8x8xf32> -> vector<2x8x8xf32>
    "tpu.trace_stop"() : () -> ()
    %572 = vector.broadcast %2 : vector<2x1x8xf32> to vector<2x8x8xf32>
    %573 = arith.addf %571, %572 : vector<2x8x8xf32>
    %cst_164 = arith.constant dense<0xFF800000> : vector<2x8xf32>
    %574 = vector.multi_reduction <maximumf>, %573, %cst_164 [2] : vector<2x8x8xf32> to vector<2x8xf32>
    %575 = vector.shape_cast %574 : vector<2x8xf32> to vector<2x8x1xf32>
    %576 = vector.broadcast %575 : vector<2x8x1xf32> to vector<2x8x8xf32>
    %577 = arith.subf %573, %576 : vector<2x8x8xf32>
    %578 = math.exp %577 : vector<2x8x8xf32>
    %cst_165 = arith.constant dense<0.000000e+00> : vector<2x8xf32>
    %579 = vector.multi_reduction <add>, %578, %cst_165 [2] : vector<2x8x8xf32> to vector<2x8xf32>
    %580 = vector.shape_cast %579 : vector<2x8xf32> to vector<2x8x1xf32>
    %581 = tpu.reciprocal %580 {approx = true} : vector<2x8x1xf32> -> vector<2x8x1xf32>
    %582 = vector.broadcast %581 : vector<2x8x1xf32> to vector<2x8x8xf32>
    %583 = arith.mulf %578, %582 : vector<2x8x8xf32>
    %584 = arith.truncf %583 : vector<2x8x8xf32> to vector<2x8x8xbf16>
    %585 = vector.extract_strided_slice %544 {offsets = [0, 0, 32], sizes = [2, 8, 32], strides = [1, 1, 1]} : vector<2x8x128xbf16> to vector<2x8x32xbf16>
    "tpu.trace_start"() <{level = 10 : i32, message = "bqk,bkd->bqd"}> : () -> ()
    %cst_166 = arith.constant dense<0.000000e+00> : vector<2x8x32xf32>
    %586 = tpu.matmul %584, %585, %cst_166 {dimension_numbers = #tpu.dot_dimension_numbers<[2], [1], [1], [2], [0, 0, 0, 1, 1, 2], [0], [0]>} : vector<2x8x8xbf16>, vector<2x8x32xbf16>, vector<2x8x32xf32> -> vector<2x8x32xf32>
    "tpu.trace_stop"() : () -> ()
    %587 = vector.shape_cast %586 : vector<2x8x32xf32> to vector<16x32xf32>
    %588 = arith.truncf %587 : vector<16x32xf32> to vector<16x32xbf16>
    %589 = vector.extract_strided_slice %538 {offsets = [32, 0], sizes = [32, 128], strides = [1, 1]} : vector<128x128xbf16> to vector<32x128xbf16>
    %cst_167 = arith.constant dense<0.000000e+00> : vector<16x128xf32>
    %590 = tpu.matmul %588, %589, %cst_167 {dimension_numbers = #tpu.dot_dimension_numbers<[1], [0], [0], [1], [0, 0, 1, 1], [], []>} : vector<16x32xbf16>, vector<32x128xbf16>, vector<16x128xf32> -> vector<16x128xf32>
    %591 = arith.addf %568, %590 : vector<16x128xf32>
    %592 = vector.extract_strided_slice %540 {offsets = [0, 0, 64], sizes = [2, 8, 32], strides = [1, 1, 1]} : vector<2x8x128xbf16> to vector<2x8x32xbf16>
    %593 = vector.extract_strided_slice %542 {offsets = [0, 0, 64], sizes = [2, 8, 32], strides = [1, 1, 1]} : vector<2x8x128xbf16> to vector<2x8x32xbf16>
    "tpu.trace_start"() <{level = 10 : i32, message = "bqd,bkd->bqk"}> : () -> ()
    %cst_168 = arith.constant dense<0.000000e+00> : vector<2x8x8xf32>
    %594 = tpu.matmul %592, %593, %cst_168 {dimension_numbers = #tpu.dot_dimension_numbers<[2], [2], [1], [1], [0, 0, 0, 1, 1, 1], [0], [0]>} : vector<2x8x32xbf16>, vector<2x8x32xbf16>, vector<2x8x8xf32> -> vector<2x8x8xf32>
    "tpu.trace_stop"() : () -> ()
    %595 = vector.broadcast %2 : vector<2x1x8xf32> to vector<2x8x8xf32>
    %596 = arith.addf %594, %595 : vector<2x8x8xf32>
    %cst_169 = arith.constant dense<0xFF800000> : vector<2x8xf32>
    %597 = vector.multi_reduction <maximumf>, %596, %cst_169 [2] : vector<2x8x8xf32> to vector<2x8xf32>
    %598 = vector.shape_cast %597 : vector<2x8xf32> to vector<2x8x1xf32>
    %599 = vector.broadcast %598 : vector<2x8x1xf32> to vector<2x8x8xf32>
    %600 = arith.subf %596, %599 : vector<2x8x8xf32>
    %601 = math.exp %600 : vector<2x8x8xf32>
    %cst_170 = arith.constant dense<0.000000e+00> : vector<2x8xf32>
    %602 = vector.multi_reduction <add>, %601, %cst_170 [2] : vector<2x8x8xf32> to vector<2x8xf32>
    %603 = vector.shape_cast %602 : vector<2x8xf32> to vector<2x8x1xf32>
    %604 = tpu.reciprocal %603 {approx = true} : vector<2x8x1xf32> -> vector<2x8x1xf32>
    %605 = vector.broadcast %604 : vector<2x8x1xf32> to vector<2x8x8xf32>
    %606 = arith.mulf %601, %605 : vector<2x8x8xf32>
    %607 = arith.truncf %606 : vector<2x8x8xf32> to vector<2x8x8xbf16>
    %608 = vector.extract_strided_slice %544 {offsets = [0, 0, 64], sizes = [2, 8, 32], strides = [1, 1, 1]} : vector<2x8x128xbf16> to vector<2x8x32xbf16>
    "tpu.trace_start"() <{level = 10 : i32, message = "bqk,bkd->bqd"}> : () -> ()
    %cst_171 = arith.constant dense<0.000000e+00> : vector<2x8x32xf32>
    %609 = tpu.matmul %607, %608, %cst_171 {dimension_numbers = #tpu.dot_dimension_numbers<[2], [1], [1], [2], [0, 0, 0, 1, 1, 2], [0], [0]>} : vector<2x8x8xbf16>, vector<2x8x32xbf16>, vector<2x8x32xf32> -> vector<2x8x32xf32>
    "tpu.trace_stop"() : () -> ()
    %610 = vector.shape_cast %609 : vector<2x8x32xf32> to vector<16x32xf32>
    %611 = arith.truncf %610 : vector<16x32xf32> to vector<16x32xbf16>
    %612 = vector.extract_strided_slice %538 {offsets = [64, 0], sizes = [32, 128], strides = [1, 1]} : vector<128x128xbf16> to vector<32x128xbf16>
    %cst_172 = arith.constant dense<0.000000e+00> : vector<16x128xf32>
    %613 = tpu.matmul %611, %612, %cst_172 {dimension_numbers = #tpu.dot_dimension_numbers<[1], [0], [0], [1], [0, 0, 1, 1], [], []>} : vector<16x32xbf16>, vector<32x128xbf16>, vector<16x128xf32> -> vector<16x128xf32>
    %614 = arith.addf %591, %613 : vector<16x128xf32>
    %615 = vector.extract_strided_slice %540 {offsets = [0, 0, 96], sizes = [2, 8, 32], strides = [1, 1, 1]} : vector<2x8x128xbf16> to vector<2x8x32xbf16>
    %616 = vector.extract_strided_slice %542 {offsets = [0, 0, 96], sizes = [2, 8, 32], strides = [1, 1, 1]} : vector<2x8x128xbf16> to vector<2x8x32xbf16>
    "tpu.trace_start"() <{level = 10 : i32, message = "bqd,bkd->bqk"}> : () -> ()
    %cst_173 = arith.constant dense<0.000000e+00> : vector<2x8x8xf32>
    %617 = tpu.matmul %615, %616, %cst_173 {dimension_numbers = #tpu.dot_dimension_numbers<[2], [2], [1], [1], [0, 0, 0, 1, 1, 1], [0], [0]>} : vector<2x8x32xbf16>, vector<2x8x32xbf16>, vector<2x8x8xf32> -> vector<2x8x8xf32>
    "tpu.trace_stop"() : () -> ()
    %618 = vector.broadcast %2 : vector<2x1x8xf32> to vector<2x8x8xf32>
    %619 = arith.addf %617, %618 : vector<2x8x8xf32>
    %cst_174 = arith.constant dense<0xFF800000> : vector<2x8xf32>
    %620 = vector.multi_reduction <maximumf>, %619, %cst_174 [2] : vector<2x8x8xf32> to vector<2x8xf32>
    %621 = vector.shape_cast %620 : vector<2x8xf32> to vector<2x8x1xf32>
    %622 = vector.broadcast %621 : vector<2x8x1xf32> to vector<2x8x8xf32>
    %623 = arith.subf %619, %622 : vector<2x8x8xf32>
    %624 = math.exp %623 : vector<2x8x8xf32>
    %cst_175 = arith.constant dense<0.000000e+00> : vector<2x8xf32>
    %625 = vector.multi_reduction <add>, %624, %cst_175 [2] : vector<2x8x8xf32> to vector<2x8xf32>
    %626 = vector.shape_cast %625 : vector<2x8xf32> to vector<2x8x1xf32>
    %627 = tpu.reciprocal %626 {approx = true} : vector<2x8x1xf32> -> vector<2x8x1xf32>
    %628 = vector.broadcast %627 : vector<2x8x1xf32> to vector<2x8x8xf32>
    %629 = arith.mulf %624, %628 : vector<2x8x8xf32>
    %630 = arith.truncf %629 : vector<2x8x8xf32> to vector<2x8x8xbf16>
    %631 = vector.extract_strided_slice %544 {offsets = [0, 0, 96], sizes = [2, 8, 32], strides = [1, 1, 1]} : vector<2x8x128xbf16> to vector<2x8x32xbf16>
    "tpu.trace_start"() <{level = 10 : i32, message = "bqk,bkd->bqd"}> : () -> ()
    %cst_176 = arith.constant dense<0.000000e+00> : vector<2x8x32xf32>
    %632 = tpu.matmul %630, %631, %cst_176 {dimension_numbers = #tpu.dot_dimension_numbers<[2], [1], [1], [2], [0, 0, 0, 1, 1, 2], [0], [0]>} : vector<2x8x8xbf16>, vector<2x8x32xbf16>, vector<2x8x32xf32> -> vector<2x8x32xf32>
    "tpu.trace_stop"() : () -> ()
    %633 = vector.shape_cast %632 : vector<2x8x32xf32> to vector<16x32xf32>
    %634 = arith.truncf %633 : vector<16x32xf32> to vector<16x32xbf16>
    %635 = vector.extract_strided_slice %538 {offsets = [96, 0], sizes = [32, 128], strides = [1, 1]} : vector<128x128xbf16> to vector<32x128xbf16>
    %cst_177 = arith.constant dense<0.000000e+00> : vector<16x128xf32>
    %636 = tpu.matmul %634, %635, %cst_177 {dimension_numbers = #tpu.dot_dimension_numbers<[1], [0], [0], [1], [0, 0, 1, 1], [], []>} : vector<16x32xbf16>, vector<32x128xbf16>, vector<16x128xf32> -> vector<16x128xf32>
    %637 = arith.addf %614, %636 : vector<16x128xf32>
    %638 = arith.addf %492, %637 : vector<16x128xf32>
    %639 = vector.extract_strided_slice %349 {offsets = [7, 0], sizes = [1, 128], strides = [1, 1]} : vector<15x128xf32> to vector<1x128xf32>
    %640 = vector.broadcast %639 : vector<1x128xf32> to vector<16x128xf32>
    %641 = arith.addf %638, %640 : vector<16x128xf32>
    %642 = vector.extract_strided_slice %349 {offsets = [13, 0], sizes = [1, 128], strides = [1, 1]} : vector<15x128xf32> to vector<1x128xf32>
    %643 = vector.extract_strided_slice %349 {offsets = [14, 0], sizes = [1, 128], strides = [1, 1]} : vector<15x128xf32> to vector<1x128xf32>
    %cst_178 = arith.constant dense<0.000000e+00> : vector<16xf32>
    %644 = vector.multi_reduction <add>, %641, %cst_178 [1] : vector<16x128xf32> to vector<16xf32>
    %645 = vector.shape_cast %644 : vector<16xf32> to vector<16x1xf32>
    %cst_179 = arith.constant 1.280000e+02 : f32
    %646 = vector.broadcast %cst_179 : f32 to vector<16x1xf32>
    %647 = arith.divf %645, %646 : vector<16x1xf32>
    %648 = vector.broadcast %647 : vector<16x1xf32> to vector<16x128xf32>
    %649 = arith.subf %641, %648 : vector<16x128xf32>
    %650 = arith.mulf %649, %649 : vector<16x128xf32>
    %cst_180 = arith.constant dense<0.000000e+00> : vector<16xf32>
    %651 = vector.multi_reduction <add>, %650, %cst_180 [1] : vector<16x128xf32> to vector<16xf32>
    %652 = vector.shape_cast %651 : vector<16xf32> to vector<16x1xf32>
    %cst_181 = arith.constant 1.280000e+02 : f32
    %653 = vector.broadcast %cst_181 : f32 to vector<16x1xf32>
    %654 = arith.divf %652, %653 : vector<16x1xf32>
    %655 = vector.broadcast %647 : vector<16x1xf32> to vector<16x128xf32>
    %656 = arith.subf %641, %655 : vector<16x128xf32>
    %cst_182 = arith.constant 9.99999974E-6 : f32
    %657 = vector.broadcast %cst_182 : f32 to vector<16x1xf32>
    %658 = arith.addf %654, %657 : vector<16x1xf32>
    %659 = math.rsqrt %658 : vector<16x1xf32>
    %660 = vector.broadcast %659 : vector<16x1xf32> to vector<16x128xf32>
    %661 = arith.mulf %656, %660 : vector<16x128xf32>
    %662 = vector.broadcast %642 : vector<1x128xf32> to vector<16x128xf32>
    %663 = arith.mulf %661, %662 : vector<16x128xf32>
    %664 = vector.broadcast %643 : vector<1x128xf32> to vector<16x128xf32>
    %665 = arith.addf %663, %664 : vector<16x128xf32>
    %666 = arith.truncf %665 : vector<16x128xf32> to vector<16x128xbf16>
    %c1_183 = arith.constant 1 : index
    %c0_184 = arith.constant 0 : index
    %c0_185 = arith.constant 0 : index
    %667 = vector.load %arg11[%c1_183, %c0_184, %c0_185] : memref<2x128x256xbf16, #tpu.memory_space<vmem>>, vector<1x128x256xbf16>
    %668 = vector.shape_cast %667 : vector<1x128x256xbf16> to vector<128x256xbf16>
    %cst_186 = arith.constant dense<0.000000e+00> : vector<16x256xf32>
    %669 = tpu.matmul %666, %668, %cst_186 {dimension_numbers = #tpu.dot_dimension_numbers<[1], [0], [0], [1], [0, 0, 1, 1], [], []>} : vector<16x128xbf16>, vector<128x256xbf16>, vector<16x256xf32> -> vector<16x256xf32>
    %c1_187 = arith.constant 1 : index
    %c0_188 = arith.constant 0 : index
    %c0_189 = arith.constant 0 : index
    %670 = vector.load %arg14[%c1_187, %c0_188, %c0_189] : memref<2x1x256xf32, #tpu.memory_space<vmem>>, vector<1x1x256xf32>
    %671 = vector.shape_cast %670 : vector<1x1x256xf32> to vector<1x256xf32>
    %672 = vector.broadcast %671 : vector<1x256xf32> to vector<16x256xf32>
    %673 = arith.addf %669, %672 : vector<16x256xf32>
    %cst_190 = arith.constant 0.000000e+00 : f32
    %674 = vector.broadcast %cst_190 : f32 to vector<16x256xf32>
    %675 = arith.maximumf %673, %674 : vector<16x256xf32>
    %676 = arith.truncf %675 : vector<16x256xf32> to vector<16x256xbf16>
    %c1_191 = arith.constant 1 : index
    %c0_192 = arith.constant 0 : index
    %c0_193 = arith.constant 0 : index
    %677 = vector.load %arg12[%c1_191, %c0_192, %c0_193] : memref<2x256x128xbf16, #tpu.memory_space<vmem>>, vector<1x256x128xbf16>
    %678 = vector.shape_cast %677 : vector<1x256x128xbf16> to vector<256x128xbf16>
    %cst_194 = arith.constant dense<0.000000e+00> : vector<16x128xf32>
    %679 = tpu.matmul %676, %678, %cst_194 {dimension_numbers = #tpu.dot_dimension_numbers<[1], [0], [0], [1], [0, 0, 1, 1], [], []>} : vector<16x256xbf16>, vector<256x128xbf16>, vector<16x128xf32> -> vector<16x128xf32>
    %680 = vector.extract_strided_slice %349 {offsets = [8, 0], sizes = [1, 128], strides = [1, 1]} : vector<15x128xf32> to vector<1x128xf32>
    %681 = vector.broadcast %680 : vector<1x128xf32> to vector<16x128xf32>
    %682 = arith.addf %679, %681 : vector<16x128xf32>
    %683 = arith.addf %641, %682 : vector<16x128xf32>
    %c0_195 = arith.constant 0 : index
    %c0_196 = arith.constant 0 : index
    %684 = vector.load %arg15[%c0_195, %c0_196] : memref<2x128xf32, #tpu.memory_space<vmem>>, vector<2x128xf32>
    %685 = vector.extract_strided_slice %684 {offsets = [0, 0], sizes = [1, 128], strides = [1, 1]} : vector<2x128xf32> to vector<1x128xf32>
    %686 = vector.extract_strided_slice %684 {offsets = [1, 0], sizes = [1, 128], strides = [1, 1]} : vector<2x128xf32> to vector<1x128xf32>
    %cst_197 = arith.constant dense<0.000000e+00> : vector<16xf32>
    %687 = vector.multi_reduction <add>, %683, %cst_197 [1] : vector<16x128xf32> to vector<16xf32>
    %688 = vector.shape_cast %687 : vector<16xf32> to vector<16x1xf32>
    %cst_198 = arith.constant 1.280000e+02 : f32
    %689 = vector.broadcast %cst_198 : f32 to vector<16x1xf32>
    %690 = arith.divf %688, %689 : vector<16x1xf32>
    %691 = vector.broadcast %690 : vector<16x1xf32> to vector<16x128xf32>
    %692 = arith.subf %683, %691 : vector<16x128xf32>
    %693 = arith.mulf %692, %692 : vector<16x128xf32>
    %cst_199 = arith.constant dense<0.000000e+00> : vector<16xf32>
    %694 = vector.multi_reduction <add>, %693, %cst_199 [1] : vector<16x128xf32> to vector<16xf32>
    %695 = vector.shape_cast %694 : vector<16xf32> to vector<16x1xf32>
    %cst_200 = arith.constant 1.280000e+02 : f32
    %696 = vector.broadcast %cst_200 : f32 to vector<16x1xf32>
    %697 = arith.divf %695, %696 : vector<16x1xf32>
    %698 = vector.broadcast %690 : vector<16x1xf32> to vector<16x128xf32>
    %699 = arith.subf %683, %698 : vector<16x128xf32>
    %cst_201 = arith.constant 9.99999974E-6 : f32
    %700 = vector.broadcast %cst_201 : f32 to vector<16x1xf32>
    %701 = arith.addf %697, %700 : vector<16x1xf32>
    %702 = math.rsqrt %701 : vector<16x1xf32>
    %703 = vector.broadcast %702 : vector<16x1xf32> to vector<16x128xf32>
    %704 = arith.mulf %699, %703 : vector<16x128xf32>
    %705 = vector.broadcast %685 : vector<1x128xf32> to vector<16x128xf32>
    %706 = arith.mulf %704, %705 : vector<16x128xf32>
    %707 = vector.broadcast %686 : vector<1x128xf32> to vector<16x128xf32>
    %708 = arith.addf %706, %707 : vector<16x128xf32>
    %709 = vector.shape_cast %708 : vector<16x128xf32> to vector<2x8x128xf32>
    %c0_202 = arith.constant 0 : index
    %c0_203 = arith.constant 0 : index
    %c0_204 = arith.constant 0 : index
    %710 = vector.load %arg16[%c0_202, %c0_203, %c0_204] : memref<2x8x128xf32, #tpu.memory_space<vmem>>, vector<2x8x128xf32>
    tpu.vector_store %arg16[%c0_202, %c0_203, %c0_204], %709 {strides = array<i32>} : memref<2x8x128xf32, #tpu.memory_space<vmem>>, vector<2x8x128xf32>,
    return
  }
  func.func @transform_0(%arg0: i32) -> (i32, i32, i32) {
    %c0_i32 = arith.constant 0 : i32
    %c0_i32_0 = arith.constant 0 : i32
    %c0_i32_1 = arith.constant 0 : i32
    return %arg0, %c0_i32, %c0_i32_0 : i32, i32, i32
  }
  func.func @transform_1(%arg0: i32) -> (i32, i32, i32) {
    %c0_i32 = arith.constant 0 : i32
    %c0_i32_0 = arith.constant 0 : i32
    %c0_i32_1 = arith.constant 0 : i32
    return %arg0, %c0_i32, %c0_i32_0 : i32, i32, i32
  }
  func.func @transform_2(%arg0: i32) -> (i32, i32) {
    %c0_i32 = arith.constant 0 : i32
    %c0_i32_0 = arith.constant 0 : i32
    %c0_i32_1 = arith.constant 0 : i32
    return %c0_i32, %c0_i32_0 : i32, i32
  }
  func.func @transform_3(%arg0: i32) -> (i32, i32, i32) {
    %c0_i32 = arith.constant 0 : i32
    %c0_i32_0 = arith.constant 0 : i32
    %c0_i32_1 = arith.constant 0 : i32
    return %arg0, %c0_i32, %c0_i32_0 : i32, i32, i32
  }
  func.func @transform_4(%arg0: i32) -> (i32, i32, i32) {
    %c0_i32 = arith.constant 0 : i32
    %c0_i32_0 = arith.constant 0 : i32
    %c0_i32_1 = arith.constant 0 : i32
    return %arg0, %c0_i32, %c0_i32_0 : i32, i32, i32
  }
  func.func @transform_5(%arg0: i32) -> (i32, i32, i32) {
    %c0_i32 = arith.constant 0 : i32
    %c0_i32_0 = arith.constant 0 : i32
    %c0_i32_1 = arith.constant 0 : i32
    %c0_i32_2 = arith.constant 0 : i32
    return %c0_i32, %c0_i32_0, %c0_i32_1 : i32, i32, i32
  }
  func.func @transform_6(%arg0: i32) -> (i32, i32, i32) {
    %c0_i32 = arith.constant 0 : i32
    %c0_i32_0 = arith.constant 0 : i32
    %c0_i32_1 = arith.constant 0 : i32
    %c0_i32_2 = arith.constant 0 : i32
    return %c0_i32, %c0_i32_0, %c0_i32_1 : i32, i32, i32
  }
  func.func @transform_7(%arg0: i32) -> (i32, i32, i32) {
    %c0_i32 = arith.constant 0 : i32
    %c0_i32_0 = arith.constant 0 : i32
    %c0_i32_1 = arith.constant 0 : i32
    %c0_i32_2 = arith.constant 0 : i32
    return %c0_i32, %c0_i32_0, %c0_i32_1 : i32, i32, i32
  }
  func.func @transform_8(%arg0: i32) -> (i32, i32, i32) {
    %c0_i32 = arith.constant 0 : i32
    %c0_i32_0 = arith.constant 0 : i32
    %c0_i32_1 = arith.constant 0 : i32
    %c0_i32_2 = arith.constant 0 : i32
    return %c0_i32, %c0_i32_0, %c0_i32_1 : i32, i32, i32
  }
  func.func @transform_9(%arg0: i32) -> (i32, i32, i32) {
    %c0_i32 = arith.constant 0 : i32
    %c0_i32_0 = arith.constant 0 : i32
    %c0_i32_1 = arith.constant 0 : i32
    %c0_i32_2 = arith.constant 0 : i32
    return %c0_i32, %c0_i32_0, %c0_i32_1 : i32, i32, i32
  }
  func.func @transform_10(%arg0: i32) -> (i32, i32, i32) {
    %c0_i32 = arith.constant 0 : i32
    %c0_i32_0 = arith.constant 0 : i32
    %c0_i32_1 = arith.constant 0 : i32
    %c0_i32_2 = arith.constant 0 : i32
    return %c0_i32, %c0_i32_0, %c0_i32_1 : i32, i32, i32
  }
  func.func @transform_11(%arg0: i32) -> (i32, i32, i32) {
    %c0_i32 = arith.constant 0 : i32
    %c0_i32_0 = arith.constant 0 : i32
    %c0_i32_1 = arith.constant 0 : i32
    %c0_i32_2 = arith.constant 0 : i32
    return %c0_i32, %c0_i32_0, %c0_i32_1 : i32, i32, i32
  }
  func.func @transform_12(%arg0: i32) -> (i32, i32, i32) {
    %c0_i32 = arith.constant 0 : i32
    %c0_i32_0 = arith.constant 0 : i32
    %c0_i32_1 = arith.constant 0 : i32
    %c0_i32_2 = arith.constant 0 : i32
    return %c0_i32, %c0_i32_0, %c0_i32_1 : i32, i32, i32
  }
  func.func @transform_13(%arg0: i32) -> (i32, i32, i32) {
    %c0_i32 = arith.constant 0 : i32
    %c0_i32_0 = arith.constant 0 : i32
    %c0_i32_1 = arith.constant 0 : i32
    %c0_i32_2 = arith.constant 0 : i32
    return %c0_i32, %c0_i32_0, %c0_i32_1 : i32, i32, i32
  }
  func.func @transform_14(%arg0: i32) -> (i32, i32) {
    %c0_i32 = arith.constant 0 : i32
    %c0_i32_0 = arith.constant 0 : i32
    %c0_i32_1 = arith.constant 0 : i32
    return %c0_i32, %c0_i32_0 : i32, i32
  }
  func.func @transform_15(%arg0: i32) -> (i32, i32, i32) {
    %c0_i32 = arith.constant 0 : i32
    %c0_i32_0 = arith.constant 0 : i32
    %c0_i32_1 = arith.constant 0 : i32
    return %arg0, %c0_i32, %c0_i32_0 : i32, i32, i32
  }
}

</mosaic_0001>

<llo_original>
// kernel: tpu_custom_call.1
$region0: #{tpu_custom_call.1}
  #allocation0 [shape = 'u32[]', space=smem, size = 0x4, offset = 0x4, fixed_abs, tag = 'smem constant byte address 0x4 - core index']
  #allocation1 [shape = 'u32[144,128]{1,0:T(1,128)}', space=vmem, size = 0x12000, scoped, tag = 'internal scratch']
  %s0 = inlined_call_operand.vmem [shape: f32[2,8,128], index: 0, kind: input, shape index: {}]
  %s1 = inlined_call_operand.vmem [shape: f32[2,8,128], index: 1, kind: input, shape index: {}]
  %s2 = inlined_call_operand.vmem [shape: f32[8,8], index: 2, kind: input, shape index: {}]
  %s3 = inlined_call_operand.vmem [shape: f32[2,1,8], index: 3, kind: input, shape index: {}]
  %s4 = inlined_call_operand.vmem [shape: f32[2,1,8], index: 4, kind: input, shape index: {}]
  %s5 = inlined_call_operand.hbm [shape: bf16[2,128,384], index: 5, kind: input, shape index: {}]
  %s6 = inlined_call_operand.hbm [shape: bf16[2,128,128], index: 6, kind: input, shape index: {}]
  %s7 = inlined_call_operand.hbm [shape: bf16[2,128,128], index: 7, kind: input, shape index: {}]
  %s8 = inlined_call_operand.hbm [shape: bf16[2,128,256], index: 8, kind: input, shape index: {}]
  %s9 = inlined_call_operand.hbm [shape: bf16[2,128,128], index: 9, kind: input, shape index: {}]
  %s10 = inlined_call_operand.hbm [shape: bf16[2,128,256], index: 10, kind: input, shape index: {}]
  %s11 = inlined_call_operand.hbm [shape: bf16[2,256,128], index: 11, kind: input, shape index: {}]
  %s12 = inlined_call_operand.vmem [shape: f32[2,15,128], index: 12, kind: input, shape index: {}]
  %s13 = inlined_call_operand.vmem [shape: f32[2,1,256], index: 13, kind: input, shape index: {}]
  %s14 = inlined_call_operand.vmem [shape: f32[2,128], index: 14, kind: input, shape index: {}]
  %s15 = inlined_call_operand.hbm [shape: f32[2,8,128], index: 15, kind: output, shape index: {}]
  %s16 = sld [smem:[#allocation0]]
  $region98: #{tpu_custom_call.1} parent=0
    _
  %s18 = ssub.s32 1, %s16
  %s19 = scalar_select 0, %s18, %s16
  $region1: #{tpu_custom_call.1} parent=0
    #allocation2 [shape = 'u8[196608]{0}', space=vmem, size = 0x30000, scoped, tag = 'input window, operand 5, single buffered']
    #allocation3 [shape = 's32[1]{0}', space=sflag, size = 0x4, scoped, tag = 'scoped memory for tpu_custom_call.1']
    #allocation4 [shape = 's32[1]{0}', space=sflag, size = 0x4, scoped, tag = 'scoped memory for tpu_custom_call.1']
    #allocation5 [shape = 'u8[65536]{0}', space=vmem, size = 0x10000, scoped, tag = 'input window, operand 6, single buffered']
    #allocation6 [shape = 's32[1]{0}', space=sflag, size = 0x4, scoped, tag = 'scoped memory for tpu_custom_call.1']
    #allocation7 [shape = 'u8[65536]{0}', space=vmem, size = 0x10000, scoped, tag = 'input window, operand 7, single buffered']
    #allocation8 [shape = 'u8[131072]{0}', space=vmem, size = 0x20000, scoped, tag = 'input window, operand 8, single buffered']
    #allocation9 [shape = 's32[1]{0}', space=sflag, size = 0x4, scoped, tag = 'scoped memory for tpu_custom_call.1']
    #allocation10 [shape = 'u8[65536]{0}', space=vmem, size = 0x10000, scoped, tag = 'input window, operand 9, single buffered']
    #allocation11 [shape = 'u8[131072]{0}', space=vmem, size = 0x20000, scoped, tag = 'input window, operand 10, single buffered']
    #allocation12 [shape = 's32[1]{0}', space=sflag, size = 0x4, scoped, tag = 'scoped memory for tpu_custom_call.1']
    #allocation13 [shape = 'u8[131072]{0}', space=vmem, size = 0x20000, scoped, tag = 'input window, operand 11, single buffered']
    #allocation14 [shape = 'u8[8192]{0}', space=vmem, size = 0x2000, scoped, tag = 'output window, operand 0, single buffered']
    %20 = vsyncpa [#allocation3], 0
    %21 = vsyncpa [#allocation6], 0
    %22 = vsyncpa [#allocation9], 0
    %23 = vsyncpa [#allocation12], 0
    %24 = vsyncpa [#allocation4], 0
    // Predicated region
    $region2: #{tpu_custom_call.1} parent=1 // pred_check
      _
    $region3: #{tpu_custom_call.1} parent=1 // pred_check_branch
      %26 = sbr.rel (0) target = $region5
    $region4: #{tpu_custom_call.1} parent=1 // pred_region
      _
    $region5: #{tpu_custom_call.1} parent=1 // pred_fallthru
      _
    // Predicated region
    $region6: #{tpu_custom_call.1} parent=1 // pred_check
      _
    $region7: #{tpu_custom_call.1} parent=1 // pred_check_branch
      %28 = sbr.rel (0) target = $region9
    $region8: #{tpu_custom_call.1} parent=1 // pred_region
      _
    $region9: #{tpu_custom_call.1} parent=1 // pred_fallthru
      _
    // Predicated region
    $region10: #{tpu_custom_call.1} parent=1 // pred_check
      _
    $region11: #{tpu_custom_call.1} parent=1 // pred_check_branch
      %30 = sbr.rel (0) target = $region13
    $region12: #{tpu_custom_call.1} parent=1 // pred_region
      _
    $region13: #{tpu_custom_call.1} parent=1 // pred_fallthru
      _
    // Predicated region
    $region14: #{tpu_custom_call.1} parent=1 // pred_check
      _
    $region15: #{tpu_custom_call.1} parent=1 // pred_check_branch
      %32 = sbr.rel (0) target = $region17
    $region16: #{tpu_custom_call.1} parent=1 // pred_region
      _
    $region17: #{tpu_custom_call.1} parent=1 // pred_fallthru
      _
    // Predicated region
    $region18: #{tpu_custom_call.1} parent=1 // pred_check
      _
    $region19: #{tpu_custom_call.1} parent=1 // pred_check_branch
      %34 = sbr.rel (0) target = $region21
    $region20: #{tpu_custom_call.1} parent=1 // pred_region
      _
    $region21: #{tpu_custom_call.1} parent=1 // pred_fallthru
      _
    // Predicated region
    $region22: #{tpu_custom_call.1} parent=1 // pred_check
      _
    $region23: #{tpu_custom_call.1} parent=1 // pred_check_branch
      %36 = sbr.rel (0) target = $region25
    $region24: #{tpu_custom_call.1} parent=1 // pred_region
      %s38 = ssub.s32 6144, 6144
      %39 = vsyncadd [#allocation3], %s38
      %s40 = sshll.u32 [#allocation2], 4
      %s41 = int_to_ptr.vmem [resolvable:$true] %s40
      %46 = dma.hbm_to_vmem [thread:$0]  %s5, 6144, %s41, [#allocation3], 192, 192, 12
    $region25: #{tpu_custom_call.1} parent=1 // pred_fallthru
      _
    // Predicated region
    $region26: #{tpu_custom_call.1} parent=1 // pred_check
      _
    $region27: #{tpu_custom_call.1} parent=1 // pred_check_branch
      %48 = sbr.rel (0) target = $region29
    $region28: #{tpu_custom_call.1} parent=1 // pred_region
      %s50 = ssub.s32 2048, 2048
      %51 = vsyncadd [#allocation6], %s50
      %s52 = sshll.u32 [#allocation5], 4
      %s53 = int_to_ptr.vmem [resolvable:$true] %s52
      %58 = dma.hbm_to_vmem [thread:$0]  %s6, 2048, %s53, [#allocation6], 64, 64, 4
    $region29: #{tpu_custom_call.1} parent=1 // pred_fallthru
      _
    // Predicated region
    $region30: #{tpu_custom_call.1} parent=1 // pred_check
      _
    $region31: #{tpu_custom_call.1} parent=1 // pred_check_branch
      %60 = sbr.rel (0) target = $region33
    $region32: #{tpu_custom_call.1} parent=1 // pred_region
      %s62 = ssub.s32 2048, 2048
      %63 = vsyncadd [#allocation6], %s62
      %s64 = sshll.u32 [#allocation7], 4
      %s65 = int_to_ptr.vmem [resolvable:$true] %s64
      %70 = dma.hbm_to_vmem [thread:$0]  %s7, 2048, %s65, [#allocation6], 64, 64, 4
    $region33: #{tpu_custom_call.1} parent=1 // pred_fallthru
      _
    // Predicated region
    $region34: #{tpu_custom_call.1} parent=1 // pred_check
      _
    $region35: #{tpu_custom_call.1} parent=1 // pred_check_branch
      %72 = sbr.rel (0) target = $region37
    $region36: #{tpu_custom_call.1} parent=1 // pred_region
      %s74 = ssub.s32 4096, 4096
      %75 = vsyncadd [#allocation9], %s74
      %s76 = sshll.u32 [#allocation8], 4
      %s77 = int_to_ptr.vmem [resolvable:$true] %s76
      %82 = dma.hbm_to_vmem [thread:$0]  %s8, 4096, %s77, [#allocation9], 128, 128, 8
    $region37: #{tpu_custom_call.1} parent=1 // pred_fallthru
      _
    // Predicated region
    $region38: #{tpu_custom_call.1} parent=1 // pred_check
      _
    $region39: #{tpu_custom_call.1} parent=1 // pred_check_branch
      %84 = sbr.rel (0) target = $region41
    $region40: #{tpu_custom_call.1} parent=1 // pred_region
      %s86 = ssub.s32 2048, 2048
      %87 = vsyncadd [#allocation9], %s86
      %s88 = sshll.u32 [#allocation10], 4
      %s89 = int_to_ptr.vmem [resolvable:$true] %s88
      %94 = dma.hbm_to_vmem [thread:$0]  %s9, 2048, %s89, [#allocation9], 64, 64, 4
    $region41: #{tpu_custom_call.1} parent=1 // pred_fallthru
      _
    // Predicated region
    $region42: #{tpu_custom_call.1} parent=1 // pred_check
      _
    $region43: #{tpu_custom_call.1} parent=1 // pred_check_branch
      %96 = sbr.rel (0) target = $region45
    $region44: #{tpu_custom_call.1} parent=1 // pred_region
      %s98 = ssub.s32 4096, 4096
      %99 = vsyncadd [#allocation12], %s98
      %s100 = sshll.u32 [#allocation11], 4
      %s101 = int_to_ptr.vmem [resolvable:$true] %s100
      %106 = dma.hbm_to_vmem [thread:$0]  %s10, 4096, %s101, [#allocation12], 128, 128, 8
    $region45: #{tpu_custom_call.1} parent=1 // pred_fallthru
      _
    // Predicated region
    $region46: #{tpu_custom_call.1} parent=1 // pred_check
      _
    $region47: #{tpu_custom_call.1} parent=1 // pred_check_branch
      %108 = sbr.rel (0) target = $region49
    $region48: #{tpu_custom_call.1} parent=1 // pred_region
      %s110 = ssub.s32 4096, 4096
      %111 = vsyncadd [#allocation12], %s110
      %s112 = sshll.u32 [#allocation13], 4
      %s113 = int_to_ptr.vmem [resolvable:$true] %s112
      %118 = dma.hbm_to_vmem [thread:$0]  %s11, 4096, %s113, [#allocation12], 64, 64, 4
    $region49: #{tpu_custom_call.1} parent=1 // pred_fallthru
      _
    // Predicated region
    $region50: #{tpu_custom_call.1} parent=1 // pred_check
      _
    $region51: #{tpu_custom_call.1} parent=1 // pred_check_branch
      %120 = sbr.rel (0) target = $region53
    $region52: #{tpu_custom_call.1} parent=1 // pred_region
      _
    $region53: #{tpu_custom_call.1} parent=1 // pred_fallthru
      _
    // Predicated region
    $region54: #{tpu_custom_call.1} parent=1 // pred_check
      _
    $region55: #{tpu_custom_call.1} parent=1 // pred_check_branch
      %122 = sbr.rel (0) target = $region57
    $region56: #{tpu_custom_call.1} parent=1 // pred_region
      _
    $region57: #{tpu_custom_call.1} parent=1 // pred_fallthru
      _
    // Predicated region
    $region58: #{tpu_custom_call.1} parent=1 // pred_check
      _
    $region59: #{tpu_custom_call.1} parent=1 // pred_check_branch
      %124 = sbr.rel (0) target = $region61
    $region60: #{tpu_custom_call.1} parent=1 // pred_region
      _
    $region61: #{tpu_custom_call.1} parent=1 // pred_fallthru
      _
    // Predicated region
    $region62: #{tpu_custom_call.1} parent=1 // pred_check
      _
    $region63: #{tpu_custom_call.1} parent=1 // pred_check_branch
      %126 = sbr.rel (0) target = $region65
    $region64: #{tpu_custom_call.1} parent=1 // pred_region
      %127 = dma.done [#allocation3], 6144
    $region65: #{tpu_custom_call.1} parent=1 // pred_fallthru
      _
    // Predicated region
    $region66: #{tpu_custom_call.1} parent=1 // pred_check
      _
    $region67: #{tpu_custom_call.1} parent=1 // pred_check_branch
      %129 = sbr.rel (0) target = $region69
    $region68: #{tpu_custom_call.1} parent=1 // pred_region
      %130 = dma.done [#allocation6], 2048
    $region69: #{tpu_custom_call.1} parent=1 // pred_fallthru
      _
    // Predicated region
    $region70: #{tpu_custom_call.1} parent=1 // pred_check
      _
    $region71: #{tpu_custom_call.1} parent=1 // pred_check_branch
      %132 = sbr.rel (0) target = $region73
    $region72: #{tpu_custom_call.1} parent=1 // pred_region
      %133 = dma.done [#allocation6], 2048
    $region73: #{tpu_custom_call.1} parent=1 // pred_fallthru
      _
    // Predicated region
    $region74: #{tpu_custom_call.1} parent=1 // pred_check
      _
    $region75: #{tpu_custom_call.1} parent=1 // pred_check_branch
      %135 = sbr.rel (0) target = $region77
    $region76: #{tpu_custom_call.1} parent=1 // pred_region
      %136 = dma.done [#allocation9], 4096
    $region77: #{tpu_custom_call.1} parent=1 // pred_fallthru
      _
    // Predicated region
    $region78: #{tpu_custom_call.1} parent=1 // pred_check
      _
    $region79: #{tpu_custom_call.1} parent=1 // pred_check_branch
      %138 = sbr.rel (0) target = $region81
    $region80: #{tpu_custom_call.1} parent=1 // pred_region
      %139 = dma.done [#allocation9], 2048
    $region81: #{tpu_custom_call.1} parent=1 // pred_fallthru
      _
    // Predicated region
    $region82: #{tpu_custom_call.1} parent=1 // pred_check
      _
    $region83: #{tpu_custom_call.1} parent=1 // pred_check_branch
      %141 = sbr.rel (0) target = $region85
    $region84: #{tpu_custom_call.1} parent=1 // pred_region
      %142 = dma.done [#allocation12], 4096
    $region85: #{tpu_custom_call.1} parent=1 // pred_fallthru
      _
    // Predicated region
    $region86: #{tpu_custom_call.1} parent=1 // pred_check
      _
    $region87: #{tpu_custom_call.1} parent=1 // pred_check_branch
      %144 = sbr.rel (0) target = $region89
    $region88: #{tpu_custom_call.1} parent=1 // pred_region
      %145 = dma.done [#allocation12], 4096
    $region89: #{tpu_custom_call.1} parent=1 // pred_fallthru
      _
    %v147 = vld [vmem:[%s2] sm:$0xff]
    %v148 = vld [vmem:[%s3] sm:$0x1]
    %v149 = vld [vmem:[%s3 + $0x1] sm:$0x1]
    %v150 = vld [vmem:[%s4] sm:$0x1]
    %v151 = vld [vmem:[%s4 + $0x1] sm:$0x1]
    %v154 = vlaneseq
    %v155 = vshrl.u32 %v154, 7
    %v156 = vsub.s32 0, %v155
    %v157 = vrot.slane %v148, %v156
    %v158 = vlaneseq
    %v159 = vshrl.u32 %v158, 7
    %v160 = vsub.s32 0, %v159
    %v161 = vrot.slane %v149, %v160
    %v164 = vadd.f32 %v147, %v157
    %v165 = vadd.f32 %v147, %v161
    %v166 = vld [vmem:[%s0] sm:$0xff]
    %v167 = vld [vmem:[%s0 + $0x8] sm:$0xff]
    %v168 = vld [vmem:[%s1] sm:$0xff]
    %v169 = vld [vmem:[%s1 + $0x8] sm:$0xff]
    %v170 = vpack.c.bf16 %v169, %v168
    %v171 = vld [vmem:[%s12] sm:$0xff]
    %v172 = vld [vmem:[%s12 + $0x8] sm:$0x7f]
    %173 = vadd.xlane.f32.xlu0 %v166
    %v174 = vpop.xlane.xlu0 %173
    %175 = vadd.xlane.f32.xlu0 %v167
    %v176 = vpop.xlane.xlu0 %175
    %v177 = vrcp.pop 128.0
    %v178 = vmul.f32 %v174, %v177
    %v179 = vmul.f32 %v176, %v177
    %v180 = vsub.f32 %v166, %v178
    %v181 = vsub.f32 %v167, %v179
    %v182 = vmul.f32 %v180, %v180
    %v183 = vmul.f32 %v181, %v181
    %184 = vadd.xlane.f32.xlu0 %v182
    %v185 = vpop.xlane.xlu0 %184
    %186 = vadd.xlane.f32.xlu0 %v183
    %v187 = vpop.xlane.xlu0 %186
    %v188 = vmul.f32 %v185, %v177
    %v189 = vmul.f32 %v187, %v177
    %v190 = vadd.f32 %v188, 1e-05
    %v191 = vadd.f32 %v189, 1e-05
    %v192 = vrsqrt.pop %v190
    %v193 = vrsqrt.pop %v191
    %v194 = vmul.f32 %v180, %v192
    %v195 = vmul.f32 %v181, %v193
    %v196 = vlaneseq
    %v197 = vshrl.u32 %v196, 7
    %v198 = vsub.s32 1, %v197
    %v199 = vrot.slane %v172, %v198
    %v200 = vmul.f32 %v194, %v199
    %v201 = vmul.f32 %v195, %v199
    %v202 = vlaneseq
    %v203 = vshrl.u32 %v202, 7
    %v204 = vsub.s32 2, %v203
    %v205 = vrot.slane %v172, %v204
    %v206 = vadd.f32 %v200, %v205
    %v207 = vadd.f32 %v201, %v205
    %v208 = vpack.c.bf16 %v207, %v206
    %v209 = vld [vmem:[#allocation2] sm:$0xff]
    %v210 = vld [vmem:[#allocation2 + $0x8] sm:$0xf]
    %v211 = vld [vmem:[#allocation2 + $0xc] sm:$0xff]
    %v212 = vld [vmem:[#allocation2 + $0x14] sm:$0xf]
    %v213 = vld [vmem:[#allocation2 + $0x18] sm:$0xff]
    %v214 = vld [vmem:[#allocation2 + $0x20] sm:$0xf]
    %v215 = vld [vmem:[#allocation2 + $0x24] sm:$0xff]
    %v216 = vld [vmem:[#allocation2 + $0x2c] sm:$0xf]
    %v217 = vld [vmem:[#allocation2 + $0x30] sm:$0xff]
    %v218 = vld [vmem:[#allocation2 + $0x38] sm:$0xf]
    %v219 = vld [vmem:[#allocation2 + $0x3c] sm:$0xff]
    %v220 = vld [vmem:[#allocation2 + $0x44] sm:$0xf]
    %v221 = vld [vmem:[#allocation2 + $0x48] sm:$0xff]
    %v222 = vld [vmem:[#allocation2 + $0x50] sm:$0xf]
    %v223 = vld [vmem:[#allocation2 + $0x54] sm:$0xff]
    %v224 = vld [vmem:[#allocation2 + $0x5c] sm:$0xf]
    %v225 = vld [vmem:[#allocation2 + $0x60] sm:$0xff]
    %v226 = vld [vmem:[#allocation2 + $0x68] sm:$0xf]
    %v227 = vld [vmem:[#allocation2 + $0x6c] sm:$0xff]
    %v228 = vld [vmem:[#allocation2 + $0x74] sm:$0xf]
    %v229 = vld [vmem:[#allocation2 + $0x78] sm:$0xff]
    %v230 = vld [vmem:[#allocation2 + $0x80] sm:$0xf]
    %v231 = vld [vmem:[#allocation2 + $0x84] sm:$0xff]
    %v232 = vld [vmem:[#allocation2 + $0x8c] sm:$0xf]
    %v233 = vld [vmem:[#allocation2 + $0x90] sm:$0xff]
    %v234 = vld [vmem:[#allocation2 + $0x98] sm:$0xf]
    %v235 = vld [vmem:[#allocation2 + $0x9c] sm:$0xff]
    %v236 = vld [vmem:[#allocation2 + $0xa4] sm:$0xf]
    %v237 = vld [vmem:[#allocation2 + $0xa8] sm:$0xff]
    %v238 = vld [vmem:[#allocation2 + $0xb0] sm:$0xf]
    %v239 = vld [vmem:[#allocation2 + $0xb4] sm:$0xff]
    %v240 = vld [vmem:[#allocation2 + $0xbc] sm:$0xf]
    %v273 = vunpack.c.l.b16 %v209
    %v274 = vunpack.c.h.b16 %v209
    %v275 = vunpack.c.l.b16 %v210
    %v276 = vunpack.c.l.b16 %v211
    %v277 = vunpack.c.h.b16 %v211
    %v278 = vunpack.c.l.b16 %v212
    %v279 = vunpack.c.l.b16 %v213
    %v280 = vunpack.c.h.b16 %v213
    %v281 = vunpack.c.l.b16 %v214
    %v282 = vunpack.c.l.b16 %v215
    %v283 = vunpack.c.h.b16 %v215
    %v284 = vunpack.c.l.b16 %v216
    %v285 = vunpack.c.l.b16 %v217
    %v286 = vunpack.c.h.b16 %v217
    %v287 = vunpack.c.l.b16 %v218
    %v288 = vunpack.c.l.b16 %v219
    %v289 = vunpack.c.h.b16 %v219
    %v290 = vunpack.c.l.b16 %v220
    %v291 = vunpack.c.l.b16 %v221
    %v292 = vunpack.c.h.b16 %v221
    %v293 = vunpack.c.l.b16 %v222
    %v294 = vunpack.c.l.b16 %v223
    %v295 = vunpack.c.h.b16 %v223
    %v296 = vunpack.c.l.b16 %v224
    %v297 = vunpack.c.l.b16 %v225
    %v298 = vunpack.c.h.b16 %v225
    %v299 = vunpack.c.l.b16 %v226
    %v300 = vunpack.c.l.b16 %v227
    %v301 = vunpack.c.h.b16 %v227
    %v302 = vunpack.c.l.b16 %v228
    %v303 = vunpack.c.l.b16 %v229
    %v304 = vunpack.c.h.b16 %v229
    %v305 = vunpack.c.l.b16 %v230
    %v306 = vunpack.c.l.b16 %v231
    %v307 = vunpack.c.h.b16 %v231
    %v308 = vunpack.c.l.b16 %v232
    %v309 = vunpack.c.l.b16 %v233
    %v310 = vunpack.c.h.b16 %v233
    %v311 = vunpack.c.l.b16 %v234
    %v312 = vunpack.c.l.b16 %v235
    %v313 = vunpack.c.h.b16 %v235
    %v314 = vunpack.c.l.b16 %v236
    %v315 = vunpack.c.l.b16 %v237
    %v316 = vunpack.c.h.b16 %v237
    %v317 = vunpack.c.l.b16 %v238
    %v318 = vunpack.c.l.b16 %v239
    %v319 = vunpack.c.h.b16 %v239
    %v320 = vunpack.c.l.b16 %v240
    %v321 = vpack.c.b16 %v276, %v273
    %v322 = vpack.c.b16 %v277, %v274
    %v323 = vpack.c.b16 %v278, %v275
    %v324 = vpack.c.b16 %v282, %v279
    %v325 = vpack.c.b16 %v283, %v280
    %v326 = vpack.c.b16 %v284, %v281
    %v327 = vpack.c.b16 %v288, %v285
    %v328 = vpack.c.b16 %v289, %v286
    %v329 = vpack.c.b16 %v290, %v287
    %v330 = vpack.c.b16 %v294, %v291
    %v331 = vpack.c.b16 %v295, %v292
    %v332 = vpack.c.b16 %v296, %v293
    %v333 = vpack.c.b16 %v300, %v297
    %v334 = vpack.c.b16 %v301, %v298
    %v335 = vpack.c.b16 %v302, %v299
    %v336 = vpack.c.b16 %v306, %v303
    %v337 = vpack.c.b16 %v307, %v304
    %v338 = vpack.c.b16 %v308, %v305
    %v339 = vpack.c.b16 %v312, %v309
    %v340 = vpack.c.b16 %v313, %v310
    %v341 = vpack.c.b16 %v314, %v311
    %v342 = vpack.c.b16 %v318, %v315
    %v343 = vpack.c.b16 %v319, %v316
    %v344 = vpack.c.b16 %v320, %v317
    %369 = vmatprep.subr.bf16.mxu0 %v343
    %370 = vmatpush1.bf16.msra.mxu0 %v342
    %371 = vmatprep.subr.bf16.mxu0 %v340
    %372 = vmatpush1.bf16.msra.mxu0 %v339
    %373 = vmatprep.subr.bf16.mxu0 %v337
    %374 = vmatpush1.bf16.msra.mxu0 %v336
    %375 = vmatprep.subr.bf16.mxu0 %v334
    %376 = vmatpush1.bf16.msra.mxu0 %v333
    %377 = vmatprep.subr.bf16.mxu0 %v331
    %378 = vmatpush1.bf16.msra.mxu0 %v330
    %379 = vmatprep.subr.bf16.mxu0 %v328
    %380 = vmatpush1.bf16.msra.mxu0 %v327
    %381 = vmatprep.subr.bf16.mxu0 %v325
    %382 = vmatpush1.bf16.msra.mxu0 %v324
    %383 = vmatprep.subr.bf16.mxu0 %v322
    %384 = vmatpush1.bf16.msra.mxu0 %v321
    %385 = vmatprep.subr.bf16.mxu0 0
    %386 = vmatpush2.bf16.msra.mxu0 0
    %387 = vmatprep.subr.bf16.mxu0 0
    %388 = vmatpush2.bf16.msra.mxu0 0
    %389 = vmatprep.subr.bf16.mxu0 0
    %390 = vmatpush2.bf16.msra.mxu0 0
    %391 = vmatprep.subr.bf16.mxu0 0
    %392 = vmatpush2.bf16.msra.mxu0 0
    %393 = vmatprep.subr.bf16.mxu0 0
    %394 = vmatpush2.bf16.msra.mxu0 0
    %395 = vmatprep.subr.bf16.mxu0 0
    %396 = vmatpush2.bf16.msra.mxu0 0
    %397 = vmatprep.subr.bf16.mxu0 0
    %398 = vmatpush2.bf16.msra.mxu0 0
    %399 = vmatprep.subr.bf16.mxu0 0
    %400 = vmatpush2.bf16.msra.mxu0 0
    %401 = vmatprep.mubr.bf16.mxu0 0
    %402 = vmatmul.mubr.bf16.gmra.mxu0 %v208
    %v403 = vpop.f32.mrf.mxu0
    %v404 = vadd.f32 0.0, %v403
    %v405 = vpop.f32.mrf.mxu0
    %v406 = vadd.f32 0.0, %v405
    %v407 = vpop.f32.mrf.mxu0
    %v408 = vadd.f32 0.0, %v407
    %v409 = vpop.f32.mrf.mxu0
    %v410 = vadd.f32 0.0, %v409
    %411 = vdwg.mxu0
    %412 = vmatprep.subr.bf16.mxu0 0
    %413 = vmatpush1.bf16.msra.mxu0 %v344
    %414 = vmatprep.subr.bf16.mxu0 0
    %415 = vmatpush1.bf16.msra.mxu0 %v341
    %416 = vmatprep.subr.bf16.mxu0 0
    %417 = vmatpush1.bf16.msra.mxu0 %v338
    %418 = vmatprep.subr.bf16.mxu0 0
    %419 = vmatpush1.bf16.msra.mxu0 %v335
    %420 = vmatprep.subr.bf16.mxu0 0
    %421 = vmatpush1.bf16.msra.mxu0 %v332
    %422 = vmatprep.subr.bf16.mxu0 0
    %423 = vmatpush1.bf16.msra.mxu0 %v329
    %424 = vmatprep.subr.bf16.mxu0 0
    %425 = vmatpush1.bf16.msra.mxu0 %v326
    %426 = vmatprep.subr.bf16.mxu0 0
    %427 = vmatpush1.bf16.msra.mxu0 %v323
    %428 = vmatprep.subr.bf16.mxu0 0
    %429 = vmatpush2.bf16.msra.mxu0 0
    %430 = vmatprep.subr.bf16.mxu0 0
    %431 = vmatpush2.bf16.msra.mxu0 0
    %432 = vmatprep.subr.bf16.mxu0 0
    %433 = vmatpush2.bf16.msra.mxu0 0
    %434 = vmatprep.subr.bf16.mxu0 0
    %435 = vmatpush2.bf16.msra.mxu0 0
    %436 = vmatprep.subr.bf16.mxu0 0
    %437 = vmatpush2.bf16.msra.mxu0 0
    %438 = vmatprep.subr.bf16.mxu0 0
    %439 = vmatpush2.bf16.msra.mxu0 0
    %440 = vmatprep.subr.bf16.mxu0 0
    %441 = vmatpush2.bf16.msra.mxu0 0
    %442 = vmatprep.subr.bf16.mxu0 0
    %443 = vmatpush2.bf16.msra.mxu0 0
    %444 = vmatprep.mubr.bf16.mxu0 0
    %445 = vmatmul.mubr.bf16.gmra.mxu0 %v208
    %v446 = vpop.f32.mrf.mxu0
    %v447 = vadd.f32 0.0, %v446
    %v448 = vpop.f32.mrf.mxu0
    %v449 = vpop.f32.mrf.mxu0
    %v450 = vadd.f32 0.0, %v449
    %v451 = vpop.f32.mrf.mxu0
    %452 = vdwg.mxu0
    %v453 = vlaneseq
    %v454 = vshrl.u32 %v453, 7
    %v455 = vsub.s32 0, %v454
    %v456 = vrot.slane %v171, %v455
    %v457 = vadd.f32 %v404, %v456
    %v458 = vadd.f32 %v408, %v456
    %v459 = vmul.f32 %v457, 0.17677669
    %v460 = vmul.f32 %v458, 0.17677669
    %v461 = vlaneseq
    %v462 = vshrl.u32 %v461, 7
    %v463 = vsub.s32 1, %v462
    %v464 = vrot.slane %v171, %v463
    %v465 = vadd.f32 %v406, %v464
    %v466 = vadd.f32 %v410, %v464
    %v467 = vlaneseq
    %v468 = vshrl.u32 %v467, 7
    %v469 = vsub.s32 2, %v468
    %v470 = vrot.slane %v171, %v469
    %v471 = vadd.f32 %v447, %v470
    %v472 = vadd.f32 %v450, %v470
    %v473 = vld [vmem:[#allocation5] sm:$0xf]
    %v474 = vld [vmem:[#allocation5 + $0x4] sm:$0xf]
    %v475 = vld [vmem:[#allocation5 + $0x8] sm:$0xf]
    %v476 = vld [vmem:[#allocation5 + $0xc] sm:$0xf]
    %v477 = vld [vmem:[#allocation5 + $0x10] sm:$0xf]
    %v478 = vld [vmem:[#allocation5 + $0x14] sm:$0xf]
    %v479 = vld [vmem:[#allocation5 + $0x18] sm:$0xf]
    %v480 = vld [vmem:[#allocation5 + $0x1c] sm:$0xf]
    %v481 = vld [vmem:[#allocation5 + $0x20] sm:$0xf]
    %v482 = vld [vmem:[#allocation5 + $0x24] sm:$0xf]
    %v483 = vld [vmem:[#allocation5 + $0x28] sm:$0xf]
    %v484 = vld [vmem:[#allocation5 + $0x2c] sm:$0xf]
    %v485 = vld [vmem:[#allocation5 + $0x30] sm:$0xf]
    %v486 = vld [vmem:[#allocation5 + $0x34] sm:$0xf]
    %v487 = vld [vmem:[#allocation5 + $0x38] sm:$0xf]
    %v488 = vld [vmem:[#allocation5 + $0x3c] sm:$0xf]
    %v489 = vpack.c.bf16 %v460, %v459
    %v491 = vunpack.c.l.b16 %v489
    %v492 = vunpack.c.h.b16 %v489
    %v493 = vpack.c.b16 %v491, %v491
    %v494 = vpack.c.b16 %v492, %v492
    %v495 = vpack.c.bf16 %v466, %v465
    %v497 = vunpack.c.l.b16 %v495
    %v498 = vunpack.c.h.b16 %v495
    %v499 = vpack.c.b16 %v497, %v497
    %v500 = vpack.c.b16 %v498, %v498
    %v501 = vpack.c.bf16 %v472, %v471
    %v503 = vunpack.c.l.b16 %v501
    %v504 = vunpack.c.h.b16 %v501
    %v505 = vpack.c.b16 %v503, %v503
    %v506 = vpack.c.b16 %v504, %v504
    %vm507 = vcmask 261120
    %v509 = vsel %vm507, %v493, 0
    %v512 = vsel %vm507, %v499, 0
    %514 = vmatprep.subr.bf16.mxu0 0
    %515 = vmatpush1.bf16.xpose.msra.mxu0 0
    %516 = vmatprep.subr.bf16.mxu0 0
    %517 = vmatpush1.bf16.xpose.msra.mxu0 0
    %518 = vmatprep.subr.bf16.mxu0 0
    %519 = vmatpush1.bf16.xpose.msra.mxu0 0
    %520 = vmatprep.subr.bf16.mxu0 0
    %521 = vmatpush1.bf16.xpose.msra.mxu0 0
    %522 = vmatprep.subr.bf16.mxu0 0
    %523 = vmatpush1.bf16.xpose.msra.mxu0 0
    %524 = vmatprep.subr.bf16.mxu0 0
    %525 = vmatpush1.bf16.xpose.msra.mxu0 0
    %526 = vmatprep.subr.bf16.mxu0 0
    %527 = vmatpush1.bf16.xpose.msra.mxu0 0
    %528 = vmatprep.subr.bf16.mxu0 0
    %529 = vmatpush1.bf16.xpose.msra.mxu0 %v512
    %530 = vmatprep.subr.bf16.mxu0 0
    %531 = vmatpush2.bf16.xpose.msra.mxu0 0
    %532 = vmatprep.subr.bf16.mxu0 0
    %533 = vmatpush2.bf16.xpose.msra.mxu0 0
    %534 = vmatprep.subr.bf16.mxu0 0
    %535 = vmatpush2.bf16.xpose.msra.mxu0 0
    %536 = vmatprep.subr.bf16.mxu0 0
    %537 = vmatpush2.bf16.xpose.msra.mxu0 0
    %538 = vmatprep.subr.bf16.mxu0 0
    %539 = vmatpush2.bf16.xpose.msra.mxu0 0
    %540 = vmatprep.subr.bf16.mxu0 0
    %541 = vmatpush2.bf16.xpose.msra.mxu0 0
    %542 = vmatprep.subr.bf16.mxu0 0
    %543 = vmatpush2.bf16.xpose.msra.mxu0 0
    %544 = vmatprep.subr.bf16.mxu0 0
    %545 = vmatpush2.bf16.xpose.msra.mxu0 0
    %546 = vmatprep.mubr.bf16.mxu0 0
    %547 = vmatmul.mubr.bf16.gmra.mxu0 %v509
    %v548 = vpop.f32.mrf.mxu0
    %v549 = vadd.f32 %v164, %v548
    %v550 = vpop.f32.mrf.mxu0
    %v551 = vpop.f32.mrf.mxu0
    %v552 = vpop.f32.mrf.mxu0
    %553 = vdwg.mxu0
    %v555 = vsel %vm507, %v494, 0
    %v558 = vsel %vm507, %v500, 0
    %560 = vmatprep.subr.bf16.mxu0 0
    %561 = vmatpush1.bf16.xpose.msra.mxu0 0
    %562 = vmatprep.subr.bf16.mxu0 0
    %563 = vmatpush1.bf16.xpose.msra.mxu0 0
    %564 = vmatprep.subr.bf16.mxu0 0
    %565 = vmatpush1.bf16.xpose.msra.mxu0 0
    %566 = vmatprep.subr.bf16.mxu0 0
    %567 = vmatpush1.bf16.xpose.msra.mxu0 0
    %568 = vmatprep.subr.bf16.mxu0 0
    %569 = vmatpush1.bf16.xpose.msra.mxu0 0
    %570 = vmatprep.subr.bf16.mxu0 0
    %571 = vmatpush1.bf16.xpose.msra.mxu0 0
    %572 = vmatprep.subr.bf16.mxu0 0
    %573 = vmatpush1.bf16.xpose.msra.mxu0 0
    %574 = vmatprep.subr.bf16.mxu0 0
    %575 = vmatpush1.bf16.xpose.msra.mxu0 %v558
    %576 = vmatprep.subr.bf16.mxu0 0
    %577 = vmatpush2.bf16.xpose.msra.mxu0 0
    %578 = vmatprep.subr.bf16.mxu0 0
    %579 = vmatpush2.bf16.xpose.msra.mxu0 0
    %580 = vmatprep.subr.bf16.mxu0 0
    %581 = vmatpush2.bf16.xpose.msra.mxu0 0
    %582 = vmatprep.subr.bf16.mxu0 0
    %583 = vmatpush2.bf16.xpose.msra.mxu0 0
    %584 = vmatprep.subr.bf16.mxu0 0
    %585 = vmatpush2.bf16.xpose.msra.mxu0 0
    %586 = vmatprep.subr.bf16.mxu0 0
    %587 = vmatpush2.bf16.xpose.msra.mxu0 0
    %588 = vmatprep.subr.bf16.mxu0 0
    %589 = vmatpush2.bf16.xpose.msra.mxu0 0
    %590 = vmatprep.subr.bf16.mxu0 0
    %591 = vmatpush2.bf16.xpose.msra.mxu0 0
    %592 = vmatprep.mubr.bf16.mxu0 0
    %593 = vmatmul.mubr.bf16.gmra.mxu0 %v555
    %v594 = vpop.f32.mrf.mxu0
    %v595 = vadd.f32 %v165, %v594
    %v596 = vpop.f32.mrf.mxu0
    %v597 = vpop.f32.mrf.mxu0
    %v598 = vpop.f32.mrf.mxu0
    %599 = vdwg.mxu0
    %vm600 = vcmask 64512
    %v601 = vsel %vm600, %v549, -inf
    %602 = vmax.xlane.f32.xlu0 %v601
    %v603 = vpop.xlane.xlu0 %602
    %v604 = vsel %vm600, %v595, -inf
    %605 = vmax.xlane.f32.xlu0 %v604
    %v606 = vpop.xlane.xlu0 %605
    %v607 = vsub.f32 %v549, %v603
    %v608 = vsub.f32 %v595, %v606
    %v609 = vmul.f32 %v607, 1.442695
    %v610 = vpow.pop %v609
    %v611 = vmul.f32 %v608, 1.442695
    %v612 = vpow.pop %v611
    %v613 = vsel %vm600, %v610, 0.0
    %614 = vadd.xlane.f32.xlu0 %v613
    %v615 = vpop.xlane.xlu0 %614
    %v616 = vsel %vm600, %v612, 0.0
    %617 = vadd.xlane.f32.xlu0 %v616
    %v618 = vpop.xlane.xlu0 %617
    %v619 = vrcp.pop %v615
    %v620 = vrcp.pop %v618
    %v621 = vmul.f32 %v610, %v619
    %v622 = vmul.f32 %v612, %v620
    %v623 = vpack.c.bf16 %v621, %v621
    %v624 = vpack.c.bf16 %v622, %v622
    %v626 = vsel %vm600, %v623, 0
    %vm628 = vcmask 1043456
    %v630 = vsel %vm628, %v505, 0
    %632 = vmatprep.subr.bf16.mxu0 0
    %633 = vmatpush1.bf16.msra.mxu0 0
    %634 = vmatprep.subr.bf16.mxu0 0
    %635 = vmatpush1.bf16.msra.mxu0 0
    %636 = vmatprep.subr.bf16.mxu0 0
    %637 = vmatpush1.bf16.msra.mxu0 0
    %638 = vmatprep.subr.bf16.mxu0 0
    %639 = vmatpush1.bf16.msra.mxu0 0
    %640 = vmatprep.subr.bf16.mxu0 0
    %641 = vmatpush1.bf16.msra.mxu0 0
    %642 = vmatprep.subr.bf16.mxu0 0
    %643 = vmatpush1.bf16.msra.mxu0 0
    %644 = vmatprep.subr.bf16.mxu0 0
    %645 = vmatpush1.bf16.msra.mxu0 0
    %646 = vmatprep.subr.bf16.mxu0 0
    %647 = vmatpush1.bf16.msra.mxu0 %v630
    %648 = vmatprep.subr.bf16.mxu0 0
    %649 = vmatpush2.bf16.msra.mxu0 0
    %650 = vmatprep.subr.bf16.mxu0 0
    %651 = vmatpush2.bf16.msra.mxu0 0
    %652 = vmatprep.subr.bf16.mxu0 0
    %653 = vmatpush2.bf16.msra.mxu0 0
    %654 = vmatprep.subr.bf16.mxu0 0
    %655 = vmatpush2.bf16.msra.mxu0 0
    %656 = vmatprep.subr.bf16.mxu0 0
    %657 = vmatpush2.bf16.msra.mxu0 0
    %658 = vmatprep.subr.bf16.mxu0 0
    %659 = vmatpush2.bf16.msra.mxu0 0
    %660 = vmatprep.subr.bf16.mxu0 0
    %661 = vmatpush2.bf16.msra.mxu0 0
    %662 = vmatprep.subr.bf16.mxu0 0
    %663 = vmatpush2.bf16.msra.mxu0 0
    %664 = vmatprep.mubr.bf16.mxu0 0
    %665 = vmatmul.mubr.bf16.gmra.mxu0 %v626
    %v666 = vpop.f32.mrf.mxu0
    %v667 = vadd.f32 0.0, %v666
    %v668 = vpop.f32.mrf.mxu0
    %v669 = vpop.f32.mrf.mxu0
    %v670 = vpop.f32.mrf.mxu0
    %671 = vdwg.mxu0
    %v673 = vsel %vm600, %v624, 0
    %v676 = vsel %vm628, %v506, 0
    %678 = vmatprep.subr.bf16.mxu0 0
    %679 = vmatpush1.bf16.msra.mxu0 0
    %680 = vmatprep.subr.bf16.mxu0 0
    %681 = vmatpush1.bf16.msra.mxu0 0
    %682 = vmatprep.subr.bf16.mxu0 0
    %683 = vmatpush1.bf16.msra.mxu0 0
    %684 = vmatprep.subr.bf16.mxu0 0
    %685 = vmatpush1.bf16.msra.mxu0 0
    %686 = vmatprep.subr.bf16.mxu0 0
    %687 = vmatpush1.bf16.msra.mxu0 0
    %688 = vmatprep.subr.bf16.mxu0 0
    %689 = vmatpush1.bf16.msra.mxu0 0
    %690 = vmatprep.subr.bf16.mxu0 0
    %691 = vmatpush1.bf16.msra.mxu0 0
    %692 = vmatprep.subr.bf16.mxu0 0
    %693 = vmatpush1.bf16.msra.mxu0 %v676
    %694 = vmatprep.subr.bf16.mxu0 0
    %695 = vmatpush2.bf16.msra.mxu0 0
    %696 = vmatprep.subr.bf16.mxu0 0
    %697 = vmatpush2.bf16.msra.mxu0 0
    %698 = vmatprep.subr.bf16.mxu0 0
    %699 = vmatpush2.bf16.msra.mxu0 0
    %700 = vmatprep.subr.bf16.mxu0 0
    %701 = vmatpush2.bf16.msra.mxu0 0
    %702 = vmatprep.subr.bf16.mxu0 0
    %703 = vmatpush2.bf16.msra.mxu0 0
    %704 = vmatprep.subr.bf16.mxu0 0
    %705 = vmatpush2.bf16.msra.mxu0 0
    %706 = vmatprep.subr.bf16.mxu0 0
    %707 = vmatpush2.bf16.msra.mxu0 0
    %708 = vmatprep.subr.bf16.mxu0 0
    %709 = vmatpush2.bf16.msra.mxu0 0
    %710 = vmatprep.mubr.bf16.mxu0 0
    %711 = vmatmul.mubr.bf16.gmra.mxu0 %v673
    %v712 = vpop.f32.mrf.mxu0
    %v713 = vadd.f32 0.0, %v712
    %v714 = vpop.f32.mrf.mxu0
    %v715 = vpop.f32.mrf.mxu0
    %v716 = vpop.f32.mrf.mxu0
    %717 = vdwg.mxu0
    %v718 = vpack.c.bf16 %v713, %v667
    %719 = vrot.lane.b32.xlu0 %v493, 96
    %v720 = vpop.permute.xlu0 %719
    %721 = vrot.lane.b32.xlu0 %v499, 96
    %v722 = vpop.permute.xlu0 %721
    %v724 = vsel %vm507, %v720, 0
    %v727 = vsel %vm507, %v722, 0
    %729 = vmatprep.subr.bf16.mxu0 0
    %730 = vmatpush1.bf16.xpose.msra.mxu0 0
    %731 = vmatprep.subr.bf16.mxu0 0
    %732 = vmatpush1.bf16.xpose.msra.mxu0 0
    %733 = vmatprep.subr.bf16.mxu0 0
    %734 = vmatpush1.bf16.xpose.msra.mxu0 0
    %735 = vmatprep.subr.bf16.mxu0 0
    %736 = vmatpush1.bf16.xpose.msra.mxu0 0
    %737 = vmatprep.subr.bf16.mxu0 0
    %738 = vmatpush1.bf16.xpose.msra.mxu0 0
    %739 = vmatprep.subr.bf16.mxu0 0
    %740 = vmatpush1.bf16.xpose.msra.mxu0 0
    %741 = vmatprep.subr.bf16.mxu0 0
    %742 = vmatpush1.bf16.xpose.msra.mxu0 0
    %743 = vmatprep.subr.bf16.mxu0 0
    %744 = vmatpush1.bf16.xpose.msra.mxu0 %v727
    %745 = vmatprep.subr.bf16.mxu0 0
    %746 = vmatpush2.bf16.xpose.msra.mxu0 0
    %747 = vmatprep.subr.bf16.mxu0 0
    %748 = vmatpush2.bf16.xpose.msra.mxu0 0
    %749 = vmatprep.subr.bf16.mxu0 0
    %750 = vmatpush2.bf16.xpose.msra.mxu0 0
    %751 = vmatprep.subr.bf16.mxu0 0
    %752 = vmatpush2.bf16.xpose.msra.mxu0 0
    %753 = vmatprep.subr.bf16.mxu0 0
    %754 = vmatpush2.bf16.xpose.msra.mxu0 0
    %755 = vmatprep.subr.bf16.mxu0 0
    %756 = vmatpush2.bf16.xpose.msra.mxu0 0
    %757 = vmatprep.subr.bf16.mxu0 0
    %758 = vmatpush2.bf16.xpose.msra.mxu0 0
    %759 = vmatprep.subr.bf16.mxu0 0
    %760 = vmatpush2.bf16.xpose.msra.mxu0 0
    %761 = vmatprep.mubr.bf16.mxu0 0
    %762 = vmatmul.mubr.bf16.gmra.mxu0 %v724
    %v763 = vpop.f32.mrf.mxu0
    %v764 = vadd.f32 %v164, %v763
    %v765 = vpop.f32.mrf.mxu0
    %v766 = vpop.f32.mrf.mxu0
    %v767 = vpop.f32.mrf.mxu0
    %768 = vdwg.mxu0
    %769 = vrot.lane.b32.xlu0 %v494, 96
    %v770 = vpop.permute.xlu0 %769
    %771 = vrot.lane.b32.xlu0 %v500, 96
    %v772 = vpop.permute.xlu0 %771
    %v774 = vsel %vm507, %v770, 0
    %v777 = vsel %vm507, %v772, 0
    %779 = vmatprep.subr.bf16.mxu0 0
    %780 = vmatpush1.bf16.xpose.msra.mxu0 0
    %781 = vmatprep.subr.bf16.mxu0 0
    %782 = vmatpush1.bf16.xpose.msra.mxu0 0
    %783 = vmatprep.subr.bf16.mxu0 0
    %784 = vmatpush1.bf16.xpose.msra.mxu0 0
    %785 = vmatprep.subr.bf16.mxu0 0
    %786 = vmatpush1.bf16.xpose.msra.mxu0 0
    %787 = vmatprep.subr.bf16.mxu0 0
    %788 = vmatpush1.bf16.xpose.msra.mxu0 0
    %789 = vmatprep.subr.bf16.mxu0 0
    %790 = vmatpush1.bf16.xpose.msra.mxu0 0
    %791 = vmatprep.subr.bf16.mxu0 0
    %792 = vmatpush1.bf16.xpose.msra.mxu0 0
    %793 = vmatprep.subr.bf16.mxu0 0
    %794 = vmatpush1.bf16.xpose.msra.mxu0 %v777
    %795 = vmatprep.subr.bf16.mxu0 0
    %796 = vmatpush2.bf16.xpose.msra.mxu0 0
    %797 = vmatprep.subr.bf16.mxu0 0
    %798 = vmatpush2.bf16.xpose.msra.mxu0 0
    %799 = vmatprep.subr.bf16.mxu0 0
    %800 = vmatpush2.bf16.xpose.msra.mxu0 0
    %801 = vmatprep.subr.bf16.mxu0 0
    %802 = vmatpush2.bf16.xpose.msra.mxu0 0
    %803 = vmatprep.subr.bf16.mxu0 0
    %804 = vmatpush2.bf16.xpose.msra.mxu0 0
    %805 = vmatprep.subr.bf16.mxu0 0
    %806 = vmatpush2.bf16.xpose.msra.mxu0 0
    %807 = vmatprep.subr.bf16.mxu0 0
    %808 = vmatpush2.bf16.xpose.msra.mxu0 0
    %809 = vmatprep.subr.bf16.mxu0 0
    %810 = vmatpush2.bf16.xpose.msra.mxu0 0
    %811 = vmatprep.mubr.bf16.mxu0 0
    %812 = vmatmul.mubr.bf16.gmra.mxu0 %v774
    %v813 = vpop.f32.mrf.mxu0
    %v814 = vadd.f32 %v165, %v813
    %v815 = vpop.f32.mrf.mxu0
    %v816 = vpop.f32.mrf.mxu0
    %v817 = vpop.f32.mrf.mxu0
    %818 = vdwg.mxu0
    %v819 = vsel %vm600, %v764, -inf
    %820 = vmax.xlane.f32.xlu0 %v819
    %v821 = vpop.xlane.xlu0 %820
    %v822 = vsel %vm600, %v814, -inf
    %823 = vmax.xlane.f32.xlu0 %v822
    %v824 = vpop.xlane.xlu0 %823
    %v825 = vsub.f32 %v764, %v821
    %v826 = vsub.f32 %v814, %v824
    %v827 = vmul.f32 %v825, 1.442695
    %v828 = vpow.pop %v827
    %v829 = vmul.f32 %v826, 1.442695
    %v830 = vpow.pop %v829
    %v831 = vsel %vm600, %v828, 0.0
    %832 = vadd.xlane.f32.xlu0 %v831
    %v833 = vpop.xlane.xlu0 %832
    %v834 = vsel %vm600, %v830, 0.0
    %835 = vadd.xlane.f32.xlu0 %v834
    %v836 = vpop.xlane.xlu0 %835
    %v837 = vrcp.pop %v833
    %v838 = vrcp.pop %v836
    %v839 = vmul.f32 %v828, %v837
    %v840 = vmul.f32 %v830, %v838
    %v841 = vpack.c.bf16 %v839, %v839
    %v842 = vpack.c.bf16 %v840, %v840
    %843 = vrot.lane.b32.xlu0 %v505, 96
    %v844 = vpop.permute.xlu0 %843
    %v846 = vsel %vm600, %v841, 0
    %v849 = vsel %vm628, %v844, 0
    %851 = vmatprep.subr.bf16.mxu0 0
    %852 = vmatpush1.bf16.msra.mxu0 0
    %853 = vmatprep.subr.bf16.mxu0 0
    %854 = vmatpush1.bf16.msra.mxu0 0
    %855 = vmatprep.subr.bf16.mxu0 0
    %856 = vmatpush1.bf16.msra.mxu0 0
    %857 = vmatprep.subr.bf16.mxu0 0
    %858 = vmatpush1.bf16.msra.mxu0 0
    %859 = vmatprep.subr.bf16.mxu0 0
    %860 = vmatpush1.bf16.msra.mxu0 0
    %861 = vmatprep.subr.bf16.mxu0 0
    %862 = vmatpush1.bf16.msra.mxu0 0
    %863 = vmatprep.subr.bf16.mxu0 0
    %864 = vmatpush1.bf16.msra.mxu0 0
    %865 = vmatprep.subr.bf16.mxu0 0
    %866 = vmatpush1.bf16.msra.mxu0 %v849
    %867 = vmatprep.subr.bf16.mxu0 0
    %868 = vmatpush2.bf16.msra.mxu0 0
    %869 = vmatprep.subr.bf16.mxu0 0
    %870 = vmatpush2.bf16.msra.mxu0 0
    %871 = vmatprep.subr.bf16.mxu0 0
    %872 = vmatpush2.bf16.msra.mxu0 0
    %873 = vmatprep.subr.bf16.mxu0 0
    %874 = vmatpush2.bf16.msra.mxu0 0
    %875 = vmatprep.subr.bf16.mxu0 0
    %876 = vmatpush2.bf16.msra.mxu0 0
    %877 = vmatprep.subr.bf16.mxu0 0
    %878 = vmatpush2.bf16.msra.mxu0 0
    %879 = vmatprep.subr.bf16.mxu0 0
    %880 = vmatpush2.bf16.msra.mxu0 0
    %881 = vmatprep.subr.bf16.mxu0 0
    %882 = vmatpush2.bf16.msra.mxu0 0
    %883 = vmatprep.mubr.bf16.mxu0 0
    %884 = vmatmul.mubr.bf16.gmra.mxu0 %v846
    %v885 = vpop.f32.mrf.mxu0
    %v886 = vadd.f32 0.0, %v885
    %v887 = vpop.f32.mrf.mxu0
    %v888 = vpop.f32.mrf.mxu0
    %v889 = vpop.f32.mrf.mxu0
    %890 = vdwg.mxu0
    %891 = vrot.lane.b32.xlu0 %v506, 96
    %v892 = vpop.permute.xlu0 %891
    %v894 = vsel %vm600, %v842, 0
    %v897 = vsel %vm628, %v892, 0
    %899 = vmatprep.subr.bf16.mxu0 0
    %900 = vmatpush1.bf16.msra.mxu0 0
    %901 = vmatprep.subr.bf16.mxu0 0
    %902 = vmatpush1.bf16.msra.mxu0 0
    %903 = vmatprep.subr.bf16.mxu0 0
    %904 = vmatpush1.bf16.msra.mxu0 0
    %905 = vmatprep.subr.bf16.mxu0 0
    %906 = vmatpush1.bf16.msra.mxu0 0
    %907 = vmatprep.subr.bf16.mxu0 0
    %908 = vmatpush1.bf16.msra.mxu0 0
    %909 = vmatprep.subr.bf16.mxu0 0
    %910 = vmatpush1.bf16.msra.mxu0 0
    %911 = vmatprep.subr.bf16.mxu0 0
    %912 = vmatpush1.bf16.msra.mxu0 0
    %913 = vmatprep.subr.bf16.mxu0 0
    %914 = vmatpush1.bf16.msra.mxu0 %v897
    %915 = vmatprep.subr.bf16.mxu0 0
    %916 = vmatpush2.bf16.msra.mxu0 0
    %917 = vmatprep.subr.bf16.mxu0 0
    %918 = vmatpush2.bf16.msra.mxu0 0
    %919 = vmatprep.subr.bf16.mxu0 0
    %920 = vmatpush2.bf16.msra.mxu0 0
    %921 = vmatprep.subr.bf16.mxu0 0
    %922 = vmatpush2.bf16.msra.mxu0 0
    %923 = vmatprep.subr.bf16.mxu0 0
    %924 = vmatpush2.bf16.msra.mxu0 0
    %925 = vmatprep.subr.bf16.mxu0 0
    %926 = vmatpush2.bf16.msra.mxu0 0
    %927 = vmatprep.subr.bf16.mxu0 0
    %928 = vmatpush2.bf16.msra.mxu0 0
    %929 = vmatprep.subr.bf16.mxu0 0
    %930 = vmatpush2.bf16.msra.mxu0 0
    %931 = vmatprep.mubr.bf16.mxu0 0
    %932 = vmatmul.mubr.bf16.gmra.mxu0 %v894
    %v933 = vpop.f32.mrf.mxu0
    %v934 = vadd.f32 0.0, %v933
    %v935 = vpop.f32.mrf.mxu0
    %v936 = vpop.f32.mrf.mxu0
    %v937 = vpop.f32.mrf.mxu0
    %938 = vdwg.mxu0
    %v939 = vpack.c.bf16 %v934, %v886
    %v944 = vunpack.c.l.b16 %v477
    %v945 = vunpack.c.l.b16 %v478
    %v946 = vunpack.c.l.b16 %v479
    %v947 = vunpack.c.l.b16 %v480
    %v948 = vpack.c.b16 %v945, %v944
    %v949 = vpack.c.b16 %v947, %v946
    %v953 = vsel %vm507, %v939, 0
    %955 = vmatprep.subr.bf16.mxu0 0
    %956 = vmatpush1.bf16.msra.mxu0 0
    %957 = vmatprep.subr.bf16.mxu0 0
    %958 = vmatpush1.bf16.msra.mxu0 0
    %959 = vmatprep.subr.bf16.mxu0 0
    %960 = vmatpush1.bf16.msra.mxu0 0
    %961 = vmatprep.subr.bf16.mxu0 0
    %962 = vmatpush1.bf16.msra.mxu0 0
    %963 = vmatprep.subr.bf16.mxu0 0
    %964 = vmatpush1.bf16.msra.mxu0 0
    %965 = vmatprep.subr.bf16.mxu0 0
    %966 = vmatpush1.bf16.msra.mxu0 0
    %967 = vmatprep.subr.bf16.mxu0 0
    %968 = vmatpush1.bf16.msra.mxu0 %v949
    %969 = vmatprep.subr.bf16.mxu0 0
    %970 = vmatpush1.bf16.msra.mxu0 %v948
    %971 = vmatprep.subr.bf16.mxu0 0
    %972 = vmatpush2.bf16.msra.mxu0 0
    %973 = vmatprep.subr.bf16.mxu0 0
    %974 = vmatpush2.bf16.msra.mxu0 0
    %975 = vmatprep.subr.bf16.mxu0 0
    %976 = vmatpush2.bf16.msra.mxu0 0
    %977 = vmatprep.subr.bf16.mxu0 0
    %978 = vmatpush2.bf16.msra.mxu0 0
    %979 = vmatprep.subr.bf16.mxu0 0
    %980 = vmatpush2.bf16.msra.mxu0 0
    %981 = vmatprep.subr.bf16.mxu0 0
    %982 = vmatpush2.bf16.msra.mxu0 0
    %983 = vmatprep.subr.bf16.mxu0 0
    %984 = vmatpush2.bf16.msra.mxu0 0
    %985 = vmatprep.subr.bf16.mxu0 0
    %986 = vmatpush2.bf16.msra.mxu0 0
    %987 = vmatprep.mubr.bf16.mxu0 0
    %988 = vmatmul.mubr.bf16.gmra.mxu0 %v953
    %v989 = vpop.f32.mrf.mxu0
    %v990 = vadd.f32 0.0, %v989
    %v991 = vpop.f32.mrf.mxu0
    %v992 = vpop.f32.mrf.mxu0
    %v993 = vadd.f32 0.0, %v992
    %v994 = vpop.f32.mrf.mxu0
    %995 = vdwg.mxu0
    %v1000 = vunpack.c.l.b16 %v473
    %v1001 = vunpack.c.l.b16 %v474
    %v1002 = vunpack.c.l.b16 %v475
    %v1003 = vunpack.c.l.b16 %v476
    %v1004 = vpack.c.b16 %v1001, %v1000
    %v1005 = vpack.c.b16 %v1003, %v1002
    %v1009 = vsel %vm507, %v718, 0
    %1011 = vmatprep.subr.bf16.mxu0 0
    %1012 = vmatpush1.bf16.msra.mxu0 0
    %1013 = vmatprep.subr.bf16.mxu0 0
    %1014 = vmatpush1.bf16.msra.mxu0 0
    %1015 = vmatprep.subr.bf16.mxu0 0
    %1016 = vmatpush1.bf16.msra.mxu0 0
    %1017 = vmatprep.subr.bf16.mxu0 0
    %1018 = vmatpush1.bf16.msra.mxu0 0
    %1019 = vmatprep.subr.bf16.mxu0 0
    %1020 = vmatpush1.bf16.msra.mxu0 0
    %1021 = vmatprep.subr.bf16.mxu0 0
    %1022 = vmatpush1.bf16.msra.mxu0 0
    %1023 = vmatprep.subr.bf16.mxu0 0
    %1024 = vmatpush1.bf16.msra.mxu0 %v1005
    %1025 = vmatprep.subr.bf16.mxu0 0
    %1026 = vmatpush1.bf16.msra.mxu0 %v1004
    %1027 = vmatprep.subr.bf16.mxu0 0
    %1028 = vmatpush2.bf16.msra.mxu0 0
    %1029 = vmatprep.subr.bf16.mxu0 0
    %1030 = vmatpush2.bf16.msra.mxu0 0
    %1031 = vmatprep.subr.bf16.mxu0 0
    %1032 = vmatpush2.bf16.msra.mxu0 0
    %1033 = vmatprep.subr.bf16.mxu0 0
    %1034 = vmatpush2.bf16.msra.mxu0 0
    %1035 = vmatprep.subr.bf16.mxu0 0
    %1036 = vmatpush2.bf16.msra.mxu0 0
    %1037 = vmatprep.subr.bf16.mxu0 0
    %1038 = vmatpush2.bf16.msra.mxu0 0
    %1039 = vmatprep.subr.bf16.mxu0 0
    %1040 = vmatpush2.bf16.msra.mxu0 0
    %1041 = vmatprep.subr.bf16.mxu0 0
    %1042 = vmatpush2.bf16.msra.mxu0 0
    %1043 = vmatprep.mubr.bf16.mxu0 0
    %1044 = vmatmul.mubr.bf16.gmra.mxu0 %v1009
    %v1045 = vpop.f32.mrf.mxu0
    %v1046 = vadd.f32 %v990, %v1045
    %v1047 = vpop.f32.mrf.mxu0
    %v1048 = vpop.f32.mrf.mxu0
    %v1049 = vadd.f32 %v993, %v1048
    %v1050 = vpop.f32.mrf.mxu0
    %1051 = vdwg.mxu0
    %1052 = vrot.lane.b32.xlu0 %v493, 64
    %v1053 = vpop.permute.xlu0 %1052
    %1054 = vrot.lane.b32.xlu0 %v499, 64
    %v1055 = vpop.permute.xlu0 %1054
    %v1057 = vsel %vm507, %v1053, 0
    %v1060 = vsel %vm507, %v1055, 0
    %1062 = vmatprep.subr.bf16.mxu0 0
    %1063 = vmatpush1.bf16.xpose.msra.mxu0 0
    %1064 = vmatprep.subr.bf16.mxu0 0
    %1065 = vmatpush1.bf16.xpose.msra.mxu0 0
    %1066 = vmatprep.subr.bf16.mxu0 0
    %1067 = vmatpush1.bf16.xpose.msra.mxu0 0
    %1068 = vmatprep.subr.bf16.mxu0 0
    %1069 = vmatpush1.bf16.xpose.msra.mxu0 0
    %1070 = vmatprep.subr.bf16.mxu0 0
    %1071 = vmatpush1.bf16.xpose.msra.mxu0 0
    %1072 = vmatprep.subr.bf16.mxu0 0
    %1073 = vmatpush1.bf16.xpose.msra.mxu0 0
    %1074 = vmatprep.subr.bf16.mxu0 0
    %1075 = vmatpush1.bf16.xpose.msra.mxu0 0
    %1076 = vmatprep.subr.bf16.mxu0 0
    %1077 = vmatpush1.bf16.xpose.msra.mxu0 %v1060
    %1078 = vmatprep.subr.bf16.mxu0 0
    %1079 = vmatpush2.bf16.xpose.msra.mxu0 0
    %1080 = vmatprep.subr.bf16.mxu0 0
    %1081 = vmatpush2.bf16.xpose.msra.mxu0 0
    %1082 = vmatprep.subr.bf16.mxu0 0
    %1083 = vmatpush2.bf16.xpose.msra.mxu0 0
    %1084 = vmatprep.subr.bf16.mxu0 0
    %1085 = vmatpush2.bf16.xpose.msra.mxu0 0
    %1086 = vmatprep.subr.bf16.mxu0 0
    %1087 = vmatpush2.bf16.xpose.msra.mxu0 0
    %1088 = vmatprep.subr.bf16.mxu0 0
    %1089 = vmatpush2.bf16.xpose.msra.mxu0 0
    %1090 = vmatprep.subr.bf16.mxu0 0
    %1091 = vmatpush2.bf16.xpose.msra.mxu0 0
    %1092 = vmatprep.subr.bf16.mxu0 0
    %1093 = vmatpush2.bf16.xpose.msra.mxu0 0
    %1094 = vmatprep.mubr.bf16.mxu0 0
    %1095 = vmatmul.mubr.bf16.gmra.mxu0 %v1057
    %v1096 = vpop.f32.mrf.mxu0
    %v1097 = vadd.f32 %v164, %v1096
    %v1098 = vpop.f32.mrf.mxu0
    %v1099 = vpop.f32.mrf.mxu0
    %v1100 = vpop.f32.mrf.mxu0
    %1101 = vdwg.mxu0
    %1102 = vrot.lane.b32.xlu0 %v494, 64
    %v1103 = vpop.permute.xlu0 %1102
    %1104 = vrot.lane.b32.xlu0 %v500, 64
    %v1105 = vpop.permute.xlu0 %1104
    %v1107 = vsel %vm507, %v1103, 0
    %v1110 = vsel %vm507, %v1105, 0
    %1112 = vmatprep.subr.bf16.mxu0 0
    %1113 = vmatpush1.bf16.xpose.msra.mxu0 0
    %1114 = vmatprep.subr.bf16.mxu0 0
    %1115 = vmatpush1.bf16.xpose.msra.mxu0 0
    %1116 = vmatprep.subr.bf16.mxu0 0
    %1117 = vmatpush1.bf16.xpose.msra.mxu0 0
    %1118 = vmatprep.subr.bf16.mxu0 0
    %1119 = vmatpush1.bf16.xpose.msra.mxu0 0
    %1120 = vmatprep.subr.bf16.mxu0 0
    %1121 = vmatpush1.bf16.xpose.msra.mxu0 0
    %1122 = vmatprep.subr.bf16.mxu0 0
    %1123 = vmatpush1.bf16.xpose.msra.mxu0 0
    %1124 = vmatprep.subr.bf16.mxu0 0
    %1125 = vmatpush1.bf16.xpose.msra.mxu0 0
    %1126 = vmatprep.subr.bf16.mxu0 0
    %1127 = vmatpush1.bf16.xpose.msra.mxu0 %v1110
    %1128 = vmatprep.subr.bf16.mxu0 0
    %1129 = vmatpush2.bf16.xpose.msra.mxu0 0
    %1130 = vmatprep.subr.bf16.mxu0 0
    %1131 = vmatpush2.bf16.xpose.msra.mxu0 0
    %1132 = vmatprep.subr.bf16.mxu0 0
    %1133 = vmatpush2.bf16.xpose.msra.mxu0 0
    %1134 = vmatprep.subr.bf16.mxu0 0
    %1135 = vmatpush2.bf16.xpose.msra.mxu0 0
    %1136 = vmatprep.subr.bf16.mxu0 0
    %1137 = vmatpush2.bf16.xpose.msra.mxu0 0
    %1138 = vmatprep.subr.bf16.mxu0 0
    %1139 = vmatpush2.bf16.xpose.msra.mxu0 0
    %1140 = vmatprep.subr.bf16.mxu0 0
    %1141 = vmatpush2.bf16.xpose.msra.mxu0 0
    %1142 = vmatprep.subr.bf16.mxu0 0
    %1143 = vmatpush2.bf16.xpose.msra.mxu0 0
    %1144 = vmatprep.mubr.bf16.mxu0 0
    %1145 = vmatmul.mubr.bf16.gmra.mxu0 %v1107
    %v1146 = vpop.f32.mrf.mxu0
    %v1147 = vadd.f32 %v165, %v1146
    %v1148 = vpop.f32.mrf.mxu0
    %v1149 = vpop.f32.mrf.mxu0
    %v1150 = vpop.f32.mrf.mxu0
    %1151 = vdwg.mxu0
    %v1152 = vsel %vm600, %v1097, -inf
    %1153 = vmax.xlane.f32.xlu0 %v1152
    %v1154 = vpop.xlane.xlu0 %1153
    %v1155 = vsel %vm600, %v1147, -inf
    %1156 = vmax.xlane.f32.xlu0 %v1155
    %v1157 = vpop.xlane.xlu0 %1156
    %v1158 = vsub.f32 %v1097, %v1154
    %v1159 = vsub.f32 %v1147, %v1157
    %v1160 = vmul.f32 %v1158, 1.442695
    %v1161 = vpow.pop %v1160
    %v1162 = vmul.f32 %v1159, 1.442695
    %v1163 = vpow.pop %v1162
    %v1164 = vsel %vm600, %v1161, 0.0
    %1165 = vadd.xlane.f32.xlu0 %v1164
    %v1166 = vpop.xlane.xlu0 %1165
    %v1167 = vsel %vm600, %v1163, 0.0
    %1168 = vadd.xlane.f32.xlu0 %v1167
    %v1169 = vpop.xlane.xlu0 %1168
    %v1170 = vrcp.pop %v1166
    %v1171 = vrcp.pop %v1169
    %v1172 = vmul.f32 %v1161, %v1170
    %v1173 = vmul.f32 %v1163, %v1171
    %v1174 = vpack.c.bf16 %v1172, %v1172
    %v1175 = vpack.c.bf16 %v1173, %v1173
    %1176 = vrot.lane.b32.xlu0 %v505, 64
    %v1177 = vpop.permute.xlu0 %1176
    %v1179 = vsel %vm600, %v1174, 0
    %v1182 = vsel %vm628, %v1177, 0
    %1184 = vmatprep.subr.bf16.mxu0 0
    %1185 = vmatpush1.bf16.msra.mxu0 0
    %1186 = vmatprep.subr.bf16.mxu0 0
    %1187 = vmatpush1.bf16.msra.mxu0 0
    %1188 = vmatprep.subr.bf16.mxu0 0
    %1189 = vmatpush1.bf16.msra.mxu0 0
    %1190 = vmatprep.subr.bf16.mxu0 0
    %1191 = vmatpush1.bf16.msra.mxu0 0
    %1192 = vmatprep.subr.bf16.mxu0 0
    %1193 = vmatpush1.bf16.msra.mxu0 0
    %1194 = vmatprep.subr.bf16.mxu0 0
    %1195 = vmatpush1.bf16.msra.mxu0 0
    %1196 = vmatprep.subr.bf16.mxu0 0
    %1197 = vmatpush1.bf16.msra.mxu0 0
    %1198 = vmatprep.subr.bf16.mxu0 0
    %1199 = vmatpush1.bf16.msra.mxu0 %v1182
    %1200 = vmatprep.subr.bf16.mxu0 0
    %1201 = vmatpush2.bf16.msra.mxu0 0
    %1202 = vmatprep.subr.bf16.mxu0 0
    %1203 = vmatpush2.bf16.msra.mxu0 0
    %1204 = vmatprep.subr.bf16.mxu0 0
    %1205 = vmatpush2.bf16.msra.mxu0 0
    %1206 = vmatprep.subr.bf16.mxu0 0
    %1207 = vmatpush2.bf16.msra.mxu0 0
    %1208 = vmatprep.subr.bf16.mxu0 0
    %1209 = vmatpush2.bf16.msra.mxu0 0
    %1210 = vmatprep.subr.bf16.mxu0 0
    %1211 = vmatpush2.bf16.msra.mxu0 0
    %1212 = vmatprep.subr.bf16.mxu0 0
    %1213 = vmatpush2.bf16.msra.mxu0 0
    %1214 = vmatprep.subr.bf16.mxu0 0
    %1215 = vmatpush2.bf16.msra.mxu0 0
    %1216 = vmatprep.mubr.bf16.mxu0 0
    %1217 = vmatmul.mubr.bf16.gmra.mxu0 %v1179
    %v1218 = vpop.f32.mrf.mxu0
    %v1219 = vadd.f32 0.0, %v1218
    %v1220 = vpop.f32.mrf.mxu0
    %v1221 = vpop.f32.mrf.mxu0
    %v1222 = vpop.f32.mrf.mxu0
    %1223 = vdwg.mxu0
    %1224 = vrot.lane.b32.xlu0 %v506, 64
    %v1225 = vpop.permute.xlu0 %1224
    %v1227 = vsel %vm600, %v1175, 0
    %v1230 = vsel %vm628, %v1225, 0
    %1232 = vmatprep.subr.bf16.mxu0 0
    %1233 = vmatpush1.bf16.msra.mxu0 0
    %1234 = vmatprep.subr.bf16.mxu0 0
    %1235 = vmatpush1.bf16.msra.mxu0 0
    %1236 = vmatprep.subr.bf16.mxu0 0
    %1237 = vmatpush1.bf16.msra.mxu0 0
    %1238 = vmatprep.subr.bf16.mxu0 0
    %1239 = vmatpush1.bf16.msra.mxu0 0
    %1240 = vmatprep.subr.bf16.mxu0 0
    %1241 = vmatpush1.bf16.msra.mxu0 0
    %1242 = vmatprep.subr.bf16.mxu0 0
    %1243 = vmatpush1.bf16.msra.mxu0 0
    %1244 = vmatprep.subr.bf16.mxu0 0
    %1245 = vmatpush1.bf16.msra.mxu0 0
    %1246 = vmatprep.subr.bf16.mxu0 0
    %1247 = vmatpush1.bf16.msra.mxu0 %v1230
    %1248 = vmatprep.subr.bf16.mxu0 0
    %1249 = vmatpush2.bf16.msra.mxu0 0
    %1250 = vmatprep.subr.bf16.mxu0 0
    %1251 = vmatpush2.bf16.msra.mxu0 0
    %1252 = vmatprep.subr.bf16.mxu0 0
    %1253 = vmatpush2.bf16.msra.mxu0 0
    %1254 = vmatprep.subr.bf16.mxu0 0
    %1255 = vmatpush2.bf16.msra.mxu0 0
    %1256 = vmatprep.subr.bf16.mxu0 0
    %1257 = vmatpush2.bf16.msra.mxu0 0
    %1258 = vmatprep.subr.bf16.mxu0 0
    %1259 = vmatpush2.bf16.msra.mxu0 0
    %1260 = vmatprep.subr.bf16.mxu0 0
    %1261 = vmatpush2.bf16.msra.mxu0 0
    %1262 = vmatprep.subr.bf16.mxu0 0
    %1263 = vmatpush2.bf16.msra.mxu0 0
    %1264 = vmatprep.mubr.bf16.mxu0 0
    %1265 = vmatmul.mubr.bf16.gmra.mxu0 %v1227
    %v1266 = vpop.f32.mrf.mxu0
    %v1267 = vadd.f32 0.0, %v1266
    %v1268 = vpop.f32.mrf.mxu0
    %v1269 = vpop.f32.mrf.mxu0
    %v1270 = vpop.f32.mrf.mxu0
    %1271 = vdwg.mxu0
    %v1272 = vpack.c.bf16 %v1267, %v1219
    %v1277 = vunpack.c.l.b16 %v481
    %v1278 = vunpack.c.l.b16 %v482
    %v1279 = vunpack.c.l.b16 %v483
    %v1280 = vunpack.c.l.b16 %v484
    %v1281 = vpack.c.b16 %v1278, %v1277
    %v1282 = vpack.c.b16 %v1280, %v1279
    %v1286 = vsel %vm507, %v1272, 0
    %1288 = vmatprep.subr.bf16.mxu0 0
    %1289 = vmatpush1.bf16.msra.mxu0 0
    %1290 = vmatprep.subr.bf16.mxu0 0
    %1291 = vmatpush1.bf16.msra.mxu0 0
    %1292 = vmatprep.subr.bf16.mxu0 0
    %1293 = vmatpush1.bf16.msra.mxu0 0
    %1294 = vmatprep.subr.bf16.mxu0 0
    %1295 = vmatpush1.bf16.msra.mxu0 0
    %1296 = vmatprep.subr.bf16.mxu0 0
    %1297 = vmatpush1.bf16.msra.mxu0 0
    %1298 = vmatprep.subr.bf16.mxu0 0
    %1299 = vmatpush1.bf16.msra.mxu0 0
    %1300 = vmatprep.subr.bf16.mxu0 0
    %1301 = vmatpush1.bf16.msra.mxu0 %v1282
    %1302 = vmatprep.subr.bf16.mxu0 0
    %1303 = vmatpush1.bf16.msra.mxu0 %v1281
    %1304 = vmatprep.subr.bf16.mxu0 0
    %1305 = vmatpush2.bf16.msra.mxu0 0
    %1306 = vmatprep.subr.bf16.mxu0 0
    %1307 = vmatpush2.bf16.msra.mxu0 0
    %1308 = vmatprep.subr.bf16.mxu0 0
    %1309 = vmatpush2.bf16.msra.mxu0 0
    %1310 = vmatprep.subr.bf16.mxu0 0
    %1311 = vmatpush2.bf16.msra.mxu0 0
    %1312 = vmatprep.subr.bf16.mxu0 0
    %1313 = vmatpush2.bf16.msra.mxu0 0
    %1314 = vmatprep.subr.bf16.mxu0 0
    %1315 = vmatpush2.bf16.msra.mxu0 0
    %1316 = vmatprep.subr.bf16.mxu0 0
    %1317 = vmatpush2.bf16.msra.mxu0 0
    %1318 = vmatprep.subr.bf16.mxu0 0
    %1319 = vmatpush2.bf16.msra.mxu0 0
    %1320 = vmatprep.mubr.bf16.mxu0 0
    %1321 = vmatmul.mubr.bf16.gmra.mxu0 %v1286
    %v1322 = vpop.f32.mrf.mxu0
    %v1323 = vadd.f32 0.0, %v1322
    %v1324 = vpop.f32.mrf.mxu0
    %v1325 = vpop.f32.mrf.mxu0
    %v1326 = vadd.f32 0.0, %v1325
    %v1327 = vpop.f32.mrf.mxu0
    %1328 = vdwg.mxu0
    %v1329 = vadd.f32 %v1046, %v1323
    %v1330 = vadd.f32 %v1049, %v1326
    %1331 = vrot.lane.b32.xlu0 %v493, 32
    %v1332 = vpop.permute.xlu0 %1331
    %1333 = vrot.lane.b32.xlu0 %v499, 32
    %v1334 = vpop.permute.xlu0 %1333
    %v1336 = vsel %vm507, %v1332, 0
    %v1339 = vsel %vm507, %v1334, 0
    %1341 = vmatprep.subr.bf16.mxu0 0
    %1342 = vmatpush1.bf16.xpose.msra.mxu0 0
    %1343 = vmatprep.subr.bf16.mxu0 0
    %1344 = vmatpush1.bf16.xpose.msra.mxu0 0
    %1345 = vmatprep.subr.bf16.mxu0 0
    %1346 = vmatpush1.bf16.xpose.msra.mxu0 0
    %1347 = vmatprep.subr.bf16.mxu0 0
    %1348 = vmatpush1.bf16.xpose.msra.mxu0 0
    %1349 = vmatprep.subr.bf16.mxu0 0
    %1350 = vmatpush1.bf16.xpose.msra.mxu0 0
    %1351 = vmatprep.subr.bf16.mxu0 0
    %1352 = vmatpush1.bf16.xpose.msra.mxu0 0
    %1353 = vmatprep.subr.bf16.mxu0 0
    %1354 = vmatpush1.bf16.xpose.msra.mxu0 0
    %1355 = vmatprep.subr.bf16.mxu0 0
    %1356 = vmatpush1.bf16.xpose.msra.mxu0 %v1339
    %1357 = vmatprep.subr.bf16.mxu0 0
    %1358 = vmatpush2.bf16.xpose.msra.mxu0 0
    %1359 = vmatprep.subr.bf16.mxu0 0
    %1360 = vmatpush2.bf16.xpose.msra.mxu0 0
    %1361 = vmatprep.subr.bf16.mxu0 0
    %1362 = vmatpush2.bf16.xpose.msra.mxu0 0
    %1363 = vmatprep.subr.bf16.mxu0 0
    %1364 = vmatpush2.bf16.xpose.msra.mxu0 0
    %1365 = vmatprep.subr.bf16.mxu0 0
    %1366 = vmatpush2.bf16.xpose.msra.mxu0 0
    %1367 = vmatprep.subr.bf16.mxu0 0
    %1368 = vmatpush2.bf16.xpose.msra.mxu0 0
    %1369 = vmatprep.subr.bf16.mxu0 0
    %1370 = vmatpush2.bf16.xpose.msra.mxu0 0
    %1371 = vmatprep.subr.bf16.mxu0 0
    %1372 = vmatpush2.bf16.xpose.msra.mxu0 0
    %1373 = vmatprep.mubr.bf16.mxu0 0
    %1374 = vmatmul.mubr.bf16.gmra.mxu0 %v1336
    %v1375 = vpop.f32.mrf.mxu0
    %v1376 = vadd.f32 %v164, %v1375
    %v1377 = vpop.f32.mrf.mxu0
    %v1378 = vpop.f32.mrf.mxu0
    %v1379 = vpop.f32.mrf.mxu0
    %1380 = vdwg.mxu0
    %1381 = vrot.lane.b32.xlu0 %v494, 32
    %v1382 = vpop.permute.xlu0 %1381
    %1383 = vrot.lane.b32.xlu0 %v500, 32
    %v1384 = vpop.permute.xlu0 %1383
    %v1386 = vsel %vm507, %v1382, 0
    %v1389 = vsel %vm507, %v1384, 0
    %1391 = vmatprep.subr.bf16.mxu0 0
    %1392 = vmatpush1.bf16.xpose.msra.mxu0 0
    %1393 = vmatprep.subr.bf16.mxu0 0
    %1394 = vmatpush1.bf16.xpose.msra.mxu0 0
    %1395 = vmatprep.subr.bf16.mxu0 0
    %1396 = vmatpush1.bf16.xpose.msra.mxu0 0
    %1397 = vmatprep.subr.bf16.mxu0 0
    %1398 = vmatpush1.bf16.xpose.msra.mxu0 0
    %1399 = vmatprep.subr.bf16.mxu0 0
    %1400 = vmatpush1.bf16.xpose.msra.mxu0 0
    %1401 = vmatprep.subr.bf16.mxu0 0
    %1402 = vmatpush1.bf16.xpose.msra.mxu0 0
    %1403 = vmatprep.subr.bf16.mxu0 0
    %1404 = vmatpush1.bf16.xpose.msra.mxu0 0
    %1405 = vmatprep.subr.bf16.mxu0 0
    %1406 = vmatpush1.bf16.xpose.msra.mxu0 %v1389
    %1407 = vmatprep.subr.bf16.mxu0 0
    %1408 = vmatpush2.bf16.xpose.msra.mxu0 0
    %1409 = vmatprep.subr.bf16.mxu0 0
    %1410 = vmatpush2.bf16.xpose.msra.mxu0 0
    %1411 = vmatprep.subr.bf16.mxu0 0
    %1412 = vmatpush2.bf16.xpose.msra.mxu0 0
    %1413 = vmatprep.subr.bf16.mxu0 0
    %1414 = vmatpush2.bf16.xpose.msra.mxu0 0
    %1415 = vmatprep.subr.bf16.mxu0 0
    %1416 = vmatpush2.bf16.xpose.msra.mxu0 0
    %1417 = vmatprep.subr.bf16.mxu0 0
    %1418 = vmatpush2.bf16.xpose.msra.mxu0 0
    %1419 = vmatprep.subr.bf16.mxu0 0
    %1420 = vmatpush2.bf16.xpose.msra.mxu0 0
    %1421 = vmatprep.subr.bf16.mxu0 0
    %1422 = vmatpush2.bf16.xpose.msra.mxu0 0
    %1423 = vmatprep.mubr.bf16.mxu0 0
    %1424 = vmatmul.mubr.bf16.gmra.mxu0 %v1386
    %v1425 = vpop.f32.mrf.mxu0
    %v1426 = vadd.f32 %v165, %v1425
    %v1427 = vpop.f32.mrf.mxu0
    %v1428 = vpop.f32.mrf.mxu0
    %v1429 = vpop.f32.mrf.mxu0
    %1430 = vdwg.mxu0
    %v1431 = vsel %vm600, %v1376, -inf
    %1432 = vmax.xlane.f32.xlu0 %v1431
    %v1433 = vpop.xlane.xlu0 %1432
    %v1434 = vsel %vm600, %v1426, -inf
    %1435 = vmax.xlane.f32.xlu0 %v1434
    %v1436 = vpop.xlane.xlu0 %1435
    %v1437 = vsub.f32 %v1376, %v1433
    %v1438 = vsub.f32 %v1426, %v1436
    %v1439 = vmul.f32 %v1437, 1.442695
    %v1440 = vpow.pop %v1439
    %v1441 = vmul.f32 %v1438, 1.442695
    %v1442 = vpow.pop %v1441
    %v1443 = vsel %vm600, %v1440, 0.0
    %1444 = vadd.xlane.f32.xlu0 %v1443
    %v1445 = vpop.xlane.xlu0 %1444
    %v1446 = vsel %vm600, %v1442, 0.0
    %1447 = vadd.xlane.f32.xlu0 %v1446
    %v1448 = vpop.xlane.xlu0 %1447
    %v1449 = vrcp.pop %v1445
    %v1450 = vrcp.pop %v1448
    %v1451 = vmul.f32 %v1440, %v1449
    %v1452 = vmul.f32 %v1442, %v1450
    %v1453 = vpack.c.bf16 %v1451, %v1451
    %v1454 = vpack.c.bf16 %v1452, %v1452
    %1455 = vrot.lane.b32.xlu0 %v505, 32
    %v1456 = vpop.permute.xlu0 %1455
    %v1458 = vsel %vm600, %v1453, 0
    %v1461 = vsel %vm628, %v1456, 0
    %1463 = vmatprep.subr.bf16.mxu0 0
    %1464 = vmatpush1.bf16.msra.mxu0 0
    %1465 = vmatprep.subr.bf16.mxu0 0
    %1466 = vmatpush1.bf16.msra.mxu0 0
    %1467 = vmatprep.subr.bf16.mxu0 0
    %1468 = vmatpush1.bf16.msra.mxu0 0
    %1469 = vmatprep.subr.bf16.mxu0 0
    %1470 = vmatpush1.bf16.msra.mxu0 0
    %1471 = vmatprep.subr.bf16.mxu0 0
    %1472 = vmatpush1.bf16.msra.mxu0 0
    %1473 = vmatprep.subr.bf16.mxu0 0
    %1474 = vmatpush1.bf16.msra.mxu0 0
    %1475 = vmatprep.subr.bf16.mxu0 0
    %1476 = vmatpush1.bf16.msra.mxu0 0
    %1477 = vmatprep.subr.bf16.mxu0 0
    %1478 = vmatpush1.bf16.msra.mxu0 %v1461
    %1479 = vmatprep.subr.bf16.mxu0 0
    %1480 = vmatpush2.bf16.msra.mxu0 0
    %1481 = vmatprep.subr.bf16.mxu0 0
    %1482 = vmatpush2.bf16.msra.mxu0 0
    %1483 = vmatprep.subr.bf16.mxu0 0
    %1484 = vmatpush2.bf16.msra.mxu0 0
    %1485 = vmatprep.subr.bf16.mxu0 0
    %1486 = vmatpush2.bf16.msra.mxu0 0
    %1487 = vmatprep.subr.bf16.mxu0 0
    %1488 = vmatpush2.bf16.msra.mxu0 0
    %1489 = vmatprep.subr.bf16.mxu0 0
    %1490 = vmatpush2.bf16.msra.mxu0 0
    %1491 = vmatprep.subr.bf16.mxu0 0
    %1492 = vmatpush2.bf16.msra.mxu0 0
    %1493 = vmatprep.subr.bf16.mxu0 0
    %1494 = vmatpush2.bf16.msra.mxu0 0
    %1495 = vmatprep.mubr.bf16.mxu0 0
    %1496 = vmatmul.mubr.bf16.gmra.mxu0 %v1458
    %v1497 = vpop.f32.mrf.mxu0
    %v1498 = vadd.f32 0.0, %v1497
    %v1499 = vpop.f32.mrf.mxu0
    %v1500 = vpop.f32.mrf.mxu0
    %v1501 = vpop.f32.mrf.mxu0
    %1502 = vdwg.mxu0
    %1503 = vrot.lane.b32.xlu0 %v506, 32
    %v1504 = vpop.permute.xlu0 %1503
    %v1506 = vsel %vm600, %v1454, 0
    %v1509 = vsel %vm628, %v1504, 0
    %1511 = vmatprep.subr.bf16.mxu0 0
    %1512 = vmatpush1.bf16.msra.mxu0 0
    %1513 = vmatprep.subr.bf16.mxu0 0
    %1514 = vmatpush1.bf16.msra.mxu0 0
    %1515 = vmatprep.subr.bf16.mxu0 0
    %1516 = vmatpush1.bf16.msra.mxu0 0
    %1517 = vmatprep.subr.bf16.mxu0 0
    %1518 = vmatpush1.bf16.msra.mxu0 0
    %1519 = vmatprep.subr.bf16.mxu0 0
    %1520 = vmatpush1.bf16.msra.mxu0 0
    %1521 = vmatprep.subr.bf16.mxu0 0
    %1522 = vmatpush1.bf16.msra.mxu0 0
    %1523 = vmatprep.subr.bf16.mxu0 0
    %1524 = vmatpush1.bf16.msra.mxu0 0
    %1525 = vmatprep.subr.bf16.mxu0 0
    %1526 = vmatpush1.bf16.msra.mxu0 %v1509
    %1527 = vmatprep.subr.bf16.mxu0 0
    %1528 = vmatpush2.bf16.msra.mxu0 0
    %1529 = vmatprep.subr.bf16.mxu0 0
    %1530 = vmatpush2.bf16.msra.mxu0 0
    %1531 = vmatprep.subr.bf16.mxu0 0
    %1532 = vmatpush2.bf16.msra.mxu0 0
    %1533 = vmatprep.subr.bf16.mxu0 0
    %1534 = vmatpush2.bf16.msra.mxu0 0
    %1535 = vmatprep.subr.bf16.mxu0 0
    %1536 = vmatpush2.bf16.msra.mxu0 0
    %1537 = vmatprep.subr.bf16.mxu0 0
    %1538 = vmatpush2.bf16.msra.mxu0 0
    %1539 = vmatprep.subr.bf16.mxu0 0
    %1540 = vmatpush2.bf16.msra.mxu0 0
    %1541 = vmatprep.subr.bf16.mxu0 0
    %1542 = vmatpush2.bf16.msra.mxu0 0
    %1543 = vmatprep.mubr.bf16.mxu0 0
    %1544 = vmatmul.mubr.bf16.gmra.mxu0 %v1506
    %v1545 = vpop.f32.mrf.mxu0
    %v1546 = vadd.f32 0.0, %v1545
    %v1547 = vpop.f32.mrf.mxu0
    %v1548 = vpop.f32.mrf.mxu0
    %v1549 = vpop.f32.mrf.mxu0
    %1550 = vdwg.mxu0
    %v1551 = vpack.c.bf16 %v1546, %v1498
    %v1556 = vunpack.c.l.b16 %v485
    %v1557 = vunpack.c.l.b16 %v486
    %v1558 = vunpack.c.l.b16 %v487
    %v1559 = vunpack.c.l.b16 %v488
    %v1560 = vpack.c.b16 %v1557, %v1556
    %v1561 = vpack.c.b16 %v1559, %v1558
    %v1565 = vsel %vm507, %v1551, 0
    %1567 = vmatprep.subr.bf16.mxu0 0
    %1568 = vmatpush1.bf16.msra.mxu0 0
    %1569 = vmatprep.subr.bf16.mxu0 0
    %1570 = vmatpush1.bf16.msra.mxu0 0
    %1571 = vmatprep.subr.bf16.mxu0 0
    %1572 = vmatpush1.bf16.msra.mxu0 0
    %1573 = vmatprep.subr.bf16.mxu0 0
    %1574 = vmatpush1.bf16.msra.mxu0 0
    %1575 = vmatprep.subr.bf16.mxu0 0
    %1576 = vmatpush1.bf16.msra.mxu0 0
    %1577 = vmatprep.subr.bf16.mxu0 0
    %1578 = vmatpush1.bf16.msra.mxu0 0
    %1579 = vmatprep.subr.bf16.mxu0 0
    %1580 = vmatpush1.bf16.msra.mxu0 %v1561
    %1581 = vmatprep.subr.bf16.mxu0 0
    %1582 = vmatpush1.bf16.msra.mxu0 %v1560
    %1583 = vmatprep.subr.bf16.mxu0 0
    %1584 = vmatpush2.bf16.msra.mxu0 0
    %1585 = vmatprep.subr.bf16.mxu0 0
    %1586 = vmatpush2.bf16.msra.mxu0 0
    %1587 = vmatprep.subr.bf16.mxu0 0
    %1588 = vmatpush2.bf16.msra.mxu0 0
    %1589 = vmatprep.subr.bf16.mxu0 0
    %1590 = vmatpush2.bf16.msra.mxu0 0
    %1591 = vmatprep.subr.bf16.mxu0 0
    %1592 = vmatpush2.bf16.msra.mxu0 0
    %1593 = vmatprep.subr.bf16.mxu0 0
    %1594 = vmatpush2.bf16.msra.mxu0 0
    %1595 = vmatprep.subr.bf16.mxu0 0
    %1596 = vmatpush2.bf16.msra.mxu0 0
    %1597 = vmatprep.subr.bf16.mxu0 0
    %1598 = vmatpush2.bf16.msra.mxu0 0
    %1599 = vmatprep.mubr.bf16.mxu0 0
    %1600 = vmatmul.mubr.bf16.gmra.mxu0 %v1565
    %v1601 = vpop.f32.mrf.mxu0
    %v1602 = vadd.f32 0.0, %v1601
    %v1603 = vpop.f32.mrf.mxu0
    %v1604 = vpop.f32.mrf.mxu0
    %v1605 = vadd.f32 0.0, %v1604
    %v1606 = vpop.f32.mrf.mxu0
    %1607 = vdwg.mxu0
    %v1608 = vadd.f32 %v1329, %v1602
    %v1609 = vadd.f32 %v1330, %v1605
    %v1610 = vadd.f32 %v166, %v1608
    %v1611 = vadd.f32 %v167, %v1609
    %v1612 = vlaneseq
    %v1613 = vshrl.u32 %v1612, 7
    %v1614 = vsub.s32 3, %v1613
    %v1615 = vrot.slane %v171, %v1614
    %v1616 = vadd.f32 %v1610, %v1615
    %v1617 = vadd.f32 %v1611, %v1615
    %1618 = vadd.xlane.f32.xlu0 %v1616
    %v1619 = vpop.xlane.xlu0 %1618
    %1620 = vadd.xlane.f32.xlu0 %v1617
    %v1621 = vpop.xlane.xlu0 %1620
    %v1622 = vmul.f32 %v1619, %v177
    %v1623 = vmul.f32 %v1621, %v177
    %v1624 = vsub.f32 %v1616, %v1622
    %v1625 = vsub.f32 %v1617, %v1623
    %v1626 = vmul.f32 %v1624, %v1624
    %v1627 = vmul.f32 %v1625, %v1625
    %1628 = vadd.xlane.f32.xlu0 %v1626
    %v1629 = vpop.xlane.xlu0 %1628
    %1630 = vadd.xlane.f32.xlu0 %v1627
    %v1631 = vpop.xlane.xlu0 %1630
    %v1632 = vmul.f32 %v1629, %v177
    %v1633 = vmul.f32 %v1631, %v177
    %v1634 = vadd.f32 %v1632, 1e-05
    %v1635 = vadd.f32 %v1633, 1e-05
    %v1636 = vrsqrt.pop %v1634
    %v1637 = vrsqrt.pop %v1635
    %v1638 = vmul.f32 %v1624, %v1636
    %v1639 = vmul.f32 %v1625, %v1637
    %v1640 = vlaneseq
    %v1641 = vshrl.u32 %v1640, 7
    %v1642 = vsub.s32 3, %v1641
    %v1643 = vrot.slane %v172, %v1642
    %v1644 = vmul.f32 %v1638, %v1643
    %v1645 = vmul.f32 %v1639, %v1643
    %v1646 = vlaneseq
    %v1647 = vshrl.u32 %v1646, 7
    %v1648 = vsub.s32 4, %v1647
    %v1649 = vrot.slane %v172, %v1648
    %v1650 = vadd.f32 %v1644, %v1649
    %v1651 = vadd.f32 %v1645, %v1649
    %v1652 = vpack.c.bf16 %v1651, %v1650
    %v1653 = vld [vmem:[#allocation7] sm:$0xf]
    %v1654 = vld [vmem:[#allocation7 + $0x4] sm:$0xf]
    %v1655 = vld [vmem:[#allocation7 + $0x8] sm:$0xf]
    %v1656 = vld [vmem:[#allocation7 + $0xc] sm:$0xf]
    %v1657 = vld [vmem:[#allocation7 + $0x10] sm:$0xf]
    %v1658 = vld [vmem:[#allocation7 + $0x14] sm:$0xf]
    %v1659 = vld [vmem:[#allocation7 + $0x18] sm:$0xf]
    %v1660 = vld [vmem:[#allocation7 + $0x1c] sm:$0xf]
    %v1661 = vld [vmem:[#allocation7 + $0x20] sm:$0xf]
    %v1662 = vld [vmem:[#allocation7 + $0x24] sm:$0xf]
    %v1663 = vld [vmem:[#allocation7 + $0x28] sm:$0xf]
    %v1664 = vld [vmem:[#allocation7 + $0x2c] sm:$0xf]
    %v1665 = vld [vmem:[#allocation7 + $0x30] sm:$0xf]
    %v1666 = vld [vmem:[#allocation7 + $0x34] sm:$0xf]
    %v1667 = vld [vmem:[#allocation7 + $0x38] sm:$0xf]
    %v1668 = vld [vmem:[#allocation7 + $0x3c] sm:$0xf]
    %v1669 = vlaneseq
    %v1670 = vshrl.u32 %v1669, 7
    %v1671 = vsub.s32 4, %v1670
    %v1672 = vrot.slane %v171, %v1671
    %v1689 = vunpack.c.l.b16 %v1653
    %v1690 = vunpack.c.l.b16 %v1654
    %v1691 = vunpack.c.l.b16 %v1655
    %v1692 = vunpack.c.l.b16 %v1656
    %v1693 = vunpack.c.l.b16 %v1657
    %v1694 = vunpack.c.l.b16 %v1658
    %v1695 = vunpack.c.l.b16 %v1659
    %v1696 = vunpack.c.l.b16 %v1660
    %v1697 = vunpack.c.l.b16 %v1661
    %v1698 = vunpack.c.l.b16 %v1662
    %v1699 = vunpack.c.l.b16 %v1663
    %v1700 = vunpack.c.l.b16 %v1664
    %v1701 = vunpack.c.l.b16 %v1665
    %v1702 = vunpack.c.l.b16 %v1666
    %v1703 = vunpack.c.l.b16 %v1667
    %v1704 = vunpack.c.l.b16 %v1668
    %v1705 = vpack.c.b16 %v1690, %v1689
    %v1706 = vpack.c.b16 %v1692, %v1691
    %v1707 = vpack.c.b16 %v1694, %v1693
    %v1708 = vpack.c.b16 %v1696, %v1695
    %v1709 = vpack.c.b16 %v1698, %v1697
    %v1710 = vpack.c.b16 %v1700, %v1699
    %v1711 = vpack.c.b16 %v1702, %v1701
    %v1712 = vpack.c.b16 %v1704, %v1703
    %1721 = vmatprep.subr.bf16.mxu0 0
    %1722 = vmatpush1.bf16.msra.mxu0 %v1712
    %1723 = vmatprep.subr.bf16.mxu0 0
    %1724 = vmatpush1.bf16.msra.mxu0 %v1711
    %1725 = vmatprep.subr.bf16.mxu0 0
    %1726 = vmatpush1.bf16.msra.mxu0 %v1710
    %1727 = vmatprep.subr.bf16.mxu0 0
    %1728 = vmatpush1.bf16.msra.mxu0 %v1709
    %1729 = vmatprep.subr.bf16.mxu0 0
    %1730 = vmatpush1.bf16.msra.mxu0 %v1708
    %1731 = vmatprep.subr.bf16.mxu0 0
    %1732 = vmatpush1.bf16.msra.mxu0 %v1707
    %1733 = vmatprep.subr.bf16.mxu0 0
    %1734 = vmatpush1.bf16.msra.mxu0 %v1706
    %1735 = vmatprep.subr.bf16.mxu0 0
    %1736 = vmatpush1.bf16.msra.mxu0 %v1705
    %1737 = vmatprep.subr.bf16.mxu0 0
    %1738 = vmatpush2.bf16.msra.mxu0 0
    %1739 = vmatprep.subr.bf16.mxu0 0
    %1740 = vmatpush2.bf16.msra.mxu0 0
    %1741 = vmatprep.subr.bf16.mxu0 0
    %1742 = vmatpush2.bf16.msra.mxu0 0
    %1743 = vmatprep.subr.bf16.mxu0 0
    %1744 = vmatpush2.bf16.msra.mxu0 0
    %1745 = vmatprep.subr.bf16.mxu0 0
    %1746 = vmatpush2.bf16.msra.mxu0 0
    %1747 = vmatprep.subr.bf16.mxu0 0
    %1748 = vmatpush2.bf16.msra.mxu0 0
    %1749 = vmatprep.subr.bf16.mxu0 0
    %1750 = vmatpush2.bf16.msra.mxu0 0
    %1751 = vmatprep.subr.bf16.mxu0 0
    %1752 = vmatpush2.bf16.msra.mxu0 0
    %1753 = vmatprep.mubr.bf16.mxu0 0
    %1754 = vmatmul.mubr.bf16.gmra.mxu0 %v1652
    %v1755 = vpop.f32.mrf.mxu0
    %v1756 = vadd.f32 %v1672, %v1755
    %v1757 = vpop.f32.mrf.mxu0
    %v1758 = vpop.f32.mrf.mxu0
    %v1759 = vadd.f32 %v1672, %v1758
    %v1760 = vpop.f32.mrf.mxu0
    %1761 = vdwg.mxu0
    %v1762 = vmul.f32 %v1756, 0.17677669
    %v1763 = vmul.f32 %v1759, 0.17677669
    %v1764 = vld [vmem:[#allocation8] sm:$0xff]
    %v1765 = vld [vmem:[#allocation8 + $0x8] sm:$0xff]
    %v1766 = vld [vmem:[#allocation8 + $0x10] sm:$0xff]
    %v1767 = vld [vmem:[#allocation8 + $0x18] sm:$0xff]
    %v1768 = vld [vmem:[#allocation8 + $0x20] sm:$0xff]
    %v1769 = vld [vmem:[#allocation8 + $0x28] sm:$0xff]
    %v1770 = vld [vmem:[#allocation8 + $0x30] sm:$0xff]
    %v1771 = vld [vmem:[#allocation8 + $0x38] sm:$0xff]
    %v1772 = vld [vmem:[#allocation8 + $0x40] sm:$0xff]
    %v1773 = vld [vmem:[#allocation8 + $0x48] sm:$0xff]
    %v1774 = vld [vmem:[#allocation8 + $0x50] sm:$0xff]
    %v1775 = vld [vmem:[#allocation8 + $0x58] sm:$0xff]
    %v1776 = vld [vmem:[#allocation8 + $0x60] sm:$0xff]
    %v1777 = vld [vmem:[#allocation8 + $0x68] sm:$0xff]
    %v1778 = vld [vmem:[#allocation8 + $0x70] sm:$0xff]
    %v1779 = vld [vmem:[#allocation8 + $0x78] sm:$0xff]
    %v1796 = vunpack.c.l.b16 %v1764
    %v1797 = vunpack.c.h.b16 %v1764
    %v1798 = vunpack.c.l.b16 %v1765
    %v1799 = vunpack.c.h.b16 %v1765
    %v1800 = vunpack.c.l.b16 %v1766
    %v1801 = vunpack.c.h.b16 %v1766
    %v1802 = vunpack.c.l.b16 %v1767
    %v1803 = vunpack.c.h.b16 %v1767
    %v1804 = vunpack.c.l.b16 %v1768
    %v1805 = vunpack.c.h.b16 %v1768
    %v1806 = vunpack.c.l.b16 %v1769
    %v1807 = vunpack.c.h.b16 %v1769
    %v1808 = vunpack.c.l.b16 %v1770
    %v1809 = vunpack.c.h.b16 %v1770
    %v1810 = vunpack.c.l.b16 %v1771
    %v1811 = vunpack.c.h.b16 %v1771
    %v1812 = vunpack.c.l.b16 %v1772
    %v1813 = vunpack.c.h.b16 %v1772
    %v1814 = vunpack.c.l.b16 %v1773
    %v1815 = vunpack.c.h.b16 %v1773
    %v1816 = vunpack.c.l.b16 %v1774
    %v1817 = vunpack.c.h.b16 %v1774
    %v1818 = vunpack.c.l.b16 %v1775
    %v1819 = vunpack.c.h.b16 %v1775
    %v1820 = vunpack.c.l.b16 %v1776
    %v1821 = vunpack.c.h.b16 %v1776
    %v1822 = vunpack.c.l.b16 %v1777
    %v1823 = vunpack.c.h.b16 %v1777
    %v1824 = vunpack.c.l.b16 %v1778
    %v1825 = vunpack.c.h.b16 %v1778
    %v1826 = vunpack.c.l.b16 %v1779
    %v1827 = vunpack.c.h.b16 %v1779
    %v1828 = vpack.c.b16 %v1798, %v1796
    %v1829 = vpack.c.b16 %v1799, %v1797
    %v1830 = vpack.c.b16 %v1802, %v1800
    %v1831 = vpack.c.b16 %v1803, %v1801
    %v1832 = vpack.c.b16 %v1806, %v1804
    %v1833 = vpack.c.b16 %v1807, %v1805
    %v1834 = vpack.c.b16 %v1810, %v1808
    %v1835 = vpack.c.b16 %v1811, %v1809
    %v1836 = vpack.c.b16 %v1814, %v1812
    %v1837 = vpack.c.b16 %v1815, %v1813
    %v1838 = vpack.c.b16 %v1818, %v1816
    %v1839 = vpack.c.b16 %v1819, %v1817
    %v1840 = vpack.c.b16 %v1822, %v1820
    %v1841 = vpack.c.b16 %v1823, %v1821
    %v1842 = vpack.c.b16 %v1826, %v1824
    %v1843 = vpack.c.b16 %v1827, %v1825
    %1860 = vmatprep.subr.bf16.mxu0 %v1843
    %1861 = vmatpush1.bf16.msra.mxu0 %v1842
    %1862 = vmatprep.subr.bf16.mxu0 %v1841
    %1863 = vmatpush1.bf16.msra.mxu0 %v1840
    %1864 = vmatprep.subr.bf16.mxu0 %v1839
    %1865 = vmatpush1.bf16.msra.mxu0 %v1838
    %1866 = vmatprep.subr.bf16.mxu0 %v1837
    %1867 = vmatpush1.bf16.msra.mxu0 %v1836
    %1868 = vmatprep.subr.bf16.mxu0 %v1835
    %1869 = vmatpush1.bf16.msra.mxu0 %v1834
    %1870 = vmatprep.subr.bf16.mxu0 %v1833
    %1871 = vmatpush1.bf16.msra.mxu0 %v1832
    %1872 = vmatprep.subr.bf16.mxu0 %v1831
    %1873 = vmatpush1.bf16.msra.mxu0 %v1830
    %1874 = vmatprep.subr.bf16.mxu0 %v1829
    %1875 = vmatpush1.bf16.msra.mxu0 %v1828
    %1876 = vmatprep.subr.bf16.mxu0 0
    %1877 = vmatpush2.bf16.msra.mxu0 0
    %1878 = vmatprep.subr.bf16.mxu0 0
    %1879 = vmatpush2.bf16.msra.mxu0 0
    %1880 = vmatprep.subr.bf16.mxu0 0
    %1881 = vmatpush2.bf16.msra.mxu0 0
    %1882 = vmatprep.subr.bf16.mxu0 0
    %1883 = vmatpush2.bf16.msra.mxu0 0
    %1884 = vmatprep.subr.bf16.mxu0 0
    %1885 = vmatpush2.bf16.msra.mxu0 0
    %1886 = vmatprep.subr.bf16.mxu0 0
    %1887 = vmatpush2.bf16.msra.mxu0 0
    %1888 = vmatprep.subr.bf16.mxu0 0
    %1889 = vmatpush2.bf16.msra.mxu0 0
    %1890 = vmatprep.subr.bf16.mxu0 0
    %1891 = vmatpush2.bf16.msra.mxu0 0
    %1892 = vmatprep.mubr.bf16.mxu0 0
    %1893 = vmatmul.mubr.bf16.gmra.mxu0 %v170
    %v1894 = vpop.f32.mrf.mxu0
    %v1895 = vadd.f32 0.0, %v1894
    %v1896 = vpop.f32.mrf.mxu0
    %v1897 = vadd.f32 0.0, %v1896
    %v1898 = vpop.f32.mrf.mxu0
    %v1899 = vadd.f32 0.0, %v1898
    %v1900 = vpop.f32.mrf.mxu0
    %v1901 = vadd.f32 0.0, %v1900
    %1902 = vdwg.mxu0
    %v1903 = vlaneseq
    %v1904 = vshrl.u32 %v1903, 7
    %v1905 = vsub.s32 5, %v1904
    %v1906 = vrot.slane %v171, %v1905
    %v1907 = vadd.f32 %v1895, %v1906
    %v1908 = vadd.f32 %v1899, %v1906
    %v1909 = vlaneseq
    %v1910 = vshrl.u32 %v1909, 7
    %v1911 = vsub.s32 6, %v1910
    %v1912 = vrot.slane %v171, %v1911
    %v1913 = vadd.f32 %v1897, %v1912
    %v1914 = vadd.f32 %v1901, %v1912
    %v1915 = vld [vmem:[#allocation10] sm:$0xf]
    %v1916 = vld [vmem:[#allocation10 + $0x4] sm:$0xf]
    %v1917 = vld [vmem:[#allocation10 + $0x8] sm:$0xf]
    %v1918 = vld [vmem:[#allocation10 + $0xc] sm:$0xf]
    %v1919 = vld [vmem:[#allocation10 + $0x10] sm:$0xf]
    %v1920 = vld [vmem:[#allocation10 + $0x14] sm:$0xf]
    %v1921 = vld [vmem:[#allocation10 + $0x18] sm:$0xf]
    %v1922 = vld [vmem:[#allocation10 + $0x1c] sm:$0xf]
    %v1923 = vld [vmem:[#allocation10 + $0x20] sm:$0xf]
    %v1924 = vld [vmem:[#allocation10 + $0x24] sm:$0xf]
    %v1925 = vld [vmem:[#allocation10 + $0x28] sm:$0xf]
    %v1926 = vld [vmem:[#allocation10 + $0x2c] sm:$0xf]
    %v1927 = vld [vmem:[#allocation10 + $0x30] sm:$0xf]
    %v1928 = vld [vmem:[#allocation10 + $0x34] sm:$0xf]
    %v1929 = vld [vmem:[#allocation10 + $0x38] sm:$0xf]
    %v1930 = vld [vmem:[#allocation10 + $0x3c] sm:$0xf]
    %v1931 = vpack.c.bf16 %v1763, %v1762
    %v1933 = vunpack.c.l.b16 %v1931
    %v1934 = vunpack.c.h.b16 %v1931
    %v1935 = vpack.c.b16 %v1933, %v1933
    %v1936 = vpack.c.b16 %v1934, %v1934
    %v1937 = vpack.c.bf16 %v1908, %v1907
    %v1939 = vunpack.c.l.b16 %v1937
    %v1940 = vunpack.c.h.b16 %v1937
    %v1941 = vpack.c.b16 %v1939, %v1939
    %v1942 = vpack.c.b16 %v1940, %v1940
    %v1943 = vpack.c.bf16 %v1914, %v1913
    %v1945 = vunpack.c.l.b16 %v1943
    %v1946 = vunpack.c.h.b16 %v1943
    %v1947 = vpack.c.b16 %v1945, %v1945
    %v1948 = vpack.c.b16 %v1946, %v1946
    %v1951 = vlaneseq
    %v1952 = vshrl.u32 %v1951, 7
    %v1953 = vsub.s32 0, %v1952
    %v1954 = vrot.slane %v150, %v1953
    %v1955 = vlaneseq
    %v1956 = vshrl.u32 %v1955, 7
    %v1957 = vsub.s32 0, %v1956
    %v1958 = vrot.slane %v151, %v1957
    %v1962 = vsel %vm507, %v1935, 0
    %v1965 = vsel %vm507, %v1941, 0
    %1967 = vmatprep.subr.bf16.mxu0 0
    %1968 = vmatpush1.bf16.xpose.msra.mxu0 0
    %1969 = vmatprep.subr.bf16.mxu0 0
    %1970 = vmatpush1.bf16.xpose.msra.mxu0 0
    %1971 = vmatprep.subr.bf16.mxu0 0
    %1972 = vmatpush1.bf16.xpose.msra.mxu0 0
    %1973 = vmatprep.subr.bf16.mxu0 0
    %1974 = vmatpush1.bf16.xpose.msra.mxu0 0
    %1975 = vmatprep.subr.bf16.mxu0 0
    %1976 = vmatpush1.bf16.xpose.msra.mxu0 0
    %1977 = vmatprep.subr.bf16.mxu0 0
    %1978 = vmatpush1.bf16.xpose.msra.mxu0 0
    %1979 = vmatprep.subr.bf16.mxu0 0
    %1980 = vmatpush1.bf16.xpose.msra.mxu0 0
    %1981 = vmatprep.subr.bf16.mxu0 0
    %1982 = vmatpush1.bf16.xpose.msra.mxu0 %v1965
    %1983 = vmatprep.subr.bf16.mxu0 0
    %1984 = vmatpush2.bf16.xpose.msra.mxu0 0
    %1985 = vmatprep.subr.bf16.mxu0 0
    %1986 = vmatpush2.bf16.xpose.msra.mxu0 0
    %1987 = vmatprep.subr.bf16.mxu0 0
    %1988 = vmatpush2.bf16.xpose.msra.mxu0 0
    %1989 = vmatprep.subr.bf16.mxu0 0
    %1990 = vmatpush2.bf16.xpose.msra.mxu0 0
    %1991 = vmatprep.subr.bf16.mxu0 0
    %1992 = vmatpush2.bf16.xpose.msra.mxu0 0
    %1993 = vmatprep.subr.bf16.mxu0 0
    %1994 = vmatpush2.bf16.xpose.msra.mxu0 0
    %1995 = vmatprep.subr.bf16.mxu0 0
    %1996 = vmatpush2.bf16.xpose.msra.mxu0 0
    %1997 = vmatprep.subr.bf16.mxu0 0
    %1998 = vmatpush2.bf16.xpose.msra.mxu0 0
    %1999 = vmatprep.mubr.bf16.mxu0 0
    %2000 = vmatmul.mubr.bf16.gmra.mxu0 %v1962
    %v2001 = vpop.f32.mrf.mxu0
    %v2002 = vadd.f32 %v1954, %v2001
    %v2003 = vpop.f32.mrf.mxu0
    %v2004 = vpop.f32.mrf.mxu0
    %v2005 = vpop.f32.mrf.mxu0
    %2006 = vdwg.mxu0
    %v2008 = vsel %vm507, %v1936, 0
    %v2011 = vsel %vm507, %v1942, 0
    %2013 = vmatprep.subr.bf16.mxu0 0
    %2014 = vmatpush1.bf16.xpose.msra.mxu0 0
    %2015 = vmatprep.subr.bf16.mxu0 0
    %2016 = vmatpush1.bf16.xpose.msra.mxu0 0
    %2017 = vmatprep.subr.bf16.mxu0 0
    %2018 = vmatpush1.bf16.xpose.msra.mxu0 0
    %2019 = vmatprep.subr.bf16.mxu0 0
    %2020 = vmatpush1.bf16.xpose.msra.mxu0 0
    %2021 = vmatprep.subr.bf16.mxu0 0
    %2022 = vmatpush1.bf16.xpose.msra.mxu0 0
    %2023 = vmatprep.subr.bf16.mxu0 0
    %2024 = vmatpush1.bf16.xpose.msra.mxu0 0
    %2025 = vmatprep.subr.bf16.mxu0 0
    %2026 = vmatpush1.bf16.xpose.msra.mxu0 0
    %2027 = vmatprep.subr.bf16.mxu0 0
    %2028 = vmatpush1.bf16.xpose.msra.mxu0 %v2011
    %2029 = vmatprep.subr.bf16.mxu0 0
    %2030 = vmatpush2.bf16.xpose.msra.mxu0 0
    %2031 = vmatprep.subr.bf16.mxu0 0
    %2032 = vmatpush2.bf16.xpose.msra.mxu0 0
    %2033 = vmatprep.subr.bf16.mxu0 0
    %2034 = vmatpush2.bf16.xpose.msra.mxu0 0
    %2035 = vmatprep.subr.bf16.mxu0 0
    %2036 = vmatpush2.bf16.xpose.msra.mxu0 0
    %2037 = vmatprep.subr.bf16.mxu0 0
    %2038 = vmatpush2.bf16.xpose.msra.mxu0 0
    %2039 = vmatprep.subr.bf16.mxu0 0
    %2040 = vmatpush2.bf16.xpose.msra.mxu0 0
    %2041 = vmatprep.subr.bf16.mxu0 0
    %2042 = vmatpush2.bf16.xpose.msra.mxu0 0
    %2043 = vmatprep.subr.bf16.mxu0 0
    %2044 = vmatpush2.bf16.xpose.msra.mxu0 0
    %2045 = vmatprep.mubr.bf16.mxu0 0
    %2046 = vmatmul.mubr.bf16.gmra.mxu0 %v2008
    %v2047 = vpop.f32.mrf.mxu0
    %v2048 = vadd.f32 %v1958, %v2047
    %v2049 = vpop.f32.mrf.mxu0
    %v2050 = vpop.f32.mrf.mxu0
    %v2051 = vpop.f32.mrf.mxu0
    %2052 = vdwg.mxu0
    %v2053 = vsel %vm600, %v2002, -inf
    %2054 = vmax.xlane.f32.xlu0 %v2053
    %v2055 = vpop.xlane.xlu0 %2054
    %v2056 = vsel %vm600, %v2048, -inf
    %2057 = vmax.xlane.f32.xlu0 %v2056
    %v2058 = vpop.xlane.xlu0 %2057
    %v2059 = vsub.f32 %v2002, %v2055
    %v2060 = vsub.f32 %v2048, %v2058
    %v2061 = vmul.f32 %v2059, 1.442695
    %v2062 = vpow.pop %v2061
    %v2063 = vmul.f32 %v2060, 1.442695
    %v2064 = vpow.pop %v2063
    %v2065 = vsel %vm600, %v2062, 0.0
    %2066 = vadd.xlane.f32.xlu0 %v2065
    %v2067 = vpop.xlane.xlu0 %2066
    %v2068 = vsel %vm600, %v2064, 0.0
    %2069 = vadd.xlane.f32.xlu0 %v2068
    %v2070 = vpop.xlane.xlu0 %2069
    %v2071 = vrcp.pop %v2067
    %v2072 = vrcp.pop %v2070
    %v2073 = vmul.f32 %v2062, %v2071
    %v2074 = vmul.f32 %v2064, %v2072
    %v2075 = vpack.c.bf16 %v2073, %v2073
    %v2076 = vpack.c.bf16 %v2074, %v2074
    %v2078 = vsel %vm600, %v2075, 0
    %v2081 = vsel %vm628, %v1947, 0
    %2083 = vmatprep.subr.bf16.mxu0 0
    %2084 = vmatpush1.bf16.msra.mxu0 0
    %2085 = vmatprep.subr.bf16.mxu0 0
    %2086 = vmatpush1.bf16.msra.mxu0 0
    %2087 = vmatprep.subr.bf16.mxu0 0
    %2088 = vmatpush1.bf16.msra.mxu0 0
    %2089 = vmatprep.subr.bf16.mxu0 0
    %2090 = vmatpush1.bf16.msra.mxu0 0
    %2091 = vmatprep.subr.bf16.mxu0 0
    %2092 = vmatpush1.bf16.msra.mxu0 0
    %2093 = vmatprep.subr.bf16.mxu0 0
    %2094 = vmatpush1.bf16.msra.mxu0 0
    %2095 = vmatprep.subr.bf16.mxu0 0
    %2096 = vmatpush1.bf16.msra.mxu0 0
    %2097 = vmatprep.subr.bf16.mxu0 0
    %2098 = vmatpush1.bf16.msra.mxu0 %v2081
    %2099 = vmatprep.subr.bf16.mxu0 0
    %2100 = vmatpush2.bf16.msra.mxu0 0
    %2101 = vmatprep.subr.bf16.mxu0 0
    %2102 = vmatpush2.bf16.msra.mxu0 0
    %2103 = vmatprep.subr.bf16.mxu0 0
    %2104 = vmatpush2.bf16.msra.mxu0 0
    %2105 = vmatprep.subr.bf16.mxu0 0
    %2106 = vmatpush2.bf16.msra.mxu0 0
    %2107 = vmatprep.subr.bf16.mxu0 0
    %2108 = vmatpush2.bf16.msra.mxu0 0
    %2109 = vmatprep.subr.bf16.mxu0 0
    %2110 = vmatpush2.bf16.msra.mxu0 0
    %2111 = vmatprep.subr.bf16.mxu0 0
    %2112 = vmatpush2.bf16.msra.mxu0 0
    %2113 = vmatprep.subr.bf16.mxu0 0
    %2114 = vmatpush2.bf16.msra.mxu0 0
    %2115 = vmatprep.mubr.bf16.mxu0 0
    %2116 = vmatmul.mubr.bf16.gmra.mxu0 %v2078
    %v2117 = vpop.f32.mrf.mxu0
    %v2118 = vadd.f32 0.0, %v2117
    %v2119 = vpop.f32.mrf.mxu0
    %v2120 = vpop.f32.mrf.mxu0
    %v2121 = vpop.f32.mrf.mxu0
    %2122 = vdwg.mxu0
    %v2124 = vsel %vm600, %v2076, 0
    %v2127 = vsel %vm628, %v1948, 0
    %2129 = vmatprep.subr.bf16.mxu0 0
    %2130 = vmatpush1.bf16.msra.mxu0 0
    %2131 = vmatprep.subr.bf16.mxu0 0
    %2132 = vmatpush1.bf16.msra.mxu0 0
    %2133 = vmatprep.subr.bf16.mxu0 0
    %2134 = vmatpush1.bf16.msra.mxu0 0
    %2135 = vmatprep.subr.bf16.mxu0 0
    %2136 = vmatpush1.bf16.msra.mxu0 0
    %2137 = vmatprep.subr.bf16.mxu0 0
    %2138 = vmatpush1.bf16.msra.mxu0 0
    %2139 = vmatprep.subr.bf16.mxu0 0
    %2140 = vmatpush1.bf16.msra.mxu0 0
    %2141 = vmatprep.subr.bf16.mxu0 0
    %2142 = vmatpush1.bf16.msra.mxu0 0
    %2143 = vmatprep.subr.bf16.mxu0 0
    %2144 = vmatpush1.bf16.msra.mxu0 %v2127
    %2145 = vmatprep.subr.bf16.mxu0 0
    %2146 = vmatpush2.bf16.msra.mxu0 0
    %2147 = vmatprep.subr.bf16.mxu0 0
    %2148 = vmatpush2.bf16.msra.mxu0 0
    %2149 = vmatprep.subr.bf16.mxu0 0
    %2150 = vmatpush2.bf16.msra.mxu0 0
    %2151 = vmatprep.subr.bf16.mxu0 0
    %2152 = vmatpush2.bf16.msra.mxu0 0
    %2153 = vmatprep.subr.bf16.mxu0 0
    %2154 = vmatpush2.bf16.msra.mxu0 0
    %2155 = vmatprep.subr.bf16.mxu0 0
    %2156 = vmatpush2.bf16.msra.mxu0 0
    %2157 = vmatprep.subr.bf16.mxu0 0
    %2158 = vmatpush2.bf16.msra.mxu0 0
    %2159 = vmatprep.subr.bf16.mxu0 0
    %2160 = vmatpush2.bf16.msra.mxu0 0
    %2161 = vmatprep.mubr.bf16.mxu0 0
    %2162 = vmatmul.mubr.bf16.gmra.mxu0 %v2124
    %v2163 = vpop.f32.mrf.mxu0
    %v2164 = vadd.f32 0.0, %v2163
    %v2165 = vpop.f32.mrf.mxu0
    %v2166 = vpop.f32.mrf.mxu0
    %v2167 = vpop.f32.mrf.mxu0
    %2168 = vdwg.mxu0
    %v2169 = vpack.c.bf16 %v2164, %v2118
    %2170 = vrot.lane.b32.xlu0 %v1935, 96
    %v2171 = vpop.permute.xlu0 %2170
    %2172 = vrot.lane.b32.xlu0 %v1941, 96
    %v2173 = vpop.permute.xlu0 %2172
    %v2175 = vsel %vm507, %v2171, 0
    %v2178 = vsel %vm507, %v2173, 0
    %2180 = vmatprep.subr.bf16.mxu0 0
    %2181 = vmatpush1.bf16.xpose.msra.mxu0 0
    %2182 = vmatprep.subr.bf16.mxu0 0
    %2183 = vmatpush1.bf16.xpose.msra.mxu0 0
    %2184 = vmatprep.subr.bf16.mxu0 0
    %2185 = vmatpush1.bf16.xpose.msra.mxu0 0
    %2186 = vmatprep.subr.bf16.mxu0 0
    %2187 = vmatpush1.bf16.xpose.msra.mxu0 0
    %2188 = vmatprep.subr.bf16.mxu0 0
    %2189 = vmatpush1.bf16.xpose.msra.mxu0 0
    %2190 = vmatprep.subr.bf16.mxu0 0
    %2191 = vmatpush1.bf16.xpose.msra.mxu0 0
    %2192 = vmatprep.subr.bf16.mxu0 0
    %2193 = vmatpush1.bf16.xpose.msra.mxu0 0
    %2194 = vmatprep.subr.bf16.mxu0 0
    %2195 = vmatpush1.bf16.xpose.msra.mxu0 %v2178
    %2196 = vmatprep.subr.bf16.mxu0 0
    %2197 = vmatpush2.bf16.xpose.msra.mxu0 0
    %2198 = vmatprep.subr.bf16.mxu0 0
    %2199 = vmatpush2.bf16.xpose.msra.mxu0 0
    %2200 = vmatprep.subr.bf16.mxu0 0
    %2201 = vmatpush2.bf16.xpose.msra.mxu0 0
    %2202 = vmatprep.subr.bf16.mxu0 0
    %2203 = vmatpush2.bf16.xpose.msra.mxu0 0
    %2204 = vmatprep.subr.bf16.mxu0 0
    %2205 = vmatpush2.bf16.xpose.msra.mxu0 0
    %2206 = vmatprep.subr.bf16.mxu0 0
    %2207 = vmatpush2.bf16.xpose.msra.mxu0 0
    %2208 = vmatprep.subr.bf16.mxu0 0
    %2209 = vmatpush2.bf16.xpose.msra.mxu0 0
    %2210 = vmatprep.subr.bf16.mxu0 0
    %2211 = vmatpush2.bf16.xpose.msra.mxu0 0
    %2212 = vmatprep.mubr.bf16.mxu0 0
    %2213 = vmatmul.mubr.bf16.gmra.mxu0 %v2175
    %v2214 = vpop.f32.mrf.mxu0
    %v2215 = vadd.f32 %v1954, %v2214
    %v2216 = vpop.f32.mrf.mxu0
    %v2217 = vpop.f32.mrf.mxu0
    %v2218 = vpop.f32.mrf.mxu0
    %2219 = vdwg.mxu0
    %2220 = vrot.lane.b32.xlu0 %v1936, 96
    %v2221 = vpop.permute.xlu0 %2220
    %2222 = vrot.lane.b32.xlu0 %v1942, 96
    %v2223 = vpop.permute.xlu0 %2222
    %v2225 = vsel %vm507, %v2221, 0
    %v2228 = vsel %vm507, %v2223, 0
    %2230 = vmatprep.subr.bf16.mxu0 0
    %2231 = vmatpush1.bf16.xpose.msra.mxu0 0
    %2232 = vmatprep.subr.bf16.mxu0 0
    %2233 = vmatpush1.bf16.xpose.msra.mxu0 0
    %2234 = vmatprep.subr.bf16.mxu0 0
    %2235 = vmatpush1.bf16.xpose.msra.mxu0 0
    %2236 = vmatprep.subr.bf16.mxu0 0
    %2237 = vmatpush1.bf16.xpose.msra.mxu0 0
    %2238 = vmatprep.subr.bf16.mxu0 0
    %2239 = vmatpush1.bf16.xpose.msra.mxu0 0
    %2240 = vmatprep.subr.bf16.mxu0 0
    %2241 = vmatpush1.bf16.xpose.msra.mxu0 0
    %2242 = vmatprep.subr.bf16.mxu0 0
    %2243 = vmatpush1.bf16.xpose.msra.mxu0 0
    %2244 = vmatprep.subr.bf16.mxu0 0
    %2245 = vmatpush1.bf16.xpose.msra.mxu0 %v2228
    %2246 = vmatprep.subr.bf16.mxu0 0
    %2247 = vmatpush2.bf16.xpose.msra.mxu0 0
    %2248 = vmatprep.subr.bf16.mxu0 0
    %2249 = vmatpush2.bf16.xpose.msra.mxu0 0
    %2250 = vmatprep.subr.bf16.mxu0 0
    %2251 = vmatpush2.bf16.xpose.msra.mxu0 0
    %2252 = vmatprep.subr.bf16.mxu0 0
    %2253 = vmatpush2.bf16.xpose.msra.mxu0 0
    %2254 = vmatprep.subr.bf16.mxu0 0
    %2255 = vmatpush2.bf16.xpose.msra.mxu0 0
    %2256 = vmatprep.subr.bf16.mxu0 0
    %2257 = vmatpush2.bf16.xpose.msra.mxu0 0
    %2258 = vmatprep.subr.bf16.mxu0 0
    %2259 = vmatpush2.bf16.xpose.msra.mxu0 0
    %2260 = vmatprep.subr.bf16.mxu0 0
    %2261 = vmatpush2.bf16.xpose.msra.mxu0 0
    %2262 = vmatprep.mubr.bf16.mxu0 0
    %2263 = vmatmul.mubr.bf16.gmra.mxu0 %v2225
    %v2264 = vpop.f32.mrf.mxu0
    %v2265 = vadd.f32 %v1958, %v2264
    %v2266 = vpop.f32.mrf.mxu0
    %v2267 = vpop.f32.mrf.mxu0
    %v2268 = vpop.f32.mrf.mxu0
    %2269 = vdwg.mxu0
    %v2270 = vsel %vm600, %v2215, -inf
    %2271 = vmax.xlane.f32.xlu0 %v2270
    %v2272 = vpop.xlane.xlu0 %2271
    %v2273 = vsel %vm600, %v2265, -inf
    %2274 = vmax.xlane.f32.xlu0 %v2273
    %v2275 = vpop.xlane.xlu0 %2274
    %v2276 = vsub.f32 %v2215, %v2272
    %v2277 = vsub.f32 %v2265, %v2275
    %v2278 = vmul.f32 %v2276, 1.442695
    %v2279 = vpow.pop %v2278
    %v2280 = vmul.f32 %v2277, 1.442695
    %v2281 = vpow.pop %v2280
    %v2282 = vsel %vm600, %v2279, 0.0
    %2283 = vadd.xlane.f32.xlu0 %v2282
    %v2284 = vpop.xlane.xlu0 %2283
    %v2285 = vsel %vm600, %v2281, 0.0
    %2286 = vadd.xlane.f32.xlu0 %v2285
    %v2287 = vpop.xlane.xlu0 %2286
    %v2288 = vrcp.pop %v2284
    %v2289 = vrcp.pop %v2287
    %v2290 = vmul.f32 %v2279, %v2288
    %v2291 = vmul.f32 %v2281, %v2289
    %v2292 = vpack.c.bf16 %v2290, %v2290
    %v2293 = vpack.c.bf16 %v2291, %v2291
    %2294 = vrot.lane.b32.xlu0 %v1947, 96
    %v2295 = vpop.permute.xlu0 %2294
    %v2297 = vsel %vm600, %v2292, 0
    %v2300 = vsel %vm628, %v2295, 0
    %2302 = vmatprep.subr.bf16.mxu0 0
    %2303 = vmatpush1.bf16.msra.mxu0 0
    %2304 = vmatprep.subr.bf16.mxu0 0
    %2305 = vmatpush1.bf16.msra.mxu0 0
    %2306 = vmatprep.subr.bf16.mxu0 0
    %2307 = vmatpush1.bf16.msra.mxu0 0
    %2308 = vmatprep.subr.bf16.mxu0 0
    %2309 = vmatpush1.bf16.msra.mxu0 0
    %2310 = vmatprep.subr.bf16.mxu0 0
    %2311 = vmatpush1.bf16.msra.mxu0 0
    %2312 = vmatprep.subr.bf16.mxu0 0
    %2313 = vmatpush1.bf16.msra.mxu0 0
    %2314 = vmatprep.subr.bf16.mxu0 0
    %2315 = vmatpush1.bf16.msra.mxu0 0
    %2316 = vmatprep.subr.bf16.mxu0 0
    %2317 = vmatpush1.bf16.msra.mxu0 %v2300
    %2318 = vmatprep.subr.bf16.mxu0 0
    %2319 = vmatpush2.bf16.msra.mxu0 0
    %2320 = vmatprep.subr.bf16.mxu0 0
    %2321 = vmatpush2.bf16.msra.mxu0 0
    %2322 = vmatprep.subr.bf16.mxu0 0
    %2323 = vmatpush2.bf16.msra.mxu0 0
    %2324 = vmatprep.subr.bf16.mxu0 0
    %2325 = vmatpush2.bf16.msra.mxu0 0
    %2326 = vmatprep.subr.bf16.mxu0 0
    %2327 = vmatpush2.bf16.msra.mxu0 0
    %2328 = vmatprep.subr.bf16.mxu0 0
    %2329 = vmatpush2.bf16.msra.mxu0 0
    %2330 = vmatprep.subr.bf16.mxu0 0
    %2331 = vmatpush2.bf16.msra.mxu0 0
    %2332 = vmatprep.subr.bf16.mxu0 0
    %2333 = vmatpush2.bf16.msra.mxu0 0
    %2334 = vmatprep.mubr.bf16.mxu0 0
    %2335 = vmatmul.mubr.bf16.gmra.mxu0 %v2297
    %v2336 = vpop.f32.mrf.mxu0
    %v2337 = vadd.f32 0.0, %v2336
    %v2338 = vpop.f32.mrf.mxu0
    %v2339 = vpop.f32.mrf.mxu0
    %v2340 = vpop.f32.mrf.mxu0
    %2341 = vdwg.mxu0
    %2342 = vrot.lane.b32.xlu0 %v1948, 96
    %v2343 = vpop.permute.xlu0 %2342
    %v2345 = vsel %vm600, %v2293, 0
    %v2348 = vsel %vm628, %v2343, 0
    %2350 = vmatprep.subr.bf16.mxu0 0
    %2351 = vmatpush1.bf16.msra.mxu0 0
    %2352 = vmatprep.subr.bf16.mxu0 0
    %2353 = vmatpush1.bf16.msra.mxu0 0
    %2354 = vmatprep.subr.bf16.mxu0 0
    %2355 = vmatpush1.bf16.msra.mxu0 0
    %2356 = vmatprep.subr.bf16.mxu0 0
    %2357 = vmatpush1.bf16.msra.mxu0 0
    %2358 = vmatprep.subr.bf16.mxu0 0
    %2359 = vmatpush1.bf16.msra.mxu0 0
    %2360 = vmatprep.subr.bf16.mxu0 0
    %2361 = vmatpush1.bf16.msra.mxu0 0
    %2362 = vmatprep.subr.bf16.mxu0 0
    %2363 = vmatpush1.bf16.msra.mxu0 0
    %2364 = vmatprep.subr.bf16.mxu0 0
    %2365 = vmatpush1.bf16.msra.mxu0 %v2348
    %2366 = vmatprep.subr.bf16.mxu0 0
    %2367 = vmatpush2.bf16.msra.mxu0 0
    %2368 = vmatprep.subr.bf16.mxu0 0
    %2369 = vmatpush2.bf16.msra.mxu0 0
    %2370 = vmatprep.subr.bf16.mxu0 0
    %2371 = vmatpush2.bf16.msra.mxu0 0
    %2372 = vmatprep.subr.bf16.mxu0 0
    %2373 = vmatpush2.bf16.msra.mxu0 0
    %2374 = vmatprep.subr.bf16.mxu0 0
    %2375 = vmatpush2.bf16.msra.mxu0 0
    %2376 = vmatprep.subr.bf16.mxu0 0
    %2377 = vmatpush2.bf16.msra.mxu0 0
    %2378 = vmatprep.subr.bf16.mxu0 0
    %2379 = vmatpush2.bf16.msra.mxu0 0
    %2380 = vmatprep.subr.bf16.mxu0 0
    %2381 = vmatpush2.bf16.msra.mxu0 0
    %2382 = vmatprep.mubr.bf16.mxu0 0
    %2383 = vmatmul.mubr.bf16.gmra.mxu0 %v2345
    %v2384 = vpop.f32.mrf.mxu0
    %v2385 = vadd.f32 0.0, %v2384
    %v2386 = vpop.f32.mrf.mxu0
    %v2387 = vpop.f32.mrf.mxu0
    %v2388 = vpop.f32.mrf.mxu0
    %2389 = vdwg.mxu0
    %v2390 = vpack.c.bf16 %v2385, %v2337
    %v2395 = vunpack.c.l.b16 %v1919
    %v2396 = vunpack.c.l.b16 %v1920
    %v2397 = vunpack.c.l.b16 %v1921
    %v2398 = vunpack.c.l.b16 %v1922
    %v2399 = vpack.c.b16 %v2396, %v2395
    %v2400 = vpack.c.b16 %v2398, %v2397
    %v2404 = vsel %vm507, %v2390, 0
    %2406 = vmatprep.subr.bf16.mxu0 0
    %2407 = vmatpush1.bf16.msra.mxu0 0
    %2408 = vmatprep.subr.bf16.mxu0 0
    %2409 = vmatpush1.bf16.msra.mxu0 0
    %2410 = vmatprep.subr.bf16.mxu0 0
    %2411 = vmatpush1.bf16.msra.mxu0 0
    %2412 = vmatprep.subr.bf16.mxu0 0
    %2413 = vmatpush1.bf16.msra.mxu0 0
    %2414 = vmatprep.subr.bf16.mxu0 0
    %2415 = vmatpush1.bf16.msra.mxu0 0
    %2416 = vmatprep.subr.bf16.mxu0 0
    %2417 = vmatpush1.bf16.msra.mxu0 0
    %2418 = vmatprep.subr.bf16.mxu0 0
    %2419 = vmatpush1.bf16.msra.mxu0 %v2400
    %2420 = vmatprep.subr.bf16.mxu0 0
    %2421 = vmatpush1.bf16.msra.mxu0 %v2399
    %2422 = vmatprep.subr.bf16.mxu0 0
    %2423 = vmatpush2.bf16.msra.mxu0 0
    %2424 = vmatprep.subr.bf16.mxu0 0
    %2425 = vmatpush2.bf16.msra.mxu0 0
    %2426 = vmatprep.subr.bf16.mxu0 0
    %2427 = vmatpush2.bf16.msra.mxu0 0
    %2428 = vmatprep.subr.bf16.mxu0 0
    %2429 = vmatpush2.bf16.msra.mxu0 0
    %2430 = vmatprep.subr.bf16.mxu0 0
    %2431 = vmatpush2.bf16.msra.mxu0 0
    %2432 = vmatprep.subr.bf16.mxu0 0
    %2433 = vmatpush2.bf16.msra.mxu0 0
    %2434 = vmatprep.subr.bf16.mxu0 0
    %2435 = vmatpush2.bf16.msra.mxu0 0
    %2436 = vmatprep.subr.bf16.mxu0 0
    %2437 = vmatpush2.bf16.msra.mxu0 0
    %2438 = vmatprep.mubr.bf16.mxu0 0
    %2439 = vmatmul.mubr.bf16.gmra.mxu0 %v2404
    %v2440 = vpop.f32.mrf.mxu0
    %v2441 = vadd.f32 0.0, %v2440
    %v2442 = vpop.f32.mrf.mxu0
    %v2443 = vpop.f32.mrf.mxu0
    %v2444 = vadd.f32 0.0, %v2443
    %v2445 = vpop.f32.mrf.mxu0
    %2446 = vdwg.mxu0
    %v2451 = vunpack.c.l.b16 %v1915
    %v2452 = vunpack.c.l.b16 %v1916
    %v2453 = vunpack.c.l.b16 %v1917
    %v2454 = vunpack.c.l.b16 %v1918
    %v2455 = vpack.c.b16 %v2452, %v2451
    %v2456 = vpack.c.b16 %v2454, %v2453
    %v2460 = vsel %vm507, %v2169, 0
    %2462 = vmatprep.subr.bf16.mxu0 0
    %2463 = vmatpush1.bf16.msra.mxu0 0
    %2464 = vmatprep.subr.bf16.mxu0 0
    %2465 = vmatpush1.bf16.msra.mxu0 0
    %2466 = vmatprep.subr.bf16.mxu0 0
    %2467 = vmatpush1.bf16.msra.mxu0 0
    %2468 = vmatprep.subr.bf16.mxu0 0
    %2469 = vmatpush1.bf16.msra.mxu0 0
    %2470 = vmatprep.subr.bf16.mxu0 0
    %2471 = vmatpush1.bf16.msra.mxu0 0
    %2472 = vmatprep.subr.bf16.mxu0 0
    %2473 = vmatpush1.bf16.msra.mxu0 0
    %2474 = vmatprep.subr.bf16.mxu0 0
    %2475 = vmatpush1.bf16.msra.mxu0 %v2456
    %2476 = vmatprep.subr.bf16.mxu0 0
    %2477 = vmatpush1.bf16.msra.mxu0 %v2455
    %2478 = vmatprep.subr.bf16.mxu0 0
    %2479 = vmatpush2.bf16.msra.mxu0 0
    %2480 = vmatprep.subr.bf16.mxu0 0
    %2481 = vmatpush2.bf16.msra.mxu0 0
    %2482 = vmatprep.subr.bf16.mxu0 0
    %2483 = vmatpush2.bf16.msra.mxu0 0
    %2484 = vmatprep.subr.bf16.mxu0 0
    %2485 = vmatpush2.bf16.msra.mxu0 0
    %2486 = vmatprep.subr.bf16.mxu0 0
    %2487 = vmatpush2.bf16.msra.mxu0 0
    %2488 = vmatprep.subr.bf16.mxu0 0
    %2489 = vmatpush2.bf16.msra.mxu0 0
    %2490 = vmatprep.subr.bf16.mxu0 0
    %2491 = vmatpush2.bf16.msra.mxu0 0
    %2492 = vmatprep.subr.bf16.mxu0 0
    %2493 = vmatpush2.bf16.msra.mxu0 0
    %2494 = vmatprep.mubr.bf16.mxu0 0
    %2495 = vmatmul.mubr.bf16.gmra.mxu0 %v2460
    %v2496 = vpop.f32.mrf.mxu0
    %v2497 = vadd.f32 %v2441, %v2496
    %v2498 = vpop.f32.mrf.mxu0
    %v2499 = vpop.f32.mrf.mxu0
    %v2500 = vadd.f32 %v2444, %v2499
    %v2501 = vpop.f32.mrf.mxu0
    %2502 = vdwg.mxu0
    %2503 = vrot.lane.b32.xlu0 %v1935, 64
    %v2504 = vpop.permute.xlu0 %2503
    %2505 = vrot.lane.b32.xlu0 %v1941, 64
    %v2506 = vpop.permute.xlu0 %2505
    %v2508 = vsel %vm507, %v2504, 0
    %v2511 = vsel %vm507, %v2506, 0
    %2513 = vmatprep.subr.bf16.mxu0 0
    %2514 = vmatpush1.bf16.xpose.msra.mxu0 0
    %2515 = vmatprep.subr.bf16.mxu0 0
    %2516 = vmatpush1.bf16.xpose.msra.mxu0 0
    %2517 = vmatprep.subr.bf16.mxu0 0
    %2518 = vmatpush1.bf16.xpose.msra.mxu0 0
    %2519 = vmatprep.subr.bf16.mxu0 0
    %2520 = vmatpush1.bf16.xpose.msra.mxu0 0
    %2521 = vmatprep.subr.bf16.mxu0 0
    %2522 = vmatpush1.bf16.xpose.msra.mxu0 0
    %2523 = vmatprep.subr.bf16.mxu0 0
    %2524 = vmatpush1.bf16.xpose.msra.mxu0 0
    %2525 = vmatprep.subr.bf16.mxu0 0
    %2526 = vmatpush1.bf16.xpose.msra.mxu0 0
    %2527 = vmatprep.subr.bf16.mxu0 0
    %2528 = vmatpush1.bf16.xpose.msra.mxu0 %v2511
    %2529 = vmatprep.subr.bf16.mxu0 0
    %2530 = vmatpush2.bf16.xpose.msra.mxu0 0
    %2531 = vmatprep.subr.bf16.mxu0 0
    %2532 = vmatpush2.bf16.xpose.msra.mxu0 0
    %2533 = vmatprep.subr.bf16.mxu0 0
    %2534 = vmatpush2.bf16.xpose.msra.mxu0 0
    %2535 = vmatprep.subr.bf16.mxu0 0
    %2536 = vmatpush2.bf16.xpose.msra.mxu0 0
    %2537 = vmatprep.subr.bf16.mxu0 0
    %2538 = vmatpush2.bf16.xpose.msra.mxu0 0
    %2539 = vmatprep.subr.bf16.mxu0 0
    %2540 = vmatpush2.bf16.xpose.msra.mxu0 0
    %2541 = vmatprep.subr.bf16.mxu0 0
    %2542 = vmatpush2.bf16.xpose.msra.mxu0 0
    %2543 = vmatprep.subr.bf16.mxu0 0
    %2544 = vmatpush2.bf16.xpose.msra.mxu0 0
    %2545 = vmatprep.mubr.bf16.mxu0 0
    %2546 = vmatmul.mubr.bf16.gmra.mxu0 %v2508
    %v2547 = vpop.f32.mrf.mxu0
    %v2548 = vadd.f32 %v1954, %v2547
    %v2549 = vpop.f32.mrf.mxu0
    %v2550 = vpop.f32.mrf.mxu0
    %v2551 = vpop.f32.mrf.mxu0
    %2552 = vdwg.mxu0
    %2553 = vrot.lane.b32.xlu0 %v1936, 64
    %v2554 = vpop.permute.xlu0 %2553
    %2555 = vrot.lane.b32.xlu0 %v1942, 64
    %v2556 = vpop.permute.xlu0 %2555
    %v2558 = vsel %vm507, %v2554, 0
    %v2561 = vsel %vm507, %v2556, 0
    %2563 = vmatprep.subr.bf16.mxu0 0
    %2564 = vmatpush1.bf16.xpose.msra.mxu0 0
    %2565 = vmatprep.subr.bf16.mxu0 0
    %2566 = vmatpush1.bf16.xpose.msra.mxu0 0
    %2567 = vmatprep.subr.bf16.mxu0 0
    %2568 = vmatpush1.bf16.xpose.msra.mxu0 0
    %2569 = vmatprep.subr.bf16.mxu0 0
    %2570 = vmatpush1.bf16.xpose.msra.mxu0 0
    %2571 = vmatprep.subr.bf16.mxu0 0
    %2572 = vmatpush1.bf16.xpose.msra.mxu0 0
    %2573 = vmatprep.subr.bf16.mxu0 0
    %2574 = vmatpush1.bf16.xpose.msra.mxu0 0
    %2575 = vmatprep.subr.bf16.mxu0 0
    %2576 = vmatpush1.bf16.xpose.msra.mxu0 0
    %2577 = vmatprep.subr.bf16.mxu0 0
    %2578 = vmatpush1.bf16.xpose.msra.mxu0 %v2561
    %2579 = vmatprep.subr.bf16.mxu0 0
    %2580 = vmatpush2.bf16.xpose.msra.mxu0 0
    %2581 = vmatprep.subr.bf16.mxu0 0
    %2582 = vmatpush2.bf16.xpose.msra.mxu0 0
    %2583 = vmatprep.subr.bf16.mxu0 0
    %2584 = vmatpush2.bf16.xpose.msra.mxu0 0
    %2585 = vmatprep.subr.bf16.mxu0 0
    %2586 = vmatpush2.bf16.xpose.msra.mxu0 0
    %2587 = vmatprep.subr.bf16.mxu0 0
    %2588 = vmatpush2.bf16.xpose.msra.mxu0 0
    %2589 = vmatprep.subr.bf16.mxu0 0
    %2590 = vmatpush2.bf16.xpose.msra.mxu0 0
    %2591 = vmatprep.subr.bf16.mxu0 0
    %2592 = vmatpush2.bf16.xpose.msra.mxu0 0
    %2593 = vmatprep.subr.bf16.mxu0 0
    %2594 = vmatpush2.bf16.xpose.msra.mxu0 0
    %2595 = vmatprep.mubr.bf16.mxu0 0
    %2596 = vmatmul.mubr.bf16.gmra.mxu0 %v2558
    %v2597 = vpop.f32.mrf.mxu0
    %v2598 = vadd.f32 %v1958, %v2597
    %v2599 = vpop.f32.mrf.mxu0
    %v2600 = vpop.f32.mrf.mxu0
    %v2601 = vpop.f32.mrf.mxu0
    %2602 = vdwg.mxu0
    %v2603 = vsel %vm600, %v2548, -inf
    %2604 = vmax.xlane.f32.xlu0 %v2603
    %v2605 = vpop.xlane.xlu0 %2604
    %v2606 = vsel %vm600, %v2598, -inf
    %2607 = vmax.xlane.f32.xlu0 %v2606
    %v2608 = vpop.xlane.xlu0 %2607
    %v2609 = vsub.f32 %v2548, %v2605
    %v2610 = vsub.f32 %v2598, %v2608
    %v2611 = vmul.f32 %v2609, 1.442695
    %v2612 = vpow.pop %v2611
    %v2613 = vmul.f32 %v2610, 1.442695
    %v2614 = vpow.pop %v2613
    %v2615 = vsel %vm600, %v2612, 0.0
    %2616 = vadd.xlane.f32.xlu0 %v2615
    %v2617 = vpop.xlane.xlu0 %2616
    %v2618 = vsel %vm600, %v2614, 0.0
    %2619 = vadd.xlane.f32.xlu0 %v2618
    %v2620 = vpop.xlane.xlu0 %2619
    %v2621 = vrcp.pop %v2617
    %v2622 = vrcp.pop %v2620
    %v2623 = vmul.f32 %v2612, %v2621
    %v2624 = vmul.f32 %v2614, %v2622
    %v2625 = vpack.c.bf16 %v2623, %v2623
    %v2626 = vpack.c.bf16 %v2624, %v2624
    %2627 = vrot.lane.b32.xlu0 %v1947, 64
    %v2628 = vpop.permute.xlu0 %2627
    %v2630 = vsel %vm600, %v2625, 0
    %v2633 = vsel %vm628, %v2628, 0
    %2635 = vmatprep.subr.bf16.mxu0 0
    %2636 = vmatpush1.bf16.msra.mxu0 0
    %2637 = vmatprep.subr.bf16.mxu0 0
    %2638 = vmatpush1.bf16.msra.mxu0 0
    %2639 = vmatprep.subr.bf16.mxu0 0
    %2640 = vmatpush1.bf16.msra.mxu0 0
    %2641 = vmatprep.subr.bf16.mxu0 0
    %2642 = vmatpush1.bf16.msra.mxu0 0
    %2643 = vmatprep.subr.bf16.mxu0 0
    %2644 = vmatpush1.bf16.msra.mxu0 0
    %2645 = vmatprep.subr.bf16.mxu0 0
    %2646 = vmatpush1.bf16.msra.mxu0 0
    %2647 = vmatprep.subr.bf16.mxu0 0
    %2648 = vmatpush1.bf16.msra.mxu0 0
    %2649 = vmatprep.subr.bf16.mxu0 0
    %2650 = vmatpush1.bf16.msra.mxu0 %v2633
    %2651 = vmatprep.subr.bf16.mxu0 0
    %2652 = vmatpush2.bf16.msra.mxu0 0
    %2653 = vmatprep.subr.bf16.mxu0 0
    %2654 = vmatpush2.bf16.msra.mxu0 0
    %2655 = vmatprep.subr.bf16.mxu0 0
    %2656 = vmatpush2.bf16.msra.mxu0 0
    %2657 = vmatprep.subr.bf16.mxu0 0
    %2658 = vmatpush2.bf16.msra.mxu0 0
    %2659 = vmatprep.subr.bf16.mxu0 0
    %2660 = vmatpush2.bf16.msra.mxu0 0
    %2661 = vmatprep.subr.bf16.mxu0 0
    %2662 = vmatpush2.bf16.msra.mxu0 0
    %2663 = vmatprep.subr.bf16.mxu0 0
    %2664 = vmatpush2.bf16.msra.mxu0 0
    %2665 = vmatprep.subr.bf16.mxu0 0
    %2666 = vmatpush2.bf16.msra.mxu0 0
    %2667 = vmatprep.mubr.bf16.mxu0 0
    %2668 = vmatmul.mubr.bf16.gmra.mxu0 %v2630
    %v2669 = vpop.f32.mrf.mxu0
    %v2670 = vadd.f32 0.0, %v2669
    %v2671 = vpop.f32.mrf.mxu0
    %v2672 = vpop.f32.mrf.mxu0
    %v2673 = vpop.f32.mrf.mxu0
    %2674 = vdwg.mxu0
    %2675 = vrot.lane.b32.xlu0 %v1948, 64
    %v2676 = vpop.permute.xlu0 %2675
    %v2678 = vsel %vm600, %v2626, 0
    %v2681 = vsel %vm628, %v2676, 0
    %2683 = vmatprep.subr.bf16.mxu0 0
    %2684 = vmatpush1.bf16.msra.mxu0 0
    %2685 = vmatprep.subr.bf16.mxu0 0
    %2686 = vmatpush1.bf16.msra.mxu0 0
    %2687 = vmatprep.subr.bf16.mxu0 0
    %2688 = vmatpush1.bf16.msra.mxu0 0
    %2689 = vmatprep.subr.bf16.mxu0 0
    %2690 = vmatpush1.bf16.msra.mxu0 0
    %2691 = vmatprep.subr.bf16.mxu0 0
    %2692 = vmatpush1.bf16.msra.mxu0 0
    %2693 = vmatprep.subr.bf16.mxu0 0
    %2694 = vmatpush1.bf16.msra.mxu0 0
    %2695 = vmatprep.subr.bf16.mxu0 0
    %2696 = vmatpush1.bf16.msra.mxu0 0
    %2697 = vmatprep.subr.bf16.mxu0 0
    %2698 = vmatpush1.bf16.msra.mxu0 %v2681
    %2699 = vmatprep.subr.bf16.mxu0 0
    %2700 = vmatpush2.bf16.msra.mxu0 0
    %2701 = vmatprep.subr.bf16.mxu0 0
    %2702 = vmatpush2.bf16.msra.mxu0 0
    %2703 = vmatprep.subr.bf16.mxu0 0
    %2704 = vmatpush2.bf16.msra.mxu0 0
    %2705 = vmatprep.subr.bf16.mxu0 0
    %2706 = vmatpush2.bf16.msra.mxu0 0
    %2707 = vmatprep.subr.bf16.mxu0 0
    %2708 = vmatpush2.bf16.msra.mxu0 0
    %2709 = vmatprep.subr.bf16.mxu0 0
    %2710 = vmatpush2.bf16.msra.mxu0 0
    %2711 = vmatprep.subr.bf16.mxu0 0
    %2712 = vmatpush2.bf16.msra.mxu0 0
    %2713 = vmatprep.subr.bf16.mxu0 0
    %2714 = vmatpush2.bf16.msra.mxu0 0
    %2715 = vmatprep.mubr.bf16.mxu0 0
    %2716 = vmatmul.mubr.bf16.gmra.mxu0 %v2678
    %v2717 = vpop.f32.mrf.mxu0
    %v2718 = vadd.f32 0.0, %v2717
    %v2719 = vpop.f32.mrf.mxu0
    %v2720 = vpop.f32.mrf.mxu0
    %v2721 = vpop.f32.mrf.mxu0
    %2722 = vdwg.mxu0
    %v2723 = vpack.c.bf16 %v2718, %v2670
    %v2728 = vunpack.c.l.b16 %v1923
    %v2729 = vunpack.c.l.b16 %v1924
    %v2730 = vunpack.c.l.b16 %v1925
    %v2731 = vunpack.c.l.b16 %v1926
    %v2732 = vpack.c.b16 %v2729, %v2728
    %v2733 = vpack.c.b16 %v2731, %v2730
    %v2737 = vsel %vm507, %v2723, 0
    %2739 = vmatprep.subr.bf16.mxu0 0
    %2740 = vmatpush1.bf16.msra.mxu0 0
    %2741 = vmatprep.subr.bf16.mxu0 0
    %2742 = vmatpush1.bf16.msra.mxu0 0
    %2743 = vmatprep.subr.bf16.mxu0 0
    %2744 = vmatpush1.bf16.msra.mxu0 0
    %2745 = vmatprep.subr.bf16.mxu0 0
    %2746 = vmatpush1.bf16.msra.mxu0 0
    %2747 = vmatprep.subr.bf16.mxu0 0
    %2748 = vmatpush1.bf16.msra.mxu0 0
    %2749 = vmatprep.subr.bf16.mxu0 0
    %2750 = vmatpush1.bf16.msra.mxu0 0
    %2751 = vmatprep.subr.bf16.mxu0 0
    %2752 = vmatpush1.bf16.msra.mxu0 %v2733
    %2753 = vmatprep.subr.bf16.mxu0 0
    %2754 = vmatpush1.bf16.msra.mxu0 %v2732
    %2755 = vmatprep.subr.bf16.mxu0 0
    %2756 = vmatpush2.bf16.msra.mxu0 0
    %2757 = vmatprep.subr.bf16.mxu0 0
    %2758 = vmatpush2.bf16.msra.mxu0 0
    %2759 = vmatprep.subr.bf16.mxu0 0
    %2760 = vmatpush2.bf16.msra.mxu0 0
    %2761 = vmatprep.subr.bf16.mxu0 0
    %2762 = vmatpush2.bf16.msra.mxu0 0
    %2763 = vmatprep.subr.bf16.mxu0 0
    %2764 = vmatpush2.bf16.msra.mxu0 0
    %2765 = vmatprep.subr.bf16.mxu0 0
    %2766 = vmatpush2.bf16.msra.mxu0 0
    %2767 = vmatprep.subr.bf16.mxu0 0
    %2768 = vmatpush2.bf16.msra.mxu0 0
    %2769 = vmatprep.subr.bf16.mxu0 0
    %2770 = vmatpush2.bf16.msra.mxu0 0
    %2771 = vmatprep.mubr.bf16.mxu0 0
    %2772 = vmatmul.mubr.bf16.gmra.mxu0 %v2737
    %v2773 = vpop.f32.mrf.mxu0
    %v2774 = vadd.f32 0.0, %v2773
    %v2775 = vpop.f32.mrf.mxu0
    %v2776 = vpop.f32.mrf.mxu0
    %v2777 = vadd.f32 0.0, %v2776
    %v2778 = vpop.f32.mrf.mxu0
    %2779 = vdwg.mxu0
    %v2780 = vadd.f32 %v2497, %v2774
    %v2781 = vadd.f32 %v2500, %v2777
    %2782 = vrot.lane.b32.xlu0 %v1935, 32
    %v2783 = vpop.permute.xlu0 %2782
    %2784 = vrot.lane.b32.xlu0 %v1941, 32
    %v2785 = vpop.permute.xlu0 %2784
    %v2787 = vsel %vm507, %v2783, 0
    %v2790 = vsel %vm507, %v2785, 0
    %2792 = vmatprep.subr.bf16.mxu0 0
    %2793 = vmatpush1.bf16.xpose.msra.mxu0 0
    %2794 = vmatprep.subr.bf16.mxu0 0
    %2795 = vmatpush1.bf16.xpose.msra.mxu0 0
    %2796 = vmatprep.subr.bf16.mxu0 0
    %2797 = vmatpush1.bf16.xpose.msra.mxu0 0
    %2798 = vmatprep.subr.bf16.mxu0 0
    %2799 = vmatpush1.bf16.xpose.msra.mxu0 0
    %2800 = vmatprep.subr.bf16.mxu0 0
    %2801 = vmatpush1.bf16.xpose.msra.mxu0 0
    %2802 = vmatprep.subr.bf16.mxu0 0
    %2803 = vmatpush1.bf16.xpose.msra.mxu0 0
    %2804 = vmatprep.subr.bf16.mxu0 0
    %2805 = vmatpush1.bf16.xpose.msra.mxu0 0
    %2806 = vmatprep.subr.bf16.mxu0 0
    %2807 = vmatpush1.bf16.xpose.msra.mxu0 %v2790
    %2808 = vmatprep.subr.bf16.mxu0 0
    %2809 = vmatpush2.bf16.xpose.msra.mxu0 0
    %2810 = vmatprep.subr.bf16.mxu0 0
    %2811 = vmatpush2.bf16.xpose.msra.mxu0 0
    %2812 = vmatprep.subr.bf16.mxu0 0
    %2813 = vmatpush2.bf16.xpose.msra.mxu0 0
    %2814 = vmatprep.subr.bf16.mxu0 0
    %2815 = vmatpush2.bf16.xpose.msra.mxu0 0
    %2816 = vmatprep.subr.bf16.mxu0 0
    %2817 = vmatpush2.bf16.xpose.msra.mxu0 0
    %2818 = vmatprep.subr.bf16.mxu0 0
    %2819 = vmatpush2.bf16.xpose.msra.mxu0 0
    %2820 = vmatprep.subr.bf16.mxu0 0
    %2821 = vmatpush2.bf16.xpose.msra.mxu0 0
    %2822 = vmatprep.subr.bf16.mxu0 0
    %2823 = vmatpush2.bf16.xpose.msra.mxu0 0
    %2824 = vmatprep.mubr.bf16.mxu0 0
    %2825 = vmatmul.mubr.bf16.gmra.mxu0 %v2787
    %v2826 = vpop.f32.mrf.mxu0
    %v2827 = vadd.f32 %v1954, %v2826
    %v2828 = vpop.f32.mrf.mxu0
    %v2829 = vpop.f32.mrf.mxu0
    %v2830 = vpop.f32.mrf.mxu0
    %2831 = vdwg.mxu0
    %2832 = vrot.lane.b32.xlu0 %v1936, 32
    %v2833 = vpop.permute.xlu0 %2832
    %2834 = vrot.lane.b32.xlu0 %v1942, 32
    %v2835 = vpop.permute.xlu0 %2834
    %v2837 = vsel %vm507, %v2833, 0
    %v2840 = vsel %vm507, %v2835, 0
    %2842 = vmatprep.subr.bf16.mxu0 0
    %2843 = vmatpush1.bf16.xpose.msra.mxu0 0
    %2844 = vmatprep.subr.bf16.mxu0 0
    %2845 = vmatpush1.bf16.xpose.msra.mxu0 0
    %2846 = vmatprep.subr.bf16.mxu0 0
    %2847 = vmatpush1.bf16.xpose.msra.mxu0 0
    %2848 = vmatprep.subr.bf16.mxu0 0
    %2849 = vmatpush1.bf16.xpose.msra.mxu0 0
    %2850 = vmatprep.subr.bf16.mxu0 0
    %2851 = vmatpush1.bf16.xpose.msra.mxu0 0
    %2852 = vmatprep.subr.bf16.mxu0 0
    %2853 = vmatpush1.bf16.xpose.msra.mxu0 0
    %2854 = vmatprep.subr.bf16.mxu0 0
    %2855 = vmatpush1.bf16.xpose.msra.mxu0 0
    %2856 = vmatprep.subr.bf16.mxu0 0
    %2857 = vmatpush1.bf16.xpose.msra.mxu0 %v2840
    %2858 = vmatprep.subr.bf16.mxu0 0
    %2859 = vmatpush2.bf16.xpose.msra.mxu0 0
    %2860 = vmatprep.subr.bf16.mxu0 0
    %2861 = vmatpush2.bf16.xpose.msra.mxu0 0
    %2862 = vmatprep.subr.bf16.mxu0 0
    %2863 = vmatpush2.bf16.xpose.msra.mxu0 0
    %2864 = vmatprep.subr.bf16.mxu0 0
    %2865 = vmatpush2.bf16.xpose.msra.mxu0 0
    %2866 = vmatprep.subr.bf16.mxu0 0
    %2867 = vmatpush2.bf16.xpose.msra.mxu0 0
    %2868 = vmatprep.subr.bf16.mxu0 0
    %2869 = vmatpush2.bf16.xpose.msra.mxu0 0
    %2870 = vmatprep.subr.bf16.mxu0 0
    %2871 = vmatpush2.bf16.xpose.msra.mxu0 0
    %2872 = vmatprep.subr.bf16.mxu0 0
    %2873 = vmatpush2.bf16.xpose.msra.mxu0 0
    %2874 = vmatprep.mubr.bf16.mxu0 0
    %2875 = vmatmul.mubr.bf16.gmra.mxu0 %v2837
    %v2876 = vpop.f32.mrf.mxu0
    %v2877 = vadd.f32 %v1958, %v2876
    %v2878 = vpop.f32.mrf.mxu0
    %v2879 = vpop.f32.mrf.mxu0
    %v2880 = vpop.f32.mrf.mxu0
    %2881 = vdwg.mxu0
    %v2882 = vsel %vm600, %v2827, -inf
    %2883 = vmax.xlane.f32.xlu0 %v2882
    %v2884 = vpop.xlane.xlu0 %2883
    %v2885 = vsel %vm600, %v2877, -inf
    %2886 = vmax.xlane.f32.xlu0 %v2885
    %v2887 = vpop.xlane.xlu0 %2886
    %v2888 = vsub.f32 %v2827, %v2884
    %v2889 = vsub.f32 %v2877, %v2887
    %v2890 = vmul.f32 %v2888, 1.442695
    %v2891 = vpow.pop %v2890
    %v2892 = vmul.f32 %v2889, 1.442695
    %v2893 = vpow.pop %v2892
    %v2894 = vsel %vm600, %v2891, 0.0
    %2895 = vadd.xlane.f32.xlu0 %v2894
    %v2896 = vpop.xlane.xlu0 %2895
    %v2897 = vsel %vm600, %v2893, 0.0
    %2898 = vadd.xlane.f32.xlu0 %v2897
    %v2899 = vpop.xlane.xlu0 %2898
    %v2900 = vrcp.pop %v2896
    %v2901 = vrcp.pop %v2899
    %v2902 = vmul.f32 %v2891, %v2900
    %v2903 = vmul.f32 %v2893, %v2901
    %v2904 = vpack.c.bf16 %v2902, %v2902
    %v2905 = vpack.c.bf16 %v2903, %v2903
    %2906 = vrot.lane.b32.xlu0 %v1947, 32
    %v2907 = vpop.permute.xlu0 %2906
    %v2909 = vsel %vm600, %v2904, 0
    %v2912 = vsel %vm628, %v2907, 0
    %2914 = vmatprep.subr.bf16.mxu0 0
    %2915 = vmatpush1.bf16.msra.mxu0 0
    %2916 = vmatprep.subr.bf16.mxu0 0
    %2917 = vmatpush1.bf16.msra.mxu0 0
    %2918 = vmatprep.subr.bf16.mxu0 0
    %2919 = vmatpush1.bf16.msra.mxu0 0
    %2920 = vmatprep.subr.bf16.mxu0 0
    %2921 = vmatpush1.bf16.msra.mxu0 0
    %2922 = vmatprep.subr.bf16.mxu0 0
    %2923 = vmatpush1.bf16.msra.mxu0 0
    %2924 = vmatprep.subr.bf16.mxu0 0
    %2925 = vmatpush1.bf16.msra.mxu0 0
    %2926 = vmatprep.subr.bf16.mxu0 0
    %2927 = vmatpush1.bf16.msra.mxu0 0
    %2928 = vmatprep.subr.bf16.mxu0 0
    %2929 = vmatpush1.bf16.msra.mxu0 %v2912
    %2930 = vmatprep.subr.bf16.mxu0 0
    %2931 = vmatpush2.bf16.msra.mxu0 0
    %2932 = vmatprep.subr.bf16.mxu0 0
    %2933 = vmatpush2.bf16.msra.mxu0 0
    %2934 = vmatprep.subr.bf16.mxu0 0
    %2935 = vmatpush2.bf16.msra.mxu0 0
    %2936 = vmatprep.subr.bf16.mxu0 0
    %2937 = vmatpush2.bf16.msra.mxu0 0
    %2938 = vmatprep.subr.bf16.mxu0 0
    %2939 = vmatpush2.bf16.msra.mxu0 0
    %2940 = vmatprep.subr.bf16.mxu0 0
    %2941 = vmatpush2.bf16.msra.mxu0 0
    %2942 = vmatprep.subr.bf16.mxu0 0
    %2943 = vmatpush2.bf16.msra.mxu0 0
    %2944 = vmatprep.subr.bf16.mxu0 0
    %2945 = vmatpush2.bf16.msra.mxu0 0
    %2946 = vmatprep.mubr.bf16.mxu0 0
    %2947 = vmatmul.mubr.bf16.gmra.mxu0 %v2909
    %v2948 = vpop.f32.mrf.mxu0
    %v2949 = vadd.f32 0.0, %v2948
    %v2950 = vpop.f32.mrf.mxu0
    %v2951 = vpop.f32.mrf.mxu0
    %v2952 = vpop.f32.mrf.mxu0
    %2953 = vdwg.mxu0
    %2954 = vrot.lane.b32.xlu0 %v1948, 32
    %v2955 = vpop.permute.xlu0 %2954
    %v2957 = vsel %vm600, %v2905, 0
    %v2960 = vsel %vm628, %v2955, 0
    %2962 = vmatprep.subr.bf16.mxu0 0
    %2963 = vmatpush1.bf16.msra.mxu0 0
    %2964 = vmatprep.subr.bf16.mxu0 0
    %2965 = vmatpush1.bf16.msra.mxu0 0
    %2966 = vmatprep.subr.bf16.mxu0 0
    %2967 = vmatpush1.bf16.msra.mxu0 0
    %2968 = vmatprep.subr.bf16.mxu0 0
    %2969 = vmatpush1.bf16.msra.mxu0 0
    %2970 = vmatprep.subr.bf16.mxu0 0
    %2971 = vmatpush1.bf16.msra.mxu0 0
    %2972 = vmatprep.subr.bf16.mxu0 0
    %2973 = vmatpush1.bf16.msra.mxu0 0
    %2974 = vmatprep.subr.bf16.mxu0 0
    %2975 = vmatpush1.bf16.msra.mxu0 0
    %2976 = vmatprep.subr.bf16.mxu0 0
    %2977 = vmatpush1.bf16.msra.mxu0 %v2960
    %2978 = vmatprep.subr.bf16.mxu0 0
    %2979 = vmatpush2.bf16.msra.mxu0 0
    %2980 = vmatprep.subr.bf16.mxu0 0
    %2981 = vmatpush2.bf16.msra.mxu0 0
    %2982 = vmatprep.subr.bf16.mxu0 0
    %2983 = vmatpush2.bf16.msra.mxu0 0
    %2984 = vmatprep.subr.bf16.mxu0 0
    %2985 = vmatpush2.bf16.msra.mxu0 0
    %2986 = vmatprep.subr.bf16.mxu0 0
    %2987 = vmatpush2.bf16.msra.mxu0 0
    %2988 = vmatprep.subr.bf16.mxu0 0
    %2989 = vmatpush2.bf16.msra.mxu0 0
    %2990 = vmatprep.subr.bf16.mxu0 0
    %2991 = vmatpush2.bf16.msra.mxu0 0
    %2992 = vmatprep.subr.bf16.mxu0 0
    %2993 = vmatpush2.bf16.msra.mxu0 0
    %2994 = vmatprep.mubr.bf16.mxu0 0
    %2995 = vmatmul.mubr.bf16.gmra.mxu0 %v2957
    %v2996 = vpop.f32.mrf.mxu0
    %v2997 = vadd.f32 0.0, %v2996
    %v2998 = vpop.f32.mrf.mxu0
    %v2999 = vpop.f32.mrf.mxu0
    %v3000 = vpop.f32.mrf.mxu0
    %3001 = vdwg.mxu0
    %v3002 = vpack.c.bf16 %v2997, %v2949
    %v3007 = vunpack.c.l.b16 %v1927
    %v3008 = vunpack.c.l.b16 %v1928
    %v3009 = vunpack.c.l.b16 %v1929
    %v3010 = vunpack.c.l.b16 %v1930
    %v3011 = vpack.c.b16 %v3008, %v3007
    %v3012 = vpack.c.b16 %v3010, %v3009
    %v3016 = vsel %vm507, %v3002, 0
    %3018 = vmatprep.subr.bf16.mxu0 0
    %3019 = vmatpush1.bf16.msra.mxu0 0
    %3020 = vmatprep.subr.bf16.mxu0 0
    %3021 = vmatpush1.bf16.msra.mxu0 0
    %3022 = vmatprep.subr.bf16.mxu0 0
    %3023 = vmatpush1.bf16.msra.mxu0 0
    %3024 = vmatprep.subr.bf16.mxu0 0
    %3025 = vmatpush1.bf16.msra.mxu0 0
    %3026 = vmatprep.subr.bf16.mxu0 0
    %3027 = vmatpush1.bf16.msra.mxu0 0
    %3028 = vmatprep.subr.bf16.mxu0 0
    %3029 = vmatpush1.bf16.msra.mxu0 0
    %3030 = vmatprep.subr.bf16.mxu0 0
    %3031 = vmatpush1.bf16.msra.mxu0 %v3012
    %3032 = vmatprep.subr.bf16.mxu0 0
    %3033 = vmatpush1.bf16.msra.mxu0 %v3011
    %3034 = vmatprep.subr.bf16.mxu0 0
    %3035 = vmatpush2.bf16.msra.mxu0 0
    %3036 = vmatprep.subr.bf16.mxu0 0
    %3037 = vmatpush2.bf16.msra.mxu0 0
    %3038 = vmatprep.subr.bf16.mxu0 0
    %3039 = vmatpush2.bf16.msra.mxu0 0
    %3040 = vmatprep.subr.bf16.mxu0 0
    %3041 = vmatpush2.bf16.msra.mxu0 0
    %3042 = vmatprep.subr.bf16.mxu0 0
    %3043 = vmatpush2.bf16.msra.mxu0 0
    %3044 = vmatprep.subr.bf16.mxu0 0
    %3045 = vmatpush2.bf16.msra.mxu0 0
    %3046 = vmatprep.subr.bf16.mxu0 0
    %3047 = vmatpush2.bf16.msra.mxu0 0
    %3048 = vmatprep.subr.bf16.mxu0 0
    %3049 = vmatpush2.bf16.msra.mxu0 0
    %3050 = vmatprep.mubr.bf16.mxu0 0
    %3051 = vmatmul.mubr.bf16.gmra.mxu0 %v3016
    %v3052 = vpop.f32.mrf.mxu0
    %v3053 = vadd.f32 0.0, %v3052
    %v3054 = vpop.f32.mrf.mxu0
    %v3055 = vpop.f32.mrf.mxu0
    %v3056 = vadd.f32 0.0, %v3055
    %v3057 = vpop.f32.mrf.mxu0
    %3058 = vdwg.mxu0
    %v3059 = vadd.f32 %v2780, %v3053
    %v3060 = vadd.f32 %v2781, %v3056
    %v3061 = vadd.f32 %v1616, %v3059
    %v3062 = vadd.f32 %v1617, %v3060
    %v3063 = vlaneseq
    %v3064 = vshrl.u32 %v3063, 7
    %v3065 = vsub.s32 7, %v3064
    %v3066 = vrot.slane %v171, %v3065
    %v3067 = vadd.f32 %v3061, %v3066
    %v3068 = vadd.f32 %v3062, %v3066
    %3069 = vadd.xlane.f32.xlu0 %v3067
    %v3070 = vpop.xlane.xlu0 %3069
    %3071 = vadd.xlane.f32.xlu0 %v3068
    %v3072 = vpop.xlane.xlu0 %3071
    %v3073 = vmul.f32 %v3070, %v177
    %v3074 = vmul.f32 %v3072, %v177
    %v3075 = vsub.f32 %v3067, %v3073
    %v3076 = vsub.f32 %v3068, %v3074
    %v3077 = vmul.f32 %v3075, %v3075
    %v3078 = vmul.f32 %v3076, %v3076
    %3079 = vadd.xlane.f32.xlu0 %v3077
    %v3080 = vpop.xlane.xlu0 %3079
    %3081 = vadd.xlane.f32.xlu0 %v3078
    %v3082 = vpop.xlane.xlu0 %3081
    %v3083 = vmul.f32 %v3080, %v177
    %v3084 = vmul.f32 %v3082, %v177
    %v3085 = vadd.f32 %v3083, 1e-05
    %v3086 = vadd.f32 %v3084, 1e-05
    %v3087 = vrsqrt.pop %v3085
    %v3088 = vrsqrt.pop %v3086
    %v3089 = vmul.f32 %v3075, %v3087
    %v3090 = vmul.f32 %v3076, %v3088
    %v3091 = vlaneseq
    %v3092 = vshrl.u32 %v3091, 7
    %v3093 = vsub.s32 5, %v3092
    %v3094 = vrot.slane %v172, %v3093
    %v3095 = vmul.f32 %v3089, %v3094
    %v3096 = vmul.f32 %v3090, %v3094
    %v3097 = vlaneseq
    %v3098 = vshrl.u32 %v3097, 7
    %v3099 = vsub.s32 6, %v3098
    %v3100 = vrot.slane %v172, %v3099
    %v3101 = vadd.f32 %v3095, %v3100
    %v3102 = vadd.f32 %v3096, %v3100
    %v3103 = vpack.c.bf16 %v3102, %v3101
    %v3104 = vld [vmem:[#allocation11] sm:$0xff]
    %v3105 = vld [vmem:[#allocation11 + $0x8] sm:$0xff]
    %v3106 = vld [vmem:[#allocation11 + $0x10] sm:$0xff]
    %v3107 = vld [vmem:[#allocation11 + $0x18] sm:$0xff]
    %v3108 = vld [vmem:[#allocation11 + $0x20] sm:$0xff]
    %v3109 = vld [vmem:[#allocation11 + $0x28] sm:$0xff]
    %v3110 = vld [vmem:[#allocation11 + $0x30] sm:$0xff]
    %v3111 = vld [vmem:[#allocation11 + $0x38] sm:$0xff]
    %v3112 = vld [vmem:[#allocation11 + $0x40] sm:$0xff]
    %v3113 = vld [vmem:[#allocation11 + $0x48] sm:$0xff]
    %v3114 = vld [vmem:[#allocation11 + $0x50] sm:$0xff]
    %v3115 = vld [vmem:[#allocation11 + $0x58] sm:$0xff]
    %v3116 = vld [vmem:[#allocation11 + $0x60] sm:$0xff]
    %v3117 = vld [vmem:[#allocation11 + $0x68] sm:$0xff]
    %v3118 = vld [vmem:[#allocation11 + $0x70] sm:$0xff]
    %v3119 = vld [vmem:[#allocation11 + $0x78] sm:$0xff]
    %v3120 = vld [vmem:[%s13] sm:$0x3]
    %v3122 = vlaneseq
    %v3123 = vshrl.u32 %v3122, 7
    %v3124 = vsub.s32 0, %v3123
    %v3125 = vrot.slane %v3120, %v3124
    %v3126 = vlaneseq
    %v3127 = vshrl.u32 %v3126, 7
    %v3128 = vsub.s32 1, %v3127
    %v3129 = vrot.slane %v3120, %v3128
    %v3148 = vunpack.c.l.b16 %v3104
    %v3149 = vunpack.c.h.b16 %v3104
    %v3150 = vunpack.c.l.b16 %v3105
    %v3151 = vunpack.c.h.b16 %v3105
    %v3152 = vunpack.c.l.b16 %v3106
    %v3153 = vunpack.c.h.b16 %v3106
    %v3154 = vunpack.c.l.b16 %v3107
    %v3155 = vunpack.c.h.b16 %v3107
    %v3156 = vunpack.c.l.b16 %v3108
    %v3157 = vunpack.c.h.b16 %v3108
    %v3158 = vunpack.c.l.b16 %v3109
    %v3159 = vunpack.c.h.b16 %v3109
    %v3160 = vunpack.c.l.b16 %v3110
    %v3161 = vunpack.c.h.b16 %v3110
    %v3162 = vunpack.c.l.b16 %v3111
    %v3163 = vunpack.c.h.b16 %v3111
    %v3164 = vunpack.c.l.b16 %v3112
    %v3165 = vunpack.c.h.b16 %v3112
    %v3166 = vunpack.c.l.b16 %v3113
    %v3167 = vunpack.c.h.b16 %v3113
    %v3168 = vunpack.c.l.b16 %v3114
    %v3169 = vunpack.c.h.b16 %v3114
    %v3170 = vunpack.c.l.b16 %v3115
    %v3171 = vunpack.c.h.b16 %v3115
    %v3172 = vunpack.c.l.b16 %v3116
    %v3173 = vunpack.c.h.b16 %v3116
    %v3174 = vunpack.c.l.b16 %v3117
    %v3175 = vunpack.c.h.b16 %v3117
    %v3176 = vunpack.c.l.b16 %v3118
    %v3177 = vunpack.c.h.b16 %v3118
    %v3178 = vunpack.c.l.b16 %v3119
    %v3179 = vunpack.c.h.b16 %v3119
    %v3180 = vpack.c.b16 %v3150, %v3148
    %v3181 = vpack.c.b16 %v3151, %v3149
    %v3182 = vpack.c.b16 %v3154, %v3152
    %v3183 = vpack.c.b16 %v3155, %v3153
    %v3184 = vpack.c.b16 %v3158, %v3156
    %v3185 = vpack.c.b16 %v3159, %v3157
    %v3186 = vpack.c.b16 %v3162, %v3160
    %v3187 = vpack.c.b16 %v3163, %v3161
    %v3188 = vpack.c.b16 %v3166, %v3164
    %v3189 = vpack.c.b16 %v3167, %v3165
    %v3190 = vpack.c.b16 %v3170, %v3168
    %v3191 = vpack.c.b16 %v3171, %v3169
    %v3192 = vpack.c.b16 %v3174, %v3172
    %v3193 = vpack.c.b16 %v3175, %v3173
    %v3194 = vpack.c.b16 %v3178, %v3176
    %v3195 = vpack.c.b16 %v3179, %v3177
    %3212 = vmatprep.subr.bf16.mxu0 %v3195
    %3213 = vmatpush1.bf16.msra.mxu0 %v3194
    %3214 = vmatprep.subr.bf16.mxu0 %v3193
    %3215 = vmatpush1.bf16.msra.mxu0 %v3192
    %3216 = vmatprep.subr.bf16.mxu0 %v3191
    %3217 = vmatpush1.bf16.msra.mxu0 %v3190
    %3218 = vmatprep.subr.bf16.mxu0 %v3189
    %3219 = vmatpush1.bf16.msra.mxu0 %v3188
    %3220 = vmatprep.subr.bf16.mxu0 %v3187
    %3221 = vmatpush1.bf16.msra.mxu0 %v3186
    %3222 = vmatprep.subr.bf16.mxu0 %v3185
    %3223 = vmatpush1.bf16.msra.mxu0 %v3184
    %3224 = vmatprep.subr.bf16.mxu0 %v3183
    %3225 = vmatpush1.bf16.msra.mxu0 %v3182
    %3226 = vmatprep.subr.bf16.mxu0 %v3181
    %3227 = vmatpush1.bf16.msra.mxu0 %v3180
    %3228 = vmatprep.subr.bf16.mxu0 0
    %3229 = vmatpush2.bf16.msra.mxu0 0
    %3230 = vmatprep.subr.bf16.mxu0 0
    %3231 = vmatpush2.bf16.msra.mxu0 0
    %3232 = vmatprep.subr.bf16.mxu0 0
    %3233 = vmatpush2.bf16.msra.mxu0 0
    %3234 = vmatprep.subr.bf16.mxu0 0
    %3235 = vmatpush2.bf16.msra.mxu0 0
    %3236 = vmatprep.subr.bf16.mxu0 0
    %3237 = vmatpush2.bf16.msra.mxu0 0
    %3238 = vmatprep.subr.bf16.mxu0 0
    %3239 = vmatpush2.bf16.msra.mxu0 0
    %3240 = vmatprep.subr.bf16.mxu0 0
    %3241 = vmatpush2.bf16.msra.mxu0 0
    %3242 = vmatprep.subr.bf16.mxu0 0
    %3243 = vmatpush2.bf16.msra.mxu0 0
    %3244 = vmatprep.mubr.bf16.mxu0 0
    %3245 = vmatmul.mubr.bf16.gmra.mxu0 %v3103
    %v3246 = vpop.f32.mrf.mxu0
    %v3247 = vadd.f32 %v3125, %v3246
    %v3248 = vpop.f32.mrf.mxu0
    %v3249 = vadd.f32 %v3129, %v3248
    %v3250 = vpop.f32.mrf.mxu0
    %v3251 = vadd.f32 %v3125, %v3250
    %v3252 = vpop.f32.mrf.mxu0
    %v3253 = vadd.f32 %v3129, %v3252
    %3254 = vdwg.mxu0
    %v3255 = vmax.f32 %v3247, 0.0
    %v3256 = vmax.f32 %v3249, 0.0
    %v3257 = vmax.f32 %v3251, 0.0
    %v3258 = vmax.f32 %v3253, 0.0
    %v3259 = vpack.c.bf16 %v3257, %v3255
    %v3260 = vpack.c.bf16 %v3258, %v3256
    %v3261 = vld [vmem:[#allocation13] sm:$0xf]
    %v3262 = vld [vmem:[#allocation13 + $0x4] sm:$0xf]
    %v3263 = vld [vmem:[#allocation13 + $0x8] sm:$0xf]
    %v3264 = vld [vmem:[#allocation13 + $0xc] sm:$0xf]
    %v3265 = vld [vmem:[#allocation13 + $0x10] sm:$0xf]
    %v3266 = vld [vmem:[#allocation13 + $0x14] sm:$0xf]
    %v3267 = vld [vmem:[#allocation13 + $0x18] sm:$0xf]
    %v3268 = vld [vmem:[#allocation13 + $0x1c] sm:$0xf]
    %v3269 = vld [vmem:[#allocation13 + $0x20] sm:$0xf]
    %v3270 = vld [vmem:[#allocation13 + $0x24] sm:$0xf]
    %v3271 = vld [vmem:[#allocation13 + $0x28] sm:$0xf]
    %v3272 = vld [vmem:[#allocation13 + $0x2c] sm:$0xf]
    %v3273 = vld [vmem:[#allocation13 + $0x30] sm:$0xf]
    %v3274 = vld [vmem:[#allocation13 + $0x34] sm:$0xf]
    %v3275 = vld [vmem:[#allocation13 + $0x38] sm:$0xf]
    %v3276 = vld [vmem:[#allocation13 + $0x3c] sm:$0xf]
    %v3277 = vld [vmem:[#allocation13 + $0x40] sm:$0xf]
    %v3278 = vld [vmem:[#allocation13 + $0x44] sm:$0xf]
    %v3279 = vld [vmem:[#allocation13 + $0x48] sm:$0xf]
    %v3280 = vld [vmem:[#allocation13 + $0x4c] sm:$0xf]
    %v3281 = vld [vmem:[#allocation13 + $0x50] sm:$0xf]
    %v3282 = vld [vmem:[#allocation13 + $0x54] sm:$0xf]
    %v3283 = vld [vmem:[#allocation13 + $0x58] sm:$0xf]
    %v3284 = vld [vmem:[#allocation13 + $0x5c] sm:$0xf]
    %v3285 = vld [vmem:[#allocation13 + $0x60] sm:$0xf]
    %v3286 = vld [vmem:[#allocation13 + $0x64] sm:$0xf]
    %v3287 = vld [vmem:[#allocation13 + $0x68] sm:$0xf]
    %v3288 = vld [vmem:[#allocation13 + $0x6c] sm:$0xf]
    %v3289 = vld [vmem:[#allocation13 + $0x70] sm:$0xf]
    %v3290 = vld [vmem:[#allocation13 + $0x74] sm:$0xf]
    %v3291 = vld [vmem:[#allocation13 + $0x78] sm:$0xf]
    %v3292 = vld [vmem:[#allocation13 + $0x7c] sm:$0xf]
    %v3293 = vlaneseq
    %v3294 = vshrl.u32 %v3293, 7
    %v3295 = vsub.s32 0, %v3294
    %v3296 = vrot.slane %v172, %v3295
    %v3329 = vunpack.c.l.b16 %v3261
    %v3330 = vunpack.c.l.b16 %v3262
    %v3331 = vunpack.c.l.b16 %v3263
    %v3332 = vunpack.c.l.b16 %v3264
    %v3333 = vunpack.c.l.b16 %v3265
    %v3334 = vunpack.c.l.b16 %v3266
    %v3335 = vunpack.c.l.b16 %v3267
    %v3336 = vunpack.c.l.b16 %v3268
    %v3337 = vunpack.c.l.b16 %v3269
    %v3338 = vunpack.c.l.b16 %v3270
    %v3339 = vunpack.c.l.b16 %v3271
    %v3340 = vunpack.c.l.b16 %v3272
    %v3341 = vunpack.c.l.b16 %v3273
    %v3342 = vunpack.c.l.b16 %v3274
    %v3343 = vunpack.c.l.b16 %v3275
    %v3344 = vunpack.c.l.b16 %v3276
    %v3345 = vunpack.c.l.b16 %v3277
    %v3346 = vunpack.c.l.b16 %v3278
    %v3347 = vunpack.c.l.b16 %v3279
    %v3348 = vunpack.c.l.b16 %v3280
    %v3349 = vunpack.c.l.b16 %v3281
    %v3350 = vunpack.c.l.b16 %v3282
    %v3351 = vunpack.c.l.b16 %v3283
    %v3352 = vunpack.c.l.b16 %v3284
    %v3353 = vunpack.c.l.b16 %v3285
    %v3354 = vunpack.c.l.b16 %v3286
    %v3355 = vunpack.c.l.b16 %v3287
    %v3356 = vunpack.c.l.b16 %v3288
    %v3357 = vunpack.c.l.b16 %v3289
    %v3358 = vunpack.c.l.b16 %v3290
    %v3359 = vunpack.c.l.b16 %v3291
    %v3360 = vunpack.c.l.b16 %v3292
    %v3361 = vpack.c.b16 %v3330, %v3329
    %v3362 = vpack.c.b16 %v3332, %v3331
    %v3363 = vpack.c.b16 %v3334, %v3333
    %v3364 = vpack.c.b16 %v3336, %v3335
    %v3365 = vpack.c.b16 %v3338, %v3337
    %v3366 = vpack.c.b16 %v3340, %v3339
    %v3367 = vpack.c.b16 %v3342, %v3341
    %v3368 = vpack.c.b16 %v3344, %v3343
    %v3369 = vpack.c.b16 %v3346, %v3345
    %v3370 = vpack.c.b16 %v3348, %v3347
    %v3371 = vpack.c.b16 %v3350, %v3349
    %v3372 = vpack.c.b16 %v3352, %v3351
    %v3373 = vpack.c.b16 %v3354, %v3353
    %v3374 = vpack.c.b16 %v3356, %v3355
    %v3375 = vpack.c.b16 %v3358, %v3357
    %v3376 = vpack.c.b16 %v3360, %v3359
    %3393 = vmatprep.subr.bf16.mxu0 0
    %3394 = vmatpush1.bf16.msra.mxu0 %v3368
    %3395 = vmatprep.subr.bf16.mxu0 0
    %3396 = vmatpush1.bf16.msra.mxu0 %v3367
    %3397 = vmatprep.subr.bf16.mxu0 0
    %3398 = vmatpush1.bf16.msra.mxu0 %v3366
    %3399 = vmatprep.subr.bf16.mxu0 0
    %3400 = vmatpush1.bf16.msra.mxu0 %v3365
    %3401 = vmatprep.subr.bf16.mxu0 0
    %3402 = vmatpush1.bf16.msra.mxu0 %v3364
    %3403 = vmatprep.subr.bf16.mxu0 0
    %3404 = vmatpush1.bf16.msra.mxu0 %v3363
    %3405 = vmatprep.subr.bf16.mxu0 0
    %3406 = vmatpush1.bf16.msra.mxu0 %v3362
    %3407 = vmatprep.subr.bf16.mxu0 0
    %3408 = vmatpush1.bf16.msra.mxu0 %v3361
    %3409 = vmatprep.subr.bf16.mxu0 0
    %3410 = vmatpush2.bf16.msra.mxu0 %v3376
    %3411 = vmatprep.subr.bf16.mxu0 0
    %3412 = vmatpush2.bf16.msra.mxu0 %v3375
    %3413 = vmatprep.subr.bf16.mxu0 0
    %3414 = vmatpush2.bf16.msra.mxu0 %v3374
    %3415 = vmatprep.subr.bf16.mxu0 0
    %3416 = vmatpush2.bf16.msra.mxu0 %v3373
    %3417 = vmatprep.subr.bf16.mxu0 0
    %3418 = vmatpush2.bf16.msra.mxu0 %v3372
    %3419 = vmatprep.subr.bf16.mxu0 0
    %3420 = vmatpush2.bf16.msra.mxu0 %v3371
    %3421 = vmatprep.subr.bf16.mxu0 0
    %3422 = vmatpush2.bf16.msra.mxu0 %v3370
    %3423 = vmatprep.subr.bf16.mxu0 0
    %3424 = vmatpush2.bf16.msra.mxu0 %v3369
    %3425 = vmatprep.mubr.bf16.mxu0 %v3260
    %3426 = vmatmul.mubr.bf16.gmra.mxu0 %v3259
    %v3427 = vpop.f32.mrf.mxu0
    %v3428 = vadd.f32 %v3296, %v3427
    %v3429 = vpop.f32.mrf.mxu0
    %v3430 = vpop.f32.mrf.mxu0
    %v3431 = vadd.f32 %v3296, %v3430
    %v3432 = vpop.f32.mrf.mxu0
    %3433 = vdwg.mxu0
    %v3434 = vadd.f32 %v3067, %v3428
    %v3435 = vadd.f32 %v3068, %v3431
    %s3436 = scalar_lea.vmem %s12, 16
    %v3437 = vld [vmem:[%s3436] sm:$0xff]
    %v3438 = vld [vmem:[%s3436 + $0x8] sm:$0x7f]
    %3439 = vadd.xlane.f32.xlu0 %v3434
    %v3440 = vpop.xlane.xlu0 %3439
    %3441 = vadd.xlane.f32.xlu0 %v3435
    %v3442 = vpop.xlane.xlu0 %3441
    %v3443 = vmul.f32 %v3440, %v177
    %v3444 = vmul.f32 %v3442, %v177
    %v3445 = vsub.f32 %v3434, %v3443
    %v3446 = vsub.f32 %v3435, %v3444
    %v3447 = vmul.f32 %v3445, %v3445
    %v3448 = vmul.f32 %v3446, %v3446
    %3449 = vadd.xlane.f32.xlu0 %v3447
    %v3450 = vpop.xlane.xlu0 %3449
    %3451 = vadd.xlane.f32.xlu0 %v3448
    %v3452 = vpop.xlane.xlu0 %3451
    %v3453 = vmul.f32 %v3450, %v177
    %v3454 = vmul.f32 %v3452, %v177
    %v3455 = vadd.f32 %v3453, 1e-05
    %v3456 = vadd.f32 %v3454, 1e-05
    %v3457 = vrsqrt.pop %v3455
    %v3458 = vrsqrt.pop %v3456
    %v3459 = vmul.f32 %v3445, %v3457
    %v3460 = vmul.f32 %v3446, %v3458
    %v3461 = vlaneseq
    %v3462 = vshrl.u32 %v3461, 7
    %v3463 = vsub.s32 1, %v3462
    %v3464 = vrot.slane %v3438, %v3463
    %v3465 = vmul.f32 %v3459, %v3464
    %v3466 = vmul.f32 %v3460, %v3464
    %v3467 = vlaneseq
    %v3468 = vshrl.u32 %v3467, 7
    %v3469 = vsub.s32 2, %v3468
    %v3470 = vrot.slane %v3438, %v3469
    %v3471 = vadd.f32 %v3465, %v3470
    %v3472 = vadd.f32 %v3466, %v3470
    %v3473 = vpack.c.bf16 %v3472, %v3471
    %s3474 = scalar_lea.vmem [#allocation2], 192
    %v3475 = vld [vmem:[%s3474] sm:$0xff]
    %v3476 = vld [vmem:[%s3474 + $0x8] sm:$0xf]
    %v3477 = vld [vmem:[%s3474 + $0xc] sm:$0xff]
    %v3478 = vld [vmem:[%s3474 + $0x14] sm:$0xf]
    %v3479 = vld [vmem:[%s3474 + $0x18] sm:$0xff]
    %v3480 = vld [vmem:[%s3474 + $0x20] sm:$0xf]
    %v3481 = vld [vmem:[%s3474 + $0x24] sm:$0xff]
    %v3482 = vld [vmem:[%s3474 + $0x2c] sm:$0xf]
    %v3483 = vld [vmem:[%s3474 + $0x30] sm:$0xff]
    %v3484 = vld [vmem:[%s3474 + $0x38] sm:$0xf]
    %v3485 = vld [vmem:[%s3474 + $0x3c] sm:$0xff]
    %v3486 = vld [vmem:[%s3474 + $0x44] sm:$0xf]
    %v3487 = vld [vmem:[%s3474 + $0x48] sm:$0xff]
    %v3488 = vld [vmem:[%s3474 + $0x50] sm:$0xf]
    %v3489 = vld [vmem:[%s3474 + $0x54] sm:$0xff]
    %v3490 = vld [vmem:[%s3474 + $0x5c] sm:$0xf]
    %v3491 = vld [vmem:[%s3474 + $0x60] sm:$0xff]
    %v3492 = vld [vmem:[%s3474 + $0x68] sm:$0xf]
    %v3493 = vld [vmem:[%s3474 + $0x6c] sm:$0xff]
    %v3494 = vld [vmem:[%s3474 + $0x74] sm:$0xf]
    %v3495 = vld [vmem:[%s3474 + $0x78] sm:$0xff]
    %v3496 = vld [vmem:[%s3474 + $0x80] sm:$0xf]
    %v3497 = vld [vmem:[%s3474 + $0x84] sm:$0xff]
    %v3498 = vld [vmem:[%s3474 + $0x8c] sm:$0xf]
    %v3499 = vld [vmem:[%s3474 + $0x90] sm:$0xff]
    %v3500 = vld [vmem:[%s3474 + $0x98] sm:$0xf]
    %v3501 = vld [vmem:[%s3474 + $0x9c] sm:$0xff]
    %v3502 = vld [vmem:[%s3474 + $0xa4] sm:$0xf]
    %v3503 = vld [vmem:[%s3474 + $0xa8] sm:$0xff]
    %v3504 = vld [vmem:[%s3474 + $0xb0] sm:$0xf]
    %v3505 = vld [vmem:[%s3474 + $0xb4] sm:$0xff]
    %v3506 = vld [vmem:[%s3474 + $0xbc] sm:$0xf]
    %v3539 = vunpack.c.l.b16 %v3475
    %v3540 = vunpack.c.h.b16 %v3475
    %v3541 = vunpack.c.l.b16 %v3476
    %v3542 = vunpack.c.l.b16 %v3477
    %v3543 = vunpack.c.h.b16 %v3477
    %v3544 = vunpack.c.l.b16 %v3478
    %v3545 = vunpack.c.l.b16 %v3479
    %v3546 = vunpack.c.h.b16 %v3479
    %v3547 = vunpack.c.l.b16 %v3480
    %v3548 = vunpack.c.l.b16 %v3481
    %v3549 = vunpack.c.h.b16 %v3481
    %v3550 = vunpack.c.l.b16 %v3482
    %v3551 = vunpack.c.l.b16 %v3483
    %v3552 = vunpack.c.h.b16 %v3483
    %v3553 = vunpack.c.l.b16 %v3484
    %v3554 = vunpack.c.l.b16 %v3485
    %v3555 = vunpack.c.h.b16 %v3485
    %v3556 = vunpack.c.l.b16 %v3486
    %v3557 = vunpack.c.l.b16 %v3487
    %v3558 = vunpack.c.h.b16 %v3487
    %v3559 = vunpack.c.l.b16 %v3488
    %v3560 = vunpack.c.l.b16 %v3489
    %v3561 = vunpack.c.h.b16 %v3489
    %v3562 = vunpack.c.l.b16 %v3490
    %v3563 = vunpack.c.l.b16 %v3491
    %v3564 = vunpack.c.h.b16 %v3491
    %v3565 = vunpack.c.l.b16 %v3492
    %v3566 = vunpack.c.l.b16 %v3493
    %v3567 = vunpack.c.h.b16 %v3493
    %v3568 = vunpack.c.l.b16 %v3494
    %v3569 = vunpack.c.l.b16 %v3495
    %v3570 = vunpack.c.h.b16 %v3495
    %v3571 = vunpack.c.l.b16 %v3496
    %v3572 = vunpack.c.l.b16 %v3497
    %v3573 = vunpack.c.h.b16 %v3497
    %v3574 = vunpack.c.l.b16 %v3498
    %v3575 = vunpack.c.l.b16 %v3499
    %v3576 = vunpack.c.h.b16 %v3499
    %v3577 = vunpack.c.l.b16 %v3500
    %v3578 = vunpack.c.l.b16 %v3501
    %v3579 = vunpack.c.h.b16 %v3501
    %v3580 = vunpack.c.l.b16 %v3502
    %v3581 = vunpack.c.l.b16 %v3503
    %v3582 = vunpack.c.h.b16 %v3503
    %v3583 = vunpack.c.l.b16 %v3504
    %v3584 = vunpack.c.l.b16 %v3505
    %v3585 = vunpack.c.h.b16 %v3505
    %v3586 = vunpack.c.l.b16 %v3506
    %v3587 = vpack.c.b16 %v3542, %v3539
    %v3588 = vpack.c.b16 %v3543, %v3540
    %v3589 = vpack.c.b16 %v3544, %v3541
    %v3590 = vpack.c.b16 %v3548, %v3545
    %v3591 = vpack.c.b16 %v3549, %v3546
    %v3592 = vpack.c.b16 %v3550, %v3547
    %v3593 = vpack.c.b16 %v3554, %v3551
    %v3594 = vpack.c.b16 %v3555, %v3552
    %v3595 = vpack.c.b16 %v3556, %v3553
    %v3596 = vpack.c.b16 %v3560, %v3557
    %v3597 = vpack.c.b16 %v3561, %v3558
    %v3598 = vpack.c.b16 %v3562, %v3559
    %v3599 = vpack.c.b16 %v3566, %v3563
    %v3600 = vpack.c.b16 %v3567, %v3564
    %v3601 = vpack.c.b16 %v3568, %v3565
    %v3602 = vpack.c.b16 %v3572, %v3569
    %v3603 = vpack.c.b16 %v3573, %v3570
    %v3604 = vpack.c.b16 %v3574, %v3571
    %v3605 = vpack.c.b16 %v3578, %v3575
    %v3606 = vpack.c.b16 %v3579, %v3576
    %v3607 = vpack.c.b16 %v3580, %v3577
    %v3608 = vpack.c.b16 %v3584, %v3581
    %v3609 = vpack.c.b16 %v3585, %v3582
    %v3610 = vpack.c.b16 %v3586, %v3583
    %3635 = vmatprep.subr.bf16.mxu0 %v3609
    %3636 = vmatpush1.bf16.msra.mxu0 %v3608
    %3637 = vmatprep.subr.bf16.mxu0 %v3606
    %3638 = vmatpush1.bf16.msra.mxu0 %v3605
    %3639 = vmatprep.subr.bf16.mxu0 %v3603
    %3640 = vmatpush1.bf16.msra.mxu0 %v3602
    %3641 = vmatprep.subr.bf16.mxu0 %v3600
    %3642 = vmatpush1.bf16.msra.mxu0 %v3599
    %3643 = vmatprep.subr.bf16.mxu0 %v3597
    %3644 = vmatpush1.bf16.msra.mxu0 %v3596
    %3645 = vmatprep.subr.bf16.mxu0 %v3594
    %3646 = vmatpush1.bf16.msra.mxu0 %v3593
    %3647 = vmatprep.subr.bf16.mxu0 %v3591
    %3648 = vmatpush1.bf16.msra.mxu0 %v3590
    %3649 = vmatprep.subr.bf16.mxu0 %v3588
    %3650 = vmatpush1.bf16.msra.mxu0 %v3587
    %3651 = vmatprep.subr.bf16.mxu0 0
    %3652 = vmatpush2.bf16.msra.mxu0 0
    %3653 = vmatprep.subr.bf16.mxu0 0
    %3654 = vmatpush2.bf16.msra.mxu0 0
    %3655 = vmatprep.subr.bf16.mxu0 0
    %3656 = vmatpush2.bf16.msra.mxu0 0
    %3657 = vmatprep.subr.bf16.mxu0 0
    %3658 = vmatpush2.bf16.msra.mxu0 0
    %3659 = vmatprep.subr.bf16.mxu0 0
    %3660 = vmatpush2.bf16.msra.mxu0 0
    %3661 = vmatprep.subr.bf16.mxu0 0
    %3662 = vmatpush2.bf16.msra.mxu0 0
    %3663 = vmatprep.subr.bf16.mxu0 0
    %3664 = vmatpush2.bf16.msra.mxu0 0
    %3665 = vmatprep.subr.bf16.mxu0 0
    %3666 = vmatpush2.bf16.msra.mxu0 0
    %3667 = vmatprep.mubr.bf16.mxu0 0
    %3668 = vmatmul.mubr.bf16.gmra.mxu0 %v3473
    %v3669 = vpop.f32.mrf.mxu0
    %v3670 = vadd.f32 0.0, %v3669
    %v3671 = vpop.f32.mrf.mxu0
    %v3672 = vadd.f32 0.0, %v3671
    %v3673 = vpop.f32.mrf.mxu0
    %v3674 = vadd.f32 0.0, %v3673
    %v3675 = vpop.f32.mrf.mxu0
    %v3676 = vadd.f32 0.0, %v3675
    %3677 = vdwg.mxu0
    %3678 = vmatprep.subr.bf16.mxu0 0
    %3679 = vmatpush1.bf16.msra.mxu0 %v3610
    %3680 = vmatprep.subr.bf16.mxu0 0
    %3681 = vmatpush1.bf16.msra.mxu0 %v3607
    %3682 = vmatprep.subr.bf16.mxu0 0
    %3683 = vmatpush1.bf16.msra.mxu0 %v3604
    %3684 = vmatprep.subr.bf16.mxu0 0
    %3685 = vmatpush1.bf16.msra.mxu0 %v3601
    %3686 = vmatprep.subr.bf16.mxu0 0
    %3687 = vmatpush1.bf16.msra.mxu0 %v3598
    %3688 = vmatprep.subr.bf16.mxu0 0
    %3689 = vmatpush1.bf16.msra.mxu0 %v3595
    %3690 = vmatprep.subr.bf16.mxu0 0
    %3691 = vmatpush1.bf16.msra.mxu0 %v3592
    %3692 = vmatprep.subr.bf16.mxu0 0
    %3693 = vmatpush1.bf16.msra.mxu0 %v3589
    %3694 = vmatprep.subr.bf16.mxu0 0
    %3695 = vmatpush2.bf16.msra.mxu0 0
    %3696 = vmatprep.subr.bf16.mxu0 0
    %3697 = vmatpush2.bf16.msra.mxu0 0
    %3698 = vmatprep.subr.bf16.mxu0 0
    %3699 = vmatpush2.bf16.msra.mxu0 0
    %3700 = vmatprep.subr.bf16.mxu0 0
    %3701 = vmatpush2.bf16.msra.mxu0 0
    %3702 = vmatprep.subr.bf16.mxu0 0
    %3703 = vmatpush2.bf16.msra.mxu0 0
    %3704 = vmatprep.subr.bf16.mxu0 0
    %3705 = vmatpush2.bf16.msra.mxu0 0
    %3706 = vmatprep.subr.bf16.mxu0 0
    %3707 = vmatpush2.bf16.msra.mxu0 0
    %3708 = vmatprep.subr.bf16.mxu0 0
    %3709 = vmatpush2.bf16.msra.mxu0 0
    %3710 = vmatprep.mubr.bf16.mxu0 0
    %3711 = vmatmul.mubr.bf16.gmra.mxu0 %v3473
    %v3712 = vpop.f32.mrf.mxu0
    %v3713 = vadd.f32 0.0, %v3712
    %v3714 = vpop.f32.mrf.mxu0
    %v3715 = vpop.f32.mrf.mxu0
    %v3716 = vadd.f32 0.0, %v3715
    %v3717 = vpop.f32.mrf.mxu0
    %3718 = vdwg.mxu0
    %v3719 = vlaneseq
    %v3720 = vshrl.u32 %v3719, 7
    %v3721 = vsub.s32 0, %v3720
    %v3722 = vrot.slane %v3437, %v3721
    %v3723 = vadd.f32 %v3670, %v3722
    %v3724 = vadd.f32 %v3674, %v3722
    %v3725 = vmul.f32 %v3723, 0.17677669
    %v3726 = vmul.f32 %v3724, 0.17677669
    %v3727 = vlaneseq
    %v3728 = vshrl.u32 %v3727, 7
    %v3729 = vsub.s32 1, %v3728
    %v3730 = vrot.slane %v3437, %v3729
    %v3731 = vadd.f32 %v3672, %v3730
    %v3732 = vadd.f32 %v3676, %v3730
    %v3733 = vlaneseq
    %v3734 = vshrl.u32 %v3733, 7
    %v3735 = vsub.s32 2, %v3734
    %v3736 = vrot.slane %v3437, %v3735
    %v3737 = vadd.f32 %v3713, %v3736
    %v3738 = vadd.f32 %v3716, %v3736
    %s3739 = scalar_lea.vmem [#allocation5], 64
    %v3740 = vld [vmem:[%s3739] sm:$0xf]
    %v3741 = vld [vmem:[%s3739 + $0x4] sm:$0xf]
    %v3742 = vld [vmem:[%s3739 + $0x8] sm:$0xf]
    %v3743 = vld [vmem:[%s3739 + $0xc] sm:$0xf]
    %v3744 = vld [vmem:[%s3739 + $0x10] sm:$0xf]
    %v3745 = vld [vmem:[%s3739 + $0x14] sm:$0xf]
    %v3746 = vld [vmem:[%s3739 + $0x18] sm:$0xf]
    %v3747 = vld [vmem:[%s3739 + $0x1c] sm:$0xf]
    %v3748 = vld [vmem:[%s3739 + $0x20] sm:$0xf]
    %v3749 = vld [vmem:[%s3739 + $0x24] sm:$0xf]
    %v3750 = vld [vmem:[%s3739 + $0x28] sm:$0xf]
    %v3751 = vld [vmem:[%s3739 + $0x2c] sm:$0xf]
    %v3752 = vld [vmem:[%s3739 + $0x30] sm:$0xf]
    %v3753 = vld [vmem:[%s3739 + $0x34] sm:$0xf]
    %v3754 = vld [vmem:[%s3739 + $0x38] sm:$0xf]
    %v3755 = vld [vmem:[%s3739 + $0x3c] sm:$0xf]
    %v3756 = vpack.c.bf16 %v3726, %v3725
    %v3758 = vunpack.c.l.b16 %v3756
    %v3759 = vunpack.c.h.b16 %v3756
    %v3760 = vpack.c.b16 %v3758, %v3758
    %v3761 = vpack.c.b16 %v3759, %v3759
    %v3762 = vpack.c.bf16 %v3732, %v3731
    %v3764 = vunpack.c.l.b16 %v3762
    %v3765 = vunpack.c.h.b16 %v3762
    %v3766 = vpack.c.b16 %v3764, %v3764
    %v3767 = vpack.c.b16 %v3765, %v3765
    %v3768 = vpack.c.bf16 %v3738, %v3737
    %v3770 = vunpack.c.l.b16 %v3768
    %v3771 = vunpack.c.h.b16 %v3768
    %v3772 = vpack.c.b16 %v3770, %v3770
    %v3773 = vpack.c.b16 %v3771, %v3771
    %v3775 = vsel %vm507, %v3760, 0
    %v3778 = vsel %vm507, %v3766, 0
    %3780 = vmatprep.subr.bf16.mxu0 0
    %3781 = vmatpush1.bf16.xpose.msra.mxu0 0
    %3782 = vmatprep.subr.bf16.mxu0 0
    %3783 = vmatpush1.bf16.xpose.msra.mxu0 0
    %3784 = vmatprep.subr.bf16.mxu0 0
    %3785 = vmatpush1.bf16.xpose.msra.mxu0 0
    %3786 = vmatprep.subr.bf16.mxu0 0
    %3787 = vmatpush1.bf16.xpose.msra.mxu0 0
    %3788 = vmatprep.subr.bf16.mxu0 0
    %3789 = vmatpush1.bf16.xpose.msra.mxu0 0
    %3790 = vmatprep.subr.bf16.mxu0 0
    %3791 = vmatpush1.bf16.xpose.msra.mxu0 0
    %3792 = vmatprep.subr.bf16.mxu0 0
    %3793 = vmatpush1.bf16.xpose.msra.mxu0 0
    %3794 = vmatprep.subr.bf16.mxu0 0
    %3795 = vmatpush1.bf16.xpose.msra.mxu0 %v3778
    %3796 = vmatprep.subr.bf16.mxu0 0
    %3797 = vmatpush2.bf16.xpose.msra.mxu0 0
    %3798 = vmatprep.subr.bf16.mxu0 0
    %3799 = vmatpush2.bf16.xpose.msra.mxu0 0
    %3800 = vmatprep.subr.bf16.mxu0 0
    %3801 = vmatpush2.bf16.xpose.msra.mxu0 0
    %3802 = vmatprep.subr.bf16.mxu0 0
    %3803 = vmatpush2.bf16.xpose.msra.mxu0 0
    %3804 = vmatprep.subr.bf16.mxu0 0
    %3805 = vmatpush2.bf16.xpose.msra.mxu0 0
    %3806 = vmatprep.subr.bf16.mxu0 0
    %3807 = vmatpush2.bf16.xpose.msra.mxu0 0
    %3808 = vmatprep.subr.bf16.mxu0 0
    %3809 = vmatpush2.bf16.xpose.msra.mxu0 0
    %3810 = vmatprep.subr.bf16.mxu0 0
    %3811 = vmatpush2.bf16.xpose.msra.mxu0 0
    %3812 = vmatprep.mubr.bf16.mxu0 0
    %3813 = vmatmul.mubr.bf16.gmra.mxu0 %v3775
    %v3814 = vpop.f32.mrf.mxu0
    %v3815 = vadd.f32 %v164, %v3814
    %v3816 = vpop.f32.mrf.mxu0
    %v3817 = vpop.f32.mrf.mxu0
    %v3818 = vpop.f32.mrf.mxu0
    %3819 = vdwg.mxu0
    %v3821 = vsel %vm507, %v3761, 0
    %v3824 = vsel %vm507, %v3767, 0
    %3826 = vmatprep.subr.bf16.mxu0 0
    %3827 = vmatpush1.bf16.xpose.msra.mxu0 0
    %3828 = vmatprep.subr.bf16.mxu0 0
    %3829 = vmatpush1.bf16.xpose.msra.mxu0 0
    %3830 = vmatprep.subr.bf16.mxu0 0
    %3831 = vmatpush1.bf16.xpose.msra.mxu0 0
    %3832 = vmatprep.subr.bf16.mxu0 0
    %3833 = vmatpush1.bf16.xpose.msra.mxu0 0
    %3834 = vmatprep.subr.bf16.mxu0 0
    %3835 = vmatpush1.bf16.xpose.msra.mxu0 0
    %3836 = vmatprep.subr.bf16.mxu0 0
    %3837 = vmatpush1.bf16.xpose.msra.mxu0 0
    %3838 = vmatprep.subr.bf16.mxu0 0
    %3839 = vmatpush1.bf16.xpose.msra.mxu0 0
    %3840 = vmatprep.subr.bf16.mxu0 0
    %3841 = vmatpush1.bf16.xpose.msra.mxu0 %v3824
    %3842 = vmatprep.subr.bf16.mxu0 0
    %3843 = vmatpush2.bf16.xpose.msra.mxu0 0
    %3844 = vmatprep.subr.bf16.mxu0 0
    %3845 = vmatpush2.bf16.xpose.msra.mxu0 0
    %3846 = vmatprep.subr.bf16.mxu0 0
    %3847 = vmatpush2.bf16.xpose.msra.mxu0 0
    %3848 = vmatprep.subr.bf16.mxu0 0
    %3849 = vmatpush2.bf16.xpose.msra.mxu0 0
    %3850 = vmatprep.subr.bf16.mxu0 0
    %3851 = vmatpush2.bf16.xpose.msra.mxu0 0
    %3852 = vmatprep.subr.bf16.mxu0 0
    %3853 = vmatpush2.bf16.xpose.msra.mxu0 0
    %3854 = vmatprep.subr.bf16.mxu0 0
    %3855 = vmatpush2.bf16.xpose.msra.mxu0 0
    %3856 = vmatprep.subr.bf16.mxu0 0
    %3857 = vmatpush2.bf16.xpose.msra.mxu0 0
    %3858 = vmatprep.mubr.bf16.mxu0 0
    %3859 = vmatmul.mubr.bf16.gmra.mxu0 %v3821
    %v3860 = vpop.f32.mrf.mxu0
    %v3861 = vadd.f32 %v165, %v3860
    %v3862 = vpop.f32.mrf.mxu0
    %v3863 = vpop.f32.mrf.mxu0
    %v3864 = vpop.f32.mrf.mxu0
    %3865 = vdwg.mxu0
    %v3866 = vsel %vm600, %v3815, -inf
    %3867 = vmax.xlane.f32.xlu0 %v3866
    %v3868 = vpop.xlane.xlu0 %3867
    %v3869 = vsel %vm600, %v3861, -inf
    %3870 = vmax.xlane.f32.xlu0 %v3869
    %v3871 = vpop.xlane.xlu0 %3870
    %v3872 = vsub.f32 %v3815, %v3868
    %v3873 = vsub.f32 %v3861, %v3871
    %v3874 = vmul.f32 %v3872, 1.442695
    %v3875 = vpow.pop %v3874
    %v3876 = vmul.f32 %v3873, 1.442695
    %v3877 = vpow.pop %v3876
    %v3878 = vsel %vm600, %v3875, 0.0
    %3879 = vadd.xlane.f32.xlu0 %v3878
    %v3880 = vpop.xlane.xlu0 %3879
    %v3881 = vsel %vm600, %v3877, 0.0
    %3882 = vadd.xlane.f32.xlu0 %v3881
    %v3883 = vpop.xlane.xlu0 %3882
    %v3884 = vrcp.pop %v3880
    %v3885 = vrcp.pop %v3883
    %v3886 = vmul.f32 %v3875, %v3884
    %v3887 = vmul.f32 %v3877, %v3885
    %v3888 = vpack.c.bf16 %v3886, %v3886
    %v3889 = vpack.c.bf16 %v3887, %v3887
    %v3891 = vsel %vm600, %v3888, 0
    %v3894 = vsel %vm628, %v3772, 0
    %3896 = vmatprep.subr.bf16.mxu0 0
    %3897 = vmatpush1.bf16.msra.mxu0 0
    %3898 = vmatprep.subr.bf16.mxu0 0
    %3899 = vmatpush1.bf16.msra.mxu0 0
    %3900 = vmatprep.subr.bf16.mxu0 0
    %3901 = vmatpush1.bf16.msra.mxu0 0
    %3902 = vmatprep.subr.bf16.mxu0 0
    %3903 = vmatpush1.bf16.msra.mxu0 0
    %3904 = vmatprep.subr.bf16.mxu0 0
    %3905 = vmatpush1.bf16.msra.mxu0 0
    %3906 = vmatprep.subr.bf16.mxu0 0
    %3907 = vmatpush1.bf16.msra.mxu0 0
    %3908 = vmatprep.subr.bf16.mxu0 0
    %3909 = vmatpush1.bf16.msra.mxu0 0
    %3910 = vmatprep.subr.bf16.mxu0 0
    %3911 = vmatpush1.bf16.msra.mxu0 %v3894
    %3912 = vmatprep.subr.bf16.mxu0 0
    %3913 = vmatpush2.bf16.msra.mxu0 0
    %3914 = vmatprep.subr.bf16.mxu0 0
    %3915 = vmatpush2.bf16.msra.mxu0 0
    %3916 = vmatprep.subr.bf16.mxu0 0
    %3917 = vmatpush2.bf16.msra.mxu0 0
    %3918 = vmatprep.subr.bf16.mxu0 0
    %3919 = vmatpush2.bf16.msra.mxu0 0
    %3920 = vmatprep.subr.bf16.mxu0 0
    %3921 = vmatpush2.bf16.msra.mxu0 0
    %3922 = vmatprep.subr.bf16.mxu0 0
    %3923 = vmatpush2.bf16.msra.mxu0 0
    %3924 = vmatprep.subr.bf16.mxu0 0
    %3925 = vmatpush2.bf16.msra.mxu0 0
    %3926 = vmatprep.subr.bf16.mxu0 0
    %3927 = vmatpush2.bf16.msra.mxu0 0
    %3928 = vmatprep.mubr.bf16.mxu0 0
    %3929 = vmatmul.mubr.bf16.gmra.mxu0 %v3891
    %v3930 = vpop.f32.mrf.mxu0
    %v3931 = vadd.f32 0.0, %v3930
    %v3932 = vpop.f32.mrf.mxu0
    %v3933 = vpop.f32.mrf.mxu0
    %v3934 = vpop.f32.mrf.mxu0
    %3935 = vdwg.mxu0
    %v3937 = vsel %vm600, %v3889, 0
    %v3940 = vsel %vm628, %v3773, 0
    %3942 = vmatprep.subr.bf16.mxu0 0
    %3943 = vmatpush1.bf16.msra.mxu0 0
    %3944 = vmatprep.subr.bf16.mxu0 0
    %3945 = vmatpush1.bf16.msra.mxu0 0
    %3946 = vmatprep.subr.bf16.mxu0 0
    %3947 = vmatpush1.bf16.msra.mxu0 0
    %3948 = vmatprep.subr.bf16.mxu0 0
    %3949 = vmatpush1.bf16.msra.mxu0 0
    %3950 = vmatprep.subr.bf16.mxu0 0
    %3951 = vmatpush1.bf16.msra.mxu0 0
    %3952 = vmatprep.subr.bf16.mxu0 0
    %3953 = vmatpush1.bf16.msra.mxu0 0
    %3954 = vmatprep.subr.bf16.mxu0 0
    %3955 = vmatpush1.bf16.msra.mxu0 0
    %3956 = vmatprep.subr.bf16.mxu0 0
    %3957 = vmatpush1.bf16.msra.mxu0 %v3940
    %3958 = vmatprep.subr.bf16.mxu0 0
    %3959 = vmatpush2.bf16.msra.mxu0 0
    %3960 = vmatprep.subr.bf16.mxu0 0
    %3961 = vmatpush2.bf16.msra.mxu0 0
    %3962 = vmatprep.subr.bf16.mxu0 0
    %3963 = vmatpush2.bf16.msra.mxu0 0
    %3964 = vmatprep.subr.bf16.mxu0 0
    %3965 = vmatpush2.bf16.msra.mxu0 0
    %3966 = vmatprep.subr.bf16.mxu0 0
    %3967 = vmatpush2.bf16.msra.mxu0 0
    %3968 = vmatprep.subr.bf16.mxu0 0
    %3969 = vmatpush2.bf16.msra.mxu0 0
    %3970 = vmatprep.subr.bf16.mxu0 0
    %3971 = vmatpush2.bf16.msra.mxu0 0
    %3972 = vmatprep.subr.bf16.mxu0 0
    %3973 = vmatpush2.bf16.msra.mxu0 0
    %3974 = vmatprep.mubr.bf16.mxu0 0
    %3975 = vmatmul.mubr.bf16.gmra.mxu0 %v3937
    %v3976 = vpop.f32.mrf.mxu0
    %v3977 = vadd.f32 0.0, %v3976
    %v3978 = vpop.f32.mrf.mxu0
    %v3979 = vpop.f32.mrf.mxu0
    %v3980 = vpop.f32.mrf.mxu0
    %3981 = vdwg.mxu0
    %v3982 = vpack.c.bf16 %v3977, %v3931
    %3983 = vrot.lane.b32.xlu0 %v3760, 96
    %v3984 = vpop.permute.xlu0 %3983
    %3985 = vrot.lane.b32.xlu0 %v3766, 96
    %v3986 = vpop.permute.xlu0 %3985
    %v3988 = vsel %vm507, %v3984, 0
    %v3991 = vsel %vm507, %v3986, 0
    %3993 = vmatprep.subr.bf16.mxu0 0
    %3994 = vmatpush1.bf16.xpose.msra.mxu0 0
    %3995 = vmatprep.subr.bf16.mxu0 0
    %3996 = vmatpush1.bf16.xpose.msra.mxu0 0
    %3997 = vmatprep.subr.bf16.mxu0 0
    %3998 = vmatpush1.bf16.xpose.msra.mxu0 0
    %3999 = vmatprep.subr.bf16.mxu0 0
    %4000 = vmatpush1.bf16.xpose.msra.mxu0 0
    %4001 = vmatprep.subr.bf16.mxu0 0
    %4002 = vmatpush1.bf16.xpose.msra.mxu0 0
    %4003 = vmatprep.subr.bf16.mxu0 0
    %4004 = vmatpush1.bf16.xpose.msra.mxu0 0
    %4005 = vmatprep.subr.bf16.mxu0 0
    %4006 = vmatpush1.bf16.xpose.msra.mxu0 0
    %4007 = vmatprep.subr.bf16.mxu0 0
    %4008 = vmatpush1.bf16.xpose.msra.mxu0 %v3991
    %4009 = vmatprep.subr.bf16.mxu0 0
    %4010 = vmatpush2.bf16.xpose.msra.mxu0 0
    %4011 = vmatprep.subr.bf16.mxu0 0
    %4012 = vmatpush2.bf16.xpose.msra.mxu0 0
    %4013 = vmatprep.subr.bf16.mxu0 0
    %4014 = vmatpush2.bf16.xpose.msra.mxu0 0
    %4015 = vmatprep.subr.bf16.mxu0 0
    %4016 = vmatpush2.bf16.xpose.msra.mxu0 0
    %4017 = vmatprep.subr.bf16.mxu0 0
    %4018 = vmatpush2.bf16.xpose.msra.mxu0 0
    %4019 = vmatprep.subr.bf16.mxu0 0
    %4020 = vmatpush2.bf16.xpose.msra.mxu0 0
    %4021 = vmatprep.subr.bf16.mxu0 0
    %4022 = vmatpush2.bf16.xpose.msra.mxu0 0
    %4023 = vmatprep.subr.bf16.mxu0 0
    %4024 = vmatpush2.bf16.xpose.msra.mxu0 0
    %4025 = vmatprep.mubr.bf16.mxu0 0
    %4026 = vmatmul.mubr.bf16.gmra.mxu0 %v3988
    %v4027 = vpop.f32.mrf.mxu0
    %v4028 = vadd.f32 %v164, %v4027
    %v4029 = vpop.f32.mrf.mxu0
    %v4030 = vpop.f32.mrf.mxu0
    %v4031 = vpop.f32.mrf.mxu0
    %4032 = vdwg.mxu0
    %4033 = vrot.lane.b32.xlu0 %v3761, 96
    %v4034 = vpop.permute.xlu0 %4033
    %4035 = vrot.lane.b32.xlu0 %v3767, 96
    %v4036 = vpop.permute.xlu0 %4035
    %v4038 = vsel %vm507, %v4034, 0
    %v4041 = vsel %vm507, %v4036, 0
    %4043 = vmatprep.subr.bf16.mxu0 0
    %4044 = vmatpush1.bf16.xpose.msra.mxu0 0
    %4045 = vmatprep.subr.bf16.mxu0 0
    %4046 = vmatpush1.bf16.xpose.msra.mxu0 0
    %4047 = vmatprep.subr.bf16.mxu0 0
    %4048 = vmatpush1.bf16.xpose.msra.mxu0 0
    %4049 = vmatprep.subr.bf16.mxu0 0
    %4050 = vmatpush1.bf16.xpose.msra.mxu0 0
    %4051 = vmatprep.subr.bf16.mxu0 0
    %4052 = vmatpush1.bf16.xpose.msra.mxu0 0
    %4053 = vmatprep.subr.bf16.mxu0 0
    %4054 = vmatpush1.bf16.xpose.msra.mxu0 0
    %4055 = vmatprep.subr.bf16.mxu0 0
    %4056 = vmatpush1.bf16.xpose.msra.mxu0 0
    %4057 = vmatprep.subr.bf16.mxu0 0
    %4058 = vmatpush1.bf16.xpose.msra.mxu0 %v4041
    %4059 = vmatprep.subr.bf16.mxu0 0
    %4060 = vmatpush2.bf16.xpose.msra.mxu0 0
    %4061 = vmatprep.subr.bf16.mxu0 0
    %4062 = vmatpush2.bf16.xpose.msra.mxu0 0
    %4063 = vmatprep.subr.bf16.mxu0 0
    %4064 = vmatpush2.bf16.xpose.msra.mxu0 0
    %4065 = vmatprep.subr.bf16.mxu0 0
    %4066 = vmatpush2.bf16.xpose.msra.mxu0 0
    %4067 = vmatprep.subr.bf16.mxu0 0
    %4068 = vmatpush2.bf16.xpose.msra.mxu0 0
    %4069 = vmatprep.subr.bf16.mxu0 0
    %4070 = vmatpush2.bf16.xpose.msra.mxu0 0
    %4071 = vmatprep.subr.bf16.mxu0 0
    %4072 = vmatpush2.bf16.xpose.msra.mxu0 0
    %4073 = vmatprep.subr.bf16.mxu0 0
    %4074 = vmatpush2.bf16.xpose.msra.mxu0 0
    %4075 = vmatprep.mubr.bf16.mxu0 0
    %4076 = vmatmul.mubr.bf16.gmra.mxu0 %v4038
    %v4077 = vpop.f32.mrf.mxu0
    %v4078 = vadd.f32 %v165, %v4077
    %v4079 = vpop.f32.mrf.mxu0
    %v4080 = vpop.f32.mrf.mxu0
    %v4081 = vpop.f32.mrf.mxu0
    %4082 = vdwg.mxu0
    %v4083 = vsel %vm600, %v4028, -inf
    %4084 = vmax.xlane.f32.xlu0 %v4083
    %v4085 = vpop.xlane.xlu0 %4084
    %v4086 = vsel %vm600, %v4078, -inf
    %4087 = vmax.xlane.f32.xlu0 %v4086
    %v4088 = vpop.xlane.xlu0 %4087
    %v4089 = vsub.f32 %v4028, %v4085
    %v4090 = vsub.f32 %v4078, %v4088
    %v4091 = vmul.f32 %v4089, 1.442695
    %v4092 = vpow.pop %v4091
    %v4093 = vmul.f32 %v4090, 1.442695
    %v4094 = vpow.pop %v4093
    %v4095 = vsel %vm600, %v4092, 0.0
    %4096 = vadd.xlane.f32.xlu0 %v4095
    %v4097 = vpop.xlane.xlu0 %4096
    %v4098 = vsel %vm600, %v4094, 0.0
    %4099 = vadd.xlane.f32.xlu0 %v4098
    %v4100 = vpop.xlane.xlu0 %4099
    %v4101 = vrcp.pop %v4097
    %v4102 = vrcp.pop %v4100
    %v4103 = vmul.f32 %v4092, %v4101
    %v4104 = vmul.f32 %v4094, %v4102
    %v4105 = vpack.c.bf16 %v4103, %v4103
    %v4106 = vpack.c.bf16 %v4104, %v4104
    %4107 = vrot.lane.b32.xlu0 %v3772, 96
    %v4108 = vpop.permute.xlu0 %4107
    %v4110 = vsel %vm600, %v4105, 0
    %v4113 = vsel %vm628, %v4108, 0
    %4115 = vmatprep.subr.bf16.mxu0 0
    %4116 = vmatpush1.bf16.msra.mxu0 0
    %4117 = vmatprep.subr.bf16.mxu0 0
    %4118 = vmatpush1.bf16.msra.mxu0 0
    %4119 = vmatprep.subr.bf16.mxu0 0
    %4120 = vmatpush1.bf16.msra.mxu0 0
    %4121 = vmatprep.subr.bf16.mxu0 0
    %4122 = vmatpush1.bf16.msra.mxu0 0
    %4123 = vmatprep.subr.bf16.mxu0 0
    %4124 = vmatpush1.bf16.msra.mxu0 0
    %4125 = vmatprep.subr.bf16.mxu0 0
    %4126 = vmatpush1.bf16.msra.mxu0 0
    %4127 = vmatprep.subr.bf16.mxu0 0
    %4128 = vmatpush1.bf16.msra.mxu0 0
    %4129 = vmatprep.subr.bf16.mxu0 0
    %4130 = vmatpush1.bf16.msra.mxu0 %v4113
    %4131 = vmatprep.subr.bf16.mxu0 0
    %4132 = vmatpush2.bf16.msra.mxu0 0
    %4133 = vmatprep.subr.bf16.mxu0 0
    %4134 = vmatpush2.bf16.msra.mxu0 0
    %4135 = vmatprep.subr.bf16.mxu0 0
    %4136 = vmatpush2.bf16.msra.mxu0 0
    %4137 = vmatprep.subr.bf16.mxu0 0
    %4138 = vmatpush2.bf16.msra.mxu0 0
    %4139 = vmatprep.subr.bf16.mxu0 0
    %4140 = vmatpush2.bf16.msra.mxu0 0
    %4141 = vmatprep.subr.bf16.mxu0 0
    %4142 = vmatpush2.bf16.msra.mxu0 0
    %4143 = vmatprep.subr.bf16.mxu0 0
    %4144 = vmatpush2.bf16.msra.mxu0 0
    %4145 = vmatprep.subr.bf16.mxu0 0
    %4146 = vmatpush2.bf16.msra.mxu0 0
    %4147 = vmatprep.mubr.bf16.mxu0 0
    %4148 = vmatmul.mubr.bf16.gmra.mxu0 %v4110
    %v4149 = vpop.f32.mrf.mxu0
    %v4150 = vadd.f32 0.0, %v4149
    %v4151 = vpop.f32.mrf.mxu0
    %v4152 = vpop.f32.mrf.mxu0
    %v4153 = vpop.f32.mrf.mxu0
    %4154 = vdwg.mxu0
    %4155 = vrot.lane.b32.xlu0 %v3773, 96
    %v4156 = vpop.permute.xlu0 %4155
    %v4158 = vsel %vm600, %v4106, 0
    %v4161 = vsel %vm628, %v4156, 0
    %4163 = vmatprep.subr.bf16.mxu0 0
    %4164 = vmatpush1.bf16.msra.mxu0 0
    %4165 = vmatprep.subr.bf16.mxu0 0
    %4166 = vmatpush1.bf16.msra.mxu0 0
    %4167 = vmatprep.subr.bf16.mxu0 0
    %4168 = vmatpush1.bf16.msra.mxu0 0
    %4169 = vmatprep.subr.bf16.mxu0 0
    %4170 = vmatpush1.bf16.msra.mxu0 0
    %4171 = vmatprep.subr.bf16.mxu0 0
    %4172 = vmatpush1.bf16.msra.mxu0 0
    %4173 = vmatprep.subr.bf16.mxu0 0
    %4174 = vmatpush1.bf16.msra.mxu0 0
    %4175 = vmatprep.subr.bf16.mxu0 0
    %4176 = vmatpush1.bf16.msra.mxu0 0
    %4177 = vmatprep.subr.bf16.mxu0 0
    %4178 = vmatpush1.bf16.msra.mxu0 %v4161
    %4179 = vmatprep.subr.bf16.mxu0 0
    %4180 = vmatpush2.bf16.msra.mxu0 0
    %4181 = vmatprep.subr.bf16.mxu0 0
    %4182 = vmatpush2.bf16.msra.mxu0 0
    %4183 = vmatprep.subr.bf16.mxu0 0
    %4184 = vmatpush2.bf16.msra.mxu0 0
    %4185 = vmatprep.subr.bf16.mxu0 0
    %4186 = vmatpush2.bf16.msra.mxu0 0
    %4187 = vmatprep.subr.bf16.mxu0 0
    %4188 = vmatpush2.bf16.msra.mxu0 0
    %4189 = vmatprep.subr.bf16.mxu0 0
    %4190 = vmatpush2.bf16.msra.mxu0 0
    %4191 = vmatprep.subr.bf16.mxu0 0
    %4192 = vmatpush2.bf16.msra.mxu0 0
    %4193 = vmatprep.subr.bf16.mxu0 0
    %4194 = vmatpush2.bf16.msra.mxu0 0
    %4195 = vmatprep.mubr.bf16.mxu0 0
    %4196 = vmatmul.mubr.bf16.gmra.mxu0 %v4158
    %v4197 = vpop.f32.mrf.mxu0
    %v4198 = vadd.f32 0.0, %v4197
    %v4199 = vpop.f32.mrf.mxu0
    %v4200 = vpop.f32.mrf.mxu0
    %v4201 = vpop.f32.mrf.mxu0
    %4202 = vdwg.mxu0
    %v4203 = vpack.c.bf16 %v4198, %v4150
    %v4208 = vunpack.c.l.b16 %v3744
    %v4209 = vunpack.c.l.b16 %v3745
    %v4210 = vunpack.c.l.b16 %v3746
    %v4211 = vunpack.c.l.b16 %v3747
    %v4212 = vpack.c.b16 %v4209, %v4208
    %v4213 = vpack.c.b16 %v4211, %v4210
    %v4217 = vsel %vm507, %v4203, 0
    %4219 = vmatprep.subr.bf16.mxu0 0
    %4220 = vmatpush1.bf16.msra.mxu0 0
    %4221 = vmatprep.subr.bf16.mxu0 0
    %4222 = vmatpush1.bf16.msra.mxu0 0
    %4223 = vmatprep.subr.bf16.mxu0 0
    %4224 = vmatpush1.bf16.msra.mxu0 0
    %4225 = vmatprep.subr.bf16.mxu0 0
    %4226 = vmatpush1.bf16.msra.mxu0 0
    %4227 = vmatprep.subr.bf16.mxu0 0
    %4228 = vmatpush1.bf16.msra.mxu0 0
    %4229 = vmatprep.subr.bf16.mxu0 0
    %4230 = vmatpush1.bf16.msra.mxu0 0
    %4231 = vmatprep.subr.bf16.mxu0 0
    %4232 = vmatpush1.bf16.msra.mxu0 %v4213
    %4233 = vmatprep.subr.bf16.mxu0 0
    %4234 = vmatpush1.bf16.msra.mxu0 %v4212
    %4235 = vmatprep.subr.bf16.mxu0 0
    %4236 = vmatpush2.bf16.msra.mxu0 0
    %4237 = vmatprep.subr.bf16.mxu0 0
    %4238 = vmatpush2.bf16.msra.mxu0 0
    %4239 = vmatprep.subr.bf16.mxu0 0
    %4240 = vmatpush2.bf16.msra.mxu0 0
    %4241 = vmatprep.subr.bf16.mxu0 0
    %4242 = vmatpush2.bf16.msra.mxu0 0
    %4243 = vmatprep.subr.bf16.mxu0 0
    %4244 = vmatpush2.bf16.msra.mxu0 0
    %4245 = vmatprep.subr.bf16.mxu0 0
    %4246 = vmatpush2.bf16.msra.mxu0 0
    %4247 = vmatprep.subr.bf16.mxu0 0
    %4248 = vmatpush2.bf16.msra.mxu0 0
    %4249 = vmatprep.subr.bf16.mxu0 0
    %4250 = vmatpush2.bf16.msra.mxu0 0
    %4251 = vmatprep.mubr.bf16.mxu0 0
    %4252 = vmatmul.mubr.bf16.gmra.mxu0 %v4217
    %v4253 = vpop.f32.mrf.mxu0
    %v4254 = vadd.f32 0.0, %v4253
    %v4255 = vpop.f32.mrf.mxu0
    %v4256 = vpop.f32.mrf.mxu0
    %v4257 = vadd.f32 0.0, %v4256
    %v4258 = vpop.f32.mrf.mxu0
    %4259 = vdwg.mxu0
    %v4264 = vunpack.c.l.b16 %v3740
    %v4265 = vunpack.c.l.b16 %v3741
    %v4266 = vunpack.c.l.b16 %v3742
    %v4267 = vunpack.c.l.b16 %v3743
    %v4268 = vpack.c.b16 %v4265, %v4264
    %v4269 = vpack.c.b16 %v4267, %v4266
    %v4273 = vsel %vm507, %v3982, 0
    %4275 = vmatprep.subr.bf16.mxu0 0
    %4276 = vmatpush1.bf16.msra.mxu0 0
    %4277 = vmatprep.subr.bf16.mxu0 0
    %4278 = vmatpush1.bf16.msra.mxu0 0
    %4279 = vmatprep.subr.bf16.mxu0 0
    %4280 = vmatpush1.bf16.msra.mxu0 0
    %4281 = vmatprep.subr.bf16.mxu0 0
    %4282 = vmatpush1.bf16.msra.mxu0 0
    %4283 = vmatprep.subr.bf16.mxu0 0
    %4284 = vmatpush1.bf16.msra.mxu0 0
    %4285 = vmatprep.subr.bf16.mxu0 0
    %4286 = vmatpush1.bf16.msra.mxu0 0
    %4287 = vmatprep.subr.bf16.mxu0 0
    %4288 = vmatpush1.bf16.msra.mxu0 %v4269
    %4289 = vmatprep.subr.bf16.mxu0 0
    %4290 = vmatpush1.bf16.msra.mxu0 %v4268
    %4291 = vmatprep.subr.bf16.mxu0 0
    %4292 = vmatpush2.bf16.msra.mxu0 0
    %4293 = vmatprep.subr.bf16.mxu0 0
    %4294 = vmatpush2.bf16.msra.mxu0 0
    %4295 = vmatprep.subr.bf16.mxu0 0
    %4296 = vmatpush2.bf16.msra.mxu0 0
    %4297 = vmatprep.subr.bf16.mxu0 0
    %4298 = vmatpush2.bf16.msra.mxu0 0
    %4299 = vmatprep.subr.bf16.mxu0 0
    %4300 = vmatpush2.bf16.msra.mxu0 0
    %4301 = vmatprep.subr.bf16.mxu0 0
    %4302 = vmatpush2.bf16.msra.mxu0 0
    %4303 = vmatprep.subr.bf16.mxu0 0
    %4304 = vmatpush2.bf16.msra.mxu0 0
    %4305 = vmatprep.subr.bf16.mxu0 0
    %4306 = vmatpush2.bf16.msra.mxu0 0
    %4307 = vmatprep.mubr.bf16.mxu0 0
    %4308 = vmatmul.mubr.bf16.gmra.mxu0 %v4273
    %v4309 = vpop.f32.mrf.mxu0
    %v4310 = vadd.f32 %v4254, %v4309
    %v4311 = vpop.f32.mrf.mxu0
    %v4312 = vpop.f32.mrf.mxu0
    %v4313 = vadd.f32 %v4257, %v4312
    %v4314 = vpop.f32.mrf.mxu0
    %4315 = vdwg.mxu0
    %4316 = vrot.lane.b32.xlu0 %v3760, 64
    %v4317 = vpop.permute.xlu0 %4316
    %4318 = vrot.lane.b32.xlu0 %v3766, 64
    %v4319 = vpop.permute.xlu0 %4318
    %v4321 = vsel %vm507, %v4317, 0
    %v4324 = vsel %vm507, %v4319, 0
    %4326 = vmatprep.subr.bf16.mxu0 0
    %4327 = vmatpush1.bf16.xpose.msra.mxu0 0
    %4328 = vmatprep.subr.bf16.mxu0 0
    %4329 = vmatpush1.bf16.xpose.msra.mxu0 0
    %4330 = vmatprep.subr.bf16.mxu0 0
    %4331 = vmatpush1.bf16.xpose.msra.mxu0 0
    %4332 = vmatprep.subr.bf16.mxu0 0
    %4333 = vmatpush1.bf16.xpose.msra.mxu0 0
    %4334 = vmatprep.subr.bf16.mxu0 0
    %4335 = vmatpush1.bf16.xpose.msra.mxu0 0
    %4336 = vmatprep.subr.bf16.mxu0 0
    %4337 = vmatpush1.bf16.xpose.msra.mxu0 0
    %4338 = vmatprep.subr.bf16.mxu0 0
    %4339 = vmatpush1.bf16.xpose.msra.mxu0 0
    %4340 = vmatprep.subr.bf16.mxu0 0
    %4341 = vmatpush1.bf16.xpose.msra.mxu0 %v4324
    %4342 = vmatprep.subr.bf16.mxu0 0
    %4343 = vmatpush2.bf16.xpose.msra.mxu0 0
    %4344 = vmatprep.subr.bf16.mxu0 0
    %4345 = vmatpush2.bf16.xpose.msra.mxu0 0
    %4346 = vmatprep.subr.bf16.mxu0 0
    %4347 = vmatpush2.bf16.xpose.msra.mxu0 0
    %4348 = vmatprep.subr.bf16.mxu0 0
    %4349 = vmatpush2.bf16.xpose.msra.mxu0 0
    %4350 = vmatprep.subr.bf16.mxu0 0
    %4351 = vmatpush2.bf16.xpose.msra.mxu0 0
    %4352 = vmatprep.subr.bf16.mxu0 0
    %4353 = vmatpush2.bf16.xpose.msra.mxu0 0
    %4354 = vmatprep.subr.bf16.mxu0 0
    %4355 = vmatpush2.bf16.xpose.msra.mxu0 0
    %4356 = vmatprep.subr.bf16.mxu0 0
    %4357 = vmatpush2.bf16.xpose.msra.mxu0 0
    %4358 = vmatprep.mubr.bf16.mxu0 0
    %4359 = vmatmul.mubr.bf16.gmra.mxu0 %v4321
    %v4360 = vpop.f32.mrf.mxu0
    %v4361 = vadd.f32 %v164, %v4360
    %v4362 = vpop.f32.mrf.mxu0
    %v4363 = vpop.f32.mrf.mxu0
    %v4364 = vpop.f32.mrf.mxu0
    %4365 = vdwg.mxu0
    %4366 = vrot.lane.b32.xlu0 %v3761, 64
    %v4367 = vpop.permute.xlu0 %4366
    %4368 = vrot.lane.b32.xlu0 %v3767, 64
    %v4369 = vpop.permute.xlu0 %4368
    %v4371 = vsel %vm507, %v4367, 0
    %v4374 = vsel %vm507, %v4369, 0
    %4376 = vmatprep.subr.bf16.mxu0 0
    %4377 = vmatpush1.bf16.xpose.msra.mxu0 0
    %4378 = vmatprep.subr.bf16.mxu0 0
    %4379 = vmatpush1.bf16.xpose.msra.mxu0 0
    %4380 = vmatprep.subr.bf16.mxu0 0
    %4381 = vmatpush1.bf16.xpose.msra.mxu0 0
    %4382 = vmatprep.subr.bf16.mxu0 0
    %4383 = vmatpush1.bf16.xpose.msra.mxu0 0
    %4384 = vmatprep.subr.bf16.mxu0 0
    %4385 = vmatpush1.bf16.xpose.msra.mxu0 0
    %4386 = vmatprep.subr.bf16.mxu0 0
    %4387 = vmatpush1.bf16.xpose.msra.mxu0 0
    %4388 = vmatprep.subr.bf16.mxu0 0
    %4389 = vmatpush1.bf16.xpose.msra.mxu0 0
    %4390 = vmatprep.subr.bf16.mxu0 0
    %4391 = vmatpush1.bf16.xpose.msra.mxu0 %v4374
    %4392 = vmatprep.subr.bf16.mxu0 0
    %4393 = vmatpush2.bf16.xpose.msra.mxu0 0
    %4394 = vmatprep.subr.bf16.mxu0 0
    %4395 = vmatpush2.bf16.xpose.msra.mxu0 0
    %4396 = vmatprep.subr.bf16.mxu0 0
    %4397 = vmatpush2.bf16.xpose.msra.mxu0 0
    %4398 = vmatprep.subr.bf16.mxu0 0
    %4399 = vmatpush2.bf16.xpose.msra.mxu0 0
    %4400 = vmatprep.subr.bf16.mxu0 0
    %4401 = vmatpush2.bf16.xpose.msra.mxu0 0
    %4402 = vmatprep.subr.bf16.mxu0 0
    %4403 = vmatpush2.bf16.xpose.msra.mxu0 0
    %4404 = vmatprep.subr.bf16.mxu0 0
    %4405 = vmatpush2.bf16.xpose.msra.mxu0 0
    %4406 = vmatprep.subr.bf16.mxu0 0
    %4407 = vmatpush2.bf16.xpose.msra.mxu0 0
    %4408 = vmatprep.mubr.bf16.mxu0 0
    %4409 = vmatmul.mubr.bf16.gmra.mxu0 %v4371
    %v4410 = vpop.f32.mrf.mxu0
    %v4411 = vadd.f32 %v165, %v4410
    %v4412 = vpop.f32.mrf.mxu0
    %v4413 = vpop.f32.mrf.mxu0
    %v4414 = vpop.f32.mrf.mxu0
    %4415 = vdwg.mxu0
    %v4416 = vsel %vm600, %v4361, -inf
    %4417 = vmax.xlane.f32.xlu0 %v4416
    %v4418 = vpop.xlane.xlu0 %4417
    %v4419 = vsel %vm600, %v4411, -inf
    %4420 = vmax.xlane.f32.xlu0 %v4419
    %v4421 = vpop.xlane.xlu0 %4420
    %v4422 = vsub.f32 %v4361, %v4418
    %v4423 = vsub.f32 %v4411, %v4421
    %v4424 = vmul.f32 %v4422, 1.442695
    %v4425 = vpow.pop %v4424
    %v4426 = vmul.f32 %v4423, 1.442695
    %v4427 = vpow.pop %v4426
    %v4428 = vsel %vm600, %v4425, 0.0
    %4429 = vadd.xlane.f32.xlu0 %v4428
    %v4430 = vpop.xlane.xlu0 %4429
    %v4431 = vsel %vm600, %v4427, 0.0
    %4432 = vadd.xlane.f32.xlu0 %v4431
    %v4433 = vpop.xlane.xlu0 %4432
    %v4434 = vrcp.pop %v4430
    %v4435 = vrcp.pop %v4433
    %v4436 = vmul.f32 %v4425, %v4434
    %v4437 = vmul.f32 %v4427, %v4435
    %v4438 = vpack.c.bf16 %v4436, %v4436
    %v4439 = vpack.c.bf16 %v4437, %v4437
    %4440 = vrot.lane.b32.xlu0 %v3772, 64
    %v4441 = vpop.permute.xlu0 %4440
    %v4443 = vsel %vm600, %v4438, 0
    %v4446 = vsel %vm628, %v4441, 0
    %4448 = vmatprep.subr.bf16.mxu0 0
    %4449 = vmatpush1.bf16.msra.mxu0 0
    %4450 = vmatprep.subr.bf16.mxu0 0
    %4451 = vmatpush1.bf16.msra.mxu0 0
    %4452 = vmatprep.subr.bf16.mxu0 0
    %4453 = vmatpush1.bf16.msra.mxu0 0
    %4454 = vmatprep.subr.bf16.mxu0 0
    %4455 = vmatpush1.bf16.msra.mxu0 0
    %4456 = vmatprep.subr.bf16.mxu0 0
    %4457 = vmatpush1.bf16.msra.mxu0 0
    %4458 = vmatprep.subr.bf16.mxu0 0
    %4459 = vmatpush1.bf16.msra.mxu0 0
    %4460 = vmatprep.subr.bf16.mxu0 0
    %4461 = vmatpush1.bf16.msra.mxu0 0
    %4462 = vmatprep.subr.bf16.mxu0 0
    %4463 = vmatpush1.bf16.msra.mxu0 %v4446
    %4464 = vmatprep.subr.bf16.mxu0 0
    %4465 = vmatpush2.bf16.msra.mxu0 0
    %4466 = vmatprep.subr.bf16.mxu0 0
    %4467 = vmatpush2.bf16.msra.mxu0 0
    %4468 = vmatprep.subr.bf16.mxu0 0
    %4469 = vmatpush2.bf16.msra.mxu0 0
    %4470 = vmatprep.subr.bf16.mxu0 0
    %4471 = vmatpush2.bf16.msra.mxu0 0
    %4472 = vmatprep.subr.bf16.mxu0 0
    %4473 = vmatpush2.bf16.msra.mxu0 0
    %4474 = vmatprep.subr.bf16.mxu0 0
    %4475 = vmatpush2.bf16.msra.mxu0 0
    %4476 = vmatprep.subr.bf16.mxu0 0
    %4477 = vmatpush2.bf16.msra.mxu0 0
    %4478 = vmatprep.subr.bf16.mxu0 0
    %4479 = vmatpush2.bf16.msra.mxu0 0
    %4480 = vmatprep.mubr.bf16.mxu0 0
    %4481 = vmatmul.mubr.bf16.gmra.mxu0 %v4443
    %v4482 = vpop.f32.mrf.mxu0
    %v4483 = vadd.f32 0.0, %v4482
    %v4484 = vpop.f32.mrf.mxu0
    %v4485 = vpop.f32.mrf.mxu0
    %v4486 = vpop.f32.mrf.mxu0
    %4487 = vdwg.mxu0
    %4488 = vrot.lane.b32.xlu0 %v3773, 64
    %v4489 = vpop.permute.xlu0 %4488
    %v4491 = vsel %vm600, %v4439, 0
    %v4494 = vsel %vm628, %v4489, 0
    %4496 = vmatprep.subr.bf16.mxu0 0
    %4497 = vmatpush1.bf16.msra.mxu0 0
    %4498 = vmatprep.subr.bf16.mxu0 0
    %4499 = vmatpush1.bf16.msra.mxu0 0
    %4500 = vmatprep.subr.bf16.mxu0 0
    %4501 = vmatpush1.bf16.msra.mxu0 0
    %4502 = vmatprep.subr.bf16.mxu0 0
    %4503 = vmatpush1.bf16.msra.mxu0 0
    %4504 = vmatprep.subr.bf16.mxu0 0
    %4505 = vmatpush1.bf16.msra.mxu0 0
    %4506 = vmatprep.subr.bf16.mxu0 0
    %4507 = vmatpush1.bf16.msra.mxu0 0
    %4508 = vmatprep.subr.bf16.mxu0 0
    %4509 = vmatpush1.bf16.msra.mxu0 0
    %4510 = vmatprep.subr.bf16.mxu0 0
    %4511 = vmatpush1.bf16.msra.mxu0 %v4494
    %4512 = vmatprep.subr.bf16.mxu0 0
    %4513 = vmatpush2.bf16.msra.mxu0 0
    %4514 = vmatprep.subr.bf16.mxu0 0
    %4515 = vmatpush2.bf16.msra.mxu0 0
    %4516 = vmatprep.subr.bf16.mxu0 0
    %4517 = vmatpush2.bf16.msra.mxu0 0
    %4518 = vmatprep.subr.bf16.mxu0 0
    %4519 = vmatpush2.bf16.msra.mxu0 0
    %4520 = vmatprep.subr.bf16.mxu0 0
    %4521 = vmatpush2.bf16.msra.mxu0 0
    %4522 = vmatprep.subr.bf16.mxu0 0
    %4523 = vmatpush2.bf16.msra.mxu0 0
    %4524 = vmatprep.subr.bf16.mxu0 0
    %4525 = vmatpush2.bf16.msra.mxu0 0
    %4526 = vmatprep.subr.bf16.mxu0 0
    %4527 = vmatpush2.bf16.msra.mxu0 0
    %4528 = vmatprep.mubr.bf16.mxu0 0
    %4529 = vmatmul.mubr.bf16.gmra.mxu0 %v4491
    %v4530 = vpop.f32.mrf.mxu0
    %v4531 = vadd.f32 0.0, %v4530
    %v4532 = vpop.f32.mrf.mxu0
    %v4533 = vpop.f32.mrf.mxu0
    %v4534 = vpop.f32.mrf.mxu0
    %4535 = vdwg.mxu0
    %v4536 = vpack.c.bf16 %v4531, %v4483
    %v4541 = vunpack.c.l.b16 %v3748
    %v4542 = vunpack.c.l.b16 %v3749
    %v4543 = vunpack.c.l.b16 %v3750
    %v4544 = vunpack.c.l.b16 %v3751
    %v4545 = vpack.c.b16 %v4542, %v4541
    %v4546 = vpack.c.b16 %v4544, %v4543
    %v4550 = vsel %vm507, %v4536, 0
    %4552 = vmatprep.subr.bf16.mxu0 0
    %4553 = vmatpush1.bf16.msra.mxu0 0
    %4554 = vmatprep.subr.bf16.mxu0 0
    %4555 = vmatpush1.bf16.msra.mxu0 0
    %4556 = vmatprep.subr.bf16.mxu0 0
    %4557 = vmatpush1.bf16.msra.mxu0 0
    %4558 = vmatprep.subr.bf16.mxu0 0
    %4559 = vmatpush1.bf16.msra.mxu0 0
    %4560 = vmatprep.subr.bf16.mxu0 0
    %4561 = vmatpush1.bf16.msra.mxu0 0
    %4562 = vmatprep.subr.bf16.mxu0 0
    %4563 = vmatpush1.bf16.msra.mxu0 0
    %4564 = vmatprep.subr.bf16.mxu0 0
    %4565 = vmatpush1.bf16.msra.mxu0 %v4546
    %4566 = vmatprep.subr.bf16.mxu0 0
    %4567 = vmatpush1.bf16.msra.mxu0 %v4545
    %4568 = vmatprep.subr.bf16.mxu0 0
    %4569 = vmatpush2.bf16.msra.mxu0 0
    %4570 = vmatprep.subr.bf16.mxu0 0
    %4571 = vmatpush2.bf16.msra.mxu0 0
    %4572 = vmatprep.subr.bf16.mxu0 0
    %4573 = vmatpush2.bf16.msra.mxu0 0
    %4574 = vmatprep.subr.bf16.mxu0 0
    %4575 = vmatpush2.bf16.msra.mxu0 0
    %4576 = vmatprep.subr.bf16.mxu0 0
    %4577 = vmatpush2.bf16.msra.mxu0 0
    %4578 = vmatprep.subr.bf16.mxu0 0
    %4579 = vmatpush2.bf16.msra.mxu0 0
    %4580 = vmatprep.subr.bf16.mxu0 0
    %4581 = vmatpush2.bf16.msra.mxu0 0
    %4582 = vmatprep.subr.bf16.mxu0 0
    %4583 = vmatpush2.bf16.msra.mxu0 0
    %4584 = vmatprep.mubr.bf16.mxu0 0
    %4585 = vmatmul.mubr.bf16.gmra.mxu0 %v4550
    %v4586 = vpop.f32.mrf.mxu0
    %v4587 = vadd.f32 0.0, %v4586
    %v4588 = vpop.f32.mrf.mxu0
    %v4589 = vpop.f32.mrf.mxu0
    %v4590 = vadd.f32 0.0, %v4589
    %v4591 = vpop.f32.mrf.mxu0
    %4592 = vdwg.mxu0
    %v4593 = vadd.f32 %v4310, %v4587
    %v4594 = vadd.f32 %v4313, %v4590
    %4595 = vrot.lane.b32.xlu0 %v3760, 32
    %v4596 = vpop.permute.xlu0 %4595
    %4597 = vrot.lane.b32.xlu0 %v3766, 32
    %v4598 = vpop.permute.xlu0 %4597
    %v4600 = vsel %vm507, %v4596, 0
    %v4603 = vsel %vm507, %v4598, 0
    %4605 = vmatprep.subr.bf16.mxu0 0
    %4606 = vmatpush1.bf16.xpose.msra.mxu0 0
    %4607 = vmatprep.subr.bf16.mxu0 0
    %4608 = vmatpush1.bf16.xpose.msra.mxu0 0
    %4609 = vmatprep.subr.bf16.mxu0 0
    %4610 = vmatpush1.bf16.xpose.msra.mxu0 0
    %4611 = vmatprep.subr.bf16.mxu0 0
    %4612 = vmatpush1.bf16.xpose.msra.mxu0 0
    %4613 = vmatprep.subr.bf16.mxu0 0
    %4614 = vmatpush1.bf16.xpose.msra.mxu0 0
    %4615 = vmatprep.subr.bf16.mxu0 0
    %4616 = vmatpush1.bf16.xpose.msra.mxu0 0
    %4617 = vmatprep.subr.bf16.mxu0 0
    %4618 = vmatpush1.bf16.xpose.msra.mxu0 0
    %4619 = vmatprep.subr.bf16.mxu0 0
    %4620 = vmatpush1.bf16.xpose.msra.mxu0 %v4603
    %4621 = vmatprep.subr.bf16.mxu0 0
    %4622 = vmatpush2.bf16.xpose.msra.mxu0 0
    %4623 = vmatprep.subr.bf16.mxu0 0
    %4624 = vmatpush2.bf16.xpose.msra.mxu0 0
    %4625 = vmatprep.subr.bf16.mxu0 0
    %4626 = vmatpush2.bf16.xpose.msra.mxu0 0
    %4627 = vmatprep.subr.bf16.mxu0 0
    %4628 = vmatpush2.bf16.xpose.msra.mxu0 0
    %4629 = vmatprep.subr.bf16.mxu0 0
    %4630 = vmatpush2.bf16.xpose.msra.mxu0 0
    %4631 = vmatprep.subr.bf16.mxu0 0
    %4632 = vmatpush2.bf16.xpose.msra.mxu0 0
    %4633 = vmatprep.subr.bf16.mxu0 0
    %4634 = vmatpush2.bf16.xpose.msra.mxu0 0
    %4635 = vmatprep.subr.bf16.mxu0 0
    %4636 = vmatpush2.bf16.xpose.msra.mxu0 0
    %4637 = vmatprep.mubr.bf16.mxu0 0
    %4638 = vmatmul.mubr.bf16.gmra.mxu0 %v4600
    %v4639 = vpop.f32.mrf.mxu0
    %v4640 = vadd.f32 %v164, %v4639
    %v4641 = vpop.f32.mrf.mxu0
    %v4642 = vpop.f32.mrf.mxu0
    %v4643 = vpop.f32.mrf.mxu0
    %4644 = vdwg.mxu0
    %4645 = vrot.lane.b32.xlu0 %v3761, 32
    %v4646 = vpop.permute.xlu0 %4645
    %4647 = vrot.lane.b32.xlu0 %v3767, 32
    %v4648 = vpop.permute.xlu0 %4647
    %v4650 = vsel %vm507, %v4646, 0
    %v4653 = vsel %vm507, %v4648, 0
    %4655 = vmatprep.subr.bf16.mxu0 0
    %4656 = vmatpush1.bf16.xpose.msra.mxu0 0
    %4657 = vmatprep.subr.bf16.mxu0 0
    %4658 = vmatpush1.bf16.xpose.msra.mxu0 0
    %4659 = vmatprep.subr.bf16.mxu0 0
    %4660 = vmatpush1.bf16.xpose.msra.mxu0 0
    %4661 = vmatprep.subr.bf16.mxu0 0
    %4662 = vmatpush1.bf16.xpose.msra.mxu0 0
    %4663 = vmatprep.subr.bf16.mxu0 0
    %4664 = vmatpush1.bf16.xpose.msra.mxu0 0
    %4665 = vmatprep.subr.bf16.mxu0 0
    %4666 = vmatpush1.bf16.xpose.msra.mxu0 0
    %4667 = vmatprep.subr.bf16.mxu0 0
    %4668 = vmatpush1.bf16.xpose.msra.mxu0 0
    %4669 = vmatprep.subr.bf16.mxu0 0
    %4670 = vmatpush1.bf16.xpose.msra.mxu0 %v4653
    %4671 = vmatprep.subr.bf16.mxu0 0
    %4672 = vmatpush2.bf16.xpose.msra.mxu0 0
    %4673 = vmatprep.subr.bf16.mxu0 0
    %4674 = vmatpush2.bf16.xpose.msra.mxu0 0
    %4675 = vmatprep.subr.bf16.mxu0 0
    %4676 = vmatpush2.bf16.xpose.msra.mxu0 0
    %4677 = vmatprep.subr.bf16.mxu0 0
    %4678 = vmatpush2.bf16.xpose.msra.mxu0 0
    %4679 = vmatprep.subr.bf16.mxu0 0
    %4680 = vmatpush2.bf16.xpose.msra.mxu0 0
    %4681 = vmatprep.subr.bf16.mxu0 0
    %4682 = vmatpush2.bf16.xpose.msra.mxu0 0
    %4683 = vmatprep.subr.bf16.mxu0 0
    %4684 = vmatpush2.bf16.xpose.msra.mxu0 0
    %4685 = vmatprep.subr.bf16.mxu0 0
    %4686 = vmatpush2.bf16.xpose.msra.mxu0 0
    %4687 = vmatprep.mubr.bf16.mxu0 0
    %4688 = vmatmul.mubr.bf16.gmra.mxu0 %v4650
    %v4689 = vpop.f32.mrf.mxu0
    %v4690 = vadd.f32 %v165, %v4689
    %v4691 = vpop.f32.mrf.mxu0
    %v4692 = vpop.f32.mrf.mxu0
    %v4693 = vpop.f32.mrf.mxu0
    %4694 = vdwg.mxu0
    %v4695 = vsel %vm600, %v4640, -inf
    %4696 = vmax.xlane.f32.xlu0 %v4695
    %v4697 = vpop.xlane.xlu0 %4696
    %v4698 = vsel %vm600, %v4690, -inf
    %4699 = vmax.xlane.f32.xlu0 %v4698
    %v4700 = vpop.xlane.xlu0 %4699
    %v4701 = vsub.f32 %v4640, %v4697
    %v4702 = vsub.f32 %v4690, %v4700
    %v4703 = vmul.f32 %v4701, 1.442695
    %v4704 = vpow.pop %v4703
    %v4705 = vmul.f32 %v4702, 1.442695
    %v4706 = vpow.pop %v4705
    %v4707 = vsel %vm600, %v4704, 0.0
    %4708 = vadd.xlane.f32.xlu0 %v4707
    %v4709 = vpop.xlane.xlu0 %4708
    %v4710 = vsel %vm600, %v4706, 0.0
    %4711 = vadd.xlane.f32.xlu0 %v4710
    %v4712 = vpop.xlane.xlu0 %4711
    %v4713 = vrcp.pop %v4709
    %v4714 = vrcp.pop %v4712
    %v4715 = vmul.f32 %v4704, %v4713
    %v4716 = vmul.f32 %v4706, %v4714
    %v4717 = vpack.c.bf16 %v4715, %v4715
    %v4718 = vpack.c.bf16 %v4716, %v4716
    %4719 = vrot.lane.b32.xlu0 %v3772, 32
    %v4720 = vpop.permute.xlu0 %4719
    %v4722 = vsel %vm600, %v4717, 0
    %v4725 = vsel %vm628, %v4720, 0
    %4727 = vmatprep.subr.bf16.mxu0 0
    %4728 = vmatpush1.bf16.msra.mxu0 0
    %4729 = vmatprep.subr.bf16.mxu0 0
    %4730 = vmatpush1.bf16.msra.mxu0 0
    %4731 = vmatprep.subr.bf16.mxu0 0
    %4732 = vmatpush1.bf16.msra.mxu0 0
    %4733 = vmatprep.subr.bf16.mxu0 0
    %4734 = vmatpush1.bf16.msra.mxu0 0
    %4735 = vmatprep.subr.bf16.mxu0 0
    %4736 = vmatpush1.bf16.msra.mxu0 0
    %4737 = vmatprep.subr.bf16.mxu0 0
    %4738 = vmatpush1.bf16.msra.mxu0 0
    %4739 = vmatprep.subr.bf16.mxu0 0
    %4740 = vmatpush1.bf16.msra.mxu0 0
    %4741 = vmatprep.subr.bf16.mxu0 0
    %4742 = vmatpush1.bf16.msra.mxu0 %v4725
    %4743 = vmatprep.subr.bf16.mxu0 0
    %4744 = vmatpush2.bf16.msra.mxu0 0
    %4745 = vmatprep.subr.bf16.mxu0 0
    %4746 = vmatpush2.bf16.msra.mxu0 0
    %4747 = vmatprep.subr.bf16.mxu0 0
    %4748 = vmatpush2.bf16.msra.mxu0 0
    %4749 = vmatprep.subr.bf16.mxu0 0
    %4750 = vmatpush2.bf16.msra.mxu0 0
    %4751 = vmatprep.subr.bf16.mxu0 0
    %4752 = vmatpush2.bf16.msra.mxu0 0
    %4753 = vmatprep.subr.bf16.mxu0 0
    %4754 = vmatpush2.bf16.msra.mxu0 0
    %4755 = vmatprep.subr.bf16.mxu0 0
    %4756 = vmatpush2.bf16.msra.mxu0 0
    %4757 = vmatprep.subr.bf16.mxu0 0
    %4758 = vmatpush2.bf16.msra.mxu0 0
    %4759 = vmatprep.mubr.bf16.mxu0 0
    %4760 = vmatmul.mubr.bf16.gmra.mxu0 %v4722
    %v4761 = vpop.f32.mrf.mxu0
    %v4762 = vadd.f32 0.0, %v4761
    %v4763 = vpop.f32.mrf.mxu0
    %v4764 = vpop.f32.mrf.mxu0
    %v4765 = vpop.f32.mrf.mxu0
    %4766 = vdwg.mxu0
    %4767 = vrot.lane.b32.xlu0 %v3773, 32
    %v4768 = vpop.permute.xlu0 %4767
    %v4770 = vsel %vm600, %v4718, 0
    %v4773 = vsel %vm628, %v4768, 0
    %4775 = vmatprep.subr.bf16.mxu0 0
    %4776 = vmatpush1.bf16.msra.mxu0 0
    %4777 = vmatprep.subr.bf16.mxu0 0
    %4778 = vmatpush1.bf16.msra.mxu0 0
    %4779 = vmatprep.subr.bf16.mxu0 0
    %4780 = vmatpush1.bf16.msra.mxu0 0
    %4781 = vmatprep.subr.bf16.mxu0 0
    %4782 = vmatpush1.bf16.msra.mxu0 0
    %4783 = vmatprep.subr.bf16.mxu0 0
    %4784 = vmatpush1.bf16.msra.mxu0 0
    %4785 = vmatprep.subr.bf16.mxu0 0
    %4786 = vmatpush1.bf16.msra.mxu0 0
    %4787 = vmatprep.subr.bf16.mxu0 0
    %4788 = vmatpush1.bf16.msra.mxu0 0
    %4789 = vmatprep.subr.bf16.mxu0 0
    %4790 = vmatpush1.bf16.msra.mxu0 %v4773
    %4791 = vmatprep.subr.bf16.mxu0 0
    %4792 = vmatpush2.bf16.msra.mxu0 0
    %4793 = vmatprep.subr.bf16.mxu0 0
    %4794 = vmatpush2.bf16.msra.mxu0 0
    %4795 = vmatprep.subr.bf16.mxu0 0
    %4796 = vmatpush2.bf16.msra.mxu0 0
    %4797 = vmatprep.subr.bf16.mxu0 0
    %4798 = vmatpush2.bf16.msra.mxu0 0
    %4799 = vmatprep.subr.bf16.mxu0 0
    %4800 = vmatpush2.bf16.msra.mxu0 0
    %4801 = vmatprep.subr.bf16.mxu0 0
    %4802 = vmatpush2.bf16.msra.mxu0 0
    %4803 = vmatprep.subr.bf16.mxu0 0
    %4804 = vmatpush2.bf16.msra.mxu0 0
    %4805 = vmatprep.subr.bf16.mxu0 0
    %4806 = vmatpush2.bf16.msra.mxu0 0
    %4807 = vmatprep.mubr.bf16.mxu0 0
    %4808 = vmatmul.mubr.bf16.gmra.mxu0 %v4770
    %v4809 = vpop.f32.mrf.mxu0
    %v4810 = vadd.f32 0.0, %v4809
    %v4811 = vpop.f32.mrf.mxu0
    %v4812 = vpop.f32.mrf.mxu0
    %v4813 = vpop.f32.mrf.mxu0
    %4814 = vdwg.mxu0
    %v4815 = vpack.c.bf16 %v4810, %v4762
    %v4820 = vunpack.c.l.b16 %v3752
    %v4821 = vunpack.c.l.b16 %v3753
    %v4822 = vunpack.c.l.b16 %v3754
    %v4823 = vunpack.c.l.b16 %v3755
    %v4824 = vpack.c.b16 %v4821, %v4820
    %v4825 = vpack.c.b16 %v4823, %v4822
    %v4829 = vsel %vm507, %v4815, 0
    %4831 = vmatprep.subr.bf16.mxu0 0
    %4832 = vmatpush1.bf16.msra.mxu0 0
    %4833 = vmatprep.subr.bf16.mxu0 0
    %4834 = vmatpush1.bf16.msra.mxu0 0
    %4835 = vmatprep.subr.bf16.mxu0 0
    %4836 = vmatpush1.bf16.msra.mxu0 0
    %4837 = vmatprep.subr.bf16.mxu0 0
    %4838 = vmatpush1.bf16.msra.mxu0 0
    %4839 = vmatprep.subr.bf16.mxu0 0
    %4840 = vmatpush1.bf16.msra.mxu0 0
    %4841 = vmatprep.subr.bf16.mxu0 0
    %4842 = vmatpush1.bf16.msra.mxu0 0
    %4843 = vmatprep.subr.bf16.mxu0 0
    %4844 = vmatpush1.bf16.msra.mxu0 %v4825
    %4845 = vmatprep.subr.bf16.mxu0 0
    %4846 = vmatpush1.bf16.msra.mxu0 %v4824
    %4847 = vmatprep.subr.bf16.mxu0 0
    %4848 = vmatpush2.bf16.msra.mxu0 0
    %4849 = vmatprep.subr.bf16.mxu0 0
    %4850 = vmatpush2.bf16.msra.mxu0 0
    %4851 = vmatprep.subr.bf16.mxu0 0
    %4852 = vmatpush2.bf16.msra.mxu0 0
    %4853 = vmatprep.subr.bf16.mxu0 0
    %4854 = vmatpush2.bf16.msra.mxu0 0
    %4855 = vmatprep.subr.bf16.mxu0 0
    %4856 = vmatpush2.bf16.msra.mxu0 0
    %4857 = vmatprep.subr.bf16.mxu0 0
    %4858 = vmatpush2.bf16.msra.mxu0 0
    %4859 = vmatprep.subr.bf16.mxu0 0
    %4860 = vmatpush2.bf16.msra.mxu0 0
    %4861 = vmatprep.subr.bf16.mxu0 0
    %4862 = vmatpush2.bf16.msra.mxu0 0
    %4863 = vmatprep.mubr.bf16.mxu0 0
    %4864 = vmatmul.mubr.bf16.gmra.mxu0 %v4829
    %v4865 = vpop.f32.mrf.mxu0
    %v4866 = vadd.f32 0.0, %v4865
    %v4867 = vpop.f32.mrf.mxu0
    %v4868 = vpop.f32.mrf.mxu0
    %v4869 = vadd.f32 0.0, %v4868
    %v4870 = vpop.f32.mrf.mxu0
    %4871 = vdwg.mxu0
    %v4872 = vadd.f32 %v4593, %v4866
    %v4873 = vadd.f32 %v4594, %v4869
    %v4874 = vadd.f32 %v3434, %v4872
    %v4875 = vadd.f32 %v3435, %v4873
    %v4876 = vlaneseq
    %v4877 = vshrl.u32 %v4876, 7
    %v4878 = vsub.s32 3, %v4877
    %v4879 = vrot.slane %v3437, %v4878
    %v4880 = vadd.f32 %v4874, %v4879
    %v4881 = vadd.f32 %v4875, %v4879
    %4882 = vadd.xlane.f32.xlu0 %v4880
    %v4883 = vpop.xlane.xlu0 %4882
    %4884 = vadd.xlane.f32.xlu0 %v4881
    %v4885 = vpop.xlane.xlu0 %4884
    %v4886 = vmul.f32 %v4883, %v177
    %v4887 = vmul.f32 %v4885, %v177
    %v4888 = vsub.f32 %v4880, %v4886
    %v4889 = vsub.f32 %v4881, %v4887
    %v4890 = vmul.f32 %v4888, %v4888
    %v4891 = vmul.f32 %v4889, %v4889
    %4892 = vadd.xlane.f32.xlu0 %v4890
    %v4893 = vpop.xlane.xlu0 %4892
    %4894 = vadd.xlane.f32.xlu0 %v4891
    %v4895 = vpop.xlane.xlu0 %4894
    %v4896 = vmul.f32 %v4893, %v177
    %v4897 = vmul.f32 %v4895, %v177
    %v4898 = vadd.f32 %v4896, 1e-05
    %v4899 = vadd.f32 %v4897, 1e-05
    %v4900 = vrsqrt.pop %v4898
    %v4901 = vrsqrt.pop %v4899
    %v4902 = vmul.f32 %v4888, %v4900
    %v4903 = vmul.f32 %v4889, %v4901
    %v4904 = vlaneseq
    %v4905 = vshrl.u32 %v4904, 7
    %v4906 = vsub.s32 3, %v4905
    %v4907 = vrot.slane %v3438, %v4906
    %v4908 = vmul.f32 %v4902, %v4907
    %v4909 = vmul.f32 %v4903, %v4907
    %v4910 = vlaneseq
    %v4911 = vshrl.u32 %v4910, 7
    %v4912 = vsub.s32 4, %v4911
    %v4913 = vrot.slane %v3438, %v4912
    %v4914 = vadd.f32 %v4908, %v4913
    %v4915 = vadd.f32 %v4909, %v4913
    %v4916 = vpack.c.bf16 %v4915, %v4914
    %s4917 = scalar_lea.vmem [#allocation7], 64
    %v4918 = vld [vmem:[%s4917] sm:$0xf]
    %v4919 = vld [vmem:[%s4917 + $0x4] sm:$0xf]
    %v4920 = vld [vmem:[%s4917 + $0x8] sm:$0xf]
    %v4921 = vld [vmem:[%s4917 + $0xc] sm:$0xf]
    %v4922 = vld [vmem:[%s4917 + $0x10] sm:$0xf]
    %v4923 = vld [vmem:[%s4917 + $0x14] sm:$0xf]
    %v4924 = vld [vmem:[%s4917 + $0x18] sm:$0xf]
    %v4925 = vld [vmem:[%s4917 + $0x1c] sm:$0xf]
    %v4926 = vld [vmem:[%s4917 + $0x20] sm:$0xf]
    %v4927 = vld [vmem:[%s4917 + $0x24] sm:$0xf]
    %v4928 = vld [vmem:[%s4917 + $0x28] sm:$0xf]
    %v4929 = vld [vmem:[%s4917 + $0x2c] sm:$0xf]
    %v4930 = vld [vmem:[%s4917 + $0x30] sm:$0xf]
    %v4931 = vld [vmem:[%s4917 + $0x34] sm:$0xf]
    %v4932 = vld [vmem:[%s4917 + $0x38] sm:$0xf]
    %v4933 = vld [vmem:[%s4917 + $0x3c] sm:$0xf]
    %v4934 = vlaneseq
    %v4935 = vshrl.u32 %v4934, 7
    %v4936 = vsub.s32 4, %v4935
    %v4937 = vrot.slane %v3437, %v4936
    %v4954 = vunpack.c.l.b16 %v4918
    %v4955 = vunpack.c.l.b16 %v4919
    %v4956 = vunpack.c.l.b16 %v4920
    %v4957 = vunpack.c.l.b16 %v4921
    %v4958 = vunpack.c.l.b16 %v4922
    %v4959 = vunpack.c.l.b16 %v4923
    %v4960 = vunpack.c.l.b16 %v4924
    %v4961 = vunpack.c.l.b16 %v4925
    %v4962 = vunpack.c.l.b16 %v4926
    %v4963 = vunpack.c.l.b16 %v4927
    %v4964 = vunpack.c.l.b16 %v4928
    %v4965 = vunpack.c.l.b16 %v4929
    %v4966 = vunpack.c.l.b16 %v4930
    %v4967 = vunpack.c.l.b16 %v4931
    %v4968 = vunpack.c.l.b16 %v4932
    %v4969 = vunpack.c.l.b16 %v4933
    %v4970 = vpack.c.b16 %v4955, %v4954
    %v4971 = vpack.c.b16 %v4957, %v4956
    %v4972 = vpack.c.b16 %v4959, %v4958
    %v4973 = vpack.c.b16 %v4961, %v4960
    %v4974 = vpack.c.b16 %v4963, %v4962
    %v4975 = vpack.c.b16 %v4965, %v4964
    %v4976 = vpack.c.b16 %v4967, %v4966
    %v4977 = vpack.c.b16 %v4969, %v4968
    %4986 = vmatprep.subr.bf16.mxu0 0
    %4987 = vmatpush1.bf16.msra.mxu0 %v4977
    %4988 = vmatprep.subr.bf16.mxu0 0
    %4989 = vmatpush1.bf16.msra.mxu0 %v4976
    %4990 = vmatprep.subr.bf16.mxu0 0
    %4991 = vmatpush1.bf16.msra.mxu0 %v4975
    %4992 = vmatprep.subr.bf16.mxu0 0
    %4993 = vmatpush1.bf16.msra.mxu0 %v4974
    %4994 = vmatprep.subr.bf16.mxu0 0
    %4995 = vmatpush1.bf16.msra.mxu0 %v4973
    %4996 = vmatprep.subr.bf16.mxu0 0
    %4997 = vmatpush1.bf16.msra.mxu0 %v4972
    %4998 = vmatprep.subr.bf16.mxu0 0
    %4999 = vmatpush1.bf16.msra.mxu0 %v4971
    %5000 = vmatprep.subr.bf16.mxu0 0
    %5001 = vmatpush1.bf16.msra.mxu0 %v4970
    %5002 = vmatprep.subr.bf16.mxu0 0
    %5003 = vmatpush2.bf16.msra.mxu0 0
    %5004 = vmatprep.subr.bf16.mxu0 0
    %5005 = vmatpush2.bf16.msra.mxu0 0
    %5006 = vmatprep.subr.bf16.mxu0 0
    %5007 = vmatpush2.bf16.msra.mxu0 0
    %5008 = vmatprep.subr.bf16.mxu0 0
    %5009 = vmatpush2.bf16.msra.mxu0 0
    %5010 = vmatprep.subr.bf16.mxu0 0
    %5011 = vmatpush2.bf16.msra.mxu0 0
    %5012 = vmatprep.subr.bf16.mxu0 0
    %5013 = vmatpush2.bf16.msra.mxu0 0
    %5014 = vmatprep.subr.bf16.mxu0 0
    %5015 = vmatpush2.bf16.msra.mxu0 0
    %5016 = vmatprep.subr.bf16.mxu0 0
    %5017 = vmatpush2.bf16.msra.mxu0 0
    %5018 = vmatprep.mubr.bf16.mxu0 0
    %5019 = vmatmul.mubr.bf16.gmra.mxu0 %v4916
    %v5020 = vpop.f32.mrf.mxu0
    %v5021 = vadd.f32 %v4937, %v5020
    %v5022 = vpop.f32.mrf.mxu0
    %v5023 = vpop.f32.mrf.mxu0
    %v5024 = vadd.f32 %v4937, %v5023
    %v5025 = vpop.f32.mrf.mxu0
    %5026 = vdwg.mxu0
    %v5027 = vmul.f32 %v5021, 0.17677669
    %v5028 = vmul.f32 %v5024, 0.17677669
    %s5029 = scalar_lea.vmem [#allocation8], 128
    %v5030 = vld [vmem:[%s5029] sm:$0xff]
    %v5031 = vld [vmem:[%s5029 + $0x8] sm:$0xff]
    %v5032 = vld [vmem:[%s5029 + $0x10] sm:$0xff]
    %v5033 = vld [vmem:[%s5029 + $0x18] sm:$0xff]
    %v5034 = vld [vmem:[%s5029 + $0x20] sm:$0xff]
    %v5035 = vld [vmem:[%s5029 + $0x28] sm:$0xff]
    %v5036 = vld [vmem:[%s5029 + $0x30] sm:$0xff]
    %v5037 = vld [vmem:[%s5029 + $0x38] sm:$0xff]
    %v5038 = vld [vmem:[%s5029 + $0x40] sm:$0xff]
    %v5039 = vld [vmem:[%s5029 + $0x48] sm:$0xff]
    %v5040 = vld [vmem:[%s5029 + $0x50] sm:$0xff]
    %v5041 = vld [vmem:[%s5029 + $0x58] sm:$0xff]
    %v5042 = vld [vmem:[%s5029 + $0x60] sm:$0xff]
    %v5043 = vld [vmem:[%s5029 + $0x68] sm:$0xff]
    %v5044 = vld [vmem:[%s5029 + $0x70] sm:$0xff]
    %v5045 = vld [vmem:[%s5029 + $0x78] sm:$0xff]
    %v5062 = vunpack.c.l.b16 %v5030
    %v5063 = vunpack.c.h.b16 %v5030
    %v5064 = vunpack.c.l.b16 %v5031
    %v5065 = vunpack.c.h.b16 %v5031
    %v5066 = vunpack.c.l.b16 %v5032
    %v5067 = vunpack.c.h.b16 %v5032
    %v5068 = vunpack.c.l.b16 %v5033
    %v5069 = vunpack.c.h.b16 %v5033
    %v5070 = vunpack.c.l.b16 %v5034
    %v5071 = vunpack.c.h.b16 %v5034
    %v5072 = vunpack.c.l.b16 %v5035
    %v5073 = vunpack.c.h.b16 %v5035
    %v5074 = vunpack.c.l.b16 %v5036
    %v5075 = vunpack.c.h.b16 %v5036
    %v5076 = vunpack.c.l.b16 %v5037
    %v5077 = vunpack.c.h.b16 %v5037
    %v5078 = vunpack.c.l.b16 %v5038
    %v5079 = vunpack.c.h.b16 %v5038
    %v5080 = vunpack.c.l.b16 %v5039
    %v5081 = vunpack.c.h.b16 %v5039
    %v5082 = vunpack.c.l.b16 %v5040
    %v5083 = vunpack.c.h.b16 %v5040
    %v5084 = vunpack.c.l.b16 %v5041
    %v5085 = vunpack.c.h.b16 %v5041
    %v5086 = vunpack.c.l.b16 %v5042
    %v5087 = vunpack.c.h.b16 %v5042
    %v5088 = vunpack.c.l.b16 %v5043
    %v5089 = vunpack.c.h.b16 %v5043
    %v5090 = vunpack.c.l.b16 %v5044
    %v5091 = vunpack.c.h.b16 %v5044
    %v5092 = vunpack.c.l.b16 %v5045
    %v5093 = vunpack.c.h.b16 %v5045
    %v5094 = vpack.c.b16 %v5064, %v5062
    %v5095 = vpack.c.b16 %v5065, %v5063
    %v5096 = vpack.c.b16 %v5068, %v5066
    %v5097 = vpack.c.b16 %v5069, %v5067
    %v5098 = vpack.c.b16 %v5072, %v5070
    %v5099 = vpack.c.b16 %v5073, %v5071
    %v5100 = vpack.c.b16 %v5076, %v5074
    %v5101 = vpack.c.b16 %v5077, %v5075
    %v5102 = vpack.c.b16 %v5080, %v5078
    %v5103 = vpack.c.b16 %v5081, %v5079
    %v5104 = vpack.c.b16 %v5084, %v5082
    %v5105 = vpack.c.b16 %v5085, %v5083
    %v5106 = vpack.c.b16 %v5088, %v5086
    %v5107 = vpack.c.b16 %v5089, %v5087
    %v5108 = vpack.c.b16 %v5092, %v5090
    %v5109 = vpack.c.b16 %v5093, %v5091
    %5126 = vmatprep.subr.bf16.mxu0 %v5109
    %5127 = vmatpush1.bf16.msra.mxu0 %v5108
    %5128 = vmatprep.subr.bf16.mxu0 %v5107
    %5129 = vmatpush1.bf16.msra.mxu0 %v5106
    %5130 = vmatprep.subr.bf16.mxu0 %v5105
    %5131 = vmatpush1.bf16.msra.mxu0 %v5104
    %5132 = vmatprep.subr.bf16.mxu0 %v5103
    %5133 = vmatpush1.bf16.msra.mxu0 %v5102
    %5134 = vmatprep.subr.bf16.mxu0 %v5101
    %5135 = vmatpush1.bf16.msra.mxu0 %v5100
    %5136 = vmatprep.subr.bf16.mxu0 %v5099
    %5137 = vmatpush1.bf16.msra.mxu0 %v5098
    %5138 = vmatprep.subr.bf16.mxu0 %v5097
    %5139 = vmatpush1.bf16.msra.mxu0 %v5096
    %5140 = vmatprep.subr.bf16.mxu0 %v5095
    %5141 = vmatpush1.bf16.msra.mxu0 %v5094
    %5142 = vmatprep.subr.bf16.mxu0 0
    %5143 = vmatpush2.bf16.msra.mxu0 0
    %5144 = vmatprep.subr.bf16.mxu0 0
    %5145 = vmatpush2.bf16.msra.mxu0 0
    %5146 = vmatprep.subr.bf16.mxu0 0
    %5147 = vmatpush2.bf16.msra.mxu0 0
    %5148 = vmatprep.subr.bf16.mxu0 0
    %5149 = vmatpush2.bf16.msra.mxu0 0
    %5150 = vmatprep.subr.bf16.mxu0 0
    %5151 = vmatpush2.bf16.msra.mxu0 0
    %5152 = vmatprep.subr.bf16.mxu0 0
    %5153 = vmatpush2.bf16.msra.mxu0 0
    %5154 = vmatprep.subr.bf16.mxu0 0
    %5155 = vmatpush2.bf16.msra.mxu0 0
    %5156 = vmatprep.subr.bf16.mxu0 0
    %5157 = vmatpush2.bf16.msra.mxu0 0
    %5158 = vmatprep.mubr.bf16.mxu0 0
    %5159 = vmatmul.mubr.bf16.gmra.mxu0 %v170
    %v5160 = vpop.f32.mrf.mxu0
    %v5161 = vadd.f32 0.0, %v5160
    %v5162 = vpop.f32.mrf.mxu0
    %v5163 = vadd.f32 0.0, %v5162
    %v5164 = vpop.f32.mrf.mxu0
    %v5165 = vadd.f32 0.0, %v5164
    %v5166 = vpop.f32.mrf.mxu0
    %v5167 = vadd.f32 0.0, %v5166
    %5168 = vdwg.mxu0
    %v5169 = vlaneseq
    %v5170 = vshrl.u32 %v5169, 7
    %v5171 = vsub.s32 5, %v5170
    %v5172 = vrot.slane %v3437, %v5171
    %v5173 = vadd.f32 %v5161, %v5172
    %v5174 = vadd.f32 %v5165, %v5172
    %v5175 = vlaneseq
    %v5176 = vshrl.u32 %v5175, 7
    %v5177 = vsub.s32 6, %v5176
    %v5178 = vrot.slane %v3437, %v5177
    %v5179 = vadd.f32 %v5163, %v5178
    %v5180 = vadd.f32 %v5167, %v5178
    %s5181 = scalar_lea.vmem [#allocation10], 64
    %v5182 = vld [vmem:[%s5181] sm:$0xf]
    %v5183 = vld [vmem:[%s5181 + $0x4] sm:$0xf]
    %v5184 = vld [vmem:[%s5181 + $0x8] sm:$0xf]
    %v5185 = vld [vmem:[%s5181 + $0xc] sm:$0xf]
    %v5186 = vld [vmem:[%s5181 + $0x10] sm:$0xf]
    %v5187 = vld [vmem:[%s5181 + $0x14] sm:$0xf]
    %v5188 = vld [vmem:[%s5181 + $0x18] sm:$0xf]
    %v5189 = vld [vmem:[%s5181 + $0x1c] sm:$0xf]
    %v5190 = vld [vmem:[%s5181 + $0x20] sm:$0xf]
    %v5191 = vld [vmem:[%s5181 + $0x24] sm:$0xf]
    %v5192 = vld [vmem:[%s5181 + $0x28] sm:$0xf]
    %v5193 = vld [vmem:[%s5181 + $0x2c] sm:$0xf]
    %v5194 = vld [vmem:[%s5181 + $0x30] sm:$0xf]
    %v5195 = vld [vmem:[%s5181 + $0x34] sm:$0xf]
    %v5196 = vld [vmem:[%s5181 + $0x38] sm:$0xf]
    %v5197 = vld [vmem:[%s5181 + $0x3c] sm:$0xf]
    %v5198 = vpack.c.bf16 %v5028, %v5027
    %v5200 = vunpack.c.l.b16 %v5198
    %v5201 = vunpack.c.h.b16 %v5198
    %v5202 = vpack.c.b16 %v5200, %v5200
    %v5203 = vpack.c.b16 %v5201, %v5201
    %v5204 = vpack.c.bf16 %v5174, %v5173
    %v5206 = vunpack.c.l.b16 %v5204
    %v5207 = vunpack.c.h.b16 %v5204
    %v5208 = vpack.c.b16 %v5206, %v5206
    %v5209 = vpack.c.b16 %v5207, %v5207
    %v5210 = vpack.c.bf16 %v5180, %v5179
    %v5212 = vunpack.c.l.b16 %v5210
    %v5213 = vunpack.c.h.b16 %v5210
    %v5214 = vpack.c.b16 %v5212, %v5212
    %v5215 = vpack.c.b16 %v5213, %v5213
    %v5217 = vsel %vm507, %v5202, 0
    %v5220 = vsel %vm507, %v5208, 0
    %5222 = vmatprep.subr.bf16.mxu0 0
    %5223 = vmatpush1.bf16.xpose.msra.mxu0 0
    %5224 = vmatprep.subr.bf16.mxu0 0
    %5225 = vmatpush1.bf16.xpose.msra.mxu0 0
    %5226 = vmatprep.subr.bf16.mxu0 0
    %5227 = vmatpush1.bf16.xpose.msra.mxu0 0
    %5228 = vmatprep.subr.bf16.mxu0 0
    %5229 = vmatpush1.bf16.xpose.msra.mxu0 0
    %5230 = vmatprep.subr.bf16.mxu0 0
    %5231 = vmatpush1.bf16.xpose.msra.mxu0 0
    %5232 = vmatprep.subr.bf16.mxu0 0
    %5233 = vmatpush1.bf16.xpose.msra.mxu0 0
    %5234 = vmatprep.subr.bf16.mxu0 0
    %5235 = vmatpush1.bf16.xpose.msra.mxu0 0
    %5236 = vmatprep.subr.bf16.mxu0 0
    %5237 = vmatpush1.bf16.xpose.msra.mxu0 %v5220
    %5238 = vmatprep.subr.bf16.mxu0 0
    %5239 = vmatpush2.bf16.xpose.msra.mxu0 0
    %5240 = vmatprep.subr.bf16.mxu0 0
    %5241 = vmatpush2.bf16.xpose.msra.mxu0 0
    %5242 = vmatprep.subr.bf16.mxu0 0
    %5243 = vmatpush2.bf16.xpose.msra.mxu0 0
    %5244 = vmatprep.subr.bf16.mxu0 0
    %5245 = vmatpush2.bf16.xpose.msra.mxu0 0
    %5246 = vmatprep.subr.bf16.mxu0 0
    %5247 = vmatpush2.bf16.xpose.msra.mxu0 0
    %5248 = vmatprep.subr.bf16.mxu0 0
    %5249 = vmatpush2.bf16.xpose.msra.mxu0 0
    %5250 = vmatprep.subr.bf16.mxu0 0
    %5251 = vmatpush2.bf16.xpose.msra.mxu0 0
    %5252 = vmatprep.subr.bf16.mxu0 0
    %5253 = vmatpush2.bf16.xpose.msra.mxu0 0
    %5254 = vmatprep.mubr.bf16.mxu0 0
    %5255 = vmatmul.mubr.bf16.gmra.mxu0 %v5217
    %v5256 = vpop.f32.mrf.mxu0
    %v5257 = vadd.f32 %v1954, %v5256
    %v5258 = vpop.f32.mrf.mxu0
    %v5259 = vpop.f32.mrf.mxu0
    %v5260 = vpop.f32.mrf.mxu0
    %5261 = vdwg.mxu0
    %v5263 = vsel %vm507, %v5203, 0
    %v5266 = vsel %vm507, %v5209, 0
    %5268 = vmatprep.subr.bf16.mxu0 0
    %5269 = vmatpush1.bf16.xpose.msra.mxu0 0
    %5270 = vmatprep.subr.bf16.mxu0 0
    %5271 = vmatpush1.bf16.xpose.msra.mxu0 0
    %5272 = vmatprep.subr.bf16.mxu0 0
    %5273 = vmatpush1.bf16.xpose.msra.mxu0 0
    %5274 = vmatprep.subr.bf16.mxu0 0
    %5275 = vmatpush1.bf16.xpose.msra.mxu0 0
    %5276 = vmatprep.subr.bf16.mxu0 0
    %5277 = vmatpush1.bf16.xpose.msra.mxu0 0
    %5278 = vmatprep.subr.bf16.mxu0 0
    %5279 = vmatpush1.bf16.xpose.msra.mxu0 0
    %5280 = vmatprep.subr.bf16.mxu0 0
    %5281 = vmatpush1.bf16.xpose.msra.mxu0 0
    %5282 = vmatprep.subr.bf16.mxu0 0
    %5283 = vmatpush1.bf16.xpose.msra.mxu0 %v5266
    %5284 = vmatprep.subr.bf16.mxu0 0
    %5285 = vmatpush2.bf16.xpose.msra.mxu0 0
    %5286 = vmatprep.subr.bf16.mxu0 0
    %5287 = vmatpush2.bf16.xpose.msra.mxu0 0
    %5288 = vmatprep.subr.bf16.mxu0 0
    %5289 = vmatpush2.bf16.xpose.msra.mxu0 0
    %5290 = vmatprep.subr.bf16.mxu0 0
    %5291 = vmatpush2.bf16.xpose.msra.mxu0 0
    %5292 = vmatprep.subr.bf16.mxu0 0
    %5293 = vmatpush2.bf16.xpose.msra.mxu0 0
    %5294 = vmatprep.subr.bf16.mxu0 0
    %5295 = vmatpush2.bf16.xpose.msra.mxu0 0
    %5296 = vmatprep.subr.bf16.mxu0 0
    %5297 = vmatpush2.bf16.xpose.msra.mxu0 0
    %5298 = vmatprep.subr.bf16.mxu0 0
    %5299 = vmatpush2.bf16.xpose.msra.mxu0 0
    %5300 = vmatprep.mubr.bf16.mxu0 0
    %5301 = vmatmul.mubr.bf16.gmra.mxu0 %v5263
    %v5302 = vpop.f32.mrf.mxu0
    %v5303 = vadd.f32 %v1958, %v5302
    %v5304 = vpop.f32.mrf.mxu0
    %v5305 = vpop.f32.mrf.mxu0
    %v5306 = vpop.f32.mrf.mxu0
    %5307 = vdwg.mxu0
    %v5308 = vsel %vm600, %v5257, -inf
    %5309 = vmax.xlane.f32.xlu0 %v5308
    %v5310 = vpop.xlane.xlu0 %5309
    %v5311 = vsel %vm600, %v5303, -inf
    %5312 = vmax.xlane.f32.xlu0 %v5311
    %v5313 = vpop.xlane.xlu0 %5312
    %v5314 = vsub.f32 %v5257, %v5310
    %v5315 = vsub.f32 %v5303, %v5313
    %v5316 = vmul.f32 %v5314, 1.442695
    %v5317 = vpow.pop %v5316
    %v5318 = vmul.f32 %v5315, 1.442695
    %v5319 = vpow.pop %v5318
    %v5320 = vsel %vm600, %v5317, 0.0
    %5321 = vadd.xlane.f32.xlu0 %v5320
    %v5322 = vpop.xlane.xlu0 %5321
    %v5323 = vsel %vm600, %v5319, 0.0
    %5324 = vadd.xlane.f32.xlu0 %v5323
    %v5325 = vpop.xlane.xlu0 %5324
    %v5326 = vrcp.pop %v5322
    %v5327 = vrcp.pop %v5325
    %v5328 = vmul.f32 %v5317, %v5326
    %v5329 = vmul.f32 %v5319, %v5327
    %v5330 = vpack.c.bf16 %v5328, %v5328
    %v5331 = vpack.c.bf16 %v5329, %v5329
    %v5333 = vsel %vm600, %v5330, 0
    %v5336 = vsel %vm628, %v5214, 0
    %5338 = vmatprep.subr.bf16.mxu0 0
    %5339 = vmatpush1.bf16.msra.mxu0 0
    %5340 = vmatprep.subr.bf16.mxu0 0
    %5341 = vmatpush1.bf16.msra.mxu0 0
    %5342 = vmatprep.subr.bf16.mxu0 0
    %5343 = vmatpush1.bf16.msra.mxu0 0
    %5344 = vmatprep.subr.bf16.mxu0 0
    %5345 = vmatpush1.bf16.msra.mxu0 0
    %5346 = vmatprep.subr.bf16.mxu0 0
    %5347 = vmatpush1.bf16.msra.mxu0 0
    %5348 = vmatprep.subr.bf16.mxu0 0
    %5349 = vmatpush1.bf16.msra.mxu0 0
    %5350 = vmatprep.subr.bf16.mxu0 0
    %5351 = vmatpush1.bf16.msra.mxu0 0
    %5352 = vmatprep.subr.bf16.mxu0 0
    %5353 = vmatpush1.bf16.msra.mxu0 %v5336
    %5354 = vmatprep.subr.bf16.mxu0 0
    %5355 = vmatpush2.bf16.msra.mxu0 0
    %5356 = vmatprep.subr.bf16.mxu0 0
    %5357 = vmatpush2.bf16.msra.mxu0 0
    %5358 = vmatprep.subr.bf16.mxu0 0
    %5359 = vmatpush2.bf16.msra.mxu0 0
    %5360 = vmatprep.subr.bf16.mxu0 0
    %5361 = vmatpush2.bf16.msra.mxu0 0
    %5362 = vmatprep.subr.bf16.mxu0 0
    %5363 = vmatpush2.bf16.msra.mxu0 0
    %5364 = vmatprep.subr.bf16.mxu0 0
    %5365 = vmatpush2.bf16.msra.mxu0 0
    %5366 = vmatprep.subr.bf16.mxu0 0
    %5367 = vmatpush2.bf16.msra.mxu0 0
    %5368 = vmatprep.subr.bf16.mxu0 0
    %5369 = vmatpush2.bf16.msra.mxu0 0
    %5370 = vmatprep.mubr.bf16.mxu0 0
    %5371 = vmatmul.mubr.bf16.gmra.mxu0 %v5333
    %v5372 = vpop.f32.mrf.mxu0
    %v5373 = vadd.f32 0.0, %v5372
    %v5374 = vpop.f32.mrf.mxu0
    %v5375 = vpop.f32.mrf.mxu0
    %v5376 = vpop.f32.mrf.mxu0
    %5377 = vdwg.mxu0
    %v5379 = vsel %vm600, %v5331, 0
    %v5382 = vsel %vm628, %v5215, 0
    %5384 = vmatprep.subr.bf16.mxu0 0
    %5385 = vmatpush1.bf16.msra.mxu0 0
    %5386 = vmatprep.subr.bf16.mxu0 0
    %5387 = vmatpush1.bf16.msra.mxu0 0
    %5388 = vmatprep.subr.bf16.mxu0 0
    %5389 = vmatpush1.bf16.msra.mxu0 0
    %5390 = vmatprep.subr.bf16.mxu0 0
    %5391 = vmatpush1.bf16.msra.mxu0 0
    %5392 = vmatprep.subr.bf16.mxu0 0
    %5393 = vmatpush1.bf16.msra.mxu0 0
    %5394 = vmatprep.subr.bf16.mxu0 0
    %5395 = vmatpush1.bf16.msra.mxu0 0
    %5396 = vmatprep.subr.bf16.mxu0 0
    %5397 = vmatpush1.bf16.msra.mxu0 0
    %5398 = vmatprep.subr.bf16.mxu0 0
    %5399 = vmatpush1.bf16.msra.mxu0 %v5382
    %5400 = vmatprep.subr.bf16.mxu0 0
    %5401 = vmatpush2.bf16.msra.mxu0 0
    %5402 = vmatprep.subr.bf16.mxu0 0
    %5403 = vmatpush2.bf16.msra.mxu0 0
    %5404 = vmatprep.subr.bf16.mxu0 0
    %5405 = vmatpush2.bf16.msra.mxu0 0
    %5406 = vmatprep.subr.bf16.mxu0 0
    %5407 = vmatpush2.bf16.msra.mxu0 0
    %5408 = vmatprep.subr.bf16.mxu0 0
    %5409 = vmatpush2.bf16.msra.mxu0 0
    %5410 = vmatprep.subr.bf16.mxu0 0
    %5411 = vmatpush2.bf16.msra.mxu0 0
    %5412 = vmatprep.subr.bf16.mxu0 0
    %5413 = vmatpush2.bf16.msra.mxu0 0
    %5414 = vmatprep.subr.bf16.mxu0 0
    %5415 = vmatpush2.bf16.msra.mxu0 0
    %5416 = vmatprep.mubr.bf16.mxu0 0
    %5417 = vmatmul.mubr.bf16.gmra.mxu0 %v5379
    %v5418 = vpop.f32.mrf.mxu0
    %v5419 = vadd.f32 0.0, %v5418
    %v5420 = vpop.f32.mrf.mxu0
    %v5421 = vpop.f32.mrf.mxu0
    %v5422 = vpop.f32.mrf.mxu0
    %5423 = vdwg.mxu0
    %v5424 = vpack.c.bf16 %v5419, %v5373
    %5425 = vrot.lane.b32.xlu0 %v5202, 96
    %v5426 = vpop.permute.xlu0 %5425
    %5427 = vrot.lane.b32.xlu0 %v5208, 96
    %v5428 = vpop.permute.xlu0 %5427
    %v5430 = vsel %vm507, %v5426, 0
    %v5433 = vsel %vm507, %v5428, 0
    %5435 = vmatprep.subr.bf16.mxu0 0
    %5436 = vmatpush1.bf16.xpose.msra.mxu0 0
    %5437 = vmatprep.subr.bf16.mxu0 0
    %5438 = vmatpush1.bf16.xpose.msra.mxu0 0
    %5439 = vmatprep.subr.bf16.mxu0 0
    %5440 = vmatpush1.bf16.xpose.msra.mxu0 0
    %5441 = vmatprep.subr.bf16.mxu0 0
    %5442 = vmatpush1.bf16.xpose.msra.mxu0 0
    %5443 = vmatprep.subr.bf16.mxu0 0
    %5444 = vmatpush1.bf16.xpose.msra.mxu0 0
    %5445 = vmatprep.subr.bf16.mxu0 0
    %5446 = vmatpush1.bf16.xpose.msra.mxu0 0
    %5447 = vmatprep.subr.bf16.mxu0 0
    %5448 = vmatpush1.bf16.xpose.msra.mxu0 0
    %5449 = vmatprep.subr.bf16.mxu0 0
    %5450 = vmatpush1.bf16.xpose.msra.mxu0 %v5433
    %5451 = vmatprep.subr.bf16.mxu0 0
    %5452 = vmatpush2.bf16.xpose.msra.mxu0 0
    %5453 = vmatprep.subr.bf16.mxu0 0
    %5454 = vmatpush2.bf16.xpose.msra.mxu0 0
    %5455 = vmatprep.subr.bf16.mxu0 0
    %5456 = vmatpush2.bf16.xpose.msra.mxu0 0
    %5457 = vmatprep.subr.bf16.mxu0 0
    %5458 = vmatpush2.bf16.xpose.msra.mxu0 0
    %5459 = vmatprep.subr.bf16.mxu0 0
    %5460 = vmatpush2.bf16.xpose.msra.mxu0 0
    %5461 = vmatprep.subr.bf16.mxu0 0
    %5462 = vmatpush2.bf16.xpose.msra.mxu0 0
    %5463 = vmatprep.subr.bf16.mxu0 0
    %5464 = vmatpush2.bf16.xpose.msra.mxu0 0
    %5465 = vmatprep.subr.bf16.mxu0 0
    %5466 = vmatpush2.bf16.xpose.msra.mxu0 0
    %5467 = vmatprep.mubr.bf16.mxu0 0
    %5468 = vmatmul.mubr.bf16.gmra.mxu0 %v5430
    %v5469 = vpop.f32.mrf.mxu0
    %v5470 = vadd.f32 %v1954, %v5469
    %v5471 = vpop.f32.mrf.mxu0
    %v5472 = vpop.f32.mrf.mxu0
    %v5473 = vpop.f32.mrf.mxu0
    %5474 = vdwg.mxu0
    %5475 = vrot.lane.b32.xlu0 %v5203, 96
    %v5476 = vpop.permute.xlu0 %5475
    %5477 = vrot.lane.b32.xlu0 %v5209, 96
    %v5478 = vpop.permute.xlu0 %5477
    %v5480 = vsel %vm507, %v5476, 0
    %v5483 = vsel %vm507, %v5478, 0
    %5485 = vmatprep.subr.bf16.mxu0 0
    %5486 = vmatpush1.bf16.xpose.msra.mxu0 0
    %5487 = vmatprep.subr.bf16.mxu0 0
    %5488 = vmatpush1.bf16.xpose.msra.mxu0 0
    %5489 = vmatprep.subr.bf16.mxu0 0
    %5490 = vmatpush1.bf16.xpose.msra.mxu0 0
    %5491 = vmatprep.subr.bf16.mxu0 0
    %5492 = vmatpush1.bf16.xpose.msra.mxu0 0
    %5493 = vmatprep.subr.bf16.mxu0 0
    %5494 = vmatpush1.bf16.xpose.msra.mxu0 0
    %5495 = vmatprep.subr.bf16.mxu0 0
    %5496 = vmatpush1.bf16.xpose.msra.mxu0 0
    %5497 = vmatprep.subr.bf16.mxu0 0
    %5498 = vmatpush1.bf16.xpose.msra.mxu0 0
    %5499 = vmatprep.subr.bf16.mxu0 0
    %5500 = vmatpush1.bf16.xpose.msra.mxu0 %v5483
    %5501 = vmatprep.subr.bf16.mxu0 0
    %5502 = vmatpush2.bf16.xpose.msra.mxu0 0
    %5503 = vmatprep.subr.bf16.mxu0 0
    %5504 = vmatpush2.bf16.xpose.msra.mxu0 0
    %5505 = vmatprep.subr.bf16.mxu0 0
    %5506 = vmatpush2.bf16.xpose.msra.mxu0 0
    %5507 = vmatprep.subr.bf16.mxu0 0
    %5508 = vmatpush2.bf16.xpose.msra.mxu0 0
    %5509 = vmatprep.subr.bf16.mxu0 0
    %5510 = vmatpush2.bf16.xpose.msra.mxu0 0
    %5511 = vmatprep.subr.bf16.mxu0 0
    %5512 = vmatpush2.bf16.xpose.msra.mxu0 0
    %5513 = vmatprep.subr.bf16.mxu0 0
    %5514 = vmatpush2.bf16.xpose.msra.mxu0 0
    %5515 = vmatprep.subr.bf16.mxu0 0
    %5516 = vmatpush2.bf16.xpose.msra.mxu0 0
    %5517 = vmatprep.mubr.bf16.mxu0 0
    %5518 = vmatmul.mubr.bf16.gmra.mxu0 %v5480
    %v5519 = vpop.f32.mrf.mxu0
    %v5520 = vadd.f32 %v1958, %v5519
    %v5521 = vpop.f32.mrf.mxu0
    %v5522 = vpop.f32.mrf.mxu0
    %v5523 = vpop.f32.mrf.mxu0
    %5524 = vdwg.mxu0
    %v5525 = vsel %vm600, %v5470, -inf
    %5526 = vmax.xlane.f32.xlu0 %v5525
    %v5527 = vpop.xlane.xlu0 %5526
    %v5528 = vsel %vm600, %v5520, -inf
    %5529 = vmax.xlane.f32.xlu0 %v5528
    %v5530 = vpop.xlane.xlu0 %5529
    %v5531 = vsub.f32 %v5470, %v5527
    %v5532 = vsub.f32 %v5520, %v5530
    %v5533 = vmul.f32 %v5531, 1.442695
    %v5534 = vpow.pop %v5533
    %v5535 = vmul.f32 %v5532, 1.442695
    %v5536 = vpow.pop %v5535
    %v5537 = vsel %vm600, %v5534, 0.0
    %5538 = vadd.xlane.f32.xlu0 %v5537
    %v5539 = vpop.xlane.xlu0 %5538
    %v5540 = vsel %vm600, %v5536, 0.0
    %5541 = vadd.xlane.f32.xlu0 %v5540
    %v5542 = vpop.xlane.xlu0 %5541
    %v5543 = vrcp.pop %v5539
    %v5544 = vrcp.pop %v5542
    %v5545 = vmul.f32 %v5534, %v5543
    %v5546 = vmul.f32 %v5536, %v5544
    %v5547 = vpack.c.bf16 %v5545, %v5545
    %v5548 = vpack.c.bf16 %v5546, %v5546
    %5549 = vrot.lane.b32.xlu0 %v5214, 96
    %v5550 = vpop.permute.xlu0 %5549
    %v5552 = vsel %vm600, %v5547, 0
    %v5555 = vsel %vm628, %v5550, 0
    %5557 = vmatprep.subr.bf16.mxu0 0
    %5558 = vmatpush1.bf16.msra.mxu0 0
    %5559 = vmatprep.subr.bf16.mxu0 0
    %5560 = vmatpush1.bf16.msra.mxu0 0
    %5561 = vmatprep.subr.bf16.mxu0 0
    %5562 = vmatpush1.bf16.msra.mxu0 0
    %5563 = vmatprep.subr.bf16.mxu0 0
    %5564 = vmatpush1.bf16.msra.mxu0 0
    %5565 = vmatprep.subr.bf16.mxu0 0
    %5566 = vmatpush1.bf16.msra.mxu0 0
    %5567 = vmatprep.subr.bf16.mxu0 0
    %5568 = vmatpush1.bf16.msra.mxu0 0
    %5569 = vmatprep.subr.bf16.mxu0 0
    %5570 = vmatpush1.bf16.msra.mxu0 0
    %5571 = vmatprep.subr.bf16.mxu0 0
    %5572 = vmatpush1.bf16.msra.mxu0 %v5555
    %5573 = vmatprep.subr.bf16.mxu0 0
    %5574 = vmatpush2.bf16.msra.mxu0 0
    %5575 = vmatprep.subr.bf16.mxu0 0
    %5576 = vmatpush2.bf16.msra.mxu0 0
    %5577 = vmatprep.subr.bf16.mxu0 0
    %5578 = vmatpush2.bf16.msra.mxu0 0
    %5579 = vmatprep.subr.bf16.mxu0 0
    %5580 = vmatpush2.bf16.msra.mxu0 0
    %5581 = vmatprep.subr.bf16.mxu0 0
    %5582 = vmatpush2.bf16.msra.mxu0 0
    %5583 = vmatprep.subr.bf16.mxu0 0
    %5584 = vmatpush2.bf16.msra.mxu0 0
    %5585 = vmatprep.subr.bf16.mxu0 0
    %5586 = vmatpush2.bf16.msra.mxu0 0
    %5587 = vmatprep.subr.bf16.mxu0 0
    %5588 = vmatpush2.bf16.msra.mxu0 0
    %5589 = vmatprep.mubr.bf16.mxu0 0
    %5590 = vmatmul.mubr.bf16.gmra.mxu0 %v5552
    %v5591 = vpop.f32.mrf.mxu0
    %v5592 = vadd.f32 0.0, %v5591
    %v5593 = vpop.f32.mrf.mxu0
    %v5594 = vpop.f32.mrf.mxu0
    %v5595 = vpop.f32.mrf.mxu0
    %5596 = vdwg.mxu0
    %5597 = vrot.lane.b32.xlu0 %v5215, 96
    %v5598 = vpop.permute.xlu0 %5597
    %v5600 = vsel %vm600, %v5548, 0
    %v5603 = vsel %vm628, %v5598, 0
    %5605 = vmatprep.subr.bf16.mxu0 0
    %5606 = vmatpush1.bf16.msra.mxu0 0
    %5607 = vmatprep.subr.bf16.mxu0 0
    %5608 = vmatpush1.bf16.msra.mxu0 0
    %5609 = vmatprep.subr.bf16.mxu0 0
    %5610 = vmatpush1.bf16.msra.mxu0 0
    %5611 = vmatprep.subr.bf16.mxu0 0
    %5612 = vmatpush1.bf16.msra.mxu0 0
    %5613 = vmatprep.subr.bf16.mxu0 0
    %5614 = vmatpush1.bf16.msra.mxu0 0
    %5615 = vmatprep.subr.bf16.mxu0 0
    %5616 = vmatpush1.bf16.msra.mxu0 0
    %5617 = vmatprep.subr.bf16.mxu0 0
    %5618 = vmatpush1.bf16.msra.mxu0 0
    %5619 = vmatprep.subr.bf16.mxu0 0
    %5620 = vmatpush1.bf16.msra.mxu0 %v5603
    %5621 = vmatprep.subr.bf16.mxu0 0
    %5622 = vmatpush2.bf16.msra.mxu0 0
    %5623 = vmatprep.subr.bf16.mxu0 0
    %5624 = vmatpush2.bf16.msra.mxu0 0
    %5625 = vmatprep.subr.bf16.mxu0 0
    %5626 = vmatpush2.bf16.msra.mxu0 0
    %5627 = vmatprep.subr.bf16.mxu0 0
    %5628 = vmatpush2.bf16.msra.mxu0 0
    %5629 = vmatprep.subr.bf16.mxu0 0
    %5630 = vmatpush2.bf16.msra.mxu0 0
    %5631 = vmatprep.subr.bf16.mxu0 0
    %5632 = vmatpush2.bf16.msra.mxu0 0
    %5633 = vmatprep.subr.bf16.mxu0 0
    %5634 = vmatpush2.bf16.msra.mxu0 0
    %5635 = vmatprep.subr.bf16.mxu0 0
    %5636 = vmatpush2.bf16.msra.mxu0 0
    %5637 = vmatprep.mubr.bf16.mxu0 0
    %5638 = vmatmul.mubr.bf16.gmra.mxu0 %v5600
    %v5639 = vpop.f32.mrf.mxu0
    %v5640 = vadd.f32 0.0, %v5639
    %v5641 = vpop.f32.mrf.mxu0
    %v5642 = vpop.f32.mrf.mxu0
    %v5643 = vpop.f32.mrf.mxu0
    %5644 = vdwg.mxu0
    %v5645 = vpack.c.bf16 %v5640, %v5592
    %v5650 = vunpack.c.l.b16 %v5186
    %v5651 = vunpack.c.l.b16 %v5187
    %v5652 = vunpack.c.l.b16 %v5188
    %v5653 = vunpack.c.l.b16 %v5189
    %v5654 = vpack.c.b16 %v5651, %v5650
    %v5655 = vpack.c.b16 %v5653, %v5652
    %v5659 = vsel %vm507, %v5645, 0
    %5661 = vmatprep.subr.bf16.mxu0 0
    %5662 = vmatpush1.bf16.msra.mxu0 0
    %5663 = vmatprep.subr.bf16.mxu0 0
    %5664 = vmatpush1.bf16.msra.mxu0 0
    %5665 = vmatprep.subr.bf16.mxu0 0
    %5666 = vmatpush1.bf16.msra.mxu0 0
    %5667 = vmatprep.subr.bf16.mxu0 0
    %5668 = vmatpush1.bf16.msra.mxu0 0
    %5669 = vmatprep.subr.bf16.mxu0 0
    %5670 = vmatpush1.bf16.msra.mxu0 0
    %5671 = vmatprep.subr.bf16.mxu0 0
    %5672 = vmatpush1.bf16.msra.mxu0 0
    %5673 = vmatprep.subr.bf16.mxu0 0
    %5674 = vmatpush1.bf16.msra.mxu0 %v5655
    %5675 = vmatprep.subr.bf16.mxu0 0
    %5676 = vmatpush1.bf16.msra.mxu0 %v5654
    %5677 = vmatprep.subr.bf16.mxu0 0
    %5678 = vmatpush2.bf16.msra.mxu0 0
    %5679 = vmatprep.subr.bf16.mxu0 0
    %5680 = vmatpush2.bf16.msra.mxu0 0
    %5681 = vmatprep.subr.bf16.mxu0 0
    %5682 = vmatpush2.bf16.msra.mxu0 0
    %5683 = vmatprep.subr.bf16.mxu0 0
    %5684 = vmatpush2.bf16.msra.mxu0 0
    %5685 = vmatprep.subr.bf16.mxu0 0
    %5686 = vmatpush2.bf16.msra.mxu0 0
    %5687 = vmatprep.subr.bf16.mxu0 0
    %5688 = vmatpush2.bf16.msra.mxu0 0
    %5689 = vmatprep.subr.bf16.mxu0 0
    %5690 = vmatpush2.bf16.msra.mxu0 0
    %5691 = vmatprep.subr.bf16.mxu0 0
    %5692 = vmatpush2.bf16.msra.mxu0 0
    %5693 = vmatprep.mubr.bf16.mxu0 0
    %5694 = vmatmul.mubr.bf16.gmra.mxu0 %v5659
    %v5695 = vpop.f32.mrf.mxu0
    %v5696 = vadd.f32 0.0, %v5695
    %v5697 = vpop.f32.mrf.mxu0
    %v5698 = vpop.f32.mrf.mxu0
    %v5699 = vadd.f32 0.0, %v5698
    %v5700 = vpop.f32.mrf.mxu0
    %5701 = vdwg.mxu0
    %v5706 = vunpack.c.l.b16 %v5182
    %v5707 = vunpack.c.l.b16 %v5183
    %v5708 = vunpack.c.l.b16 %v5184
    %v5709 = vunpack.c.l.b16 %v5185
    %v5710 = vpack.c.b16 %v5707, %v5706
    %v5711 = vpack.c.b16 %v5709, %v5708
    %v5715 = vsel %vm507, %v5424, 0
    %5717 = vmatprep.subr.bf16.mxu0 0
    %5718 = vmatpush1.bf16.msra.mxu0 0
    %5719 = vmatprep.subr.bf16.mxu0 0
    %5720 = vmatpush1.bf16.msra.mxu0 0
    %5721 = vmatprep.subr.bf16.mxu0 0
    %5722 = vmatpush1.bf16.msra.mxu0 0
    %5723 = vmatprep.subr.bf16.mxu0 0
    %5724 = vmatpush1.bf16.msra.mxu0 0
    %5725 = vmatprep.subr.bf16.mxu0 0
    %5726 = vmatpush1.bf16.msra.mxu0 0
    %5727 = vmatprep.subr.bf16.mxu0 0
    %5728 = vmatpush1.bf16.msra.mxu0 0
    %5729 = vmatprep.subr.bf16.mxu0 0
    %5730 = vmatpush1.bf16.msra.mxu0 %v5711
    %5731 = vmatprep.subr.bf16.mxu0 0
    %5732 = vmatpush1.bf16.msra.mxu0 %v5710
    %5733 = vmatprep.subr.bf16.mxu0 0
    %5734 = vmatpush2.bf16.msra.mxu0 0
    %5735 = vmatprep.subr.bf16.mxu0 0
    %5736 = vmatpush2.bf16.msra.mxu0 0
    %5737 = vmatprep.subr.bf16.mxu0 0
    %5738 = vmatpush2.bf16.msra.mxu0 0
    %5739 = vmatprep.subr.bf16.mxu0 0
    %5740 = vmatpush2.bf16.msra.mxu0 0
    %5741 = vmatprep.subr.bf16.mxu0 0
    %5742 = vmatpush2.bf16.msra.mxu0 0
    %5743 = vmatprep.subr.bf16.mxu0 0
    %5744 = vmatpush2.bf16.msra.mxu0 0
    %5745 = vmatprep.subr.bf16.mxu0 0
    %5746 = vmatpush2.bf16.msra.mxu0 0
    %5747 = vmatprep.subr.bf16.mxu0 0
    %5748 = vmatpush2.bf16.msra.mxu0 0
    %5749 = vmatprep.mubr.bf16.mxu0 0
    %5750 = vmatmul.mubr.bf16.gmra.mxu0 %v5715
    %v5751 = vpop.f32.mrf.mxu0
    %v5752 = vadd.f32 %v5696, %v5751
    %v5753 = vpop.f32.mrf.mxu0
    %v5754 = vpop.f32.mrf.mxu0
    %v5755 = vadd.f32 %v5699, %v5754
    %v5756 = vpop.f32.mrf.mxu0
    %5757 = vdwg.mxu0
    %5758 = vrot.lane.b32.xlu0 %v5202, 64
    %v5759 = vpop.permute.xlu0 %5758
    %5760 = vrot.lane.b32.xlu0 %v5208, 64
    %v5761 = vpop.permute.xlu0 %5760
    %v5763 = vsel %vm507, %v5759, 0
    %v5766 = vsel %vm507, %v5761, 0
    %5768 = vmatprep.subr.bf16.mxu0 0
    %5769 = vmatpush1.bf16.xpose.msra.mxu0 0
    %5770 = vmatprep.subr.bf16.mxu0 0
    %5771 = vmatpush1.bf16.xpose.msra.mxu0 0
    %5772 = vmatprep.subr.bf16.mxu0 0
    %5773 = vmatpush1.bf16.xpose.msra.mxu0 0
    %5774 = vmatprep.subr.bf16.mxu0 0
    %5775 = vmatpush1.bf16.xpose.msra.mxu0 0
    %5776 = vmatprep.subr.bf16.mxu0 0
    %5777 = vmatpush1.bf16.xpose.msra.mxu0 0
    %5778 = vmatprep.subr.bf16.mxu0 0
    %5779 = vmatpush1.bf16.xpose.msra.mxu0 0
    %5780 = vmatprep.subr.bf16.mxu0 0
    %5781 = vmatpush1.bf16.xpose.msra.mxu0 0
    %5782 = vmatprep.subr.bf16.mxu0 0
    %5783 = vmatpush1.bf16.xpose.msra.mxu0 %v5766
    %5784 = vmatprep.subr.bf16.mxu0 0
    %5785 = vmatpush2.bf16.xpose.msra.mxu0 0
    %5786 = vmatprep.subr.bf16.mxu0 0
    %5787 = vmatpush2.bf16.xpose.msra.mxu0 0
    %5788 = vmatprep.subr.bf16.mxu0 0
    %5789 = vmatpush2.bf16.xpose.msra.mxu0 0
    %5790 = vmatprep.subr.bf16.mxu0 0
    %5791 = vmatpush2.bf16.xpose.msra.mxu0 0
    %5792 = vmatprep.subr.bf16.mxu0 0
    %5793 = vmatpush2.bf16.xpose.msra.mxu0 0
    %5794 = vmatprep.subr.bf16.mxu0 0
    %5795 = vmatpush2.bf16.xpose.msra.mxu0 0
    %5796 = vmatprep.subr.bf16.mxu0 0
    %5797 = vmatpush2.bf16.xpose.msra.mxu0 0
    %5798 = vmatprep.subr.bf16.mxu0 0
    %5799 = vmatpush2.bf16.xpose.msra.mxu0 0
    %5800 = vmatprep.mubr.bf16.mxu0 0
    %5801 = vmatmul.mubr.bf16.gmra.mxu0 %v5763
    %v5802 = vpop.f32.mrf.mxu0
    %v5803 = vadd.f32 %v1954, %v5802
    %v5804 = vpop.f32.mrf.mxu0
    %v5805 = vpop.f32.mrf.mxu0
    %v5806 = vpop.f32.mrf.mxu0
    %5807 = vdwg.mxu0
    %5808 = vrot.lane.b32.xlu0 %v5203, 64
    %v5809 = vpop.permute.xlu0 %5808
    %5810 = vrot.lane.b32.xlu0 %v5209, 64
    %v5811 = vpop.permute.xlu0 %5810
    %v5813 = vsel %vm507, %v5809, 0
    %v5816 = vsel %vm507, %v5811, 0
    %5818 = vmatprep.subr.bf16.mxu0 0
    %5819 = vmatpush1.bf16.xpose.msra.mxu0 0
    %5820 = vmatprep.subr.bf16.mxu0 0
    %5821 = vmatpush1.bf16.xpose.msra.mxu0 0
    %5822 = vmatprep.subr.bf16.mxu0 0
    %5823 = vmatpush1.bf16.xpose.msra.mxu0 0
    %5824 = vmatprep.subr.bf16.mxu0 0
    %5825 = vmatpush1.bf16.xpose.msra.mxu0 0
    %5826 = vmatprep.subr.bf16.mxu0 0
    %5827 = vmatpush1.bf16.xpose.msra.mxu0 0
    %5828 = vmatprep.subr.bf16.mxu0 0
    %5829 = vmatpush1.bf16.xpose.msra.mxu0 0
    %5830 = vmatprep.subr.bf16.mxu0 0
    %5831 = vmatpush1.bf16.xpose.msra.mxu0 0
    %5832 = vmatprep.subr.bf16.mxu0 0
    %5833 = vmatpush1.bf16.xpose.msra.mxu0 %v5816
    %5834 = vmatprep.subr.bf16.mxu0 0
    %5835 = vmatpush2.bf16.xpose.msra.mxu0 0
    %5836 = vmatprep.subr.bf16.mxu0 0
    %5837 = vmatpush2.bf16.xpose.msra.mxu0 0
    %5838 = vmatprep.subr.bf16.mxu0 0
    %5839 = vmatpush2.bf16.xpose.msra.mxu0 0
    %5840 = vmatprep.subr.bf16.mxu0 0
    %5841 = vmatpush2.bf16.xpose.msra.mxu0 0
    %5842 = vmatprep.subr.bf16.mxu0 0
    %5843 = vmatpush2.bf16.xpose.msra.mxu0 0
    %5844 = vmatprep.subr.bf16.mxu0 0
    %5845 = vmatpush2.bf16.xpose.msra.mxu0 0
    %5846 = vmatprep.subr.bf16.mxu0 0
    %5847 = vmatpush2.bf16.xpose.msra.mxu0 0
    %5848 = vmatprep.subr.bf16.mxu0 0
    %5849 = vmatpush2.bf16.xpose.msra.mxu0 0
    %5850 = vmatprep.mubr.bf16.mxu0 0
    %5851 = vmatmul.mubr.bf16.gmra.mxu0 %v5813
    %v5852 = vpop.f32.mrf.mxu0
    %v5853 = vadd.f32 %v1958, %v5852
    %v5854 = vpop.f32.mrf.mxu0
    %v5855 = vpop.f32.mrf.mxu0
    %v5856 = vpop.f32.mrf.mxu0
    %5857 = vdwg.mxu0
    %v5858 = vsel %vm600, %v5803, -inf
    %5859 = vmax.xlane.f32.xlu0 %v5858
    %v5860 = vpop.xlane.xlu0 %5859
    %v5861 = vsel %vm600, %v5853, -inf
    %5862 = vmax.xlane.f32.xlu0 %v5861
    %v5863 = vpop.xlane.xlu0 %5862
    %v5864 = vsub.f32 %v5803, %v5860
    %v5865 = vsub.f32 %v5853, %v5863
    %v5866 = vmul.f32 %v5864, 1.442695
    %v5867 = vpow.pop %v5866
    %v5868 = vmul.f32 %v5865, 1.442695
    %v5869 = vpow.pop %v5868
    %v5870 = vsel %vm600, %v5867, 0.0
    %5871 = vadd.xlane.f32.xlu0 %v5870
    %v5872 = vpop.xlane.xlu0 %5871
    %v5873 = vsel %vm600, %v5869, 0.0
    %5874 = vadd.xlane.f32.xlu0 %v5873
    %v5875 = vpop.xlane.xlu0 %5874
    %v5876 = vrcp.pop %v5872
    %v5877 = vrcp.pop %v5875
    %v5878 = vmul.f32 %v5867, %v5876
    %v5879 = vmul.f32 %v5869, %v5877
    %v5880 = vpack.c.bf16 %v5878, %v5878
    %v5881 = vpack.c.bf16 %v5879, %v5879
    %5882 = vrot.lane.b32.xlu0 %v5214, 64
    %v5883 = vpop.permute.xlu0 %5882
    %v5885 = vsel %vm600, %v5880, 0
    %v5888 = vsel %vm628, %v5883, 0
    %5890 = vmatprep.subr.bf16.mxu0 0
    %5891 = vmatpush1.bf16.msra.mxu0 0
    %5892 = vmatprep.subr.bf16.mxu0 0
    %5893 = vmatpush1.bf16.msra.mxu0 0
    %5894 = vmatprep.subr.bf16.mxu0 0
    %5895 = vmatpush1.bf16.msra.mxu0 0
    %5896 = vmatprep.subr.bf16.mxu0 0
    %5897 = vmatpush1.bf16.msra.mxu0 0
    %5898 = vmatprep.subr.bf16.mxu0 0
    %5899 = vmatpush1.bf16.msra.mxu0 0
    %5900 = vmatprep.subr.bf16.mxu0 0
    %5901 = vmatpush1.bf16.msra.mxu0 0
    %5902 = vmatprep.subr.bf16.mxu0 0
    %5903 = vmatpush1.bf16.msra.mxu0 0
    %5904 = vmatprep.subr.bf16.mxu0 0
    %5905 = vmatpush1.bf16.msra.mxu0 %v5888
    %5906 = vmatprep.subr.bf16.mxu0 0
    %5907 = vmatpush2.bf16.msra.mxu0 0
    %5908 = vmatprep.subr.bf16.mxu0 0
    %5909 = vmatpush2.bf16.msra.mxu0 0
    %5910 = vmatprep.subr.bf16.mxu0 0
    %5911 = vmatpush2.bf16.msra.mxu0 0
    %5912 = vmatprep.subr.bf16.mxu0 0
    %5913 = vmatpush2.bf16.msra.mxu0 0
    %5914 = vmatprep.subr.bf16.mxu0 0
    %5915 = vmatpush2.bf16.msra.mxu0 0
    %5916 = vmatprep.subr.bf16.mxu0 0
    %5917 = vmatpush2.bf16.msra.mxu0 0
    %5918 = vmatprep.subr.bf16.mxu0 0
    %5919 = vmatpush2.bf16.msra.mxu0 0
    %5920 = vmatprep.subr.bf16.mxu0 0
    %5921 = vmatpush2.bf16.msra.mxu0 0
    %5922 = vmatprep.mubr.bf16.mxu0 0
    %5923 = vmatmul.mubr.bf16.gmra.mxu0 %v5885
    %v5924 = vpop.f32.mrf.mxu0
    %v5925 = vadd.f32 0.0, %v5924
    %v5926 = vpop.f32.mrf.mxu0
    %v5927 = vpop.f32.mrf.mxu0
    %v5928 = vpop.f32.mrf.mxu0
    %5929 = vdwg.mxu0
    %5930 = vrot.lane.b32.xlu0 %v5215, 64
    %v5931 = vpop.permute.xlu0 %5930
    %v5933 = vsel %vm600, %v5881, 0
    %v5936 = vsel %vm628, %v5931, 0
    %5938 = vmatprep.subr.bf16.mxu0 0
    %5939 = vmatpush1.bf16.msra.mxu0 0
    %5940 = vmatprep.subr.bf16.mxu0 0
    %5941 = vmatpush1.bf16.msra.mxu0 0
    %5942 = vmatprep.subr.bf16.mxu0 0
    %5943 = vmatpush1.bf16.msra.mxu0 0
    %5944 = vmatprep.subr.bf16.mxu0 0
    %5945 = vmatpush1.bf16.msra.mxu0 0
    %5946 = vmatprep.subr.bf16.mxu0 0
    %5947 = vmatpush1.bf16.msra.mxu0 0
    %5948 = vmatprep.subr.bf16.mxu0 0
    %5949 = vmatpush1.bf16.msra.mxu0 0
    %5950 = vmatprep.subr.bf16.mxu0 0
    %5951 = vmatpush1.bf16.msra.mxu0 0
    %5952 = vmatprep.subr.bf16.mxu0 0
    %5953 = vmatpush1.bf16.msra.mxu0 %v5936
    %5954 = vmatprep.subr.bf16.mxu0 0
    %5955 = vmatpush2.bf16.msra.mxu0 0
    %5956 = vmatprep.subr.bf16.mxu0 0
    %5957 = vmatpush2.bf16.msra.mxu0 0
    %5958 = vmatprep.subr.bf16.mxu0 0
    %5959 = vmatpush2.bf16.msra.mxu0 0
    %5960 = vmatprep.subr.bf16.mxu0 0
    %5961 = vmatpush2.bf16.msra.mxu0 0
    %5962 = vmatprep.subr.bf16.mxu0 0
    %5963 = vmatpush2.bf16.msra.mxu0 0
    %5964 = vmatprep.subr.bf16.mxu0 0
    %5965 = vmatpush2.bf16.msra.mxu0 0
    %5966 = vmatprep.subr.bf16.mxu0 0
    %5967 = vmatpush2.bf16.msra.mxu0 0
    %5968 = vmatprep.subr.bf16.mxu0 0
    %5969 = vmatpush2.bf16.msra.mxu0 0
    %5970 = vmatprep.mubr.bf16.mxu0 0
    %5971 = vmatmul.mubr.bf16.gmra.mxu0 %v5933
    %v5972 = vpop.f32.mrf.mxu0
    %v5973 = vadd.f32 0.0, %v5972
    %v5974 = vpop.f32.mrf.mxu0
    %v5975 = vpop.f32.mrf.mxu0
    %v5976 = vpop.f32.mrf.mxu0
    %5977 = vdwg.mxu0
    %v5978 = vpack.c.bf16 %v5973, %v5925
    %v5983 = vunpack.c.l.b16 %v5190
    %v5984 = vunpack.c.l.b16 %v5191
    %v5985 = vunpack.c.l.b16 %v5192
    %v5986 = vunpack.c.l.b16 %v5193
    %v5987 = vpack.c.b16 %v5984, %v5983
    %v5988 = vpack.c.b16 %v5986, %v5985
    %v5992 = vsel %vm507, %v5978, 0
    %5994 = vmatprep.subr.bf16.mxu0 0
    %5995 = vmatpush1.bf16.msra.mxu0 0
    %5996 = vmatprep.subr.bf16.mxu0 0
    %5997 = vmatpush1.bf16.msra.mxu0 0
    %5998 = vmatprep.subr.bf16.mxu0 0
    %5999 = vmatpush1.bf16.msra.mxu0 0
    %6000 = vmatprep.subr.bf16.mxu0 0
    %6001 = vmatpush1.bf16.msra.mxu0 0
    %6002 = vmatprep.subr.bf16.mxu0 0
    %6003 = vmatpush1.bf16.msra.mxu0 0
    %6004 = vmatprep.subr.bf16.mxu0 0
    %6005 = vmatpush1.bf16.msra.mxu0 0
    %6006 = vmatprep.subr.bf16.mxu0 0
    %6007 = vmatpush1.bf16.msra.mxu0 %v5988
    %6008 = vmatprep.subr.bf16.mxu0 0
    %6009 = vmatpush1.bf16.msra.mxu0 %v5987
    %6010 = vmatprep.subr.bf16.mxu0 0
    %6011 = vmatpush2.bf16.msra.mxu0 0
    %6012 = vmatprep.subr.bf16.mxu0 0
    %6013 = vmatpush2.bf16.msra.mxu0 0
    %6014 = vmatprep.subr.bf16.mxu0 0
    %6015 = vmatpush2.bf16.msra.mxu0 0
    %6016 = vmatprep.subr.bf16.mxu0 0
    %6017 = vmatpush2.bf16.msra.mxu0 0
    %6018 = vmatprep.subr.bf16.mxu0 0
    %6019 = vmatpush2.bf16.msra.mxu0 0
    %6020 = vmatprep.subr.bf16.mxu0 0
    %6021 = vmatpush2.bf16.msra.mxu0 0
    %6022 = vmatprep.subr.bf16.mxu0 0
    %6023 = vmatpush2.bf16.msra.mxu0 0
    %6024 = vmatprep.subr.bf16.mxu0 0
    %6025 = vmatpush2.bf16.msra.mxu0 0
    %6026 = vmatprep.mubr.bf16.mxu0 0
    %6027 = vmatmul.mubr.bf16.gmra.mxu0 %v5992
    %v6028 = vpop.f32.mrf.mxu0
    %v6029 = vadd.f32 0.0, %v6028
    %v6030 = vpop.f32.mrf.mxu0
    %v6031 = vpop.f32.mrf.mxu0
    %v6032 = vadd.f32 0.0, %v6031
    %v6033 = vpop.f32.mrf.mxu0
    %6034 = vdwg.mxu0
    %v6035 = vadd.f32 %v5752, %v6029
    %v6036 = vadd.f32 %v5755, %v6032
    %6037 = vrot.lane.b32.xlu0 %v5202, 32
    %v6038 = vpop.permute.xlu0 %6037
    %6039 = vrot.lane.b32.xlu0 %v5208, 32
    %v6040 = vpop.permute.xlu0 %6039
    %v6042 = vsel %vm507, %v6038, 0
    %v6045 = vsel %vm507, %v6040, 0
    %6047 = vmatprep.subr.bf16.mxu0 0
    %6048 = vmatpush1.bf16.xpose.msra.mxu0 0
    %6049 = vmatprep.subr.bf16.mxu0 0
    %6050 = vmatpush1.bf16.xpose.msra.mxu0 0
    %6051 = vmatprep.subr.bf16.mxu0 0
    %6052 = vmatpush1.bf16.xpose.msra.mxu0 0
    %6053 = vmatprep.subr.bf16.mxu0 0
    %6054 = vmatpush1.bf16.xpose.msra.mxu0 0
    %6055 = vmatprep.subr.bf16.mxu0 0
    %6056 = vmatpush1.bf16.xpose.msra.mxu0 0
    %6057 = vmatprep.subr.bf16.mxu0 0
    %6058 = vmatpush1.bf16.xpose.msra.mxu0 0
    %6059 = vmatprep.subr.bf16.mxu0 0
    %6060 = vmatpush1.bf16.xpose.msra.mxu0 0
    %6061 = vmatprep.subr.bf16.mxu0 0
    %6062 = vmatpush1.bf16.xpose.msra.mxu0 %v6045
    %6063 = vmatprep.subr.bf16.mxu0 0
    %6064 = vmatpush2.bf16.xpose.msra.mxu0 0
    %6065 = vmatprep.subr.bf16.mxu0 0
    %6066 = vmatpush2.bf16.xpose.msra.mxu0 0
    %6067 = vmatprep.subr.bf16.mxu0 0
    %6068 = vmatpush2.bf16.xpose.msra.mxu0 0
    %6069 = vmatprep.subr.bf16.mxu0 0
    %6070 = vmatpush2.bf16.xpose.msra.mxu0 0
    %6071 = vmatprep.subr.bf16.mxu0 0
    %6072 = vmatpush2.bf16.xpose.msra.mxu0 0
    %6073 = vmatprep.subr.bf16.mxu0 0
    %6074 = vmatpush2.bf16.xpose.msra.mxu0 0
    %6075 = vmatprep.subr.bf16.mxu0 0
    %6076 = vmatpush2.bf16.xpose.msra.mxu0 0
    %6077 = vmatprep.subr.bf16.mxu0 0
    %6078 = vmatpush2.bf16.xpose.msra.mxu0 0
    %6079 = vmatprep.mubr.bf16.mxu0 0
    %6080 = vmatmul.mubr.bf16.gmra.mxu0 %v6042
    %v6081 = vpop.f32.mrf.mxu0
    %v6082 = vadd.f32 %v1954, %v6081
    %v6083 = vpop.f32.mrf.mxu0
    %v6084 = vpop.f32.mrf.mxu0
    %v6085 = vpop.f32.mrf.mxu0
    %6086 = vdwg.mxu0
    %6087 = vrot.lane.b32.xlu0 %v5203, 32
    %v6088 = vpop.permute.xlu0 %6087
    %6089 = vrot.lane.b32.xlu0 %v5209, 32
    %v6090 = vpop.permute.xlu0 %6089
    %v6092 = vsel %vm507, %v6088, 0
    %v6095 = vsel %vm507, %v6090, 0
    %6097 = vmatprep.subr.bf16.mxu0 0
    %6098 = vmatpush1.bf16.xpose.msra.mxu0 0
    %6099 = vmatprep.subr.bf16.mxu0 0
    %6100 = vmatpush1.bf16.xpose.msra.mxu0 0
    %6101 = vmatprep.subr.bf16.mxu0 0
    %6102 = vmatpush1.bf16.xpose.msra.mxu0 0
    %6103 = vmatprep.subr.bf16.mxu0 0
    %6104 = vmatpush1.bf16.xpose.msra.mxu0 0
    %6105 = vmatprep.subr.bf16.mxu0 0
    %6106 = vmatpush1.bf16.xpose.msra.mxu0 0
    %6107 = vmatprep.subr.bf16.mxu0 0
    %6108 = vmatpush1.bf16.xpose.msra.mxu0 0
    %6109 = vmatprep.subr.bf16.mxu0 0
    %6110 = vmatpush1.bf16.xpose.msra.mxu0 0
    %6111 = vmatprep.subr.bf16.mxu0 0
    %6112 = vmatpush1.bf16.xpose.msra.mxu0 %v6095
    %6113 = vmatprep.subr.bf16.mxu0 0
    %6114 = vmatpush2.bf16.xpose.msra.mxu0 0
    %6115 = vmatprep.subr.bf16.mxu0 0
    %6116 = vmatpush2.bf16.xpose.msra.mxu0 0
    %6117 = vmatprep.subr.bf16.mxu0 0
    %6118 = vmatpush2.bf16.xpose.msra.mxu0 0
    %6119 = vmatprep.subr.bf16.mxu0 0
    %6120 = vmatpush2.bf16.xpose.msra.mxu0 0
    %6121 = vmatprep.subr.bf16.mxu0 0
    %6122 = vmatpush2.bf16.xpose.msra.mxu0 0
    %6123 = vmatprep.subr.bf16.mxu0 0
    %6124 = vmatpush2.bf16.xpose.msra.mxu0 0
    %6125 = vmatprep.subr.bf16.mxu0 0
    %6126 = vmatpush2.bf16.xpose.msra.mxu0 0
    %6127 = vmatprep.subr.bf16.mxu0 0
    %6128 = vmatpush2.bf16.xpose.msra.mxu0 0
    %6129 = vmatprep.mubr.bf16.mxu0 0
    %6130 = vmatmul.mubr.bf16.gmra.mxu0 %v6092
    %v6131 = vpop.f32.mrf.mxu0
    %v6132 = vadd.f32 %v1958, %v6131
    %v6133 = vpop.f32.mrf.mxu0
    %v6134 = vpop.f32.mrf.mxu0
    %v6135 = vpop.f32.mrf.mxu0
    %6136 = vdwg.mxu0
    %v6137 = vsel %vm600, %v6082, -inf
    %6138 = vmax.xlane.f32.xlu0 %v6137
    %v6139 = vpop.xlane.xlu0 %6138
    %v6140 = vsel %vm600, %v6132, -inf
    %6141 = vmax.xlane.f32.xlu0 %v6140
    %v6142 = vpop.xlane.xlu0 %6141
    %v6143 = vsub.f32 %v6082, %v6139
    %v6144 = vsub.f32 %v6132, %v6142
    %v6145 = vmul.f32 %v6143, 1.442695
    %v6146 = vpow.pop %v6145
    %v6147 = vmul.f32 %v6144, 1.442695
    %v6148 = vpow.pop %v6147
    %v6149 = vsel %vm600, %v6146, 0.0
    %6150 = vadd.xlane.f32.xlu0 %v6149
    %v6151 = vpop.xlane.xlu0 %6150
    %v6152 = vsel %vm600, %v6148, 0.0
    %6153 = vadd.xlane.f32.xlu0 %v6152
    %v6154 = vpop.xlane.xlu0 %6153
    %v6155 = vrcp.pop %v6151
    %v6156 = vrcp.pop %v6154
    %v6157 = vmul.f32 %v6146, %v6155
    %v6158 = vmul.f32 %v6148, %v6156
    %v6159 = vpack.c.bf16 %v6157, %v6157
    %v6160 = vpack.c.bf16 %v6158, %v6158
    %6161 = vrot.lane.b32.xlu0 %v5214, 32
    %v6162 = vpop.permute.xlu0 %6161
    %v6164 = vsel %vm600, %v6159, 0
    %v6167 = vsel %vm628, %v6162, 0
    %6169 = vmatprep.subr.bf16.mxu0 0
    %6170 = vmatpush1.bf16.msra.mxu0 0
    %6171 = vmatprep.subr.bf16.mxu0 0
    %6172 = vmatpush1.bf16.msra.mxu0 0
    %6173 = vmatprep.subr.bf16.mxu0 0
    %6174 = vmatpush1.bf16.msra.mxu0 0
    %6175 = vmatprep.subr.bf16.mxu0 0
    %6176 = vmatpush1.bf16.msra.mxu0 0
    %6177 = vmatprep.subr.bf16.mxu0 0
    %6178 = vmatpush1.bf16.msra.mxu0 0
    %6179 = vmatprep.subr.bf16.mxu0 0
    %6180 = vmatpush1.bf16.msra.mxu0 0
    %6181 = vmatprep.subr.bf16.mxu0 0
    %6182 = vmatpush1.bf16.msra.mxu0 0
    %6183 = vmatprep.subr.bf16.mxu0 0
    %6184 = vmatpush1.bf16.msra.mxu0 %v6167
    %6185 = vmatprep.subr.bf16.mxu0 0
    %6186 = vmatpush2.bf16.msra.mxu0 0
    %6187 = vmatprep.subr.bf16.mxu0 0
    %6188 = vmatpush2.bf16.msra.mxu0 0
    %6189 = vmatprep.subr.bf16.mxu0 0
    %6190 = vmatpush2.bf16.msra.mxu0 0
    %6191 = vmatprep.subr.bf16.mxu0 0
    %6192 = vmatpush2.bf16.msra.mxu0 0
    %6193 = vmatprep.subr.bf16.mxu0 0
    %6194 = vmatpush2.bf16.msra.mxu0 0
    %6195 = vmatprep.subr.bf16.mxu0 0
    %6196 = vmatpush2.bf16.msra.mxu0 0
    %6197 = vmatprep.subr.bf16.mxu0 0
    %6198 = vmatpush2.bf16.msra.mxu0 0
    %6199 = vmatprep.subr.bf16.mxu0 0
    %6200 = vmatpush2.bf16.msra.mxu0 0
    %6201 = vmatprep.mubr.bf16.mxu0 0
    %6202 = vmatmul.mubr.bf16.gmra.mxu0 %v6164
    %v6203 = vpop.f32.mrf.mxu0
    %v6204 = vadd.f32 0.0, %v6203
    %v6205 = vpop.f32.mrf.mxu0
    %v6206 = vpop.f32.mrf.mxu0
    %v6207 = vpop.f32.mrf.mxu0
    %6208 = vdwg.mxu0
    %6209 = vrot.lane.b32.xlu0 %v5215, 32
    %v6210 = vpop.permute.xlu0 %6209
    %v6212 = vsel %vm600, %v6160, 0
    %v6215 = vsel %vm628, %v6210, 0
    %6217 = vmatprep.subr.bf16.mxu0 0
    %6218 = vmatpush1.bf16.msra.mxu0 0
    %6219 = vmatprep.subr.bf16.mxu0 0
    %6220 = vmatpush1.bf16.msra.mxu0 0
    %6221 = vmatprep.subr.bf16.mxu0 0
    %6222 = vmatpush1.bf16.msra.mxu0 0
    %6223 = vmatprep.subr.bf16.mxu0 0
    %6224 = vmatpush1.bf16.msra.mxu0 0
    %6225 = vmatprep.subr.bf16.mxu0 0
    %6226 = vmatpush1.bf16.msra.mxu0 0
    %6227 = vmatprep.subr.bf16.mxu0 0
    %6228 = vmatpush1.bf16.msra.mxu0 0
    %6229 = vmatprep.subr.bf16.mxu0 0
    %6230 = vmatpush1.bf16.msra.mxu0 0
    %6231 = vmatprep.subr.bf16.mxu0 0
    %6232 = vmatpush1.bf16.msra.mxu0 %v6215
    %6233 = vmatprep.subr.bf16.mxu0 0
    %6234 = vmatpush2.bf16.msra.mxu0 0
    %6235 = vmatprep.subr.bf16.mxu0 0
    %6236 = vmatpush2.bf16.msra.mxu0 0
    %6237 = vmatprep.subr.bf16.mxu0 0
    %6238 = vmatpush2.bf16.msra.mxu0 0
    %6239 = vmatprep.subr.bf16.mxu0 0
    %6240 = vmatpush2.bf16.msra.mxu0 0
    %6241 = vmatprep.subr.bf16.mxu0 0
    %6242 = vmatpush2.bf16.msra.mxu0 0
    %6243 = vmatprep.subr.bf16.mxu0 0
    %6244 = vmatpush2.bf16.msra.mxu0 0
    %6245 = vmatprep.subr.bf16.mxu0 0
    %6246 = vmatpush2.bf16.msra.mxu0 0
    %6247 = vmatprep.subr.bf16.mxu0 0
    %6248 = vmatpush2.bf16.msra.mxu0 0
    %6249 = vmatprep.mubr.bf16.mxu0 0
    %6250 = vmatmul.mubr.bf16.gmra.mxu0 %v6212
    %v6251 = vpop.f32.mrf.mxu0
    %v6252 = vadd.f32 0.0, %v6251
    %v6253 = vpop.f32.mrf.mxu0
    %v6254 = vpop.f32.mrf.mxu0
    %v6255 = vpop.f32.mrf.mxu0
    %6256 = vdwg.mxu0
    %v6257 = vpack.c.bf16 %v6252, %v6204
    %v6262 = vunpack.c.l.b16 %v5194
    %v6263 = vunpack.c.l.b16 %v5195
    %v6264 = vunpack.c.l.b16 %v5196
    %v6265 = vunpack.c.l.b16 %v5197
    %v6266 = vpack.c.b16 %v6263, %v6262
    %v6267 = vpack.c.b16 %v6265, %v6264
    %v6271 = vsel %vm507, %v6257, 0
    %6273 = vmatprep.subr.bf16.mxu0 0
    %6274 = vmatpush1.bf16.msra.mxu0 0
    %6275 = vmatprep.subr.bf16.mxu0 0
    %6276 = vmatpush1.bf16.msra.mxu0 0
    %6277 = vmatprep.subr.bf16.mxu0 0
    %6278 = vmatpush1.bf16.msra.mxu0 0
    %6279 = vmatprep.subr.bf16.mxu0 0
    %6280 = vmatpush1.bf16.msra.mxu0 0
    %6281 = vmatprep.subr.bf16.mxu0 0
    %6282 = vmatpush1.bf16.msra.mxu0 0
    %6283 = vmatprep.subr.bf16.mxu0 0
    %6284 = vmatpush1.bf16.msra.mxu0 0
    %6285 = vmatprep.subr.bf16.mxu0 0
    %6286 = vmatpush1.bf16.msra.mxu0 %v6267
    %6287 = vmatprep.subr.bf16.mxu0 0
    %6288 = vmatpush1.bf16.msra.mxu0 %v6266
    %6289 = vmatprep.subr.bf16.mxu0 0
    %6290 = vmatpush2.bf16.msra.mxu0 0
    %6291 = vmatprep.subr.bf16.mxu0 0
    %6292 = vmatpush2.bf16.msra.mxu0 0
    %6293 = vmatprep.subr.bf16.mxu0 0
    %6294 = vmatpush2.bf16.msra.mxu0 0
    %6295 = vmatprep.subr.bf16.mxu0 0
    %6296 = vmatpush2.bf16.msra.mxu0 0
    %6297 = vmatprep.subr.bf16.mxu0 0
    %6298 = vmatpush2.bf16.msra.mxu0 0
    %6299 = vmatprep.subr.bf16.mxu0 0
    %6300 = vmatpush2.bf16.msra.mxu0 0
    %6301 = vmatprep.subr.bf16.mxu0 0
    %6302 = vmatpush2.bf16.msra.mxu0 0
    %6303 = vmatprep.subr.bf16.mxu0 0
    %6304 = vmatpush2.bf16.msra.mxu0 0
    %6305 = vmatprep.mubr.bf16.mxu0 0
    %6306 = vmatmul.mubr.bf16.gmra.mxu0 %v6271
    %v6307 = vpop.f32.mrf.mxu0
    %v6308 = vadd.f32 0.0, %v6307
    %v6309 = vpop.f32.mrf.mxu0
    %v6310 = vpop.f32.mrf.mxu0
    %v6311 = vadd.f32 0.0, %v6310
    %v6312 = vpop.f32.mrf.mxu0
    %6313 = vdwg.mxu0
    %v6314 = vadd.f32 %v6035, %v6308
    %v6315 = vadd.f32 %v6036, %v6311
    %v6316 = vadd.f32 %v4880, %v6314
    %v6317 = vadd.f32 %v4881, %v6315
    %v6318 = vlaneseq
    %v6319 = vshrl.u32 %v6318, 7
    %v6320 = vsub.s32 7, %v6319
    %v6321 = vrot.slane %v3437, %v6320
    %v6322 = vadd.f32 %v6316, %v6321
    %v6323 = vadd.f32 %v6317, %v6321
    %6324 = vadd.xlane.f32.xlu0 %v6322
    %v6325 = vpop.xlane.xlu0 %6324
    %6326 = vadd.xlane.f32.xlu0 %v6323
    %v6327 = vpop.xlane.xlu0 %6326
    %v6328 = vmul.f32 %v6325, %v177
    %v6329 = vmul.f32 %v6327, %v177
    %v6330 = vsub.f32 %v6322, %v6328
    %v6331 = vsub.f32 %v6323, %v6329
    %v6332 = vmul.f32 %v6330, %v6330
    %v6333 = vmul.f32 %v6331, %v6331
    %6334 = vadd.xlane.f32.xlu0 %v6332
    %v6335 = vpop.xlane.xlu0 %6334
    %6336 = vadd.xlane.f32.xlu0 %v6333
    %v6337 = vpop.xlane.xlu0 %6336
    %v6338 = vmul.f32 %v6335, %v177
    %v6339 = vmul.f32 %v6337, %v177
    %v6340 = vadd.f32 %v6338, 1e-05
    %v6341 = vadd.f32 %v6339, 1e-05
    %v6342 = vrsqrt.pop %v6340
    %v6343 = vrsqrt.pop %v6341
    %v6344 = vmul.f32 %v6330, %v6342
    %v6345 = vmul.f32 %v6331, %v6343
    %v6346 = vlaneseq
    %v6347 = vshrl.u32 %v6346, 7
    %v6348 = vsub.s32 5, %v6347
    %v6349 = vrot.slane %v3438, %v6348
    %v6350 = vmul.f32 %v6344, %v6349
    %v6351 = vmul.f32 %v6345, %v6349
    %v6352 = vlaneseq
    %v6353 = vshrl.u32 %v6352, 7
    %v6354 = vsub.s32 6, %v6353
    %v6355 = vrot.slane %v3438, %v6354
    %v6356 = vadd.f32 %v6350, %v6355
    %v6357 = vadd.f32 %v6351, %v6355
    %v6358 = vpack.c.bf16 %v6357, %v6356
    %s6359 = scalar_lea.vmem [#allocation11], 128
    %v6360 = vld [vmem:[%s6359] sm:$0xff]
    %v6361 = vld [vmem:[%s6359 + $0x8] sm:$0xff]
    %v6362 = vld [vmem:[%s6359 + $0x10] sm:$0xff]
    %v6363 = vld [vmem:[%s6359 + $0x18] sm:$0xff]
    %v6364 = vld [vmem:[%s6359 + $0x20] sm:$0xff]
    %v6365 = vld [vmem:[%s6359 + $0x28] sm:$0xff]
    %v6366 = vld [vmem:[%s6359 + $0x30] sm:$0xff]
    %v6367 = vld [vmem:[%s6359 + $0x38] sm:$0xff]
    %v6368 = vld [vmem:[%s6359 + $0x40] sm:$0xff]
    %v6369 = vld [vmem:[%s6359 + $0x48] sm:$0xff]
    %v6370 = vld [vmem:[%s6359 + $0x50] sm:$0xff]
    %v6371 = vld [vmem:[%s6359 + $0x58] sm:$0xff]
    %v6372 = vld [vmem:[%s6359 + $0x60] sm:$0xff]
    %v6373 = vld [vmem:[%s6359 + $0x68] sm:$0xff]
    %v6374 = vld [vmem:[%s6359 + $0x70] sm:$0xff]
    %v6375 = vld [vmem:[%s6359 + $0x78] sm:$0xff]
    %s6376 = scalar_lea.vmem %s13, 2
    %v6377 = vld [vmem:[%s6376] sm:$0x3]
    %v6379 = vlaneseq
    %v6380 = vshrl.u32 %v6379, 7
    %v6381 = vsub.s32 0, %v6380
    %v6382 = vrot.slane %v6377, %v6381
    %v6383 = vlaneseq
    %v6384 = vshrl.u32 %v6383, 7
    %v6385 = vsub.s32 1, %v6384
    %v6386 = vrot.slane %v6377, %v6385
    %v6405 = vunpack.c.l.b16 %v6360
    %v6406 = vunpack.c.h.b16 %v6360
    %v6407 = vunpack.c.l.b16 %v6361
    %v6408 = vunpack.c.h.b16 %v6361
    %v6409 = vunpack.c.l.b16 %v6362
    %v6410 = vunpack.c.h.b16 %v6362
    %v6411 = vunpack.c.l.b16 %v6363
    %v6412 = vunpack.c.h.b16 %v6363
    %v6413 = vunpack.c.l.b16 %v6364
    %v6414 = vunpack.c.h.b16 %v6364
    %v6415 = vunpack.c.l.b16 %v6365
    %v6416 = vunpack.c.h.b16 %v6365
    %v6417 = vunpack.c.l.b16 %v6366
    %v6418 = vunpack.c.h.b16 %v6366
    %v6419 = vunpack.c.l.b16 %v6367
    %v6420 = vunpack.c.h.b16 %v6367
    %v6421 = vunpack.c.l.b16 %v6368
    %v6422 = vunpack.c.h.b16 %v6368
    %v6423 = vunpack.c.l.b16 %v6369
    %v6424 = vunpack.c.h.b16 %v6369
    %v6425 = vunpack.c.l.b16 %v6370
    %v6426 = vunpack.c.h.b16 %v6370
    %v6427 = vunpack.c.l.b16 %v6371
    %v6428 = vunpack.c.h.b16 %v6371
    %v6429 = vunpack.c.l.b16 %v6372
    %v6430 = vunpack.c.h.b16 %v6372
    %v6431 = vunpack.c.l.b16 %v6373
    %v6432 = vunpack.c.h.b16 %v6373
    %v6433 = vunpack.c.l.b16 %v6374
    %v6434 = vunpack.c.h.b16 %v6374
    %v6435 = vunpack.c.l.b16 %v6375
    %v6436 = vunpack.c.h.b16 %v6375
    %v6437 = vpack.c.b16 %v6407, %v6405
    %v6438 = vpack.c.b16 %v6408, %v6406
    %v6439 = vpack.c.b16 %v6411, %v6409
    %v6440 = vpack.c.b16 %v6412, %v6410
    %v6441 = vpack.c.b16 %v6415, %v6413
    %v6442 = vpack.c.b16 %v6416, %v6414
    %v6443 = vpack.c.b16 %v6419, %v6417
    %v6444 = vpack.c.b16 %v6420, %v6418
    %v6445 = vpack.c.b16 %v6423, %v6421
    %v6446 = vpack.c.b16 %v6424, %v6422
    %v6447 = vpack.c.b16 %v6427, %v6425
    %v6448 = vpack.c.b16 %v6428, %v6426
    %v6449 = vpack.c.b16 %v6431, %v6429
    %v6450 = vpack.c.b16 %v6432, %v6430
    %v6451 = vpack.c.b16 %v6435, %v6433
    %v6452 = vpack.c.b16 %v6436, %v6434
    %6469 = vmatprep.subr.bf16.mxu0 %v6452
    %6470 = vmatpush1.bf16.msra.mxu0 %v6451
    %6471 = vmatprep.subr.bf16.mxu0 %v6450
    %6472 = vmatpush1.bf16.msra.mxu0 %v6449
    %6473 = vmatprep.subr.bf16.mxu0 %v6448
    %6474 = vmatpush1.bf16.msra.mxu0 %v6447
    %6475 = vmatprep.subr.bf16.mxu0 %v6446
    %6476 = vmatpush1.bf16.msra.mxu0 %v6445
    %6477 = vmatprep.subr.bf16.mxu0 %v6444
    %6478 = vmatpush1.bf16.msra.mxu0 %v6443
    %6479 = vmatprep.subr.bf16.mxu0 %v6442
    %6480 = vmatpush1.bf16.msra.mxu0 %v6441
    %6481 = vmatprep.subr.bf16.mxu0 %v6440
    %6482 = vmatpush1.bf16.msra.mxu0 %v6439
    %6483 = vmatprep.subr.bf16.mxu0 %v6438
    %6484 = vmatpush1.bf16.msra.mxu0 %v6437
    %6485 = vmatprep.subr.bf16.mxu0 0
    %6486 = vmatpush2.bf16.msra.mxu0 0
    %6487 = vmatprep.subr.bf16.mxu0 0
    %6488 = vmatpush2.bf16.msra.mxu0 0
    %6489 = vmatprep.subr.bf16.mxu0 0
    %6490 = vmatpush2.bf16.msra.mxu0 0
    %6491 = vmatprep.subr.bf16.mxu0 0
    %6492 = vmatpush2.bf16.msra.mxu0 0
    %6493 = vmatprep.subr.bf16.mxu0 0
    %6494 = vmatpush2.bf16.msra.mxu0 0
    %6495 = vmatprep.subr.bf16.mxu0 0
    %6496 = vmatpush2.bf16.msra.mxu0 0
    %6497 = vmatprep.subr.bf16.mxu0 0
    %6498 = vmatpush2.bf16.msra.mxu0 0
    %6499 = vmatprep.subr.bf16.mxu0 0
    %6500 = vmatpush2.bf16.msra.mxu0 0
    %6501 = vmatprep.mubr.bf16.mxu0 0
    %6502 = vmatmul.mubr.bf16.gmra.mxu0 %v6358
    %v6503 = vpop.f32.mrf.mxu0
    %v6504 = vadd.f32 %v6382, %v6503
    %v6505 = vpop.f32.mrf.mxu0
    %v6506 = vadd.f32 %v6386, %v6505
    %v6507 = vpop.f32.mrf.mxu0
    %v6508 = vadd.f32 %v6382, %v6507
    %v6509 = vpop.f32.mrf.mxu0
    %v6510 = vadd.f32 %v6386, %v6509
    %6511 = vdwg.mxu0
    %v6512 = vmax.f32 %v6504, 0.0
    %v6513 = vmax.f32 %v6506, 0.0
    %v6514 = vmax.f32 %v6508, 0.0
    %v6515 = vmax.f32 %v6510, 0.0
    %v6516 = vpack.c.bf16 %v6514, %v6512
    %v6517 = vpack.c.bf16 %v6515, %v6513
    %s6518 = scalar_lea.vmem [#allocation13], 128
    %v6519 = vld [vmem:[%s6518] sm:$0xf]
    %v6520 = vld [vmem:[%s6518 + $0x4] sm:$0xf]
    %v6521 = vld [vmem:[%s6518 + $0x8] sm:$0xf]
    %v6522 = vld [vmem:[%s6518 + $0xc] sm:$0xf]
    %v6523 = vld [vmem:[%s6518 + $0x10] sm:$0xf]
    %v6524 = vld [vmem:[%s6518 + $0x14] sm:$0xf]
    %v6525 = vld [vmem:[%s6518 + $0x18] sm:$0xf]
    %v6526 = vld [vmem:[%s6518 + $0x1c] sm:$0xf]
    %v6527 = vld [vmem:[%s6518 + $0x20] sm:$0xf]
    %v6528 = vld [vmem:[%s6518 + $0x24] sm:$0xf]
    %v6529 = vld [vmem:[%s6518 + $0x28] sm:$0xf]
    %v6530 = vld [vmem:[%s6518 + $0x2c] sm:$0xf]
    %v6531 = vld [vmem:[%s6518 + $0x30] sm:$0xf]
    %v6532 = vld [vmem:[%s6518 + $0x34] sm:$0xf]
    %v6533 = vld [vmem:[%s6518 + $0x38] sm:$0xf]
    %v6534 = vld [vmem:[%s6518 + $0x3c] sm:$0xf]
    %v6535 = vld [vmem:[%s6518 + $0x40] sm:$0xf]
    %v6536 = vld [vmem:[%s6518 + $0x44] sm:$0xf]
    %v6537 = vld [vmem:[%s6518 + $0x48] sm:$0xf]
    %v6538 = vld [vmem:[%s6518 + $0x4c] sm:$0xf]
    %v6539 = vld [vmem:[%s6518 + $0x50] sm:$0xf]
    %v6540 = vld [vmem:[%s6518 + $0x54] sm:$0xf]
    %v6541 = vld [vmem:[%s6518 + $0x58] sm:$0xf]
    %v6542 = vld [vmem:[%s6518 + $0x5c] sm:$0xf]
    %v6543 = vld [vmem:[%s6518 + $0x60] sm:$0xf]
    %v6544 = vld [vmem:[%s6518 + $0x64] sm:$0xf]
    %v6545 = vld [vmem:[%s6518 + $0x68] sm:$0xf]
    %v6546 = vld [vmem:[%s6518 + $0x6c] sm:$0xf]
    %v6547 = vld [vmem:[%s6518 + $0x70] sm:$0xf]
    %v6548 = vld [vmem:[%s6518 + $0x74] sm:$0xf]
    %v6549 = vld [vmem:[%s6518 + $0x78] sm:$0xf]
    %v6550 = vld [vmem:[%s6518 + $0x7c] sm:$0xf]
    %v6551 = vlaneseq
    %v6552 = vshrl.u32 %v6551, 7
    %v6553 = vsub.s32 0, %v6552
    %v6554 = vrot.slane %v3438, %v6553
    %v6587 = vunpack.c.l.b16 %v6519
    %v6588 = vunpack.c.l.b16 %v6520
    %v6589 = vunpack.c.l.b16 %v6521
    %v6590 = vunpack.c.l.b16 %v6522
    %v6591 = vunpack.c.l.b16 %v6523
    %v6592 = vunpack.c.l.b16 %v6524
    %v6593 = vunpack.c.l.b16 %v6525
    %v6594 = vunpack.c.l.b16 %v6526
    %v6595 = vunpack.c.l.b16 %v6527
    %v6596 = vunpack.c.l.b16 %v6528
    %v6597 = vunpack.c.l.b16 %v6529
    %v6598 = vunpack.c.l.b16 %v6530
    %v6599 = vunpack.c.l.b16 %v6531
    %v6600 = vunpack.c.l.b16 %v6532
    %v6601 = vunpack.c.l.b16 %v6533
    %v6602 = vunpack.c.l.b16 %v6534
    %v6603 = vunpack.c.l.b16 %v6535
    %v6604 = vunpack.c.l.b16 %v6536
    %v6605 = vunpack.c.l.b16 %v6537
    %v6606 = vunpack.c.l.b16 %v6538
    %v6607 = vunpack.c.l.b16 %v6539
    %v6608 = vunpack.c.l.b16 %v6540
    %v6609 = vunpack.c.l.b16 %v6541
    %v6610 = vunpack.c.l.b16 %v6542
    %v6611 = vunpack.c.l.b16 %v6543
    %v6612 = vunpack.c.l.b16 %v6544
    %v6613 = vunpack.c.l.b16 %v6545
    %v6614 = vunpack.c.l.b16 %v6546
    %v6615 = vunpack.c.l.b16 %v6547
    %v6616 = vunpack.c.l.b16 %v6548
    %v6617 = vunpack.c.l.b16 %v6549
    %v6618 = vunpack.c.l.b16 %v6550
    %v6619 = vpack.c.b16 %v6588, %v6587
    %v6620 = vpack.c.b16 %v6590, %v6589
    %v6621 = vpack.c.b16 %v6592, %v6591
    %v6622 = vpack.c.b16 %v6594, %v6593
    %v6623 = vpack.c.b16 %v6596, %v6595
    %v6624 = vpack.c.b16 %v6598, %v6597
    %v6625 = vpack.c.b16 %v6600, %v6599
    %v6626 = vpack.c.b16 %v6602, %v6601
    %v6627 = vpack.c.b16 %v6604, %v6603
    %v6628 = vpack.c.b16 %v6606, %v6605
    %v6629 = vpack.c.b16 %v6608, %v6607
    %v6630 = vpack.c.b16 %v6610, %v6609
    %v6631 = vpack.c.b16 %v6612, %v6611
    %v6632 = vpack.c.b16 %v6614, %v6613
    %v6633 = vpack.c.b16 %v6616, %v6615
    %v6634 = vpack.c.b16 %v6618, %v6617
    %6651 = vmatprep.subr.bf16.mxu0 0
    %6652 = vmatpush1.bf16.msra.mxu0 %v6626
    %6653 = vmatprep.subr.bf16.mxu0 0
    %6654 = vmatpush1.bf16.msra.mxu0 %v6625
    %6655 = vmatprep.subr.bf16.mxu0 0
    %6656 = vmatpush1.bf16.msra.mxu0 %v6624
    %6657 = vmatprep.subr.bf16.mxu0 0
    %6658 = vmatpush1.bf16.msra.mxu0 %v6623
    %6659 = vmatprep.subr.bf16.mxu0 0
    %6660 = vmatpush1.bf16.msra.mxu0 %v6622
    %6661 = vmatprep.subr.bf16.mxu0 0
    %6662 = vmatpush1.bf16.msra.mxu0 %v6621
    %6663 = vmatprep.subr.bf16.mxu0 0
    %6664 = vmatpush1.bf16.msra.mxu0 %v6620
    %6665 = vmatprep.subr.bf16.mxu0 0
    %6666 = vmatpush1.bf16.msra.mxu0 %v6619
    %6667 = vmatprep.subr.bf16.mxu0 0
    %6668 = vmatpush2.bf16.msra.mxu0 %v6634
    %6669 = vmatprep.subr.bf16.mxu0 0
    %6670 = vmatpush2.bf16.msra.mxu0 %v6633
    %6671 = vmatprep.subr.bf16.mxu0 0
    %6672 = vmatpush2.bf16.msra.mxu0 %v6632
    %6673 = vmatprep.subr.bf16.mxu0 0
    %6674 = vmatpush2.bf16.msra.mxu0 %v6631
    %6675 = vmatprep.subr.bf16.mxu0 0
    %6676 = vmatpush2.bf16.msra.mxu0 %v6630
    %6677 = vmatprep.subr.bf16.mxu0 0
    %6678 = vmatpush2.bf16.msra.mxu0 %v6629
    %6679 = vmatprep.subr.bf16.mxu0 0
    %6680 = vmatpush2.bf16.msra.mxu0 %v6628
    %6681 = vmatprep.subr.bf16.mxu0 0
    %6682 = vmatpush2.bf16.msra.mxu0 %v6627
    %6683 = vmatprep.mubr.bf16.mxu0 %v6517
    %6684 = vmatmul.mubr.bf16.gmra.mxu0 %v6516
    %v6685 = vpop.f32.mrf.mxu0
    %v6686 = vadd.f32 %v6554, %v6685
    %v6687 = vpop.f32.mrf.mxu0
    %v6688 = vpop.f32.mrf.mxu0
    %v6689 = vadd.f32 %v6554, %v6688
    %v6690 = vpop.f32.mrf.mxu0
    %6691 = vdwg.mxu0
    %v6692 = vadd.f32 %v6322, %v6686
    %v6693 = vadd.f32 %v6323, %v6689
    %v6694 = vld [vmem:[%s14] sm:$0x3]
    %6695 = vadd.xlane.f32.xlu0 %v6692
    %v6696 = vpop.xlane.xlu0 %6695
    %6697 = vadd.xlane.f32.xlu0 %v6693
    %v6698 = vpop.xlane.xlu0 %6697
    %v6699 = vmul.f32 %v6696, %v177
    %v6700 = vmul.f32 %v6698, %v177
    %v6701 = vsub.f32 %v6692, %v6699
    %v6702 = vsub.f32 %v6693, %v6700
    %v6703 = vmul.f32 %v6701, %v6701
    %v6704 = vmul.f32 %v6702, %v6702
    %6705 = vadd.xlane.f32.xlu0 %v6703
    %v6706 = vpop.xlane.xlu0 %6705
    %6707 = vadd.xlane.f32.xlu0 %v6704
    %v6708 = vpop.xlane.xlu0 %6707
    %v6709 = vmul.f32 %v6706, %v177
    %v6710 = vmul.f32 %v6708, %v177
    %v6711 = vadd.f32 %v6709, 1e-05
    %v6712 = vadd.f32 %v6710, 1e-05
    %v6713 = vrsqrt.pop %v6711
    %v6714 = vrsqrt.pop %v6712
    %v6715 = vmul.f32 %v6701, %v6713
    %v6716 = vmul.f32 %v6702, %v6714
    %v6717 = vlaneseq
    %v6718 = vshrl.u32 %v6717, 7
    %v6719 = vsub.s32 0, %v6718
    %v6720 = vrot.slane %v6694, %v6719
    %v6721 = vmul.f32 %v6715, %v6720
    %v6722 = vmul.f32 %v6716, %v6720
    %v6723 = vlaneseq
    %v6724 = vshrl.u32 %v6723, 7
    %v6725 = vsub.s32 1, %v6724
    %v6726 = vrot.slane %v6694, %v6725
    %v6727 = vadd.f32 %v6721, %v6726
    %v6728 = vadd.f32 %v6722, %v6726
    %6729 = vst [vmem:[#allocation14] sm:$0xff] %v6727
    %6730 = vst [vmem:[#allocation14 + $0x8] sm:$0xff] %v6728
    // Predicated region
    $region90: #{tpu_custom_call.1} parent=1 // pred_check
      _
    $region91: #{tpu_custom_call.1} parent=1 // pred_check_branch
      %6732 = sbr.rel (0) target = $region93
    $region92: #{tpu_custom_call.1} parent=1 // pred_region
      %s6734 = ssub.s32 256, 256
      %6735 = vsyncadd [#allocation4], %s6734
      %s6736 = sshll.u32 [#allocation14], 4
      %s6737 = int_to_ptr.vmem [resolvable:$true] %s6736
      %6742 = dma.vmem_to_hbm [thread:$0]  %s6737, 256, %s15, [#allocation4], 128, 128, 8
    $region93: #{tpu_custom_call.1} parent=1 // pred_fallthru
      _
    // Predicated region
    $region94: #{tpu_custom_call.1} parent=1 // pred_check
      _
    $region95: #{tpu_custom_call.1} parent=1 // pred_check_branch
      %6744 = sbr.rel (0) target = $region97
    $region96: #{tpu_custom_call.1} parent=1 // pred_region
      %6745 = dma.done [#allocation4], 256
    $region97: #{tpu_custom_call.1} parent=1 // pred_fallthru
      _
    %6746 = vsyncpa [#allocation3], 1
    %6747 = vsyncpa [#allocation6], 1
    %6748 = vsyncpa [#allocation9], 1
    %6749 = vsyncpa [#allocation12], 1
    %6750 = vsyncpa [#allocation4], 1

</llo_original>
